<compile_context>
chip_gen: v7x
topology: tpu7x:2x2x1
jax: 0.10.0
libtpu: 0.0.40
codegen_flags: <defaults>
</compile_context>

<pallas_src>
import functools

import jax
import jax.numpy as jnp
from jax.experimental import pallas as pl
from jax.experimental.pallas import tpu as pltpu


EXPANSION = 4


def _round_up(x, m):
    return ((x + m - 1) // m) * m


@functools.lru_cache(maxsize=None)
def _vmem_limit_bytes():
    """Per-generation VMEM budget: ~3/4 of physical, capped at 100 MiB.

    v7x (64 MiB physical) -> 48 MiB; v5e/v6e (128 MiB) -> 96 MiB.
    """
    cap = 64 * 1024 * 1024
    try:
        cap = int(pltpu.get_tpu_info().vmem_capacity_bytes)
    except Exception:
        pass
    return int(max(32 * 1024 * 1024, min(cap * 3 // 4, 100 * 1024 * 1024)))


def _default_tm():
    return 1024 if _vmem_limit_bytes() >= 80 * 1024 * 1024 else 512


def _pick_tile(dim, preferred, align):
    """Return (tile, padded_dim).

    Full-dim block when dim <= preferred (legal for any size: 'equal to the full array
    dim' satisfies the (8,128) rule and avoids all padding); otherwise the largest
    multiple of `align` <= preferred that divides dim; otherwise fall back to `align`
    with the dim padded up (rare for conv shapes).
    """
    if dim <= preferred:
        return dim, dim
    t = max(align, (preferred // align) * align)
    while t > align and dim % t != 0:
        t -= align
    if dim % t != 0:
        return align, _round_up(dim, align)
    return t, dim


def _pad2(x, rows, cols):
    """Zero-pad a 2-D array only when needed (no-op in the aligned common case)."""
    r, c = x.shape
    if (r, c) == (rows, cols):
        return x
    return jnp.zeros((rows, cols), x.dtype).at[:r, :c].set(x)


# ----------------------------- tiled matmul kernels -----------------------------

def _mm_kernel(a_ref, b_ref, o_ref, acc_ref, *, relu):
    @pl.when(pl.program_id(2) == 0)
    def _init():
        acc_ref[...] = jnp.zeros_like(acc_ref)

    acc_ref[...] += jnp.dot(a_ref[...], b_ref[...],
                            preferred_element_type=jnp.float32)

    @pl.when(pl.program_id(2) == pl.num_programs(2) - 1)
    def _flush():
        acc = acc_ref[...]
        if relu:
            acc = jnp.maximum(acc, 0.0)
        o_ref[...] = acc.astype(o_ref.dtype)


def matmul_pallas(a, b, *, relu=False, out_dtype=jnp.float32,
                  tm=None, tn=256, tk=512):
    """(M, K) @ (K, N): bf16 operands on the MXU with an f32 VMEM accumulator.

    Blocks cover the full K / N dims when small (no padding copy); larger dims use
    128-aligned tiles and only get zero-padded when no aligned divisor exists.
    """
    if tm is None:
        tm = _default_tm()
    M, K = a.shape
    K2, N = b.shape
    assert K == K2
    a = a.astype(jnp.bfloat16)
    b = b.astype(jnp.bfloat16)

    tm, Mp = _pick_tile(M, tm, 128)
    tn, Np = _pick_tile(N, tn, 128)
    tk, Kp = _pick_tile(K, tk, 128)

    a_p = _pad2(a, Mp, Kp)
    b_p = _pad2(b, Kp, Np)

    out = pl.pallas_call(
        functools.partial(_mm_kernel, relu=relu),
        out_shape=jax.ShapeDtypeStruct((Mp, Np), out_dtype),
        grid=(Mp // tm, Np // tn, Kp // tk),
        in_specs=[pl.BlockSpec((tm, tk), lambda i, j, k: (i, k)),
                  pl.BlockSpec((tk, tn), lambda i, j, k: (k, j))],
        out_specs=pl.BlockSpec((tm, tn), lambda i, j, k: (i, j)),
        scratch_shapes=[pltpu.VMEM((tm, tn), jnp.float32)],
        compiler_params=pltpu.CompilerParams(
            dimension_semantics=("parallel", "parallel", "arbitrary"),
            vmem_limit_bytes=_vmem_limit_bytes()),
        cost_estimate=pl.CostEstimate(
            flops=2 * Mp * Np * Kp,
            transcendentals=0,
            bytes_accessed=(a_p.size + b_p.size) * 2
                           + Mp * Np * jnp.dtype(out_dtype).itemsize),
    )(a_p, b_p)
    if (Mp, Np) != (M, N):
        out = out[:M, :N]
    return out


def _dual_mm_kernel(a1_ref, b1_ref, a2_ref, b2_ref, o_ref, *, relu):
    acc = jnp.dot(a1_ref[...], b1_ref[...], preferred_element_type=jnp.float32)
    acc = acc + jnp.dot(a2_ref[...], b2_ref[...], preferred_element_type=jnp.float32)
    if relu:
        acc = jnp.maximum(acc, 0.0)
    o_ref[...] = acc.astype(o_ref.dtype)


def dual_matmul_pallas(a1, b1, a2, b2, *, relu=True, out_dtype=jnp.float32,
                       tm=None, tn=256):
    """relu(a1 @ b1 + a2 @ b2) fused in a single MXU kernel.

    Replaces conv3 + shortcut-conv + residual-add + ReLU: one kernel launch, no f32
    residual HBM round trip. K1/K2 are loaded as full blocks (no K grid), which is
    fine for bottleneck channel counts (<= 2048); operands stream as bf16, f32 acc.
    """
    if tm is None:
        tm = _default_tm()
    M, K1 = a1.shape
    M2, K2 = a2.shape
    N = b1.shape[1]
    assert M == M2 and b1.shape[0] == K1 and b2.shape == (K2, N)

    a1 = a1.astype(jnp.bfloat16)
    a2 = a2.astype(jnp.bfloat16)
    b1 = b1.astype(jnp.bfloat16)
    b2 = b2.astype(jnp.bfloat16)

    tm, Mp = _pick_tile(M, tm, 128)
    tn, Np = _pick_tile(N, tn, 128)

    a1p = _pad2(a1, Mp, K1)
    a2p = _pad2(a2, Mp, K2)
    b1p = _pad2(b1, K1, Np)
    b2p = _pad2(b2, K2, Np)

    out = pl.pallas_call(
        functools.partial(_dual_mm_kernel, relu=relu),
        out_shape=jax.ShapeDtypeStruct((Mp, Np), out_dtype),
        grid=(Mp // tm, Np // tn),
        in_specs=[pl.BlockSpec((tm, K1), lambda i, j: (i, 0)),
                  pl.BlockSpec((K1, tn), lambda i, j: (0, j)),
                  pl.BlockSpec((tm, K2), lambda i, j: (i, 0)),
                  pl.BlockSpec((K2, tn), lambda i, j: (0, j))],
        out_specs=pl.BlockSpec((tm, tn), lambda i, j: (i, j)),
        compiler_params=pltpu.CompilerParams(
            dimension_semantics=("parallel", "parallel"),
            vmem_limit_bytes=_vmem_limit_bytes()),
        cost_estimate=pl.CostEstimate(
            flops=2 * Mp * Np * (K1 + K2),
            transcendentals=0,
            bytes_accessed=(a1p.size + a2p.size + b1p.size + b2p.size) * 2
                           + Mp * Np * jnp.dtype(out_dtype).itemsize),
    )(a1p, b1p, a2p, b2p)
    if (Mp, Np) != (M, N):
        out = out[:M, :N]
    return out


# ----------------------------- 3x3 conv (stride 1) ------------------------------

def _conv3x3_kernel(x_ref, w_ref, o_ref, *, row_len, wp, relu):
    # x_ref: (hp*wp, Cin) one zero-padded image flattened over (row, col); wp is a
    #        multiple of 8 so the ky*wp base offsets are sublane-aligned.
    # w_ref: (9, Cin, tn) tap-major weights for one Cout tile.
    # o_ref: (row_len, tn); columns [W, wp) of each output row are wrap garbage that
    #        the caller slices away once at the very end of the block.
    # The 9 tap matmuls are summed as values and stored once (no accumulator RMW passes).
    # TODO(synk): the kx in {1,2} slices are still sublane-misaligned; a pltpu.roll of
    # the aligned ky block would move that shift onto the XLU slot.
    acc = None
    for ky in range(3):
        base = ky * wp
        part = None
        for kx in range(3):
            patch = x_ref[base + kx:base + kx + row_len, :]
            d = jnp.dot(patch, w_ref[3 * ky + kx],
                        preferred_element_type=jnp.float32)
            part = d if part is None else part + d
        acc = part if acc is None else acc + part
    if relu:
        acc = jnp.maximum(acc, 0.0)
    o_ref[...] = acc.astype(o_ref.dtype)


def conv3x3_s1_pallas(x_nhwc, w_tap, *, relu=True, out_dtype=jnp.bfloat16, tn=256):
    """3x3 / stride 1 / padding 1 conv with NO HBM im2col (9 shifted matmuls in-kernel).

    Returns (out, wp8): out has shape (N, H*wp8, Cout) in a padded row layout; columns
    [W, wp8) of each row are garbage and must be sliced off by the consumer (done once
    at the very end of the bottleneck).
    """
    N, H, W, Cin = x_nhwc.shape
    assert w_tap.shape[:2] == (9, Cin)
    Cout = w_tap.shape[2]
    wp8 = _round_up(W + 2, 8)        # sublane-aligned padded row width (>= W + 2)
    hp = H + 3                       # 1 top + 2 bottom pad rows keep all shifts in bounds
    row_len = H * wp8

    x_pad = jnp.pad(x_nhwc.astype(jnp.bfloat16),
                    ((0, 0), (1, 2), (1, wp8 - W - 1), (0, 0))).reshape(N, hp * wp8, Cin)

    tn, cop = _pick_tile(Cout, tn, 128)
    w_p = w_tap.astype(jnp.bfloat16)
    if cop != Cout:
        w_p = jnp.zeros((9, Cin, cop), jnp.bfloat16).at[:, :, :Cout].set(w_p)

    out = pl.pallas_call(
        functools.partial(_conv3x3_kernel, row_len=row_len, wp=wp8, relu=relu),
        out_shape=jax.ShapeDtypeStruct((N, row_len, cop), out_dtype),
        grid=(N, cop // tn),
        in_specs=[pl.BlockSpec((None, hp * wp8, Cin), lambda n, j: (n, 0, 0)),
                  pl.BlockSpec((9, Cin, tn), lambda n, j: (0, 0, j))],
        out_specs=pl.BlockSpec((None, row_len, tn), lambda n, j: (n, 0, j)),
        compiler_params=pltpu.CompilerParams(
            dimension_semantics=("parallel", "parallel"),
            vmem_limit_bytes=_vmem_limit_bytes()),
        cost_estimate=pl.CostEstimate(
            flops=2 * N * row_len * 9 * Cin * cop,
            transcendentals=0,
            bytes_accessed=x_pad.size * 2 + w_p.size * 2
                           + N * row_len * cop * jnp.dtype(out_dtype).itemsize),
    )(x_pad, w_p)
    if cop != Cout:
        out = out[:, :, :Cout]
    return out, wp8


def _conv3x3_fits_vmem(H, W, cin, cout):
    """Whole-image blocking footprint guard (keeps v7x's 64 MiB physical VMEM safe)."""
    wp8 = _round_up(W + 2, 8)
    tn = min(256, cout)
    row_len = H * wp8
    per_step = ((H + 3) * wp8 * cin * 2      # input block (bf16)
                + 9 * cin * tn * 2           # weight block
                + row_len * tn * 2)          # output block (bf16)
    footprint = 2 * per_step + 2 * row_len * tn * 4   # double-buffer + f32 tap temporaries
    return footprint < int(0.6 * _vmem_limit_bytes())


def conv3x3_im2col_pallas(x_nhwc, w_tap, *, stride, relu=True, out_dtype=jnp.bfloat16):
    # TODO(synk): direct strided 3x3 kernel; this fallback materializes a bf16 im2col
    # matrix in HBM (~2.25x the input at stride 2) and is only used for stride > 1 or
    # when the whole-image 3x3 blocking would not fit in VMEM.
    N, H, W, Cin = x_nhwc.shape
    Cout = w_tap.shape[2]
    xp = jnp.pad(x_nhwc.astype(jnp.bfloat16), ((0, 0), (1, 1), (1, 1), (0, 0)))
    Ho = (H + 2 - 3) // stride + 1
    Wo = (W + 2 - 3) // stride + 1
    cols = []
    for ky in range(3):
        for kx in range(3):
            cols.append(xp[:, ky:ky + stride * Ho:stride,
                           kx:kx + stride * Wo:stride, :])
    a = jnp.stack(cols, axis=3).reshape(N * Ho * Wo, 9 * Cin)
    b = w_tap.reshape(9 * Cin, Cout)
    out = matmul_pallas(a, b, relu=relu, out_dtype=out_dtype)
    return out.reshape(N, Ho, Wo, Cout)


# ---------------------------------- Bottleneck -----------------------------------

def init_bottleneck_params(key, in_planes, planes):
    """He-initialized bias-free conv weights in PyTorch OIHW layout (f32)."""
    k1, k2, k3, ks = jax.random.split(key, 4)

    def _w(k, cout, cin, kh, kw):
        fan_in = cin * kh * kw
        std = (2.0 / fan_in) ** 0.5
        return std * jax.random.normal(k, (cout, cin, kh, kw), dtype=jnp.float32)

    return {
        "w1": _w(k1, planes, in_planes, 1, 1),                 # 1x1
        "w2": _w(k2, planes, planes, 3, 3),                    # 3x3, pad 1, stride s
        "w3": _w(k3, EXPANSION * planes, planes, 1, 1),        # 1x1
        "ws": _w(ks, EXPANSION * planes, in_planes, 1, 1),     # shortcut 1x1, stride s
    }


def prepare_params(raw):
    """Pre-transpose to kernel layouts and pre-cast to bf16 (hoisted out of forward)."""
    def _t1x1(w):   # (Cout, Cin, 1, 1) -> (Cin, Cout)
        return jnp.transpose(w[:, :, 0, 0], (1, 0)).astype(jnp.bfloat16)

    def _t3x3(w):   # (Cout, Cin, 3, 3) -> (9, Cin, Cout), tap-major (ky, kx)
        return jnp.transpose(w, (2, 3, 1, 0)).reshape(
            9, w.shape[1], w.shape[0]).astype(jnp.bfloat16)

    return {"w1": _t1x1(raw["w1"]), "w2": _t3x3(raw["w2"]),
            "w3": _t1x1(raw["w3"]), "ws": _t1x1(raw["ws"])}


def bottleneck_forward(x_nchw, params, t, *, stride=1):
    """Mirrors Bottleneck.forward(x, t) with norm_type=None (plain bias-free convs)."""
    # TODO(synk): DynamicConv2D's task-conditioned masking / GPM bookkeeping (the `t`
    # argument) is not reproducible from the provided code; `t` is accepted and ignored.
    del t
    x = jnp.transpose(x_nchw, (0, 2, 3, 1)).astype(jnp.bfloat16)   # NCHW -> NHWC, one cast
    N, H, W, cin = x.shape
    planes = params["w1"].shape[1]
    c4 = params["w3"].shape[1]

    # conv1 (1x1) + ReLU
    out1 = matmul_pallas(x.reshape(N * H * W, cin), params["w1"], relu=True,
                         out_dtype=jnp.bfloat16).reshape(N, H, W, planes)

    if stride == 1 and _conv3x3_fits_vmem(H, W, planes, planes):
        # conv2 (3x3/s1) + ReLU: output stays in the padded (N, H*wp8, planes) row layout.
        mid, wp8 = conv3x3_s1_pallas(out1, params["w2"], relu=True,
                                     out_dtype=jnp.bfloat16)
        m_rows = N * H * wp8
        a_mid = mid.reshape(m_rows, planes)
        # Shortcut input laid out in the same padded rows (zero wrap columns).
        x_rows = jnp.pad(x, ((0, 0), (0, 0), (0, wp8 - W), (0, 0))).reshape(m_rows, cin)
        # conv3 (1x1) + shortcut (1x1) + residual add + ReLU fused in ONE kernel.
        y = dual_matmul_pallas(a_mid, params["w3"], x_rows, params["ws"],
                               relu=True, out_dtype=jnp.float32)
        y = y.reshape(N, H, wp8, c4)[:, :, :W, :]                 # drop wrap columns once
    else:
        mid = conv3x3_im2col_pallas(out1, params["w2"], stride=stride, relu=True,
                                    out_dtype=jnp.bfloat16)
        _, Ho, Wo, _ = mid.shape
        a_mid = mid.reshape(N * Ho * Wo, planes)
        x_rows = x[:, ::stride, ::stride, :].reshape(N * Ho * Wo, cin)
        y = dual_matmul_pallas(a_mid, params["w3"], x_rows, params["ws"],
                               relu=True, out_dtype=jnp.float32)
        y = y.reshape(N, Ho, Wo, c4)

    # TODO(synk): return NHWC (and/or bf16) if the consumer allows, to skip this layout
    # round trip; kept NCHW/f32 to match the PyTorch module's output.
    return jnp.transpose(y, (0, 3, 1, 2))                          # NHWC -> NCHW


# ----------------------------- reference (pure JAX) -------------------------------

def _ref_conv(x_nhwc, w_oihw, stride, padding):
    w_hwio = jnp.transpose(w_oihw, (2, 3, 1, 0)).astype(jnp.bfloat16)
    return jax.lax.conv_general_dilated(
        x_nhwc.astype(jnp.bfloat16), w_hwio, (stride, stride),
        [(padding, padding), (padding, padding)],
        dimension_numbers=("NHWC", "HWIO", "NHWC"),
        preferred_element_type=jnp.float32)


def bottleneck_ref(x_nchw, raw_params, *, stride=1):
    """Pure-JAX reference with the same bf16-operand / f32-accumulate dtype policy."""
    x = jnp.transpose(x_nchw, (0, 2, 3, 1))
    out = jax.nn.relu(_ref_conv(x, raw_params["w1"], 1, 0)).astype(jnp.bfloat16)
    out = jax.nn.relu(_ref_conv(out, raw_params["w2"], stride, 1)).astype(jnp.bfloat16)
    out = _ref_conv(out, raw_params["w3"], 1, 0)
    sc = _ref_conv(x, raw_params["ws"], stride, 0)
    y = jax.nn.relu(out + sc)
    return jnp.transpose(y, (0, 3, 1, 2))


# -------------------------------------- main ---------------------------------------

if __name__ == "__main__":
    key = jax.random.PRNGKey(0)
    kx, kp = jax.random.split(key)

    batch, in_planes, planes, hw, stride = 2, 4, 4, 16, 1
    x = jax.random.normal(kx, (batch, in_planes, hw, hw), dtype=jnp.float32)
    raw = init_bottleneck_params(kp, in_planes, planes)
    params = prepare_params(raw)

    fwd = jax.jit(lambda xx, pp: bottleneck_forward(xx, pp, t=0, stride=stride))
    y = jax.block_until_ready(fwd(x, params))

    y_ref = jax.block_until_ready(bottleneck_ref(x, raw, stride=stride))
    assert y.shape == (batch, EXPANSION * planes, hw // stride, hw // stride), y.shape
    max_err = float(jnp.max(jnp.abs(y - y_ref)))
    assert jnp.allclose(y, y_ref, atol=3e-2, rtol=3e-2), f"max abs err {max_err}"

    print("KERNEL_OK")
</pallas_src>

<mosaic_0001>
module attributes {stable_mosaic.version = 11 : i64} {
  func.func @_mm_kernel(%arg0: i32, %arg1: i32, %arg2: i32, %arg3: memref<512x4xbf16, #tpu.memory_space<vmem>>, %arg4: memref<4x4xbf16, #tpu.memory_space<vmem>>, %arg5: memref<512x4xbf16, #tpu.memory_space<vmem>>, %arg6: memref<512x4xf32, #tpu.memory_space<vmem>>) attributes {dimension_semantics = [#tpu.dimension_semantics<parallel>, #tpu.dimension_semantics<parallel>, #tpu.dimension_semantics<arbitrary>], iteration_bounds = array<i64: 1, 1, 1>, scalar_prefetch = 0 : i64, scratch_operands = 1 : i64, tpu.core_type = #tpu.core_type<tc>, window_params = [{transform_indices = @transform_0, window_bounds = array<i64: 512, 4>}, {transform_indices = @transform_1, window_bounds = array<i64: 4, 4>}, {transform_indices = @transform_2, window_bounds = array<i64: 512, 4>}]} {
    %c0_i32 = arith.constant 0 : i32
    %0 = arith.cmpi eq, %arg2, %c0_i32 : i32
    %1 = arith.extui %0 : i1 to i32
    %c0_i32_0 = arith.constant 0 : i32
    %2 = arith.cmpi ne, %1, %c0_i32_0 : i32
    scf.if %2 {
      %cst_10 = arith.constant 0.000000e+00 : f32
      %12 = vector.broadcast %cst_10 : f32 to vector<512x4xf32>
      %c0_11 = arith.constant 0 : index
      %c0_12 = arith.constant 0 : index
      %13 = vector.load %arg6[%c0_11, %c0_12] : memref<512x4xf32, #tpu.memory_space<vmem>>, vector<512x4xf32>
      tpu.vector_store %arg6[%c0_11, %c0_12], %12 {strides = array<i32>} : memref<512x4xf32, #tpu.memory_space<vmem>>, vector<512x4xf32>,
    } else {
    }
    %c0 = arith.constant 0 : index
    %c0_1 = arith.constant 0 : index
    %3 = vector.load %arg6[%c0, %c0_1] : memref<512x4xf32, #tpu.memory_space<vmem>>, vector<512x4xf32>
    %c0_2 = arith.constant 0 : index
    %c0_3 = arith.constant 0 : index
    %4 = vector.load %arg3[%c0_2, %c0_3] : memref<512x4xbf16, #tpu.memory_space<vmem>>, vector<512x4xbf16>
    %c0_4 = arith.constant 0 : index
    %c0_5 = arith.constant 0 : index
    %5 = vector.load %arg4[%c0_4, %c0_5] : memref<4x4xbf16, #tpu.memory_space<vmem>>, vector<4x4xbf16>
    %cst = arith.constant dense<0.000000e+00> : vector<512x4xf32>
    %6 = tpu.matmul %4, %5, %cst {dimension_numbers = #tpu.dot_dimension_numbers<[1], [0], [0], [1], [0, 0, 1, 1], [], []>} : vector<512x4xbf16>, vector<4x4xbf16>, vector<512x4xf32> -> vector<512x4xf32>
    %7 = arith.addf %3, %6 : vector<512x4xf32>
    %c0_6 = arith.constant 0 : index
    %c0_7 = arith.constant 0 : index
    %8 = vector.load %arg6[%c0_6, %c0_7] : memref<512x4xf32, #tpu.memory_space<vmem>>, vector<512x4xf32>
    tpu.vector_store %arg6[%c0_6, %c0_7], %7 {strides = array<i32>} : memref<512x4xf32, #tpu.memory_space<vmem>>, vector<512x4xf32>,
    %c0_i32_8 = arith.constant 0 : i32
    %9 = arith.cmpi eq, %arg2, %c0_i32_8 : i32
    %10 = arith.extui %9 : i1 to i32
    %c0_i32_9 = arith.constant 0 : i32
    %11 = arith.cmpi ne, %10, %c0_i32_9 : i32
    scf.if %11 {
      %c0_10 = arith.constant 0 : index
      %c0_11 = arith.constant 0 : index
      %12 = vector.load %arg6[%c0_10, %c0_11] : memref<512x4xf32, #tpu.memory_space<vmem>>, vector<512x4xf32>
      %cst_12 = arith.constant 0.000000e+00 : f32
      %13 = vector.broadcast %cst_12 : f32 to vector<512x4xf32>
      %14 = arith.maximumf %12, %13 : vector<512x4xf32>
      %15 = arith.truncf %14 : vector<512x4xf32> to vector<512x4xbf16>
      %c0_13 = arith.constant 0 : index
      %c0_14 = arith.constant 0 : index
      %16 = vector.load %arg5[%c0_13, %c0_14] : memref<512x4xbf16, #tpu.memory_space<vmem>>, vector<512x4xbf16>
      tpu.vector_store %arg5[%c0_13, %c0_14], %15 {strides = array<i32>} : memref<512x4xbf16, #tpu.memory_space<vmem>>, vector<512x4xbf16>,
    } else {
    }
    return
  }
  func.func @transform_0(%arg0: i32, %arg1: i32, %arg2: i32) -> (i32, i32) {
    %c0_i32 = arith.constant 0 : i32
    return %arg0, %arg2 : i32, i32
  }
  func.func @transform_1(%arg0: i32, %arg1: i32, %arg2: i32) -> (i32, i32) {
    %c0_i32 = arith.constant 0 : i32
    return %arg2, %arg1 : i32, i32
  }
  func.func @transform_2(%arg0: i32, %arg1: i32, %arg2: i32) -> (i32, i32) {
    %c0_i32 = arith.constant 0 : i32
    return %arg0, %arg1 : i32, i32
  }
}

module attributes {stable_mosaic.version = 11 : i64} {
  func.func @_conv3x3_kernel(%arg0: i32, %arg1: i32, %arg2: memref<1x456x4xbf16, #tpu.memory_space<vmem>>, %arg3: memref<9x4x4xbf16, #tpu.memory_space<vmem>>, %arg4: memref<1x384x4xbf16, #tpu.memory_space<vmem>>) attributes {dimension_semantics = [#tpu.dimension_semantics<parallel>, #tpu.dimension_semantics<parallel>], iteration_bounds = array<i64: 2, 1>, scalar_prefetch = 0 : i64, scratch_operands = 0 : i64, tpu.core_type = #tpu.core_type<tc>, window_params = [{transform_indices = @transform_0, window_bounds = array<i64: 1, 456, 4>}, {transform_indices = @transform_1, window_bounds = array<i64: 9, 4, 4>}, {transform_indices = @transform_2, window_bounds = array<i64: 1, 384, 4>}]} {
    %c0 = arith.constant 0 : index
    %c0_0 = arith.constant 0 : index
    %c0_1 = arith.constant 0 : index
    %0 = vector.load %arg2[%c0, %c0_0, %c0_1] : memref<1x456x4xbf16, #tpu.memory_space<vmem>>, vector<1x384x4xbf16>
    %1 = vector.shape_cast %0 : vector<1x384x4xbf16> to vector<384x4xbf16>
    %c0_2 = arith.constant 0 : index
    %c0_3 = arith.constant 0 : index
    %c0_4 = arith.constant 0 : index
    %2 = vector.load %arg3[%c0_2, %c0_3, %c0_4] : memref<9x4x4xbf16, #tpu.memory_space<vmem>>, vector<1x4x4xbf16>
    %3 = vector.shape_cast %2 : vector<1x4x4xbf16> to vector<4x4xbf16>
    %cst = arith.constant dense<0.000000e+00> : vector<384x4xf32>
    %4 = tpu.matmul %1, %3, %cst {dimension_numbers = #tpu.dot_dimension_numbers<[1], [0], [0], [1], [0, 0, 1, 1], [], []>} : vector<384x4xbf16>, vector<4x4xbf16>, vector<384x4xf32> -> vector<384x4xf32>
    %c0_5 = arith.constant 0 : index
    %c1 = arith.constant 1 : index
    %c0_6 = arith.constant 0 : index
    %5 = vector.load %arg2[%c0_5, %c1, %c0_6] : memref<1x456x4xbf16, #tpu.memory_space<vmem>>, vector<1x384x4xbf16>
    %6 = vector.shape_cast %5 : vector<1x384x4xbf16> to vector<384x4xbf16>
    %c1_7 = arith.constant 1 : index
    %c0_8 = arith.constant 0 : index
    %c0_9 = arith.constant 0 : index
    %7 = vector.load %arg3[%c1_7, %c0_8, %c0_9] : memref<9x4x4xbf16, #tpu.memory_space<vmem>>, vector<1x4x4xbf16>
    %8 = vector.shape_cast %7 : vector<1x4x4xbf16> to vector<4x4xbf16>
    %cst_10 = arith.constant dense<0.000000e+00> : vector<384x4xf32>
    %9 = tpu.matmul %6, %8, %cst_10 {dimension_numbers = #tpu.dot_dimension_numbers<[1], [0], [0], [1], [0, 0, 1, 1], [], []>} : vector<384x4xbf16>, vector<4x4xbf16>, vector<384x4xf32> -> vector<384x4xf32>
    %10 = arith.addf %4, %9 : vector<384x4xf32>
    %c0_11 = arith.constant 0 : index
    %c2 = arith.constant 2 : index
    %c0_12 = arith.constant 0 : index
    %11 = vector.load %arg2[%c0_11, %c2, %c0_12] : memref<1x456x4xbf16, #tpu.memory_space<vmem>>, vector<1x384x4xbf16>
    %12 = vector.shape_cast %11 : vector<1x384x4xbf16> to vector<384x4xbf16>
    %c2_13 = arith.constant 2 : index
    %c0_14 = arith.constant 0 : index
    %c0_15 = arith.constant 0 : index
    %13 = vector.load %arg3[%c2_13, %c0_14, %c0_15] : memref<9x4x4xbf16, #tpu.memory_space<vmem>>, vector<1x4x4xbf16>
    %14 = vector.shape_cast %13 : vector<1x4x4xbf16> to vector<4x4xbf16>
    %cst_16 = arith.constant dense<0.000000e+00> : vector<384x4xf32>
    %15 = tpu.matmul %12, %14, %cst_16 {dimension_numbers = #tpu.dot_dimension_numbers<[1], [0], [0], [1], [0, 0, 1, 1], [], []>} : vector<384x4xbf16>, vector<4x4xbf16>, vector<384x4xf32> -> vector<384x4xf32>
    %16 = arith.addf %10, %15 : vector<384x4xf32>
    %c0_17 = arith.constant 0 : index
    %c24 = arith.constant 24 : index
    %c0_18 = arith.constant 0 : index
    %17 = vector.load %arg2[%c0_17, %c24, %c0_18] : memref<1x456x4xbf16, #tpu.memory_space<vmem>>, vector<1x384x4xbf16>
    %18 = vector.shape_cast %17 : vector<1x384x4xbf16> to vector<384x4xbf16>
    %c3 = arith.constant 3 : index
    %c0_19 = arith.constant 0 : index
    %c0_20 = arith.constant 0 : index
    %19 = vector.load %arg3[%c3, %c0_19, %c0_20] : memref<9x4x4xbf16, #tpu.memory_space<vmem>>, vector<1x4x4xbf16>
    %20 = vector.shape_cast %19 : vector<1x4x4xbf16> to vector<4x4xbf16>
    %cst_21 = arith.constant dense<0.000000e+00> : vector<384x4xf32>
    %21 = tpu.matmul %18, %20, %cst_21 {dimension_numbers = #tpu.dot_dimension_numbers<[1], [0], [0], [1], [0, 0, 1, 1], [], []>} : vector<384x4xbf16>, vector<4x4xbf16>, vector<384x4xf32> -> vector<384x4xf32>
    %c0_22 = arith.constant 0 : index
    %c25 = arith.constant 25 : index
    %c0_23 = arith.constant 0 : index
    %22 = vector.load %arg2[%c0_22, %c25, %c0_23] : memref<1x456x4xbf16, #tpu.memory_space<vmem>>, vector<1x384x4xbf16>
    %23 = vector.shape_cast %22 : vector<1x384x4xbf16> to vector<384x4xbf16>
    %c4 = arith.constant 4 : index
    %c0_24 = arith.constant 0 : index
    %c0_25 = arith.constant 0 : index
    %24 = vector.load %arg3[%c4, %c0_24, %c0_25] : memref<9x4x4xbf16, #tpu.memory_space<vmem>>, vector<1x4x4xbf16>
    %25 = vector.shape_cast %24 : vector<1x4x4xbf16> to vector<4x4xbf16>
    %cst_26 = arith.constant dense<0.000000e+00> : vector<384x4xf32>
    %26 = tpu.matmul %23, %25, %cst_26 {dimension_numbers = #tpu.dot_dimension_numbers<[1], [0], [0], [1], [0, 0, 1, 1], [], []>} : vector<384x4xbf16>, vector<4x4xbf16>, vector<384x4xf32> -> vector<384x4xf32>
    %27 = arith.addf %21, %26 : vector<384x4xf32>
    %c0_27 = arith.constant 0 : index
    %c26 = arith.constant 26 : index
    %c0_28 = arith.constant 0 : index
    %28 = vector.load %arg2[%c0_27, %c26, %c0_28] : memref<1x456x4xbf16, #tpu.memory_space<vmem>>, vector<1x384x4xbf16>
    %29 = vector.shape_cast %28 : vector<1x384x4xbf16> to vector<384x4xbf16>
    %c5 = arith.constant 5 : index
    %c0_29 = arith.constant 0 : index
    %c0_30 = arith.constant 0 : index
    %30 = vector.load %arg3[%c5, %c0_29, %c0_30] : memref<9x4x4xbf16, #tpu.memory_space<vmem>>, vector<1x4x4xbf16>
    %31 = vector.shape_cast %30 : vector<1x4x4xbf16> to vector<4x4xbf16>
    %cst_31 = arith.constant dense<0.000000e+00> : vector<384x4xf32>
    %32 = tpu.matmul %29, %31, %cst_31 {dimension_numbers = #tpu.dot_dimension_numbers<[1], [0], [0], [1], [0, 0, 1, 1], [], []>} : vector<384x4xbf16>, vector<4x4xbf16>, vector<384x4xf32> -> vector<384x4xf32>
    %33 = arith.addf %27, %32 : vector<384x4xf32>
    %34 = arith.addf %16, %33 : vector<384x4xf32>
    %c0_32 = arith.constant 0 : index
    %c48 = arith.constant 48 : index
    %c0_33 = arith.constant 0 : index
    %35 = vector.load %arg2[%c0_32, %c48, %c0_33] : memref<1x456x4xbf16, #tpu.memory_space<vmem>>, vector<1x384x4xbf16>
    %36 = vector.shape_cast %35 : vector<1x384x4xbf16> to vector<384x4xbf16>
    %c6 = arith.constant 6 : index
    %c0_34 = arith.constant 0 : index
    %c0_35 = arith.constant 0 : index
    %37 = vector.load %arg3[%c6, %c0_34, %c0_35] : memref<9x4x4xbf16, #tpu.memory_space<vmem>>, vector<1x4x4xbf16>
    %38 = vector.shape_cast %37 : vector<1x4x4xbf16> to vector<4x4xbf16>
    %cst_36 = arith.constant dense<0.000000e+00> : vector<384x4xf32>
    %39 = tpu.matmul %36, %38, %cst_36 {dimension_numbers = #tpu.dot_dimension_numbers<[1], [0], [0], [1], [0, 0, 1, 1], [], []>} : vector<384x4xbf16>, vector<4x4xbf16>, vector<384x4xf32> -> vector<384x4xf32>
    %c0_37 = arith.constant 0 : index
    %c49 = arith.constant 49 : index
    %c0_38 = arith.constant 0 : index
    %40 = vector.load %arg2[%c0_37, %c49, %c0_38] : memref<1x456x4xbf16, #tpu.memory_space<vmem>>, vector<1x384x4xbf16>
    %41 = vector.shape_cast %40 : vector<1x384x4xbf16> to vector<384x4xbf16>
    %c7 = arith.constant 7 : index
    %c0_39 = arith.constant 0 : index
    %c0_40 = arith.constant 0 : index
    %42 = vector.load %arg3[%c7, %c0_39, %c0_40] : memref<9x4x4xbf16, #tpu.memory_space<vmem>>, vector<1x4x4xbf16>
    %43 = vector.shape_cast %42 : vector<1x4x4xbf16> to vector<4x4xbf16>
    %cst_41 = arith.constant dense<0.000000e+00> : vector<384x4xf32>
    %44 = tpu.matmul %41, %43, %cst_41 {dimension_numbers = #tpu.dot_dimension_numbers<[1], [0], [0], [1], [0, 0, 1, 1], [], []>} : vector<384x4xbf16>, vector<4x4xbf16>, vector<384x4xf32> -> vector<384x4xf32>
    %45 = arith.addf %39, %44 : vector<384x4xf32>
    %c0_42 = arith.constant 0 : index
    %c50 = arith.constant 50 : index
    %c0_43 = arith.constant 0 : index
    %46 = vector.load %arg2[%c0_42, %c50, %c0_43] : memref<1x456x4xbf16, #tpu.memory_space<vmem>>, vector<1x384x4xbf16>
    %47 = vector.shape_cast %46 : vector<1x384x4xbf16> to vector<384x4xbf16>
    %c8 = arith.constant 8 : index
    %c0_44 = arith.constant 0 : index
    %c0_45 = arith.constant 0 : index
    %48 = vector.load %arg3[%c8, %c0_44, %c0_45] : memref<9x4x4xbf16, #tpu.memory_space<vmem>>, vector<1x4x4xbf16>
    %49 = vector.shape_cast %48 : vector<1x4x4xbf16> to vector<4x4xbf16>
    %cst_46 = arith.constant dense<0.000000e+00> : vector<384x4xf32>
    %50 = tpu.matmul %47, %49, %cst_46 {dimension_numbers = #tpu.dot_dimension_numbers<[1], [0], [0], [1], [0, 0, 1, 1], [], []>} : vector<384x4xbf16>, vector<4x4xbf16>, vector<384x4xf32> -> vector<384x4xf32>
    %51 = arith.addf %45, %50 : vector<384x4xf32>
    %52 = arith.addf %34, %51 : vector<384x4xf32>
    %cst_47 = arith.constant 0.000000e+00 : f32
    %53 = vector.broadcast %cst_47 : f32 to vector<384x4xf32>
    %54 = arith.maximumf %52, %53 : vector<384x4xf32>
    %55 = arith.truncf %54 : vector<384x4xf32> to vector<384x4xbf16>
    %c0_48 = arith.constant 0 : index
    %c0_49 = arith.constant 0 : index
    %c0_50 = arith.constant 0 : index
    %56 = vector.load %arg4[%c0_48, %c0_49, %c0_50] : memref<1x384x4xbf16, #tpu.memory_space<vmem>>, vector<1x384x4xbf16>
    %57 = vector.shape_cast %56 : vector<1x384x4xbf16> to vector<384x4xbf16>
    %58 = vector.shape_cast %55 : vector<384x4xbf16> to vector<1x384x4xbf16>
    tpu.vector_store %arg4[%c0_48, %c0_49, %c0_50], %58 {strides = array<i32>} : memref<1x384x4xbf16, #tpu.memory_space<vmem>>, vector<1x384x4xbf16>,
    return
  }
  func.func @transform_0(%arg0: i32, %arg1: i32) -> (i32, i32, i32) {
    %c0_i32 = arith.constant 0 : i32
    %c0_i32_0 = arith.constant 0 : i32
    %c0_i32_1 = arith.constant 0 : i32
    return %arg0, %c0_i32, %c0_i32_0 : i32, i32, i32
  }
  func.func @transform_1(%arg0: i32, %arg1: i32) -> (i32, i32, i32) {
    %c0_i32 = arith.constant 0 : i32
    %c0_i32_0 = arith.constant 0 : i32
    %c0_i32_1 = arith.constant 0 : i32
    return %c0_i32, %c0_i32_0, %arg1 : i32, i32, i32
  }
  func.func @transform_2(%arg0: i32, %arg1: i32) -> (i32, i32, i32) {
    %c0_i32 = arith.constant 0 : i32
    %c0_i32_0 = arith.constant 0 : i32
    return %arg0, %c0_i32, %arg1 : i32, i32, i32
  }
}

module attributes {stable_mosaic.version = 11 : i64} {
  func.func @_dual_mm_kernel(%arg0: i32, %arg1: i32, %arg2: memref<384x4xbf16, #tpu.memory_space<vmem>>, %arg3: memref<4x16xbf16, #tpu.memory_space<vmem>>, %arg4: memref<384x4xbf16, #tpu.memory_space<vmem>>, %arg5: memref<4x16xbf16, #tpu.memory_space<vmem>>, %arg6: memref<384x16xf32, #tpu.memory_space<vmem>>) attributes {dimension_semantics = [#tpu.dimension_semantics<parallel>, #tpu.dimension_semantics<parallel>], iteration_bounds = array<i64: 2, 1>, scalar_prefetch = 0 : i64, scratch_operands = 0 : i64, tpu.core_type = #tpu.core_type<tc>, window_params = [{transform_indices = @transform_0, window_bounds = array<i64: 384, 4>}, {transform_indices = @transform_1, window_bounds = array<i64: 4, 16>}, {transform_indices = @transform_2, window_bounds = array<i64: 384, 4>}, {transform_indices = @transform_3, window_bounds = array<i64: 4, 16>}, {transform_indices = @transform_4, window_bounds = array<i64: 384, 16>}]} {
    %c0 = arith.constant 0 : index
    %c0_0 = arith.constant 0 : index
    %0 = vector.load %arg2[%c0, %c0_0] : memref<384x4xbf16, #tpu.memory_space<vmem>>, vector<384x4xbf16>
    %c0_1 = arith.constant 0 : index
    %c0_2 = arith.constant 0 : index
    %1 = vector.load %arg3[%c0_1, %c0_2] : memref<4x16xbf16, #tpu.memory_space<vmem>>, vector<4x16xbf16>
    %cst = arith.constant dense<0.000000e+00> : vector<384x16xf32>
    %2 = tpu.matmul %0, %1, %cst {dimension_numbers = #tpu.dot_dimension_numbers<[1], [0], [0], [1], [0, 0, 1, 1], [], []>} : vector<384x4xbf16>, vector<4x16xbf16>, vector<384x16xf32> -> vector<384x16xf32>
    %c0_3 = arith.constant 0 : index
    %c0_4 = arith.constant 0 : index
    %3 = vector.load %arg4[%c0_3, %c0_4] : memref<384x4xbf16, #tpu.memory_space<vmem>>, vector<384x4xbf16>
    %c0_5 = arith.constant 0 : index
    %c0_6 = arith.constant 0 : index
    %4 = vector.load %arg5[%c0_5, %c0_6] : memref<4x16xbf16, #tpu.memory_space<vmem>>, vector<4x16xbf16>
    %cst_7 = arith.constant dense<0.000000e+00> : vector<384x16xf32>
    %5 = tpu.matmul %3, %4, %cst_7 {dimension_numbers = #tpu.dot_dimension_numbers<[1], [0], [0], [1], [0, 0, 1, 1], [], []>} : vector<384x4xbf16>, vector<4x16xbf16>, vector<384x16xf32> -> vector<384x16xf32>
    %6 = arith.addf %2, %5 : vector<384x16xf32>
    %cst_8 = arith.constant 0.000000e+00 : f32
    %7 = vector.broadcast %cst_8 : f32 to vector<384x16xf32>
    %8 = arith.maximumf %6, %7 : vector<384x16xf32>
    %c0_9 = arith.constant 0 : index
    %c0_10 = arith.constant 0 : index
    %9 = vector.load %arg6[%c0_9, %c0_10] : memref<384x16xf32, #tpu.memory_space<vmem>>, vector<384x16xf32>
    tpu.vector_store %arg6[%c0_9, %c0_10], %8 {strides = array<i32>} : memref<384x16xf32, #tpu.memory_space<vmem>>, vector<384x16xf32>,
    return
  }
  func.func @transform_0(%arg0: i32, %arg1: i32) -> (i32, i32) {
    %c0_i32 = arith.constant 0 : i32
    %c0_i32_0 = arith.constant 0 : i32
    return %arg0, %c0_i32 : i32, i32
  }
  func.func @transform_1(%arg0: i32, %arg1: i32) -> (i32, i32) {
    %c0_i32 = arith.constant 0 : i32
    %c0_i32_0 = arith.constant 0 : i32
    return %c0_i32, %arg1 : i32, i32
  }
  func.func @transform_2(%arg0: i32, %arg1: i32) -> (i32, i32) {
    %c0_i32 = arith.constant 0 : i32
    %c0_i32_0 = arith.constant 0 : i32
    return %arg0, %c0_i32 : i32, i32
  }
  func.func @transform_3(%arg0: i32, %arg1: i32) -> (i32, i32) {
    %c0_i32 = arith.constant 0 : i32
    %c0_i32_0 = arith.constant 0 : i32
    return %c0_i32, %arg1 : i32, i32
  }
  func.func @transform_4(%arg0: i32, %arg1: i32) -> (i32, i32) {
    %c0_i32 = arith.constant 0 : i32
    return %arg0, %arg1 : i32, i32
  }
}

</mosaic_0001>

<llo_original>
// kernel: _lambda_.3
$region0: #{_lambda_.3}
  #allocation0 [shape = 'u32[]', space=smem, size = 0x4, offset = 0x4, fixed_abs, tag = 'smem constant byte address 0x4 - core index']
  #allocation1 [shape = 'u32[144,128]{1,0:T(1,128)}', space=vmem, size = 0x12000, scoped, tag = 'internal scratch']
  #allocation2 [shape = 'f32[512,4]{1,0:T(8,128)}', space=vmem, size = 0x40000, scoped, tag = 'scratch operand']
  %s0 = inlined_call_operand.vmem [shape: bf16[512,4], index: 0, kind: input, shape index: {}]
  %s1 = inlined_call_operand.vmem [shape: bf16[4,4], index: 1, kind: input, shape index: {}]
  %s2 = inlined_call_operand.vmem [shape: bf16[512,4], index: 2, kind: output, shape index: {}]
  %s3 = sld [smem:[#allocation0]]
  $region26: #{_lambda_.3} parent=0
    _
  %s5 = ssub.s32 1, %s3
  %s6 = scalar_select 0, %s5, %s3
  // Predicated region
  $region2: #{_lambda_.3} parent=0 // pred_check
    _
  $region3: #{_lambda_.3} parent=0 // pred_check_branch
    %8 = sbr.rel (0) target = $region5
  $region4: #{_lambda_.3} parent=0 // pred_region
    _
  $region5: #{_lambda_.3} parent=0 // pred_fallthru
    _
  // Predicated region
  $region6: #{_lambda_.3} parent=0 // pred_check
    _
  $region7: #{_lambda_.3} parent=0 // pred_check_branch
    %10 = sbr.rel (0) target = $region9
  $region8: #{_lambda_.3} parent=0 // pred_region
    _
  $region9: #{_lambda_.3} parent=0 // pred_fallthru
    _
  %p12 = scmp.eq.s32.totalorder 0, 0
  // Predicated region
  $region10: #{_lambda_.3} parent=0 // pred_check
    %p13 = pneg %p12
  $region11: #{_lambda_.3} parent=0 // pred_check_branch
    %15 = sbr.rel (%p13) target = $region13
  $region12: #{_lambda_.3} parent=0 // pred_region
    %vm16 = vcmask 31744
    %17 = vst.msk [vmem:[#allocation2] sm:$0xff] %vm16, 0.0
    %18 = vst.msk [vmem:[#allocation2 + $0x8] sm:$0xff] %vm16, 0.0
    %19 = vst.msk [vmem:[#allocation2 + $0x10] sm:$0xff] %vm16, 0.0
    %20 = vst.msk [vmem:[#allocation2 + $0x18] sm:$0xff] %vm16, 0.0
    %21 = vst.msk [vmem:[#allocation2 + $0x20] sm:$0xff] %vm16, 0.0
    %22 = vst.msk [vmem:[#allocation2 + $0x28] sm:$0xff] %vm16, 0.0
    %23 = vst.msk [vmem:[#allocation2 + $0x30] sm:$0xff] %vm16, 0.0
    %24 = vst.msk [vmem:[#allocation2 + $0x38] sm:$0xff] %vm16, 0.0
    %25 = vst.msk [vmem:[#allocation2 + $0x40] sm:$0xff] %vm16, 0.0
    %26 = vst.msk [vmem:[#allocation2 + $0x48] sm:$0xff] %vm16, 0.0
    %27 = vst.msk [vmem:[#allocation2 + $0x50] sm:$0xff] %vm16, 0.0
    %28 = vst.msk [vmem:[#allocation2 + $0x58] sm:$0xff] %vm16, 0.0
    %29 = vst.msk [vmem:[#allocation2 + $0x60] sm:$0xff] %vm16, 0.0
    %30 = vst.msk [vmem:[#allocation2 + $0x68] sm:$0xff] %vm16, 0.0
    %31 = vst.msk [vmem:[#allocation2 + $0x70] sm:$0xff] %vm16, 0.0
    %32 = vst.msk [vmem:[#allocation2 + $0x78] sm:$0xff] %vm16, 0.0
    %33 = vst.msk [vmem:[#allocation2 + $0x80] sm:$0xff] %vm16, 0.0
    %34 = vst.msk [vmem:[#allocation2 + $0x88] sm:$0xff] %vm16, 0.0
    %35 = vst.msk [vmem:[#allocation2 + $0x90] sm:$0xff] %vm16, 0.0
    %36 = vst.msk [vmem:[#allocation2 + $0x98] sm:$0xff] %vm16, 0.0
    %37 = vst.msk [vmem:[#allocation2 + $0xa0] sm:$0xff] %vm16, 0.0
    %38 = vst.msk [vmem:[#allocation2 + $0xa8] sm:$0xff] %vm16, 0.0
    %39 = vst.msk [vmem:[#allocation2 + $0xb0] sm:$0xff] %vm16, 0.0
    %40 = vst.msk [vmem:[#allocation2 + $0xb8] sm:$0xff] %vm16, 0.0
    %41 = vst.msk [vmem:[#allocation2 + $0xc0] sm:$0xff] %vm16, 0.0
    %42 = vst.msk [vmem:[#allocation2 + $0xc8] sm:$0xff] %vm16, 0.0
    %43 = vst.msk [vmem:[#allocation2 + $0xd0] sm:$0xff] %vm16, 0.0
    %44 = vst.msk [vmem:[#allocation2 + $0xd8] sm:$0xff] %vm16, 0.0
    %45 = vst.msk [vmem:[#allocation2 + $0xe0] sm:$0xff] %vm16, 0.0
    %46 = vst.msk [vmem:[#allocation2 + $0xe8] sm:$0xff] %vm16, 0.0
    %47 = vst.msk [vmem:[#allocation2 + $0xf0] sm:$0xff] %vm16, 0.0
    %48 = vst.msk [vmem:[#allocation2 + $0xf8] sm:$0xff] %vm16, 0.0
    %49 = vst.msk [vmem:[#allocation2 + $0x100] sm:$0xff] %vm16, 0.0
    %50 = vst.msk [vmem:[#allocation2 + $0x108] sm:$0xff] %vm16, 0.0
    %51 = vst.msk [vmem:[#allocation2 + $0x110] sm:$0xff] %vm16, 0.0
    %52 = vst.msk [vmem:[#allocation2 + $0x118] sm:$0xff] %vm16, 0.0
    %53 = vst.msk [vmem:[#allocation2 + $0x120] sm:$0xff] %vm16, 0.0
    %54 = vst.msk [vmem:[#allocation2 + $0x128] sm:$0xff] %vm16, 0.0
    %55 = vst.msk [vmem:[#allocation2 + $0x130] sm:$0xff] %vm16, 0.0
    %56 = vst.msk [vmem:[#allocation2 + $0x138] sm:$0xff] %vm16, 0.0
    %57 = vst.msk [vmem:[#allocation2 + $0x140] sm:$0xff] %vm16, 0.0
    %58 = vst.msk [vmem:[#allocation2 + $0x148] sm:$0xff] %vm16, 0.0
    %59 = vst.msk [vmem:[#allocation2 + $0x150] sm:$0xff] %vm16, 0.0
    %60 = vst.msk [vmem:[#allocation2 + $0x158] sm:$0xff] %vm16, 0.0
    %61 = vst.msk [vmem:[#allocation2 + $0x160] sm:$0xff] %vm16, 0.0
    %62 = vst.msk [vmem:[#allocation2 + $0x168] sm:$0xff] %vm16, 0.0
    %63 = vst.msk [vmem:[#allocation2 + $0x170] sm:$0xff] %vm16, 0.0
    %64 = vst.msk [vmem:[#allocation2 + $0x178] sm:$0xff] %vm16, 0.0
    %65 = vst.msk [vmem:[#allocation2 + $0x180] sm:$0xff] %vm16, 0.0
    %66 = vst.msk [vmem:[#allocation2 + $0x188] sm:$0xff] %vm16, 0.0
    %67 = vst.msk [vmem:[#allocation2 + $0x190] sm:$0xff] %vm16, 0.0
    %68 = vst.msk [vmem:[#allocation2 + $0x198] sm:$0xff] %vm16, 0.0
    %69 = vst.msk [vmem:[#allocation2 + $0x1a0] sm:$0xff] %vm16, 0.0
    %70 = vst.msk [vmem:[#allocation2 + $0x1a8] sm:$0xff] %vm16, 0.0
    %71 = vst.msk [vmem:[#allocation2 + $0x1b0] sm:$0xff] %vm16, 0.0
    %72 = vst.msk [vmem:[#allocation2 + $0x1b8] sm:$0xff] %vm16, 0.0
    %73 = vst.msk [vmem:[#allocation2 + $0x1c0] sm:$0xff] %vm16, 0.0
    %74 = vst.msk [vmem:[#allocation2 + $0x1c8] sm:$0xff] %vm16, 0.0
    %75 = vst.msk [vmem:[#allocation2 + $0x1d0] sm:$0xff] %vm16, 0.0
    %76 = vst.msk [vmem:[#allocation2 + $0x1d8] sm:$0xff] %vm16, 0.0
    %77 = vst.msk [vmem:[#allocation2 + $0x1e0] sm:$0xff] %vm16, 0.0
    %78 = vst.msk [vmem:[#allocation2 + $0x1e8] sm:$0xff] %vm16, 0.0
    %79 = vst.msk [vmem:[#allocation2 + $0x1f0] sm:$0xff] %vm16, 0.0
    %80 = vst.msk [vmem:[#allocation2 + $0x1f8] sm:$0xff] %vm16, 0.0
  $region13: #{_lambda_.3} parent=0 // pred_fallthru
    _
  %v81 = vld [vmem:[#allocation2] sm:$0xff]
  %v82 = vld [vmem:[#allocation2 + $0x8] sm:$0xff]
  %v83 = vld [vmem:[#allocation2 + $0x10] sm:$0xff]
  %v84 = vld [vmem:[#allocation2 + $0x18] sm:$0xff]
  %v85 = vld [vmem:[#allocation2 + $0x20] sm:$0xff]
  %v86 = vld [vmem:[#allocation2 + $0x28] sm:$0xff]
  %v87 = vld [vmem:[#allocation2 + $0x30] sm:$0xff]
  %v88 = vld [vmem:[#allocation2 + $0x38] sm:$0xff]
  %v89 = vld [vmem:[#allocation2 + $0x40] sm:$0xff]
  %v90 = vld [vmem:[#allocation2 + $0x48] sm:$0xff]
  %v91 = vld [vmem:[#allocation2 + $0x50] sm:$0xff]
  %v92 = vld [vmem:[#allocation2 + $0x58] sm:$0xff]
  %v93 = vld [vmem:[#allocation2 + $0x60] sm:$0xff]
  %v94 = vld [vmem:[#allocation2 + $0x68] sm:$0xff]
  %v95 = vld [vmem:[#allocation2 + $0x70] sm:$0xff]
  %v96 = vld [vmem:[#allocation2 + $0x78] sm:$0xff]
  %v97 = vld [vmem:[#allocation2 + $0x80] sm:$0xff]
  %v98 = vld [vmem:[#allocation2 + $0x88] sm:$0xff]
  %v99 = vld [vmem:[#allocation2 + $0x90] sm:$0xff]
  %v100 = vld [vmem:[#allocation2 + $0x98] sm:$0xff]
  %v101 = vld [vmem:[#allocation2 + $0xa0] sm:$0xff]
  %v102 = vld [vmem:[#allocation2 + $0xa8] sm:$0xff]
  %v103 = vld [vmem:[#allocation2 + $0xb0] sm:$0xff]
  %v104 = vld [vmem:[#allocation2 + $0xb8] sm:$0xff]
  %v105 = vld [vmem:[#allocation2 + $0xc0] sm:$0xff]
  %v106 = vld [vmem:[#allocation2 + $0xc8] sm:$0xff]
  %v107 = vld [vmem:[#allocation2 + $0xd0] sm:$0xff]
  %v108 = vld [vmem:[#allocation2 + $0xd8] sm:$0xff]
  %v109 = vld [vmem:[#allocation2 + $0xe0] sm:$0xff]
  %v110 = vld [vmem:[#allocation2 + $0xe8] sm:$0xff]
  %v111 = vld [vmem:[#allocation2 + $0xf0] sm:$0xff]
  %v112 = vld [vmem:[#allocation2 + $0xf8] sm:$0xff]
  %v113 = vld [vmem:[#allocation2 + $0x100] sm:$0xff]
  %v114 = vld [vmem:[#allocation2 + $0x108] sm:$0xff]
  %v115 = vld [vmem:[#allocation2 + $0x110] sm:$0xff]
  %v116 = vld [vmem:[#allocation2 + $0x118] sm:$0xff]
  %v117 = vld [vmem:[#allocation2 + $0x120] sm:$0xff]
  %v118 = vld [vmem:[#allocation2 + $0x128] sm:$0xff]
  %v119 = vld [vmem:[#allocation2 + $0x130] sm:$0xff]
  %v120 = vld [vmem:[#allocation2 + $0x138] sm:$0xff]
  %v121 = vld [vmem:[#allocation2 + $0x140] sm:$0xff]
  %v122 = vld [vmem:[#allocation2 + $0x148] sm:$0xff]
  %v123 = vld [vmem:[#allocation2 + $0x150] sm:$0xff]
  %v124 = vld [vmem:[#allocation2 + $0x158] sm:$0xff]
  %v125 = vld [vmem:[#allocation2 + $0x160] sm:$0xff]
  %v126 = vld [vmem:[#allocation2 + $0x168] sm:$0xff]
  %v127 = vld [vmem:[#allocation2 + $0x170] sm:$0xff]
  %v128 = vld [vmem:[#allocation2 + $0x178] sm:$0xff]
  %v129 = vld [vmem:[#allocation2 + $0x180] sm:$0xff]
  %v130 = vld [vmem:[#allocation2 + $0x188] sm:$0xff]
  %v131 = vld [vmem:[#allocation2 + $0x190] sm:$0xff]
  %v132 = vld [vmem:[#allocation2 + $0x198] sm:$0xff]
  %v133 = vld [vmem:[#allocation2 + $0x1a0] sm:$0xff]
  %v134 = vld [vmem:[#allocation2 + $0x1a8] sm:$0xff]
  %v135 = vld [vmem:[#allocation2 + $0x1b0] sm:$0xff]
  %v136 = vld [vmem:[#allocation2 + $0x1b8] sm:$0xff]
  %v137 = vld [vmem:[#allocation2 + $0x1c0] sm:$0xff]
  %v138 = vld [vmem:[#allocation2 + $0x1c8] sm:$0xff]
  %v139 = vld [vmem:[#allocation2 + $0x1d0] sm:$0xff]
  %v140 = vld [vmem:[#allocation2 + $0x1d8] sm:$0xff]
  %v141 = vld [vmem:[#allocation2 + $0x1e0] sm:$0xff]
  %v142 = vld [vmem:[#allocation2 + $0x1e8] sm:$0xff]
  %v143 = vld [vmem:[#allocation2 + $0x1f0] sm:$0xff]
  %v144 = vld [vmem:[#allocation2 + $0x1f8] sm:$0xff]
  %v145 = vld [vmem:[%s0] sm:$0xf]
  %v146 = vld [vmem:[%s0 + $0x4] sm:$0xf]
  %v147 = vld [vmem:[%s0 + $0x8] sm:$0xf]
  %v148 = vld [vmem:[%s0 + $0xc] sm:$0xf]
  %v149 = vld [vmem:[%s0 + $0x10] sm:$0xf]
  %v150 = vld [vmem:[%s0 + $0x14] sm:$0xf]
  %v151 = vld [vmem:[%s0 + $0x18] sm:$0xf]
  %v152 = vld [vmem:[%s0 + $0x1c] sm:$0xf]
  %v153 = vld [vmem:[%s0 + $0x20] sm:$0xf]
  %v154 = vld [vmem:[%s0 + $0x24] sm:$0xf]
  %v155 = vld [vmem:[%s0 + $0x28] sm:$0xf]
  %v156 = vld [vmem:[%s0 + $0x2c] sm:$0xf]
  %v157 = vld [vmem:[%s0 + $0x30] sm:$0xf]
  %v158 = vld [vmem:[%s0 + $0x34] sm:$0xf]
  %v159 = vld [vmem:[%s0 + $0x38] sm:$0xf]
  %v160 = vld [vmem:[%s0 + $0x3c] sm:$0xf]
  %v161 = vld [vmem:[%s0 + $0x40] sm:$0xf]
  %v162 = vld [vmem:[%s0 + $0x44] sm:$0xf]
  %v163 = vld [vmem:[%s0 + $0x48] sm:$0xf]
  %v164 = vld [vmem:[%s0 + $0x4c] sm:$0xf]
  %v165 = vld [vmem:[%s0 + $0x50] sm:$0xf]
  %v166 = vld [vmem:[%s0 + $0x54] sm:$0xf]
  %v167 = vld [vmem:[%s0 + $0x58] sm:$0xf]
  %v168 = vld [vmem:[%s0 + $0x5c] sm:$0xf]
  %v169 = vld [vmem:[%s0 + $0x60] sm:$0xf]
  %v170 = vld [vmem:[%s0 + $0x64] sm:$0xf]
  %v171 = vld [vmem:[%s0 + $0x68] sm:$0xf]
  %v172 = vld [vmem:[%s0 + $0x6c] sm:$0xf]
  %v173 = vld [vmem:[%s0 + $0x70] sm:$0xf]
  %v174 = vld [vmem:[%s0 + $0x74] sm:$0xf]
  %v175 = vld [vmem:[%s0 + $0x78] sm:$0xf]
  %v176 = vld [vmem:[%s0 + $0x7c] sm:$0xf]
  %v177 = vld [vmem:[%s0 + $0x80] sm:$0xf]
  %v178 = vld [vmem:[%s0 + $0x84] sm:$0xf]
  %v179 = vld [vmem:[%s0 + $0x88] sm:$0xf]
  %v180 = vld [vmem:[%s0 + $0x8c] sm:$0xf]
  %v181 = vld [vmem:[%s0 + $0x90] sm:$0xf]
  %v182 = vld [vmem:[%s0 + $0x94] sm:$0xf]
  %v183 = vld [vmem:[%s0 + $0x98] sm:$0xf]
  %v184 = vld [vmem:[%s0 + $0x9c] sm:$0xf]
  %v185 = vld [vmem:[%s0 + $0xa0] sm:$0xf]
  %v186 = vld [vmem:[%s0 + $0xa4] sm:$0xf]
  %v187 = vld [vmem:[%s0 + $0xa8] sm:$0xf]
  %v188 = vld [vmem:[%s0 + $0xac] sm:$0xf]
  %v189 = vld [vmem:[%s0 + $0xb0] sm:$0xf]
  %v190 = vld [vmem:[%s0 + $0xb4] sm:$0xf]
  %v191 = vld [vmem:[%s0 + $0xb8] sm:$0xf]
  %v192 = vld [vmem:[%s0 + $0xbc] sm:$0xf]
  %v193 = vld [vmem:[%s0 + $0xc0] sm:$0xf]
  %v194 = vld [vmem:[%s0 + $0xc4] sm:$0xf]
  %v195 = vld [vmem:[%s0 + $0xc8] sm:$0xf]
  %v196 = vld [vmem:[%s0 + $0xcc] sm:$0xf]
  %v197 = vld [vmem:[%s0 + $0xd0] sm:$0xf]
  %v198 = vld [vmem:[%s0 + $0xd4] sm:$0xf]
  %v199 = vld [vmem:[%s0 + $0xd8] sm:$0xf]
  %v200 = vld [vmem:[%s0 + $0xdc] sm:$0xf]
  %v201 = vld [vmem:[%s0 + $0xe0] sm:$0xf]
  %v202 = vld [vmem:[%s0 + $0xe4] sm:$0xf]
  %v203 = vld [vmem:[%s0 + $0xe8] sm:$0xf]
  %v204 = vld [vmem:[%s0 + $0xec] sm:$0xf]
  %v205 = vld [vmem:[%s0 + $0xf0] sm:$0xf]
  %v206 = vld [vmem:[%s0 + $0xf4] sm:$0xf]
  %v207 = vld [vmem:[%s0 + $0xf8] sm:$0xf]
  %v208 = vld [vmem:[%s0 + $0xfc] sm:$0xf]
  %v209 = vld [vmem:[%s1] sm:$0x3]
  %v274 = vunpack.c.l.b16 %v145
  %v275 = vunpack.c.l.b16 %v146
  %v276 = vunpack.c.l.b16 %v147
  %v277 = vunpack.c.l.b16 %v148
  %v278 = vunpack.c.l.b16 %v149
  %v279 = vunpack.c.l.b16 %v150
  %v280 = vunpack.c.l.b16 %v151
  %v281 = vunpack.c.l.b16 %v152
  %v282 = vunpack.c.l.b16 %v153
  %v283 = vunpack.c.l.b16 %v154
  %v284 = vunpack.c.l.b16 %v155
  %v285 = vunpack.c.l.b16 %v156
  %v286 = vunpack.c.l.b16 %v157
  %v287 = vunpack.c.l.b16 %v158
  %v288 = vunpack.c.l.b16 %v159
  %v289 = vunpack.c.l.b16 %v160
  %v290 = vunpack.c.l.b16 %v161
  %v291 = vunpack.c.l.b16 %v162
  %v292 = vunpack.c.l.b16 %v163
  %v293 = vunpack.c.l.b16 %v164
  %v294 = vunpack.c.l.b16 %v165
  %v295 = vunpack.c.l.b16 %v166
  %v296 = vunpack.c.l.b16 %v167
  %v297 = vunpack.c.l.b16 %v168
  %v298 = vunpack.c.l.b16 %v169
  %v299 = vunpack.c.l.b16 %v170
  %v300 = vunpack.c.l.b16 %v171
  %v301 = vunpack.c.l.b16 %v172
  %v302 = vunpack.c.l.b16 %v173
  %v303 = vunpack.c.l.b16 %v174
  %v304 = vunpack.c.l.b16 %v175
  %v305 = vunpack.c.l.b16 %v176
  %v306 = vunpack.c.l.b16 %v177
  %v307 = vunpack.c.l.b16 %v178
  %v308 = vunpack.c.l.b16 %v179
  %v309 = vunpack.c.l.b16 %v180
  %v310 = vunpack.c.l.b16 %v181
  %v311 = vunpack.c.l.b16 %v182
  %v312 = vunpack.c.l.b16 %v183
  %v313 = vunpack.c.l.b16 %v184
  %v314 = vunpack.c.l.b16 %v185
  %v315 = vunpack.c.l.b16 %v186
  %v316 = vunpack.c.l.b16 %v187
  %v317 = vunpack.c.l.b16 %v188
  %v318 = vunpack.c.l.b16 %v189
  %v319 = vunpack.c.l.b16 %v190
  %v320 = vunpack.c.l.b16 %v191
  %v321 = vunpack.c.l.b16 %v192
  %v322 = vunpack.c.l.b16 %v193
  %v323 = vunpack.c.l.b16 %v194
  %v324 = vunpack.c.l.b16 %v195
  %v325 = vunpack.c.l.b16 %v196
  %v326 = vunpack.c.l.b16 %v197
  %v327 = vunpack.c.l.b16 %v198
  %v328 = vunpack.c.l.b16 %v199
  %v329 = vunpack.c.l.b16 %v200
  %v330 = vunpack.c.l.b16 %v201
  %v331 = vunpack.c.l.b16 %v202
  %v332 = vunpack.c.l.b16 %v203
  %v333 = vunpack.c.l.b16 %v204
  %v334 = vunpack.c.l.b16 %v205
  %v335 = vunpack.c.l.b16 %v206
  %v336 = vunpack.c.l.b16 %v207
  %v337 = vunpack.c.l.b16 %v208
  %v338 = vpack.c.b16 %v275, %v274
  %v339 = vpack.c.b16 %v277, %v276
  %v340 = vpack.c.b16 %v279, %v278
  %v341 = vpack.c.b16 %v281, %v280
  %v342 = vpack.c.b16 %v283, %v282
  %v343 = vpack.c.b16 %v285, %v284
  %v344 = vpack.c.b16 %v287, %v286
  %v345 = vpack.c.b16 %v289, %v288
  %v346 = vpack.c.b16 %v291, %v290
  %v347 = vpack.c.b16 %v293, %v292
  %v348 = vpack.c.b16 %v295, %v294
  %v349 = vpack.c.b16 %v297, %v296
  %v350 = vpack.c.b16 %v299, %v298
  %v351 = vpack.c.b16 %v301, %v300
  %v352 = vpack.c.b16 %v303, %v302
  %v353 = vpack.c.b16 %v305, %v304
  %v354 = vpack.c.b16 %v307, %v306
  %v355 = vpack.c.b16 %v309, %v308
  %v356 = vpack.c.b16 %v311, %v310
  %v357 = vpack.c.b16 %v313, %v312
  %v358 = vpack.c.b16 %v315, %v314
  %v359 = vpack.c.b16 %v317, %v316
  %v360 = vpack.c.b16 %v319, %v318
  %v361 = vpack.c.b16 %v321, %v320
  %v362 = vpack.c.b16 %v323, %v322
  %v363 = vpack.c.b16 %v325, %v324
  %v364 = vpack.c.b16 %v327, %v326
  %v365 = vpack.c.b16 %v329, %v328
  %v366 = vpack.c.b16 %v331, %v330
  %v367 = vpack.c.b16 %v333, %v332
  %v368 = vpack.c.b16 %v335, %v334
  %v369 = vpack.c.b16 %v337, %v336
  %vm370 = vcmask 31744
  %v372 = vsel %vm370, %v338, 0
  %v375 = vsel %vm370, %v339, 0
  %v378 = vsel %vm370, %v340, 0
  %v381 = vsel %vm370, %v341, 0
  %v384 = vsel %vm370, %v342, 0
  %v387 = vsel %vm370, %v343, 0
  %v390 = vsel %vm370, %v344, 0
  %v393 = vsel %vm370, %v345, 0
  %v396 = vsel %vm370, %v346, 0
  %v399 = vsel %vm370, %v347, 0
  %v402 = vsel %vm370, %v348, 0
  %v405 = vsel %vm370, %v349, 0
  %v408 = vsel %vm370, %v350, 0
  %v411 = vsel %vm370, %v351, 0
  %v414 = vsel %vm370, %v352, 0
  %v417 = vsel %vm370, %v353, 0
  %v420 = vsel %vm370, %v354, 0
  %v423 = vsel %vm370, %v355, 0
  %v426 = vsel %vm370, %v356, 0
  %v429 = vsel %vm370, %v357, 0
  %v432 = vsel %vm370, %v358, 0
  %v435 = vsel %vm370, %v359, 0
  %v438 = vsel %vm370, %v360, 0
  %v441 = vsel %vm370, %v361, 0
  %v444 = vsel %vm370, %v362, 0
  %v447 = vsel %vm370, %v363, 0
  %v450 = vsel %vm370, %v364, 0
  %v453 = vsel %vm370, %v365, 0
  %v456 = vsel %vm370, %v366, 0
  %v459 = vsel %vm370, %v367, 0
  %v462 = vsel %vm370, %v368, 0
  %v465 = vsel %vm370, %v369, 0
  %vm467 = vcmask 1041408
  %v469 = vsel %vm467, %v209, 0
  %471 = vmatprep.subr.bf16.mxu0 0
  %472 = vmatpush1.bf16.msra.mxu0 %v469
  %473 = vmatprep.subr.bf16.mxu0 0
  %474 = vmatpush1.bf16.msra.mxu0 0
  %475 = vmatprep.subr.bf16.mxu0 0
  %476 = vmatpush1.bf16.msra.mxu0 0
  %477 = vmatprep.subr.bf16.mxu0 0
  %478 = vmatpush1.bf16.msra.mxu0 0
  %479 = vmatprep.subr.bf16.mxu0 0
  %480 = vmatpush1.bf16.msra.mxu0 0
  %481 = vmatprep.subr.bf16.mxu0 0
  %482 = vmatpush1.bf16.msra.mxu0 0
  %483 = vmatprep.subr.bf16.mxu0 0
  %484 = vmatpush1.bf16.msra.mxu0 0
  %485 = vmatprep.subr.bf16.mxu0 0
  %486 = vmatpush1.bf16.msra.mxu0 0
  %487 = vmatprep.subr.bf16.mxu0 0
  %488 = vmatpush1.bf16.msra.mxu0 0
  %489 = vmatprep.subr.bf16.mxu0 0
  %490 = vmatpush1.bf16.msra.mxu0 0
  %491 = vmatprep.subr.bf16.mxu0 0
  %492 = vmatpush1.bf16.msra.mxu0 0
  %493 = vmatprep.subr.bf16.mxu0 0
  %494 = vmatpush1.bf16.msra.mxu0 0
  %495 = vmatprep.subr.bf16.mxu0 0
  %496 = vmatpush1.bf16.msra.mxu0 0
  %497 = vmatprep.subr.bf16.mxu0 0
  %498 = vmatpush1.bf16.msra.mxu0 0
  %499 = vmatprep.subr.bf16.mxu0 0
  %500 = vmatpush1.bf16.msra.mxu0 0
  %501 = vmatprep.subr.bf16.mxu0 0
  %502 = vmatpush1.bf16.msra.mxu0 0
  %503 = vmatprep.mubr.bf16.mxu0 0
  %504 = vmatmul.mubr.bf16.gmra.mrb[0].mxu0 %v372
  %v505 = vpop.f32.mrb[0].mxu0
  %v506 = vadd.f32 0.0, %v505
  %v507 = vpop.f32.mrb[0].mxu0
  %v508 = vpop.f32.mrb[0].mxu0
  %v509 = vadd.f32 0.0, %v508
  %v510 = vpop.f32.mrb[0].mxu0
  %511 = vmatprep.mubr.bf16.mxu0 0
  %512 = vmatmul.mubr.bf16.gmra.mrb[0].mxu0 %v375
  %v513 = vpop.f32.mrb[0].mxu0
  %v514 = vadd.f32 0.0, %v513
  %v515 = vpop.f32.mrb[0].mxu0
  %v516 = vpop.f32.mrb[0].mxu0
  %v517 = vadd.f32 0.0, %v516
  %v518 = vpop.f32.mrb[0].mxu0
  %519 = vmatprep.mubr.bf16.mxu0 0
  %520 = vmatmul.mubr.bf16.gmra.mrb[0].mxu0 %v378
  %v521 = vpop.f32.mrb[0].mxu0
  %v522 = vadd.f32 0.0, %v521
  %v523 = vpop.f32.mrb[0].mxu0
  %v524 = vpop.f32.mrb[0].mxu0
  %v525 = vadd.f32 0.0, %v524
  %v526 = vpop.f32.mrb[0].mxu0
  %527 = vmatprep.mubr.bf16.mxu0 0
  %528 = vmatmul.mubr.bf16.gmra.mrb[0].mxu0 %v381
  %v529 = vpop.f32.mrb[0].mxu0
  %v530 = vadd.f32 0.0, %v529
  %v531 = vpop.f32.mrb[0].mxu0
  %v532 = vpop.f32.mrb[0].mxu0
  %v533 = vadd.f32 0.0, %v532
  %v534 = vpop.f32.mrb[0].mxu0
  %535 = vmatprep.mubr.bf16.mxu0 0
  %536 = vmatmul.mubr.bf16.gmra.mrb[0].mxu0 %v384
  %v537 = vpop.f32.mrb[0].mxu0
  %v538 = vadd.f32 0.0, %v537
  %v539 = vpop.f32.mrb[0].mxu0
  %v540 = vpop.f32.mrb[0].mxu0
  %v541 = vadd.f32 0.0, %v540
  %v542 = vpop.f32.mrb[0].mxu0
  %543 = vmatprep.mubr.bf16.mxu0 0
  %544 = vmatmul.mubr.bf16.gmra.mrb[0].mxu0 %v387
  %v545 = vpop.f32.mrb[0].mxu0
  %v546 = vadd.f32 0.0, %v545
  %v547 = vpop.f32.mrb[0].mxu0
  %v548 = vpop.f32.mrb[0].mxu0
  %v549 = vadd.f32 0.0, %v548
  %v550 = vpop.f32.mrb[0].mxu0
  %551 = vmatprep.mubr.bf16.mxu0 0
  %552 = vmatmul.mubr.bf16.gmra.mrb[0].mxu0 %v390
  %v553 = vpop.f32.mrb[0].mxu0
  %v554 = vadd.f32 0.0, %v553
  %v555 = vpop.f32.mrb[0].mxu0
  %v556 = vpop.f32.mrb[0].mxu0
  %v557 = vadd.f32 0.0, %v556
  %v558 = vpop.f32.mrb[0].mxu0
  %559 = vmatprep.mubr.bf16.mxu0 0
  %560 = vmatmul.mubr.bf16.gmra.mrb[0].mxu0 %v393
  %v561 = vpop.f32.mrb[0].mxu0
  %v562 = vadd.f32 0.0, %v561
  %v563 = vpop.f32.mrb[0].mxu0
  %v564 = vpop.f32.mrb[0].mxu0
  %v565 = vadd.f32 0.0, %v564
  %v566 = vpop.f32.mrb[0].mxu0
  %567 = vmatprep.mubr.bf16.mxu0 0
  %568 = vmatmul.mubr.bf16.gmra.mrb[0].mxu0 %v396
  %v569 = vpop.f32.mrb[0].mxu0
  %v570 = vadd.f32 0.0, %v569
  %v571 = vpop.f32.mrb[0].mxu0
  %v572 = vpop.f32.mrb[0].mxu0
  %v573 = vadd.f32 0.0, %v572
  %v574 = vpop.f32.mrb[0].mxu0
  %575 = vmatprep.mubr.bf16.mxu0 0
  %576 = vmatmul.mubr.bf16.gmra.mrb[0].mxu0 %v399
  %v577 = vpop.f32.mrb[0].mxu0
  %v578 = vadd.f32 0.0, %v577
  %v579 = vpop.f32.mrb[0].mxu0
  %v580 = vpop.f32.mrb[0].mxu0
  %v581 = vadd.f32 0.0, %v580
  %v582 = vpop.f32.mrb[0].mxu0
  %583 = vmatprep.mubr.bf16.mxu0 0
  %584 = vmatmul.mubr.bf16.gmra.mrb[0].mxu0 %v402
  %v585 = vpop.f32.mrb[0].mxu0
  %v586 = vadd.f32 0.0, %v585
  %v587 = vpop.f32.mrb[0].mxu0
  %v588 = vpop.f32.mrb[0].mxu0
  %v589 = vadd.f32 0.0, %v588
  %v590 = vpop.f32.mrb[0].mxu0
  %591 = vmatprep.mubr.bf16.mxu0 0
  %592 = vmatmul.mubr.bf16.gmra.mrb[0].mxu0 %v405
  %v593 = vpop.f32.mrb[0].mxu0
  %v594 = vadd.f32 0.0, %v593
  %v595 = vpop.f32.mrb[0].mxu0
  %v596 = vpop.f32.mrb[0].mxu0
  %v597 = vadd.f32 0.0, %v596
  %v598 = vpop.f32.mrb[0].mxu0
  %599 = vmatprep.mubr.bf16.mxu0 0
  %600 = vmatmul.mubr.bf16.gmra.mrb[0].mxu0 %v408
  %v601 = vpop.f32.mrb[0].mxu0
  %v602 = vadd.f32 0.0, %v601
  %v603 = vpop.f32.mrb[0].mxu0
  %v604 = vpop.f32.mrb[0].mxu0
  %v605 = vadd.f32 0.0, %v604
  %v606 = vpop.f32.mrb[0].mxu0
  %607 = vmatprep.mubr.bf16.mxu0 0
  %608 = vmatmul.mubr.bf16.gmra.mrb[0].mxu0 %v411
  %v609 = vpop.f32.mrb[0].mxu0
  %v610 = vadd.f32 0.0, %v609
  %v611 = vpop.f32.mrb[0].mxu0
  %v612 = vpop.f32.mrb[0].mxu0
  %v613 = vadd.f32 0.0, %v612
  %v614 = vpop.f32.mrb[0].mxu0
  %615 = vmatprep.mubr.bf16.mxu0 0
  %616 = vmatmul.mubr.bf16.gmra.mrb[0].mxu0 %v414
  %v617 = vpop.f32.mrb[0].mxu0
  %v618 = vadd.f32 0.0, %v617
  %v619 = vpop.f32.mrb[0].mxu0
  %v620 = vpop.f32.mrb[0].mxu0
  %v621 = vadd.f32 0.0, %v620
  %v622 = vpop.f32.mrb[0].mxu0
  %623 = vmatprep.mubr.bf16.mxu0 0
  %624 = vmatmul.mubr.bf16.gmra.mrb[0].mxu0 %v417
  %v625 = vpop.f32.mrb[0].mxu0
  %v626 = vadd.f32 0.0, %v625
  %v627 = vpop.f32.mrb[0].mxu0
  %v628 = vpop.f32.mrb[0].mxu0
  %v629 = vadd.f32 0.0, %v628
  %v630 = vpop.f32.mrb[0].mxu0
  %631 = vmatprep.mubr.bf16.mxu0 0
  %632 = vmatmul.mubr.bf16.gmra.mrb[0].mxu0 %v420
  %v633 = vpop.f32.mrb[0].mxu0
  %v634 = vadd.f32 0.0, %v633
  %v635 = vpop.f32.mrb[0].mxu0
  %v636 = vpop.f32.mrb[0].mxu0
  %v637 = vadd.f32 0.0, %v636
  %v638 = vpop.f32.mrb[0].mxu0
  %639 = vmatprep.mubr.bf16.mxu0 0
  %640 = vmatmul.mubr.bf16.gmra.mrb[0].mxu0 %v423
  %v641 = vpop.f32.mrb[0].mxu0
  %v642 = vadd.f32 0.0, %v641
  %v643 = vpop.f32.mrb[0].mxu0
  %v644 = vpop.f32.mrb[0].mxu0
  %v645 = vadd.f32 0.0, %v644
  %v646 = vpop.f32.mrb[0].mxu0
  %647 = vmatprep.mubr.bf16.mxu0 0
  %648 = vmatmul.mubr.bf16.gmra.mrb[0].mxu0 %v426
  %v649 = vpop.f32.mrb[0].mxu0
  %v650 = vadd.f32 0.0, %v649
  %v651 = vpop.f32.mrb[0].mxu0
  %v652 = vpop.f32.mrb[0].mxu0
  %v653 = vadd.f32 0.0, %v652
  %v654 = vpop.f32.mrb[0].mxu0
  %655 = vmatprep.mubr.bf16.mxu0 0
  %656 = vmatmul.mubr.bf16.gmra.mrb[0].mxu0 %v429
  %v657 = vpop.f32.mrb[0].mxu0
  %v658 = vadd.f32 0.0, %v657
  %v659 = vpop.f32.mrb[0].mxu0
  %v660 = vpop.f32.mrb[0].mxu0
  %v661 = vadd.f32 0.0, %v660
  %v662 = vpop.f32.mrb[0].mxu0
  %663 = vmatprep.mubr.bf16.mxu0 0
  %664 = vmatmul.mubr.bf16.gmra.mrb[0].mxu0 %v432
  %v665 = vpop.f32.mrb[0].mxu0
  %v666 = vadd.f32 0.0, %v665
  %v667 = vpop.f32.mrb[0].mxu0
  %v668 = vpop.f32.mrb[0].mxu0
  %v669 = vadd.f32 0.0, %v668
  %v670 = vpop.f32.mrb[0].mxu0
  %671 = vmatprep.mubr.bf16.mxu0 0
  %672 = vmatmul.mubr.bf16.gmra.mrb[0].mxu0 %v435
  %v673 = vpop.f32.mrb[0].mxu0
  %v674 = vadd.f32 0.0, %v673
  %v675 = vpop.f32.mrb[0].mxu0
  %v676 = vpop.f32.mrb[0].mxu0
  %v677 = vadd.f32 0.0, %v676
  %v678 = vpop.f32.mrb[0].mxu0
  %679 = vmatprep.mubr.bf16.mxu0 0
  %680 = vmatmul.mubr.bf16.gmra.mrb[0].mxu0 %v438
  %v681 = vpop.f32.mrb[0].mxu0
  %v682 = vadd.f32 0.0, %v681
  %v683 = vpop.f32.mrb[0].mxu0
  %v684 = vpop.f32.mrb[0].mxu0
  %v685 = vadd.f32 0.0, %v684
  %v686 = vpop.f32.mrb[0].mxu0
  %687 = vmatprep.mubr.bf16.mxu0 0
  %688 = vmatmul.mubr.bf16.gmra.mrb[0].mxu0 %v441
  %v689 = vpop.f32.mrb[0].mxu0
  %v690 = vadd.f32 0.0, %v689
  %v691 = vpop.f32.mrb[0].mxu0
  %v692 = vpop.f32.mrb[0].mxu0
  %v693 = vadd.f32 0.0, %v692
  %v694 = vpop.f32.mrb[0].mxu0
  %695 = vmatprep.mubr.bf16.mxu0 0
  %696 = vmatmul.mubr.bf16.gmra.mrb[0].mxu0 %v444
  %v697 = vpop.f32.mrb[0].mxu0
  %v698 = vadd.f32 0.0, %v697
  %v699 = vpop.f32.mrb[0].mxu0
  %v700 = vpop.f32.mrb[0].mxu0
  %v701 = vadd.f32 0.0, %v700
  %v702 = vpop.f32.mrb[0].mxu0
  %703 = vmatprep.mubr.bf16.mxu0 0
  %704 = vmatmul.mubr.bf16.gmra.mrb[0].mxu0 %v447
  %v705 = vpop.f32.mrb[0].mxu0
  %v706 = vadd.f32 0.0, %v705
  %v707 = vpop.f32.mrb[0].mxu0
  %v708 = vpop.f32.mrb[0].mxu0
  %v709 = vadd.f32 0.0, %v708
  %v710 = vpop.f32.mrb[0].mxu0
  %711 = vmatprep.mubr.bf16.mxu0 0
  %712 = vmatmul.mubr.bf16.gmra.mrb[0].mxu0 %v450
  %v713 = vpop.f32.mrb[0].mxu0
  %v714 = vadd.f32 0.0, %v713
  %v715 = vpop.f32.mrb[0].mxu0
  %v716 = vpop.f32.mrb[0].mxu0
  %v717 = vadd.f32 0.0, %v716
  %v718 = vpop.f32.mrb[0].mxu0
  %719 = vmatprep.mubr.bf16.mxu0 0
  %720 = vmatmul.mubr.bf16.gmra.mrb[0].mxu0 %v453
  %v721 = vpop.f32.mrb[0].mxu0
  %v722 = vadd.f32 0.0, %v721
  %v723 = vpop.f32.mrb[0].mxu0
  %v724 = vpop.f32.mrb[0].mxu0
  %v725 = vadd.f32 0.0, %v724
  %v726 = vpop.f32.mrb[0].mxu0
  %727 = vmatprep.mubr.bf16.mxu0 0
  %728 = vmatmul.mubr.bf16.gmra.mrb[0].mxu0 %v456
  %v729 = vpop.f32.mrb[0].mxu0
  %v730 = vadd.f32 0.0, %v729
  %v731 = vpop.f32.mrb[0].mxu0
  %v732 = vpop.f32.mrb[0].mxu0
  %v733 = vadd.f32 0.0, %v732
  %v734 = vpop.f32.mrb[0].mxu0
  %735 = vmatprep.mubr.bf16.mxu0 0
  %736 = vmatmul.mubr.bf16.gmra.mrb[0].mxu0 %v459
  %v737 = vpop.f32.mrb[0].mxu0
  %v738 = vadd.f32 0.0, %v737
  %v739 = vpop.f32.mrb[0].mxu0
  %v740 = vpop.f32.mrb[0].mxu0
  %v741 = vadd.f32 0.0, %v740
  %v742 = vpop.f32.mrb[0].mxu0
  %743 = vmatprep.mubr.bf16.mxu0 0
  %744 = vmatmul.mubr.bf16.gmra.mrb[0].mxu0 %v462
  %v745 = vpop.f32.mrb[0].mxu0
  %v746 = vadd.f32 0.0, %v745
  %v747 = vpop.f32.mrb[0].mxu0
  %v748 = vpop.f32.mrb[0].mxu0
  %v749 = vadd.f32 0.0, %v748
  %v750 = vpop.f32.mrb[0].mxu0
  %751 = vmatprep.mubr.bf16.mxu0 0
  %752 = vmatmul.mubr.bf16.gmra.mrb[0].mxu0 %v465
  %v753 = vpop.f32.mrb[0].mxu0
  %v754 = vadd.f32 0.0, %v753
  %v755 = vpop.f32.mrb[0].mxu0
  %v756 = vpop.f32.mrb[0].mxu0
  %v757 = vadd.f32 0.0, %v756
  %v758 = vpop.f32.mrb[0].mxu0
  %759 = vdwg.mxu0
  %v760 = vadd.f32 %v81, %v506
  %v761 = vadd.f32 %v82, %v509
  %v762 = vadd.f32 %v83, %v514
  %v763 = vadd.f32 %v84, %v517
  %v764 = vadd.f32 %v85, %v522
  %v765 = vadd.f32 %v86, %v525
  %v766 = vadd.f32 %v87, %v530
  %v767 = vadd.f32 %v88, %v533
  %v768 = vadd.f32 %v89, %v538
  %v769 = vadd.f32 %v90, %v541
  %v770 = vadd.f32 %v91, %v546
  %v771 = vadd.f32 %v92, %v549
  %v772 = vadd.f32 %v93, %v554
  %v773 = vadd.f32 %v94, %v557
  %v774 = vadd.f32 %v95, %v562
  %v775 = vadd.f32 %v96, %v565
  %v776 = vadd.f32 %v97, %v570
  %v777 = vadd.f32 %v98, %v573
  %v778 = vadd.f32 %v99, %v578
  %v779 = vadd.f32 %v100, %v581
  %v780 = vadd.f32 %v101, %v586
  %v781 = vadd.f32 %v102, %v589
  %v782 = vadd.f32 %v103, %v594
  %v783 = vadd.f32 %v104, %v597
  %v784 = vadd.f32 %v105, %v602
  %v785 = vadd.f32 %v106, %v605
  %v786 = vadd.f32 %v107, %v610
  %v787 = vadd.f32 %v108, %v613
  %v788 = vadd.f32 %v109, %v618
  %v789 = vadd.f32 %v110, %v621
  %v790 = vadd.f32 %v111, %v626
  %v791 = vadd.f32 %v112, %v629
  %v792 = vadd.f32 %v113, %v634
  %v793 = vadd.f32 %v114, %v637
  %v794 = vadd.f32 %v115, %v642
  %v795 = vadd.f32 %v116, %v645
  %v796 = vadd.f32 %v117, %v650
  %v797 = vadd.f32 %v118, %v653
  %v798 = vadd.f32 %v119, %v658
  %v799 = vadd.f32 %v120, %v661
  %v800 = vadd.f32 %v121, %v666
  %v801 = vadd.f32 %v122, %v669
  %v802 = vadd.f32 %v123, %v674
  %v803 = vadd.f32 %v124, %v677
  %v804 = vadd.f32 %v125, %v682
  %v805 = vadd.f32 %v126, %v685
  %v806 = vadd.f32 %v127, %v690
  %v807 = vadd.f32 %v128, %v693
  %v808 = vadd.f32 %v129, %v698
  %v809 = vadd.f32 %v130, %v701
  %v810 = vadd.f32 %v131, %v706
  %v811 = vadd.f32 %v132, %v709
  %v812 = vadd.f32 %v133, %v714
  %v813 = vadd.f32 %v134, %v717
  %v814 = vadd.f32 %v135, %v722
  %v815 = vadd.f32 %v136, %v725
  %v816 = vadd.f32 %v137, %v730
  %v817 = vadd.f32 %v138, %v733
  %v818 = vadd.f32 %v139, %v738
  %v819 = vadd.f32 %v140, %v741
  %v820 = vadd.f32 %v141, %v746
  %v821 = vadd.f32 %v142, %v749
  %v822 = vadd.f32 %v143, %v754
  %v823 = vadd.f32 %v144, %v757
  %824 = vst.msk [vmem:[#allocation2] sm:$0xff] %vm370, %v760
  %825 = vst.msk [vmem:[#allocation2 + $0x8] sm:$0xff] %vm370, %v761
  %826 = vst.msk [vmem:[#allocation2 + $0x10] sm:$0xff] %vm370, %v762
  %827 = vst.msk [vmem:[#allocation2 + $0x18] sm:$0xff] %vm370, %v763
  %828 = vst.msk [vmem:[#allocation2 + $0x20] sm:$0xff] %vm370, %v764
  %829 = vst.msk [vmem:[#allocation2 + $0x28] sm:$0xff] %vm370, %v765
  %830 = vst.msk [vmem:[#allocation2 + $0x30] sm:$0xff] %vm370, %v766
  %831 = vst.msk [vmem:[#allocation2 + $0x38] sm:$0xff] %vm370, %v767
  %832 = vst.msk [vmem:[#allocation2 + $0x40] sm:$0xff] %vm370, %v768
  %833 = vst.msk [vmem:[#allocation2 + $0x48] sm:$0xff] %vm370, %v769
  %834 = vst.msk [vmem:[#allocation2 + $0x50] sm:$0xff] %vm370, %v770
  %835 = vst.msk [vmem:[#allocation2 + $0x58] sm:$0xff] %vm370, %v771
  %836 = vst.msk [vmem:[#allocation2 + $0x60] sm:$0xff] %vm370, %v772
  %837 = vst.msk [vmem:[#allocation2 + $0x68] sm:$0xff] %vm370, %v773
  %838 = vst.msk [vmem:[#allocation2 + $0x70] sm:$0xff] %vm370, %v774
  %839 = vst.msk [vmem:[#allocation2 + $0x78] sm:$0xff] %vm370, %v775
  %840 = vst.msk [vmem:[#allocation2 + $0x80] sm:$0xff] %vm370, %v776
  %841 = vst.msk [vmem:[#allocation2 + $0x88] sm:$0xff] %vm370, %v777
  %842 = vst.msk [vmem:[#allocation2 + $0x90] sm:$0xff] %vm370, %v778
  %843 = vst.msk [vmem:[#allocation2 + $0x98] sm:$0xff] %vm370, %v779
  %844 = vst.msk [vmem:[#allocation2 + $0xa0] sm:$0xff] %vm370, %v780
  %845 = vst.msk [vmem:[#allocation2 + $0xa8] sm:$0xff] %vm370, %v781
  %846 = vst.msk [vmem:[#allocation2 + $0xb0] sm:$0xff] %vm370, %v782
  %847 = vst.msk [vmem:[#allocation2 + $0xb8] sm:$0xff] %vm370, %v783
  %848 = vst.msk [vmem:[#allocation2 + $0xc0] sm:$0xff] %vm370, %v784
  %849 = vst.msk [vmem:[#allocation2 + $0xc8] sm:$0xff] %vm370, %v785
  %850 = vst.msk [vmem:[#allocation2 + $0xd0] sm:$0xff] %vm370, %v786
  %851 = vst.msk [vmem:[#allocation2 + $0xd8] sm:$0xff] %vm370, %v787
  %852 = vst.msk [vmem:[#allocation2 + $0xe0] sm:$0xff] %vm370, %v788
  %853 = vst.msk [vmem:[#allocation2 + $0xe8] sm:$0xff] %vm370, %v789
  %854 = vst.msk [vmem:[#allocation2 + $0xf0] sm:$0xff] %vm370, %v790
  %855 = vst.msk [vmem:[#allocation2 + $0xf8] sm:$0xff] %vm370, %v791
  %856 = vst.msk [vmem:[#allocation2 + $0x100] sm:$0xff] %vm370, %v792
  %857 = vst.msk [vmem:[#allocation2 + $0x108] sm:$0xff] %vm370, %v793
  %858 = vst.msk [vmem:[#allocation2 + $0x110] sm:$0xff] %vm370, %v794
  %859 = vst.msk [vmem:[#allocation2 + $0x118] sm:$0xff] %vm370, %v795
  %860 = vst.msk [vmem:[#allocation2 + $0x120] sm:$0xff] %vm370, %v796
  %861 = vst.msk [vmem:[#allocation2 + $0x128] sm:$0xff] %vm370, %v797
  %862 = vst.msk [vmem:[#allocation2 + $0x130] sm:$0xff] %vm370, %v798
  %863 = vst.msk [vmem:[#allocation2 + $0x138] sm:$0xff] %vm370, %v799
  %864 = vst.msk [vmem:[#allocation2 + $0x140] sm:$0xff] %vm370, %v800
  %865 = vst.msk [vmem:[#allocation2 + $0x148] sm:$0xff] %vm370, %v801
  %866 = vst.msk [vmem:[#allocation2 + $0x150] sm:$0xff] %vm370, %v802
  %867 = vst.msk [vmem:[#allocation2 + $0x158] sm:$0xff] %vm370, %v803
  %868 = vst.msk [vmem:[#allocation2 + $0x160] sm:$0xff] %vm370, %v804
  %869 = vst.msk [vmem:[#allocation2 + $0x168] sm:$0xff] %vm370, %v805
  %870 = vst.msk [vmem:[#allocation2 + $0x170] sm:$0xff] %vm370, %v806
  %871 = vst.msk [vmem:[#allocation2 + $0x178] sm:$0xff] %vm370, %v807
  %872 = vst.msk [vmem:[#allocation2 + $0x180] sm:$0xff] %vm370, %v808
  %873 = vst.msk [vmem:[#allocation2 + $0x188] sm:$0xff] %vm370, %v809
  %874 = vst.msk [vmem:[#allocation2 + $0x190] sm:$0xff] %vm370, %v810
  %875 = vst.msk [vmem:[#allocation2 + $0x198] sm:$0xff] %vm370, %v811
  %876 = vst.msk [vmem:[#allocation2 + $0x1a0] sm:$0xff] %vm370, %v812
  %877 = vst.msk [vmem:[#allocation2 + $0x1a8] sm:$0xff] %vm370, %v813
  %878 = vst.msk [vmem:[#allocation2 + $0x1b0] sm:$0xff] %vm370, %v814
  %879 = vst.msk [vmem:[#allocation2 + $0x1b8] sm:$0xff] %vm370, %v815
  %880 = vst.msk [vmem:[#allocation2 + $0x1c0] sm:$0xff] %vm370, %v816
  %881 = vst.msk [vmem:[#allocation2 + $0x1c8] sm:$0xff] %vm370, %v817
  %882 = vst.msk [vmem:[#allocation2 + $0x1d0] sm:$0xff] %vm370, %v818
  %883 = vst.msk [vmem:[#allocation2 + $0x1d8] sm:$0xff] %vm370, %v819
  %884 = vst.msk [vmem:[#allocation2 + $0x1e0] sm:$0xff] %vm370, %v820
  %885 = vst.msk [vmem:[#allocation2 + $0x1e8] sm:$0xff] %vm370, %v821
  %886 = vst.msk [vmem:[#allocation2 + $0x1f0] sm:$0xff] %vm370, %v822
  %887 = vst.msk [vmem:[#allocation2 + $0x1f8] sm:$0xff] %vm370, %v823
  // Predicated region
  $region14: #{_lambda_.3} parent=0 // pred_check
    %p888 = pneg %p12
  $region15: #{_lambda_.3} parent=0 // pred_check_branch
    %890 = sbr.rel (%p888) target = $region17
  $region16: #{_lambda_.3} parent=0 // pred_region
    %v891 = vld [vmem:[#allocation2] sm:$0xff]
    %v892 = vld [vmem:[#allocation2 + $0x8] sm:$0xff]
    %v893 = vld [vmem:[#allocation2 + $0x10] sm:$0xff]
    %v894 = vld [vmem:[#allocation2 + $0x18] sm:$0xff]
    %v895 = vld [vmem:[#allocation2 + $0x20] sm:$0xff]
    %v896 = vld [vmem:[#allocation2 + $0x28] sm:$0xff]
    %v897 = vld [vmem:[#allocation2 + $0x30] sm:$0xff]
    %v898 = vld [vmem:[#allocation2 + $0x38] sm:$0xff]
    %v899 = vld [vmem:[#allocation2 + $0x40] sm:$0xff]
    %v900 = vld [vmem:[#allocation2 + $0x48] sm:$0xff]
    %v901 = vld [vmem:[#allocation2 + $0x50] sm:$0xff]
    %v902 = vld [vmem:[#allocation2 + $0x58] sm:$0xff]
    %v903 = vld [vmem:[#allocation2 + $0x60] sm:$0xff]
    %v904 = vld [vmem:[#allocation2 + $0x68] sm:$0xff]
    %v905 = vld [vmem:[#allocation2 + $0x70] sm:$0xff]
    %v906 = vld [vmem:[#allocation2 + $0x78] sm:$0xff]
    %v907 = vld [vmem:[#allocation2 + $0x80] sm:$0xff]
    %v908 = vld [vmem:[#allocation2 + $0x88] sm:$0xff]
    %v909 = vld [vmem:[#allocation2 + $0x90] sm:$0xff]
    %v910 = vld [vmem:[#allocation2 + $0x98] sm:$0xff]
    %v911 = vld [vmem:[#allocation2 + $0xa0] sm:$0xff]
    %v912 = vld [vmem:[#allocation2 + $0xa8] sm:$0xff]
    %v913 = vld [vmem:[#allocation2 + $0xb0] sm:$0xff]
    %v914 = vld [vmem:[#allocation2 + $0xb8] sm:$0xff]
    %v915 = vld [vmem:[#allocation2 + $0xc0] sm:$0xff]
    %v916 = vld [vmem:[#allocation2 + $0xc8] sm:$0xff]
    %v917 = vld [vmem:[#allocation2 + $0xd0] sm:$0xff]
    %v918 = vld [vmem:[#allocation2 + $0xd8] sm:$0xff]
    %v919 = vld [vmem:[#allocation2 + $0xe0] sm:$0xff]
    %v920 = vld [vmem:[#allocation2 + $0xe8] sm:$0xff]
    %v921 = vld [vmem:[#allocation2 + $0xf0] sm:$0xff]
    %v922 = vld [vmem:[#allocation2 + $0xf8] sm:$0xff]
    %v923 = vld [vmem:[#allocation2 + $0x100] sm:$0xff]
    %v924 = vld [vmem:[#allocation2 + $0x108] sm:$0xff]
    %v925 = vld [vmem:[#allocation2 + $0x110] sm:$0xff]
    %v926 = vld [vmem:[#allocation2 + $0x118] sm:$0xff]
    %v927 = vld [vmem:[#allocation2 + $0x120] sm:$0xff]
    %v928 = vld [vmem:[#allocation2 + $0x128] sm:$0xff]
    %v929 = vld [vmem:[#allocation2 + $0x130] sm:$0xff]
    %v930 = vld [vmem:[#allocation2 + $0x138] sm:$0xff]
    %v931 = vld [vmem:[#allocation2 + $0x140] sm:$0xff]
    %v932 = vld [vmem:[#allocation2 + $0x148] sm:$0xff]
    %v933 = vld [vmem:[#allocation2 + $0x150] sm:$0xff]
    %v934 = vld [vmem:[#allocation2 + $0x158] sm:$0xff]
    %v935 = vld [vmem:[#allocation2 + $0x160] sm:$0xff]
    %v936 = vld [vmem:[#allocation2 + $0x168] sm:$0xff]
    %v937 = vld [vmem:[#allocation2 + $0x170] sm:$0xff]
    %v938 = vld [vmem:[#allocation2 + $0x178] sm:$0xff]
    %v939 = vld [vmem:[#allocation2 + $0x180] sm:$0xff]
    %v940 = vld [vmem:[#allocation2 + $0x188] sm:$0xff]
    %v941 = vld [vmem:[#allocation2 + $0x190] sm:$0xff]
    %v942 = vld [vmem:[#allocation2 + $0x198] sm:$0xff]
    %v943 = vld [vmem:[#allocation2 + $0x1a0] sm:$0xff]
    %v944 = vld [vmem:[#allocation2 + $0x1a8] sm:$0xff]
    %v945 = vld [vmem:[#allocation2 + $0x1b0] sm:$0xff]
    %v946 = vld [vmem:[#allocation2 + $0x1b8] sm:$0xff]
    %v947 = vld [vmem:[#allocation2 + $0x1c0] sm:$0xff]
    %v948 = vld [vmem:[#allocation2 + $0x1c8] sm:$0xff]
    %v949 = vld [vmem:[#allocation2 + $0x1d0] sm:$0xff]
    %v950 = vld [vmem:[#allocation2 + $0x1d8] sm:$0xff]
    %v951 = vld [vmem:[#allocation2 + $0x1e0] sm:$0xff]
    %v952 = vld [vmem:[#allocation2 + $0x1e8] sm:$0xff]
    %v953 = vld [vmem:[#allocation2 + $0x1f0] sm:$0xff]
    %v954 = vld [vmem:[#allocation2 + $0x1f8] sm:$0xff]
    %v955 = vmax.f32 %v891, 0.0
    %v956 = vmax.f32 %v892, 0.0
    %v957 = vmax.f32 %v893, 0.0
    %v958 = vmax.f32 %v894, 0.0
    %v959 = vmax.f32 %v895, 0.0
    %v960 = vmax.f32 %v896, 0.0
    %v961 = vmax.f32 %v897, 0.0
    %v962 = vmax.f32 %v898, 0.0
    %v963 = vmax.f32 %v899, 0.0
    %v964 = vmax.f32 %v900, 0.0
    %v965 = vmax.f32 %v901, 0.0
    %v966 = vmax.f32 %v902, 0.0
    %v967 = vmax.f32 %v903, 0.0
    %v968 = vmax.f32 %v904, 0.0
    %v969 = vmax.f32 %v905, 0.0
    %v970 = vmax.f32 %v906, 0.0
    %v971 = vmax.f32 %v907, 0.0
    %v972 = vmax.f32 %v908, 0.0
    %v973 = vmax.f32 %v909, 0.0
    %v974 = vmax.f32 %v910, 0.0
    %v975 = vmax.f32 %v911, 0.0
    %v976 = vmax.f32 %v912, 0.0
    %v977 = vmax.f32 %v913, 0.0
    %v978 = vmax.f32 %v914, 0.0
    %v979 = vmax.f32 %v915, 0.0
    %v980 = vmax.f32 %v916, 0.0
    %v981 = vmax.f32 %v917, 0.0
    %v982 = vmax.f32 %v918, 0.0
    %v983 = vmax.f32 %v919, 0.0
    %v984 = vmax.f32 %v920, 0.0
    %v985 = vmax.f32 %v921, 0.0
    %v986 = vmax.f32 %v922, 0.0
    %v987 = vmax.f32 %v923, 0.0
    %v988 = vmax.f32 %v924, 0.0
    %v989 = vmax.f32 %v925, 0.0
    %v990 = vmax.f32 %v926, 0.0
    %v991 = vmax.f32 %v927, 0.0
    %v992 = vmax.f32 %v928, 0.0
    %v993 = vmax.f32 %v929, 0.0
    %v994 = vmax.f32 %v930, 0.0
    %v995 = vmax.f32 %v931, 0.0
    %v996 = vmax.f32 %v932, 0.0
    %v997 = vmax.f32 %v933, 0.0
    %v998 = vmax.f32 %v934, 0.0
    %v999 = vmax.f32 %v935, 0.0
    %v1000 = vmax.f32 %v936, 0.0
    %v1001 = vmax.f32 %v937, 0.0
    %v1002 = vmax.f32 %v938, 0.0
    %v1003 = vmax.f32 %v939, 0.0
    %v1004 = vmax.f32 %v940, 0.0
    %v1005 = vmax.f32 %v941, 0.0
    %v1006 = vmax.f32 %v942, 0.0
    %v1007 = vmax.f32 %v943, 0.0
    %v1008 = vmax.f32 %v944, 0.0
    %v1009 = vmax.f32 %v945, 0.0
    %v1010 = vmax.f32 %v946, 0.0
    %v1011 = vmax.f32 %v947, 0.0
    %v1012 = vmax.f32 %v948, 0.0
    %v1013 = vmax.f32 %v949, 0.0
    %v1014 = vmax.f32 %v950, 0.0
    %v1015 = vmax.f32 %v951, 0.0
    %v1016 = vmax.f32 %v952, 0.0
    %v1017 = vmax.f32 %v953, 0.0
    %v1018 = vmax.f32 %v954, 0.0
    %v1019 = vpack.c.bf16 %v956, %v955
    %v1020 = vpack.c.bf16 %v958, %v957
    %v1021 = vpack.c.bf16 %v960, %v959
    %v1022 = vpack.c.bf16 %v962, %v961
    %v1023 = vpack.c.bf16 %v964, %v963
    %v1024 = vpack.c.bf16 %v966, %v965
    %v1025 = vpack.c.bf16 %v968, %v967
    %v1026 = vpack.c.bf16 %v970, %v969
    %v1027 = vpack.c.bf16 %v972, %v971
    %v1028 = vpack.c.bf16 %v974, %v973
    %v1029 = vpack.c.bf16 %v976, %v975
    %v1030 = vpack.c.bf16 %v978, %v977
    %v1031 = vpack.c.bf16 %v980, %v979
    %v1032 = vpack.c.bf16 %v982, %v981
    %v1033 = vpack.c.bf16 %v984, %v983
    %v1034 = vpack.c.bf16 %v986, %v985
    %v1035 = vpack.c.bf16 %v988, %v987
    %v1036 = vpack.c.bf16 %v990, %v989
    %v1037 = vpack.c.bf16 %v992, %v991
    %v1038 = vpack.c.bf16 %v994, %v993
    %v1039 = vpack.c.bf16 %v996, %v995
    %v1040 = vpack.c.bf16 %v998, %v997
    %v1041 = vpack.c.bf16 %v1000, %v999
    %v1042 = vpack.c.bf16 %v1002, %v1001
    %v1043 = vpack.c.bf16 %v1004, %v1003
    %v1044 = vpack.c.bf16 %v1006, %v1005
    %v1045 = vpack.c.bf16 %v1008, %v1007
    %v1046 = vpack.c.bf16 %v1010, %v1009
    %v1047 = vpack.c.bf16 %v1012, %v1011
    %v1048 = vpack.c.bf16 %v1014, %v1013
    %v1049 = vpack.c.bf16 %v1016, %v1015
    %v1050 = vpack.c.bf16 %v1018, %v1017
    %v1083 = vunpack.c.l.b16 %v1019
    %v1084 = vunpack.c.h.b16 %v1019
    %v1085 = vunpack.c.l.b16 %v1020
    %v1086 = vunpack.c.h.b16 %v1020
    %v1087 = vunpack.c.l.b16 %v1021
    %v1088 = vunpack.c.h.b16 %v1021
    %v1089 = vunpack.c.l.b16 %v1022
    %v1090 = vunpack.c.h.b16 %v1022
    %v1091 = vunpack.c.l.b16 %v1023
    %v1092 = vunpack.c.h.b16 %v1023
    %v1093 = vunpack.c.l.b16 %v1024
    %v1094 = vunpack.c.h.b16 %v1024
    %v1095 = vunpack.c.l.b16 %v1025
    %v1096 = vunpack.c.h.b16 %v1025
    %v1097 = vunpack.c.l.b16 %v1026
    %v1098 = vunpack.c.h.b16 %v1026
    %v1099 = vunpack.c.l.b16 %v1027
    %v1100 = vunpack.c.h.b16 %v1027
    %v1101 = vunpack.c.l.b16 %v1028
    %v1102 = vunpack.c.h.b16 %v1028
    %v1103 = vunpack.c.l.b16 %v1029
    %v1104 = vunpack.c.h.b16 %v1029
    %v1105 = vunpack.c.l.b16 %v1030
    %v1106 = vunpack.c.h.b16 %v1030
    %v1107 = vunpack.c.l.b16 %v1031
    %v1108 = vunpack.c.h.b16 %v1031
    %v1109 = vunpack.c.l.b16 %v1032
    %v1110 = vunpack.c.h.b16 %v1032
    %v1111 = vunpack.c.l.b16 %v1033
    %v1112 = vunpack.c.h.b16 %v1033
    %v1113 = vunpack.c.l.b16 %v1034
    %v1114 = vunpack.c.h.b16 %v1034
    %v1115 = vunpack.c.l.b16 %v1035
    %v1116 = vunpack.c.h.b16 %v1035
    %v1117 = vunpack.c.l.b16 %v1036
    %v1118 = vunpack.c.h.b16 %v1036
    %v1119 = vunpack.c.l.b16 %v1037
    %v1120 = vunpack.c.h.b16 %v1037
    %v1121 = vunpack.c.l.b16 %v1038
    %v1122 = vunpack.c.h.b16 %v1038
    %v1123 = vunpack.c.l.b16 %v1039
    %v1124 = vunpack.c.h.b16 %v1039
    %v1125 = vunpack.c.l.b16 %v1040
    %v1126 = vunpack.c.h.b16 %v1040
    %v1127 = vunpack.c.l.b16 %v1041
    %v1128 = vunpack.c.h.b16 %v1041
    %v1129 = vunpack.c.l.b16 %v1042
    %v1130 = vunpack.c.h.b16 %v1042
    %v1131 = vunpack.c.l.b16 %v1043
    %v1132 = vunpack.c.h.b16 %v1043
    %v1133 = vunpack.c.l.b16 %v1044
    %v1134 = vunpack.c.h.b16 %v1044
    %v1135 = vunpack.c.l.b16 %v1045
    %v1136 = vunpack.c.h.b16 %v1045
    %v1137 = vunpack.c.l.b16 %v1046
    %v1138 = vunpack.c.h.b16 %v1046
    %v1139 = vunpack.c.l.b16 %v1047
    %v1140 = vunpack.c.h.b16 %v1047
    %v1141 = vunpack.c.l.b16 %v1048
    %v1142 = vunpack.c.h.b16 %v1048
    %v1143 = vunpack.c.l.b16 %v1049
    %v1144 = vunpack.c.h.b16 %v1049
    %v1145 = vunpack.c.l.b16 %v1050
    %v1146 = vunpack.c.h.b16 %v1050
    %v1147 = vpack.c.b16 %v1083, %v1083
    %v1148 = vpack.c.b16 %v1084, %v1084
    %v1149 = vpack.c.b16 %v1085, %v1085
    %v1150 = vpack.c.b16 %v1086, %v1086
    %v1151 = vpack.c.b16 %v1087, %v1087
    %v1152 = vpack.c.b16 %v1088, %v1088
    %v1153 = vpack.c.b16 %v1089, %v1089
    %v1154 = vpack.c.b16 %v1090, %v1090
    %v1155 = vpack.c.b16 %v1091, %v1091
    %v1156 = vpack.c.b16 %v1092, %v1092
    %v1157 = vpack.c.b16 %v1093, %v1093
    %v1158 = vpack.c.b16 %v1094, %v1094
    %v1159 = vpack.c.b16 %v1095, %v1095
    %v1160 = vpack.c.b16 %v1096, %v1096
    %v1161 = vpack.c.b16 %v1097, %v1097
    %v1162 = vpack.c.b16 %v1098, %v1098
    %v1163 = vpack.c.b16 %v1099, %v1099
    %v1164 = vpack.c.b16 %v1100, %v1100
    %v1165 = vpack.c.b16 %v1101, %v1101
    %v1166 = vpack.c.b16 %v1102, %v1102
    %v1167 = vpack.c.b16 %v1103, %v1103
    %v1168 = vpack.c.b16 %v1104, %v1104
    %v1169 = vpack.c.b16 %v1105, %v1105
    %v1170 = vpack.c.b16 %v1106, %v1106
    %v1171 = vpack.c.b16 %v1107, %v1107
    %v1172 = vpack.c.b16 %v1108, %v1108
    %v1173 = vpack.c.b16 %v1109, %v1109
    %v1174 = vpack.c.b16 %v1110, %v1110
    %v1175 = vpack.c.b16 %v1111, %v1111
    %v1176 = vpack.c.b16 %v1112, %v1112
    %v1177 = vpack.c.b16 %v1113, %v1113
    %v1178 = vpack.c.b16 %v1114, %v1114
    %v1179 = vpack.c.b16 %v1115, %v1115
    %v1180 = vpack.c.b16 %v1116, %v1116
    %v1181 = vpack.c.b16 %v1117, %v1117
    %v1182 = vpack.c.b16 %v1118, %v1118
    %v1183 = vpack.c.b16 %v1119, %v1119
    %v1184 = vpack.c.b16 %v1120, %v1120
    %v1185 = vpack.c.b16 %v1121, %v1121
    %v1186 = vpack.c.b16 %v1122, %v1122
    %v1187 = vpack.c.b16 %v1123, %v1123
    %v1188 = vpack.c.b16 %v1124, %v1124
    %v1189 = vpack.c.b16 %v1125, %v1125
    %v1190 = vpack.c.b16 %v1126, %v1126
    %v1191 = vpack.c.b16 %v1127, %v1127
    %v1192 = vpack.c.b16 %v1128, %v1128
    %v1193 = vpack.c.b16 %v1129, %v1129
    %v1194 = vpack.c.b16 %v1130, %v1130
    %v1195 = vpack.c.b16 %v1131, %v1131
    %v1196 = vpack.c.b16 %v1132, %v1132
    %v1197 = vpack.c.b16 %v1133, %v1133
    %v1198 = vpack.c.b16 %v1134, %v1134
    %v1199 = vpack.c.b16 %v1135, %v1135
    %v1200 = vpack.c.b16 %v1136, %v1136
    %v1201 = vpack.c.b16 %v1137, %v1137
    %v1202 = vpack.c.b16 %v1138, %v1138
    %v1203 = vpack.c.b16 %v1139, %v1139
    %v1204 = vpack.c.b16 %v1140, %v1140
    %v1205 = vpack.c.b16 %v1141, %v1141
    %v1206 = vpack.c.b16 %v1142, %v1142
    %v1207 = vpack.c.b16 %v1143, %v1143
    %v1208 = vpack.c.b16 %v1144, %v1144
    %v1209 = vpack.c.b16 %v1145, %v1145
    %v1210 = vpack.c.b16 %v1146, %v1146
    %vm1275 = vcmask 27648
    %1276 = vst.msk [vmem:[%s2] sm:$0xf] %vm1275, %v1147
    %1277 = vst.msk [vmem:[%s2 + $0x4] sm:$0xf] %vm1275, %v1148
    %1278 = vst.msk [vmem:[%s2 + $0x8] sm:$0xf] %vm1275, %v1149
    %1279 = vst.msk [vmem:[%s2 + $0xc] sm:$0xf] %vm1275, %v1150
    %1280 = vst.msk [vmem:[%s2 + $0x10] sm:$0xf] %vm1275, %v1151
    %1281 = vst.msk [vmem:[%s2 + $0x14] sm:$0xf] %vm1275, %v1152
    %1282 = vst.msk [vmem:[%s2 + $0x18] sm:$0xf] %vm1275, %v1153
    %1283 = vst.msk [vmem:[%s2 + $0x1c] sm:$0xf] %vm1275, %v1154
    %1284 = vst.msk [vmem:[%s2 + $0x20] sm:$0xf] %vm1275, %v1155
    %1285 = vst.msk [vmem:[%s2 + $0x24] sm:$0xf] %vm1275, %v1156
    %1286 = vst.msk [vmem:[%s2 + $0x28] sm:$0xf] %vm1275, %v1157
    %1287 = vst.msk [vmem:[%s2 + $0x2c] sm:$0xf] %vm1275, %v1158
    %1288 = vst.msk [vmem:[%s2 + $0x30] sm:$0xf] %vm1275, %v1159
    %1289 = vst.msk [vmem:[%s2 + $0x34] sm:$0xf] %vm1275, %v1160
    %1290 = vst.msk [vmem:[%s2 + $0x38] sm:$0xf] %vm1275, %v1161
    %1291 = vst.msk [vmem:[%s2 + $0x3c] sm:$0xf] %vm1275, %v1162
    %1292 = vst.msk [vmem:[%s2 + $0x40] sm:$0xf] %vm1275, %v1163
    %1293 = vst.msk [vmem:[%s2 + $0x44] sm:$0xf] %vm1275, %v1164
    %1294 = vst.msk [vmem:[%s2 + $0x48] sm:$0xf] %vm1275, %v1165
    %1295 = vst.msk [vmem:[%s2 + $0x4c] sm:$0xf] %vm1275, %v1166
    %1296 = vst.msk [vmem:[%s2 + $0x50] sm:$0xf] %vm1275, %v1167
    %1297 = vst.msk [vmem:[%s2 + $0x54] sm:$0xf] %vm1275, %v1168
    %1298 = vst.msk [vmem:[%s2 + $0x58] sm:$0xf] %vm1275, %v1169
    %1299 = vst.msk [vmem:[%s2 + $0x5c] sm:$0xf] %vm1275, %v1170
    %1300 = vst.msk [vmem:[%s2 + $0x60] sm:$0xf] %vm1275, %v1171
    %1301 = vst.msk [vmem:[%s2 + $0x64] sm:$0xf] %vm1275, %v1172
    %1302 = vst.msk [vmem:[%s2 + $0x68] sm:$0xf] %vm1275, %v1173
    %1303 = vst.msk [vmem:[%s2 + $0x6c] sm:$0xf] %vm1275, %v1174
    %1304 = vst.msk [vmem:[%s2 + $0x70] sm:$0xf] %vm1275, %v1175
    %1305 = vst.msk [vmem:[%s2 + $0x74] sm:$0xf] %vm1275, %v1176
    %1306 = vst.msk [vmem:[%s2 + $0x78] sm:$0xf] %vm1275, %v1177
    %1307 = vst.msk [vmem:[%s2 + $0x7c] sm:$0xf] %vm1275, %v1178
    %1308 = vst.msk [vmem:[%s2 + $0x80] sm:$0xf] %vm1275, %v1179
    %1309 = vst.msk [vmem:[%s2 + $0x84] sm:$0xf] %vm1275, %v1180
    %1310 = vst.msk [vmem:[%s2 + $0x88] sm:$0xf] %vm1275, %v1181
    %1311 = vst.msk [vmem:[%s2 + $0x8c] sm:$0xf] %vm1275, %v1182
    %1312 = vst.msk [vmem:[%s2 + $0x90] sm:$0xf] %vm1275, %v1183
    %1313 = vst.msk [vmem:[%s2 + $0x94] sm:$0xf] %vm1275, %v1184
    %1314 = vst.msk [vmem:[%s2 + $0x98] sm:$0xf] %vm1275, %v1185
    %1315 = vst.msk [vmem:[%s2 + $0x9c] sm:$0xf] %vm1275, %v1186
    %1316 = vst.msk [vmem:[%s2 + $0xa0] sm:$0xf] %vm1275, %v1187
    %1317 = vst.msk [vmem:[%s2 + $0xa4] sm:$0xf] %vm1275, %v1188
    %1318 = vst.msk [vmem:[%s2 + $0xa8] sm:$0xf] %vm1275, %v1189
    %1319 = vst.msk [vmem:[%s2 + $0xac] sm:$0xf] %vm1275, %v1190
    %1320 = vst.msk [vmem:[%s2 + $0xb0] sm:$0xf] %vm1275, %v1191
    %1321 = vst.msk [vmem:[%s2 + $0xb4] sm:$0xf] %vm1275, %v1192
    %1322 = vst.msk [vmem:[%s2 + $0xb8] sm:$0xf] %vm1275, %v1193
    %1323 = vst.msk [vmem:[%s2 + $0xbc] sm:$0xf] %vm1275, %v1194
    %1324 = vst.msk [vmem:[%s2 + $0xc0] sm:$0xf] %vm1275, %v1195
    %1325 = vst.msk [vmem:[%s2 + $0xc4] sm:$0xf] %vm1275, %v1196
    %1326 = vst.msk [vmem:[%s2 + $0xc8] sm:$0xf] %vm1275, %v1197
    %1327 = vst.msk [vmem:[%s2 + $0xcc] sm:$0xf] %vm1275, %v1198
    %1328 = vst.msk [vmem:[%s2 + $0xd0] sm:$0xf] %vm1275, %v1199
    %1329 = vst.msk [vmem:[%s2 + $0xd4] sm:$0xf] %vm1275, %v1200
    %1330 = vst.msk [vmem:[%s2 + $0xd8] sm:$0xf] %vm1275, %v1201
    %1331 = vst.msk [vmem:[%s2 + $0xdc] sm:$0xf] %vm1275, %v1202
    %1332 = vst.msk [vmem:[%s2 + $0xe0] sm:$0xf] %vm1275, %v1203
    %1333 = vst.msk [vmem:[%s2 + $0xe4] sm:$0xf] %vm1275, %v1204
    %1334 = vst.msk [vmem:[%s2 + $0xe8] sm:$0xf] %vm1275, %v1205
    %1335 = vst.msk [vmem:[%s2 + $0xec] sm:$0xf] %vm1275, %v1206
    %1336 = vst.msk [vmem:[%s2 + $0xf0] sm:$0xf] %vm1275, %v1207
    %1337 = vst.msk [vmem:[%s2 + $0xf4] sm:$0xf] %vm1275, %v1208
    %1338 = vst.msk [vmem:[%s2 + $0xf8] sm:$0xf] %vm1275, %v1209
    %1339 = vst.msk [vmem:[%s2 + $0xfc] sm:$0xf] %vm1275, %v1210
  $region17: #{_lambda_.3} parent=0 // pred_fallthru
    _
  // Predicated region
  $region18: #{_lambda_.3} parent=0 // pred_check
    _
  $region19: #{_lambda_.3} parent=0 // pred_check_branch
    %1341 = sbr.rel (0) target = $region21
  $region20: #{_lambda_.3} parent=0 // pred_region
    _
  $region21: #{_lambda_.3} parent=0 // pred_fallthru
    _
  // Predicated region
  $region22: #{_lambda_.3} parent=0 // pred_check
    _
  $region23: #{_lambda_.3} parent=0 // pred_check_branch
    %1343 = sbr.rel (0) target = $region25
  $region24: #{_lambda_.3} parent=0 // pred_region
    _
  $region25: #{_lambda_.3} parent=0 // pred_fallthru
    _

// kernel: _lambda_.5
$region0: #{_lambda_.5}
  #allocation0 [shape = 'u32[]', space=smem, size = 0x4, offset = 0x4, fixed_abs, tag = 'smem constant byte address 0x4 - core index']
  #allocation1 [shape = 'u32[144,128]{1,0:T(1,128)}', space=vmem, size = 0x12000, scoped, tag = 'internal scratch']
  %s0 = inlined_call_operand.vmem [shape: bf16[768,4], index: 0, kind: input, shape index: {}]
  %s1 = inlined_call_operand.vmem [shape: bf16[4,16], index: 1, kind: input, shape index: {}]
  %s2 = inlined_call_operand.vmem [shape: bf16[768,4], index: 2, kind: input, shape index: {}]
  %s3 = inlined_call_operand.vmem [shape: bf16[4,16], index: 3, kind: input, shape index: {}]
  %s4 = inlined_call_operand.vmem [shape: f32[768,16], index: 4, kind: output, shape index: {}]
  %s5 = sld [smem:[#allocation0]]
  $region49: #{_lambda_.5} parent=0
    _
  %s7 = ssub.s32 1, %s5
  %s8 = scalar_select 0, %s7, %s5
  loop: start=0, step=1, limit=4
  $region2: #{_lambda_.5} parent=0 // loop_pre_header
    _
  $region3: #{_lambda_.5} parent=0 // loop_header
    %s10 = sphi 0, %s14
    %p11 = scmp.ge.s32.totalorder %s10, 4
    %s17 = sphi 0, %s29
    %s18 = sphi 0, %s25
    %s19 = sphi 0, %s17
    %s20 = sphi 0, %s18
    %s21 = sphi 0, %s19
    %s22 = sphi 0, %s20
    %s32 = sphi 0, %s34
    %s35 = sphi 0, %s32
    %s36 = sphi 0, %s35
    %s52 = sphi 0, %s36
    %s58 = sphi 0, %s60
    %s61 = sphi 0, %s58
    %s62 = sphi 0, %s61
    %s78 = sphi 0, %s62
    %s84 = sphi 0, %s86
    %s87 = sphi 0, %s84
    %s88 = sphi 0, %s87
    %s104 = sphi 0, %s88
    %s110 = sphi 0, %s112
    %s113 = sphi 0, %s110
    %s114 = sphi 0, %s113
    %s130 = sphi 0, %s114
    %s138 = sphi 0, %s140
    %s141 = sphi 0, %s138
    %s142 = sphi 0, %s141
    %s158 = sphi 0, %s142
  $region4: #{_lambda_.5} parent=0 // loop_header_branch
    %13 = sbr.rel (%p11) target = $region8
  $region5: #{_lambda_.5} parent=0 // loop_body
    %s15 = ssub.s32 %s10, 1
    %s16 = ssub.s32 %s10, 2
    %s23 = sadd.s32 1, %s18
    %p24 = scmp.ge.s32.totalorder %s23, 1
    %s25 = scalar_select %p24, 0, %s23
    %s26 = sadd.s32 1, %s17
    %s27 = scalar_select %p24, %s26, %s17
    %p28 = scmp.ge.s32.totalorder %s27, 2
    %s29 = scalar_select %p28, 0, %s27
    %s30 = ssub.s32 %s17, %s29
    %p31 = scmp.eq.s32.totalorder %s30, 0
    %s33 = sadd.s32 %s32, 1
    %s34 = scalar_select %p31, %s32, %s33
    %p37 = pneg %p31
    %p38 = scmp.eq.s32.totalorder %s10, 1
    %p39 = por %p37, %p38
    %p40 = scmp.ne.s32.totalorder %s32, %s35
    %p41 = scmp.eq.s32.totalorder %s10, 0
    %p42 = por %p40, %p41
    %p43 = scmp.ne.s32.totalorder %s32, %s35
    %p44 = scmp.eq.s32.totalorder %s15, 1
    %p45 = por %p43, %p44
    %p46 = scmp.ne.s32.totalorder %s35, %s36
    %p47 = scmp.eq.s32.totalorder %s15, 0
    %p48 = por %p46, %p47
    %p49 = scmp.ne.s32.totalorder %s35, %s36
    %p50 = scmp.eq.s32.totalorder %s16, 1
    %p51 = por %p49, %p50
    %p53 = scmp.ne.s32.totalorder %s36, %s52
    %p54 = scmp.eq.s32.totalorder %s16, 0
    %p55 = por %p53, %p54
    %s56 = ssub.s32 %s18, %s25
    %p57 = scmp.eq.s32.totalorder %s56, 0
    %s59 = sadd.s32 %s58, 1
    %s60 = scalar_select %p57, %s58, %s59
    %p63 = pneg %p57
    %p64 = scmp.eq.s32.totalorder %s10, 1
    %p65 = por %p63, %p64
    %p66 = scmp.ne.s32.totalorder %s58, %s61
    %p67 = scmp.eq.s32.totalorder %s10, 0
    %p68 = por %p66, %p67
    %p69 = scmp.ne.s32.totalorder %s58, %s61
    %p70 = scmp.eq.s32.totalorder %s15, 1
    %p71 = por %p69, %p70
    %p72 = scmp.ne.s32.totalorder %s61, %s62
    %p73 = scmp.eq.s32.totalorder %s15, 0
    %p74 = por %p72, %p73
    %p75 = scmp.ne.s32.totalorder %s61, %s62
    %p76 = scmp.eq.s32.totalorder %s16, 1
    %p77 = por %p75, %p76
    %p79 = scmp.ne.s32.totalorder %s62, %s78
    %p80 = scmp.eq.s32.totalorder %s16, 0
    %p81 = por %p79, %p80
    %s82 = ssub.s32 %s17, %s29
    %p83 = scmp.eq.s32.totalorder %s82, 0
    %s85 = sadd.s32 %s84, 1
    %s86 = scalar_select %p83, %s84, %s85
    %p89 = pneg %p83
    %p90 = scmp.eq.s32.totalorder %s10, 1
    %p91 = por %p89, %p90
    %p92 = scmp.ne.s32.totalorder %s84, %s87
    %p93 = scmp.eq.s32.totalorder %s10, 0
    %p94 = por %p92, %p93
    %p95 = scmp.ne.s32.totalorder %s84, %s87
    %p96 = scmp.eq.s32.totalorder %s15, 1
    %p97 = por %p95, %p96
    %p98 = scmp.ne.s32.totalorder %s87, %s88
    %p99 = scmp.eq.s32.totalorder %s15, 0
    %p100 = por %p98, %p99
    %p101 = scmp.ne.s32.totalorder %s87, %s88
    %p102 = scmp.eq.s32.totalorder %s16, 1
    %p103 = por %p101, %p102
    %p105 = scmp.ne.s32.totalorder %s88, %s104
    %p106 = scmp.eq.s32.totalorder %s16, 0
    %p107 = por %p105, %p106
    %s108 = ssub.s32 %s18, %s25
    %p109 = scmp.eq.s32.totalorder %s108, 0
    %s111 = sadd.s32 %s110, 1
    %s112 = scalar_select %p109, %s110, %s111
    %p115 = pneg %p109
    %p116 = scmp.eq.s32.totalorder %s10, 1
    %p117 = por %p115, %p116
    %p118 = scmp.ne.s32.totalorder %s110, %s113
    %p119 = scmp.eq.s32.totalorder %s10, 0
    %p120 = por %p118, %p119
    %p121 = scmp.ne.s32.totalorder %s110, %s113
    %p122 = scmp.eq.s32.totalorder %s15, 1
    %p123 = por %p121, %p122
    %p124 = scmp.ne.s32.totalorder %s113, %s114
    %p125 = scmp.eq.s32.totalorder %s15, 0
    %p126 = por %p124, %p125
    %p127 = scmp.ne.s32.totalorder %s113, %s114
    %p128 = scmp.eq.s32.totalorder %s16, 1
    %p129 = por %p127, %p128
    %p131 = scmp.ne.s32.totalorder %s114, %s130
    %p132 = scmp.eq.s32.totalorder %s16, 0
    %p133 = por %p131, %p132
    %s134 = ssub.s32 %s17, %s29
    %s135 = ssub.s32 %s18, %s25
    %s136 = sor.u32 %s134, %s135
    %p137 = scmp.eq.s32.totalorder %s136, 0
    %s139 = sadd.s32 %s138, 1
    %s140 = scalar_select %p137, %s138, %s139
    %p143 = pneg %p137
    %p144 = scmp.eq.s32.totalorder %s10, 1
    %p145 = por %p143, %p144
    %p146 = scmp.ne.s32.totalorder %s138, %s141
    %p147 = scmp.eq.s32.totalorder %s10, 0
    %p148 = por %p146, %p147
    %p149 = scmp.ne.s32.totalorder %s138, %s141
    %p150 = scmp.eq.s32.totalorder %s15, 1
    %p151 = por %p149, %p150
    %p152 = scmp.ne.s32.totalorder %s141, %s142
    %p153 = scmp.eq.s32.totalorder %s15, 0
    %p154 = por %p152, %p153
    %p155 = scmp.ne.s32.totalorder %s141, %s142
    %p156 = scmp.eq.s32.totalorder %s16, 1
    %p157 = por %p155, %p156
    %p159 = scmp.ne.s32.totalorder %s142, %s158
    %p160 = scmp.eq.s32.totalorder %s16, 0
    %p161 = por %p159, %p160
    %p162 = scmp.le.s32.totalorder 1, %s10
    %p163 = scmp.lt.s32.totalorder %s10, 3
    %p164 = pnand %p162, %p163
    %p165 = pneg %p164
    // Predicated region
    $region9: #{_lambda_.5} parent=5 // pred_check
      _
    $region10: #{_lambda_.5} parent=5 // pred_check_branch
      %167 = sbr.rel (%p164) target = $region12
    $region11: #{_lambda_.5} parent=5 // pred_region
      %s168 = ssub.s32 %s10, 1
      // Predicated region
      $region13: #{_lambda_.5} parent=11 // pred_check
        %p169 = pneg %p74
      $region14: #{_lambda_.5} parent=11 // pred_check_branch
        %171 = sbr.rel (%p169) target = $region16
      $region15: #{_lambda_.5} parent=11 // pred_region
        %p172 = scmp.lt.s32.totalorder %s20, 0
        %s173 = scalar_select %p172, %s20, 0
        %s174 = smul.addr %s173, 2
        %s175 = scalar_lea.vmem %s1, %s174
      $region16: #{_lambda_.5} parent=11 // pred_fallthru
        _
      // Predicated region
      $region17: #{_lambda_.5} parent=11 // pred_check
        %p176 = pneg %p126
      $region18: #{_lambda_.5} parent=11 // pred_check_branch
        %178 = sbr.rel (%p176) target = $region20
      $region19: #{_lambda_.5} parent=11 // pred_region
        %p179 = scmp.lt.s32.totalorder %s20, 0
        %s180 = scalar_select %p179, %s20, 0
        %s181 = smul.addr %s180, 2
        %s182 = scalar_lea.vmem %s3, %s181
      $region20: #{_lambda_.5} parent=11 // pred_fallthru
        _
    $region12: #{_lambda_.5} parent=5 // pred_fallthru
      _
    %p183 = scmp.lt.s32.totalorder %s10, 2
    // Predicated region
    $region21: #{_lambda_.5} parent=5 // pred_check
      %p184 = pneg %p183
    $region22: #{_lambda_.5} parent=5 // pred_check_branch
      %186 = sbr.rel (%p184) target = $region24
    $region23: #{_lambda_.5} parent=5 // pred_region
      // Predicated region
      $region25: #{_lambda_.5} parent=23 // pred_check
        %p187 = pneg %p42
      $region26: #{_lambda_.5} parent=23 // pred_check_branch
        %189 = sbr.rel (%p187) target = $region28
      $region27: #{_lambda_.5} parent=23 // pred_region
        %s190 = smul.u32 48, %s17
        %p191 = scmp.lt.s32.totalorder %s190, 95
        %s192 = scalar_select %p191, %s190, 95
        %s193 = smul.addr %s192, 4
        %s194 = scalar_lea.vmem %s0, %s193
        %s195 = smul.u32 48, %s17
      $region28: #{_lambda_.5} parent=23 // pred_fallthru
        _
      // Predicated region
      $region29: #{_lambda_.5} parent=23 // pred_check
        %p196 = pneg %p94
      $region30: #{_lambda_.5} parent=23 // pred_check_branch
        %198 = sbr.rel (%p196) target = $region32
      $region31: #{_lambda_.5} parent=23 // pred_region
        %s199 = smul.u32 48, %s17
        %p200 = scmp.lt.s32.totalorder %s199, 95
        %s201 = scalar_select %p200, %s199, 95
        %s202 = smul.addr %s201, 4
        %s203 = scalar_lea.vmem %s2, %s202
        %s204 = smul.u32 48, %s17
      $region32: #{_lambda_.5} parent=23 // pred_fallthru
        _
    $region24: #{_lambda_.5} parent=5 // pred_fallthru
      _
    %p205 = scmp.le.s32.totalorder 1, %s10
    %p206 = scmp.lt.s32.totalorder %s10, 3
    %p207 = pnand %p205, %p206
    %p208 = pneg %p207
    // Predicated region
    $region33: #{_lambda_.5} parent=5 // pred_check
      _
    $region34: #{_lambda_.5} parent=5 // pred_check_branch
      %210 = sbr.rel (%p207) target = $region36
    $region35: #{_lambda_.5} parent=5 // pred_region
      %s211 = ssub.s32 %s10, 1
      %s212 = smul.u32 48, %s19
      %p213 = scmp.lt.s32.totalorder %s212, 95
      %s214 = scalar_select %p213, %s212, 95
      %s215 = smul.addr %s214, 4
      %s216 = scalar_lea.vmem %s0, %s215
      %p217 = pneg %p48
      %p218 = pneg %p45
      %p219 = scmp.lt.s32.totalorder %s20, 0
      %s220 = scalar_select %p219, %s20, 0
      %s221 = smul.addr %s220, 2
      %s222 = scalar_lea.vmem %s1, %s221
      %p223 = pneg %p74
      %p224 = pneg %p71
      %s225 = smul.u32 48, %s19
      %p226 = scmp.lt.s32.totalorder %s225, 95
      %s227 = scalar_select %p226, %s225, 95
      %s228 = smul.addr %s227, 4
      %s229 = scalar_lea.vmem %s2, %s228
      %p230 = pneg %p100
      %p231 = pneg %p97
      %p232 = scmp.lt.s32.totalorder %s20, 0
      %s233 = scalar_select %p232, %s20, 0
      %s234 = smul.addr %s233, 2
      %s235 = scalar_lea.vmem %s3, %s234
      %p236 = pneg %p126
      %p237 = pneg %p123
      %p238 = pneg %p154
      %p239 = pneg %p151
      %s240 = smul.u32 48, %s19
      %p241 = scmp.lt.s32.totalorder %s240, 95
      %s242 = scalar_select %p241, %s240, 95
      %p243 = scmp.lt.s32.totalorder %s20, 0
      %s244 = scalar_select %p243, %s20, 0
      %s245 = sadd.s32 %s244, %s242
      %s246 = smul.addr %s245, 8
      %s247 = scalar_lea.vmem %s4, %s246
      %s248 = smul.u32 48, %s19
      %p249 = scmp.lt.s32.totalorder %s248, 95
      %s250 = scalar_select %p249, %s248, 95
      %s251 = smul.addr %s250, 4
      %s252 = scalar_lea.vmem %s0, %s251
      %s253 = smul.u32 48, %s19
      %p254 = scmp.lt.s32.totalorder %s20, 0
      %s255 = scalar_select %p254, %s20, 0
      %s256 = smul.addr %s255, 2
      %s257 = scalar_lea.vmem %s1, %s256
      %s258 = smul.u32 48, %s19
      %p259 = scmp.lt.s32.totalorder %s258, 95
      %s260 = scalar_select %p259, %s258, 95
      %s261 = smul.addr %s260, 4
      %s262 = scalar_lea.vmem %s2, %s261
      %s263 = smul.u32 48, %s19
      %p264 = scmp.lt.s32.totalorder %s20, 0
      %s265 = scalar_select %p264, %s20, 0
      %s266 = smul.addr %s265, 2
      %s267 = scalar_lea.vmem %s3, %s266
      %s268 = smul.u32 48, %s19
      %p269 = scmp.lt.s32.totalorder %s268, 95
      %s270 = scalar_select %p269, %s268, 95
      %p271 = scmp.lt.s32.totalorder %s20, 0
      %s272 = scalar_select %p271, %s20, 0
      %s273 = sadd.s32 %s272, %s270
      %s274 = smul.addr %s273, 8
      %s275 = scalar_lea.vmem %s4, %s274
      %s276 = smul.u32 48, %s19
      %v278 = vld [vmem:[%s252] sm:$0xf]
      %v279 = vld [vmem:[%s252 + $0x4] sm:$0xf]
      %v280 = vld [vmem:[%s252 + $0x8] sm:$0xf]
      %v281 = vld [vmem:[%s252 + $0xc] sm:$0xf]
      %v282 = vld [vmem:[%s252 + $0x10] sm:$0xf]
      %v283 = vld [vmem:[%s252 + $0x14] sm:$0xf]
      %v284 = vld [vmem:[%s252 + $0x18] sm:$0xf]
      %v285 = vld [vmem:[%s252 + $0x1c] sm:$0xf]
      %v286 = vld [vmem:[%s252 + $0x20] sm:$0xf]
      %v287 = vld [vmem:[%s252 + $0x24] sm:$0xf]
      %v288 = vld [vmem:[%s252 + $0x28] sm:$0xf]
      %v289 = vld [vmem:[%s252 + $0x2c] sm:$0xf]
      %v290 = vld [vmem:[%s252 + $0x30] sm:$0xf]
      %v291 = vld [vmem:[%s252 + $0x34] sm:$0xf]
      %v292 = vld [vmem:[%s252 + $0x38] sm:$0xf]
      %v293 = vld [vmem:[%s252 + $0x3c] sm:$0xf]
      %v294 = vld [vmem:[%s252 + $0x40] sm:$0xf]
      %v295 = vld [vmem:[%s252 + $0x44] sm:$0xf]
      %v296 = vld [vmem:[%s252 + $0x48] sm:$0xf]
      %v297 = vld [vmem:[%s252 + $0x4c] sm:$0xf]
      %v298 = vld [vmem:[%s252 + $0x50] sm:$0xf]
      %v299 = vld [vmem:[%s252 + $0x54] sm:$0xf]
      %v300 = vld [vmem:[%s252 + $0x58] sm:$0xf]
      %v301 = vld [vmem:[%s252 + $0x5c] sm:$0xf]
      %v302 = vld [vmem:[%s252 + $0x60] sm:$0xf]
      %v303 = vld [vmem:[%s252 + $0x64] sm:$0xf]
      %v304 = vld [vmem:[%s252 + $0x68] sm:$0xf]
      %v305 = vld [vmem:[%s252 + $0x6c] sm:$0xf]
      %v306 = vld [vmem:[%s252 + $0x70] sm:$0xf]
      %v307 = vld [vmem:[%s252 + $0x74] sm:$0xf]
      %v308 = vld [vmem:[%s252 + $0x78] sm:$0xf]
      %v309 = vld [vmem:[%s252 + $0x7c] sm:$0xf]
      %v310 = vld [vmem:[%s252 + $0x80] sm:$0xf]
      %v311 = vld [vmem:[%s252 + $0x84] sm:$0xf]
      %v312 = vld [vmem:[%s252 + $0x88] sm:$0xf]
      %v313 = vld [vmem:[%s252 + $0x8c] sm:$0xf]
      %v314 = vld [vmem:[%s252 + $0x90] sm:$0xf]
      %v315 = vld [vmem:[%s252 + $0x94] sm:$0xf]
      %v316 = vld [vmem:[%s252 + $0x98] sm:$0xf]
      %v317 = vld [vmem:[%s252 + $0x9c] sm:$0xf]
      %v318 = vld [vmem:[%s252 + $0xa0] sm:$0xf]
      %v319 = vld [vmem:[%s252 + $0xa4] sm:$0xf]
      %v320 = vld [vmem:[%s252 + $0xa8] sm:$0xf]
      %v321 = vld [vmem:[%s252 + $0xac] sm:$0xf]
      %v322 = vld [vmem:[%s252 + $0xb0] sm:$0xf]
      %v323 = vld [vmem:[%s252 + $0xb4] sm:$0xf]
      %v324 = vld [vmem:[%s252 + $0xb8] sm:$0xf]
      %v325 = vld [vmem:[%s252 + $0xbc] sm:$0xf]
      %v326 = vld [vmem:[%s257] sm:$0x3]
      %v327 = vld [vmem:[%s262] sm:$0xf]
      %v328 = vld [vmem:[%s262 + $0x4] sm:$0xf]
      %v329 = vld [vmem:[%s262 + $0x8] sm:$0xf]
      %v330 = vld [vmem:[%s262 + $0xc] sm:$0xf]
      %v331 = vld [vmem:[%s262 + $0x10] sm:$0xf]
      %v332 = vld [vmem:[%s262 + $0x14] sm:$0xf]
      %v333 = vld [vmem:[%s262 + $0x18] sm:$0xf]
      %v334 = vld [vmem:[%s262 + $0x1c] sm:$0xf]
      %v335 = vld [vmem:[%s262 + $0x20] sm:$0xf]
      %v336 = vld [vmem:[%s262 + $0x24] sm:$0xf]
      %v337 = vld [vmem:[%s262 + $0x28] sm:$0xf]
      %v338 = vld [vmem:[%s262 + $0x2c] sm:$0xf]
      %v339 = vld [vmem:[%s262 + $0x30] sm:$0xf]
      %v340 = vld [vmem:[%s262 + $0x34] sm:$0xf]
      %v341 = vld [vmem:[%s262 + $0x38] sm:$0xf]
      %v342 = vld [vmem:[%s262 + $0x3c] sm:$0xf]
      %v343 = vld [vmem:[%s262 + $0x40] sm:$0xf]
      %v344 = vld [vmem:[%s262 + $0x44] sm:$0xf]
      %v345 = vld [vmem:[%s262 + $0x48] sm:$0xf]
      %v346 = vld [vmem:[%s262 + $0x4c] sm:$0xf]
      %v347 = vld [vmem:[%s262 + $0x50] sm:$0xf]
      %v348 = vld [vmem:[%s262 + $0x54] sm:$0xf]
      %v349 = vld [vmem:[%s262 + $0x58] sm:$0xf]
      %v350 = vld [vmem:[%s262 + $0x5c] sm:$0xf]
      %v351 = vld [vmem:[%s262 + $0x60] sm:$0xf]
      %v352 = vld [vmem:[%s262 + $0x64] sm:$0xf]
      %v353 = vld [vmem:[%s262 + $0x68] sm:$0xf]
      %v354 = vld [vmem:[%s262 + $0x6c] sm:$0xf]
      %v355 = vld [vmem:[%s262 + $0x70] sm:$0xf]
      %v356 = vld [vmem:[%s262 + $0x74] sm:$0xf]
      %v357 = vld [vmem:[%s262 + $0x78] sm:$0xf]
      %v358 = vld [vmem:[%s262 + $0x7c] sm:$0xf]
      %v359 = vld [vmem:[%s262 + $0x80] sm:$0xf]
      %v360 = vld [vmem:[%s262 + $0x84] sm:$0xf]
      %v361 = vld [vmem:[%s262 + $0x88] sm:$0xf]
      %v362 = vld [vmem:[%s262 + $0x8c] sm:$0xf]
      %v363 = vld [vmem:[%s262 + $0x90] sm:$0xf]
      %v364 = vld [vmem:[%s262 + $0x94] sm:$0xf]
      %v365 = vld [vmem:[%s262 + $0x98] sm:$0xf]
      %v366 = vld [vmem:[%s262 + $0x9c] sm:$0xf]
      %v367 = vld [vmem:[%s262 + $0xa0] sm:$0xf]
      %v368 = vld [vmem:[%s262 + $0xa4] sm:$0xf]
      %v369 = vld [vmem:[%s262 + $0xa8] sm:$0xf]
      %v370 = vld [vmem:[%s262 + $0xac] sm:$0xf]
      %v371 = vld [vmem:[%s262 + $0xb0] sm:$0xf]
      %v372 = vld [vmem:[%s262 + $0xb4] sm:$0xf]
      %v373 = vld [vmem:[%s262 + $0xb8] sm:$0xf]
      %v374 = vld [vmem:[%s262 + $0xbc] sm:$0xf]
      %v375 = vld [vmem:[%s267] sm:$0x3]
      %v424 = vunpack.c.l.b16 %v327
      %v425 = vunpack.c.l.b16 %v328
      %v426 = vunpack.c.l.b16 %v329
      %v427 = vunpack.c.l.b16 %v330
      %v428 = vunpack.c.l.b16 %v331
      %v429 = vunpack.c.l.b16 %v332
      %v430 = vunpack.c.l.b16 %v333
      %v431 = vunpack.c.l.b16 %v334
      %v432 = vunpack.c.l.b16 %v335
      %v433 = vunpack.c.l.b16 %v336
      %v434 = vunpack.c.l.b16 %v337
      %v435 = vunpack.c.l.b16 %v338
      %v436 = vunpack.c.l.b16 %v339
      %v437 = vunpack.c.l.b16 %v340
      %v438 = vunpack.c.l.b16 %v341
      %v439 = vunpack.c.l.b16 %v342
      %v440 = vunpack.c.l.b16 %v343
      %v441 = vunpack.c.l.b16 %v344
      %v442 = vunpack.c.l.b16 %v345
      %v443 = vunpack.c.l.b16 %v346
      %v444 = vunpack.c.l.b16 %v347
      %v445 = vunpack.c.l.b16 %v348
      %v446 = vunpack.c.l.b16 %v349
      %v447 = vunpack.c.l.b16 %v350
      %v448 = vunpack.c.l.b16 %v351
      %v449 = vunpack.c.l.b16 %v352
      %v450 = vunpack.c.l.b16 %v353
      %v451 = vunpack.c.l.b16 %v354
      %v452 = vunpack.c.l.b16 %v355
      %v453 = vunpack.c.l.b16 %v356
      %v454 = vunpack.c.l.b16 %v357
      %v455 = vunpack.c.l.b16 %v358
      %v456 = vunpack.c.l.b16 %v359
      %v457 = vunpack.c.l.b16 %v360
      %v458 = vunpack.c.l.b16 %v361
      %v459 = vunpack.c.l.b16 %v362
      %v460 = vunpack.c.l.b16 %v363
      %v461 = vunpack.c.l.b16 %v364
      %v462 = vunpack.c.l.b16 %v365
      %v463 = vunpack.c.l.b16 %v366
      %v464 = vunpack.c.l.b16 %v367
      %v465 = vunpack.c.l.b16 %v368
      %v466 = vunpack.c.l.b16 %v369
      %v467 = vunpack.c.l.b16 %v370
      %v468 = vunpack.c.l.b16 %v371
      %v469 = vunpack.c.l.b16 %v372
      %v470 = vunpack.c.l.b16 %v373
      %v471 = vunpack.c.l.b16 %v374
      %v472 = vpack.c.b16 %v425, %v424
      %v473 = vpack.c.b16 %v427, %v426
      %v474 = vpack.c.b16 %v429, %v428
      %v475 = vpack.c.b16 %v431, %v430
      %v476 = vpack.c.b16 %v433, %v432
      %v477 = vpack.c.b16 %v435, %v434
      %v478 = vpack.c.b16 %v437, %v436
      %v479 = vpack.c.b16 %v439, %v438
      %v480 = vpack.c.b16 %v441, %v440
      %v481 = vpack.c.b16 %v443, %v442
      %v482 = vpack.c.b16 %v445, %v444
      %v483 = vpack.c.b16 %v447, %v446
      %v484 = vpack.c.b16 %v449, %v448
      %v485 = vpack.c.b16 %v451, %v450
      %v486 = vpack.c.b16 %v453, %v452
      %v487 = vpack.c.b16 %v455, %v454
      %v488 = vpack.c.b16 %v457, %v456
      %v489 = vpack.c.b16 %v459, %v458
      %v490 = vpack.c.b16 %v461, %v460
      %v491 = vpack.c.b16 %v463, %v462
      %v492 = vpack.c.b16 %v465, %v464
      %v493 = vpack.c.b16 %v467, %v466
      %v494 = vpack.c.b16 %v469, %v468
      %v495 = vpack.c.b16 %v471, %v470
      %vm496 = vcmask 31744
      %v498 = vsel %vm496, %v472, 0
      %v501 = vsel %vm496, %v473, 0
      %v504 = vsel %vm496, %v474, 0
      %v507 = vsel %vm496, %v475, 0
      %v510 = vsel %vm496, %v476, 0
      %v513 = vsel %vm496, %v477, 0
      %v516 = vsel %vm496, %v478, 0
      %v519 = vsel %vm496, %v479, 0
      %v522 = vsel %vm496, %v480, 0
      %v525 = vsel %vm496, %v481, 0
      %v528 = vsel %vm496, %v482, 0
      %v531 = vsel %vm496, %v483, 0
      %v534 = vsel %vm496, %v484, 0
      %v537 = vsel %vm496, %v485, 0
      %v540 = vsel %vm496, %v486, 0
      %v543 = vsel %vm496, %v487, 0
      %v546 = vsel %vm496, %v488, 0
      %v549 = vsel %vm496, %v489, 0
      %v552 = vsel %vm496, %v490, 0
      %v555 = vsel %vm496, %v491, 0
      %v558 = vsel %vm496, %v492, 0
      %v561 = vsel %vm496, %v493, 0
      %v564 = vsel %vm496, %v494, 0
      %v567 = vsel %vm496, %v495, 0
      %vm569 = vcmask 1041408
      %v571 = vsel %vm569, %v375, 0
      %573 = vmatprep.subr.bf16.mxu0 0
      %574 = vmatpush1.bf16.msra.mxu0 %v571
      %575 = vmatprep.subr.bf16.mxu0 0
      %576 = vmatpush1.bf16.msra.mxu0 0
      %577 = vmatprep.subr.bf16.mxu0 0
      %578 = vmatpush1.bf16.msra.mxu0 0
      %579 = vmatprep.subr.bf16.mxu0 0
      %580 = vmatpush1.bf16.msra.mxu0 0
      %581 = vmatprep.subr.bf16.mxu0 0
      %582 = vmatpush1.bf16.msra.mxu0 0
      %583 = vmatprep.subr.bf16.mxu0 0
      %584 = vmatpush1.bf16.msra.mxu0 0
      %585 = vmatprep.subr.bf16.mxu0 0
      %586 = vmatpush1.bf16.msra.mxu0 0
      %587 = vmatprep.subr.bf16.mxu0 0
      %588 = vmatpush1.bf16.msra.mxu0 0
      %589 = vmatprep.subr.bf16.mxu0 0
      %590 = vmatpush1.bf16.msra.mxu0 0
      %591 = vmatprep.subr.bf16.mxu0 0
      %592 = vmatpush1.bf16.msra.mxu0 0
      %593 = vmatprep.subr.bf16.mxu0 0
      %594 = vmatpush1.bf16.msra.mxu0 0
      %595 = vmatprep.subr.bf16.mxu0 0
      %596 = vmatpush1.bf16.msra.mxu0 0
      %597 = vmatprep.subr.bf16.mxu0 0
      %598 = vmatpush1.bf16.msra.mxu0 0
      %599 = vmatprep.subr.bf16.mxu0 0
      %600 = vmatpush1.bf16.msra.mxu0 0
      %601 = vmatprep.subr.bf16.mxu0 0
      %602 = vmatpush1.bf16.msra.mxu0 0
      %603 = vmatprep.subr.bf16.mxu0 0
      %604 = vmatpush1.bf16.msra.mxu0 0
      %605 = vmatprep.mubr.bf16.mxu0 0
      %606 = vmatmul.mubr.bf16.gmra.mrb[0].mxu0 %v498
      %v607 = vpop.f32.mrb[0].mxu0
      %v608 = vadd.f32 0.0, %v607
      %v609 = vpop.f32.mrb[0].mxu0
      %v610 = vpop.f32.mrb[0].mxu0
      %v611 = vadd.f32 0.0, %v610
      %v612 = vpop.f32.mrb[0].mxu0
      %613 = vmatprep.mubr.bf16.mxu0 0
      %614 = vmatmul.mubr.bf16.gmra.mrb[0].mxu0 %v501
      %v615 = vpop.f32.mrb[0].mxu0
      %v616 = vadd.f32 0.0, %v615
      %v617 = vpop.f32.mrb[0].mxu0
      %v618 = vpop.f32.mrb[0].mxu0
      %v619 = vadd.f32 0.0, %v618
      %v620 = vpop.f32.mrb[0].mxu0
      %621 = vmatprep.mubr.bf16.mxu0 0
      %622 = vmatmul.mubr.bf16.gmra.mrb[0].mxu0 %v504
      %v623 = vpop.f32.mrb[0].mxu0
      %v624 = vadd.f32 0.0, %v623
      %v625 = vpop.f32.mrb[0].mxu0
      %v626 = vpop.f32.mrb[0].mxu0
      %v627 = vadd.f32 0.0, %v626
      %v628 = vpop.f32.mrb[0].mxu0
      %629 = vmatprep.mubr.bf16.mxu0 0
      %630 = vmatmul.mubr.bf16.gmra.mrb[0].mxu0 %v507
      %v631 = vpop.f32.mrb[0].mxu0
      %v632 = vadd.f32 0.0, %v631
      %v633 = vpop.f32.mrb[0].mxu0
      %v634 = vpop.f32.mrb[0].mxu0
      %v635 = vadd.f32 0.0, %v634
      %v636 = vpop.f32.mrb[0].mxu0
      %637 = vmatprep.mubr.bf16.mxu0 0
      %638 = vmatmul.mubr.bf16.gmra.mrb[0].mxu0 %v510
      %v639 = vpop.f32.mrb[0].mxu0
      %v640 = vadd.f32 0.0, %v639
      %v641 = vpop.f32.mrb[0].mxu0
      %v642 = vpop.f32.mrb[0].mxu0
      %v643 = vadd.f32 0.0, %v642
      %v644 = vpop.f32.mrb[0].mxu0
      %645 = vmatprep.mubr.bf16.mxu0 0
      %646 = vmatmul.mubr.bf16.gmra.mrb[0].mxu0 %v513
      %v647 = vpop.f32.mrb[0].mxu0
      %v648 = vadd.f32 0.0, %v647
      %v649 = vpop.f32.mrb[0].mxu0
      %v650 = vpop.f32.mrb[0].mxu0
      %v651 = vadd.f32 0.0, %v650
      %v652 = vpop.f32.mrb[0].mxu0
      %653 = vmatprep.mubr.bf16.mxu0 0
      %654 = vmatmul.mubr.bf16.gmra.mrb[0].mxu0 %v516
      %v655 = vpop.f32.mrb[0].mxu0
      %v656 = vadd.f32 0.0, %v655
      %v657 = vpop.f32.mrb[0].mxu0
      %v658 = vpop.f32.mrb[0].mxu0
      %v659 = vadd.f32 0.0, %v658
      %v660 = vpop.f32.mrb[0].mxu0
      %661 = vmatprep.mubr.bf16.mxu0 0
      %662 = vmatmul.mubr.bf16.gmra.mrb[0].mxu0 %v519
      %v663 = vpop.f32.mrb[0].mxu0
      %v664 = vadd.f32 0.0, %v663
      %v665 = vpop.f32.mrb[0].mxu0
      %v666 = vpop.f32.mrb[0].mxu0
      %v667 = vadd.f32 0.0, %v666
      %v668 = vpop.f32.mrb[0].mxu0
      %669 = vmatprep.mubr.bf16.mxu0 0
      %670 = vmatmul.mubr.bf16.gmra.mrb[0].mxu0 %v522
      %v671 = vpop.f32.mrb[0].mxu0
      %v672 = vadd.f32 0.0, %v671
      %v673 = vpop.f32.mrb[0].mxu0
      %v674 = vpop.f32.mrb[0].mxu0
      %v675 = vadd.f32 0.0, %v674
      %v676 = vpop.f32.mrb[0].mxu0
      %677 = vmatprep.mubr.bf16.mxu0 0
      %678 = vmatmul.mubr.bf16.gmra.mrb[0].mxu0 %v525
      %v679 = vpop.f32.mrb[0].mxu0
      %v680 = vadd.f32 0.0, %v679
      %v681 = vpop.f32.mrb[0].mxu0
      %v682 = vpop.f32.mrb[0].mxu0
      %v683 = vadd.f32 0.0, %v682
      %v684 = vpop.f32.mrb[0].mxu0
      %685 = vmatprep.mubr.bf16.mxu0 0
      %686 = vmatmul.mubr.bf16.gmra.mrb[0].mxu0 %v528
      %v687 = vpop.f32.mrb[0].mxu0
      %v688 = vadd.f32 0.0, %v687
      %v689 = vpop.f32.mrb[0].mxu0
      %v690 = vpop.f32.mrb[0].mxu0
      %v691 = vadd.f32 0.0, %v690
      %v692 = vpop.f32.mrb[0].mxu0
      %693 = vmatprep.mubr.bf16.mxu0 0
      %694 = vmatmul.mubr.bf16.gmra.mrb[0].mxu0 %v531
      %v695 = vpop.f32.mrb[0].mxu0
      %v696 = vadd.f32 0.0, %v695
      %v697 = vpop.f32.mrb[0].mxu0
      %v698 = vpop.f32.mrb[0].mxu0
      %v699 = vadd.f32 0.0, %v698
      %v700 = vpop.f32.mrb[0].mxu0
      %701 = vmatprep.mubr.bf16.mxu0 0
      %702 = vmatmul.mubr.bf16.gmra.mrb[0].mxu0 %v534
      %v703 = vpop.f32.mrb[0].mxu0
      %v704 = vadd.f32 0.0, %v703
      %v705 = vpop.f32.mrb[0].mxu0
      %v706 = vpop.f32.mrb[0].mxu0
      %v707 = vadd.f32 0.0, %v706
      %v708 = vpop.f32.mrb[0].mxu0
      %709 = vmatprep.mubr.bf16.mxu0 0
      %710 = vmatmul.mubr.bf16.gmra.mrb[0].mxu0 %v537
      %v711 = vpop.f32.mrb[0].mxu0
      %v712 = vadd.f32 0.0, %v711
      %v713 = vpop.f32.mrb[0].mxu0
      %v714 = vpop.f32.mrb[0].mxu0
      %v715 = vadd.f32 0.0, %v714
      %v716 = vpop.f32.mrb[0].mxu0
      %717 = vmatprep.mubr.bf16.mxu0 0
      %718 = vmatmul.mubr.bf16.gmra.mrb[0].mxu0 %v540
      %v719 = vpop.f32.mrb[0].mxu0
      %v720 = vadd.f32 0.0, %v719
      %v721 = vpop.f32.mrb[0].mxu0
      %v722 = vpop.f32.mrb[0].mxu0
      %v723 = vadd.f32 0.0, %v722
      %v724 = vpop.f32.mrb[0].mxu0
      %725 = vmatprep.mubr.bf16.mxu0 0
      %726 = vmatmul.mubr.bf16.gmra.mrb[0].mxu0 %v543
      %v727 = vpop.f32.mrb[0].mxu0
      %v728 = vadd.f32 0.0, %v727
      %v729 = vpop.f32.mrb[0].mxu0
      %v730 = vpop.f32.mrb[0].mxu0
      %v731 = vadd.f32 0.0, %v730
      %v732 = vpop.f32.mrb[0].mxu0
      %733 = vmatprep.mubr.bf16.mxu0 0
      %734 = vmatmul.mubr.bf16.gmra.mrb[0].mxu0 %v546
      %v735 = vpop.f32.mrb[0].mxu0
      %v736 = vadd.f32 0.0, %v735
      %v737 = vpop.f32.mrb[0].mxu0
      %v738 = vpop.f32.mrb[0].mxu0
      %v739 = vadd.f32 0.0, %v738
      %v740 = vpop.f32.mrb[0].mxu0
      %741 = vmatprep.mubr.bf16.mxu0 0
      %742 = vmatmul.mubr.bf16.gmra.mrb[0].mxu0 %v549
      %v743 = vpop.f32.mrb[0].mxu0
      %v744 = vadd.f32 0.0, %v743
      %v745 = vpop.f32.mrb[0].mxu0
      %v746 = vpop.f32.mrb[0].mxu0
      %v747 = vadd.f32 0.0, %v746
      %v748 = vpop.f32.mrb[0].mxu0
      %749 = vmatprep.mubr.bf16.mxu0 0
      %750 = vmatmul.mubr.bf16.gmra.mrb[0].mxu0 %v552
      %v751 = vpop.f32.mrb[0].mxu0
      %v752 = vadd.f32 0.0, %v751
      %v753 = vpop.f32.mrb[0].mxu0
      %v754 = vpop.f32.mrb[0].mxu0
      %v755 = vadd.f32 0.0, %v754
      %v756 = vpop.f32.mrb[0].mxu0
      %757 = vmatprep.mubr.bf16.mxu0 0
      %758 = vmatmul.mubr.bf16.gmra.mrb[0].mxu0 %v555
      %v759 = vpop.f32.mrb[0].mxu0
      %v760 = vadd.f32 0.0, %v759
      %v761 = vpop.f32.mrb[0].mxu0
      %v762 = vpop.f32.mrb[0].mxu0
      %v763 = vadd.f32 0.0, %v762
      %v764 = vpop.f32.mrb[0].mxu0
      %765 = vmatprep.mubr.bf16.mxu0 0
      %766 = vmatmul.mubr.bf16.gmra.mrb[0].mxu0 %v558
      %v767 = vpop.f32.mrb[0].mxu0
      %v768 = vadd.f32 0.0, %v767
      %v769 = vpop.f32.mrb[0].mxu0
      %v770 = vpop.f32.mrb[0].mxu0
      %v771 = vadd.f32 0.0, %v770
      %v772 = vpop.f32.mrb[0].mxu0
      %773 = vmatprep.mubr.bf16.mxu0 0
      %774 = vmatmul.mubr.bf16.gmra.mrb[0].mxu0 %v561
      %v775 = vpop.f32.mrb[0].mxu0
      %v776 = vadd.f32 0.0, %v775
      %v777 = vpop.f32.mrb[0].mxu0
      %v778 = vpop.f32.mrb[0].mxu0
      %v779 = vadd.f32 0.0, %v778
      %v780 = vpop.f32.mrb[0].mxu0
      %781 = vmatprep.mubr.bf16.mxu0 0
      %782 = vmatmul.mubr.bf16.gmra.mrb[0].mxu0 %v564
      %v783 = vpop.f32.mrb[0].mxu0
      %v784 = vadd.f32 0.0, %v783
      %v785 = vpop.f32.mrb[0].mxu0
      %v786 = vpop.f32.mrb[0].mxu0
      %v787 = vadd.f32 0.0, %v786
      %v788 = vpop.f32.mrb[0].mxu0
      %789 = vmatprep.mubr.bf16.mxu0 0
      %790 = vmatmul.mubr.bf16.gmra.mrb[0].mxu0 %v567
      %v791 = vpop.f32.mrb[0].mxu0
      %v792 = vadd.f32 0.0, %v791
      %v793 = vpop.f32.mrb[0].mxu0
      %v794 = vpop.f32.mrb[0].mxu0
      %v795 = vadd.f32 0.0, %v794
      %v796 = vpop.f32.mrb[0].mxu0
      %797 = vdwg.mxu0
      %v846 = vunpack.c.l.b16 %v278
      %v847 = vunpack.c.l.b16 %v279
      %v848 = vunpack.c.l.b16 %v280
      %v849 = vunpack.c.l.b16 %v281
      %v850 = vunpack.c.l.b16 %v282
      %v851 = vunpack.c.l.b16 %v283
      %v852 = vunpack.c.l.b16 %v284
      %v853 = vunpack.c.l.b16 %v285
      %v854 = vunpack.c.l.b16 %v286
      %v855 = vunpack.c.l.b16 %v287
      %v856 = vunpack.c.l.b16 %v288
      %v857 = vunpack.c.l.b16 %v289
      %v858 = vunpack.c.l.b16 %v290
      %v859 = vunpack.c.l.b16 %v291
      %v860 = vunpack.c.l.b16 %v292
      %v861 = vunpack.c.l.b16 %v293
      %v862 = vunpack.c.l.b16 %v294
      %v863 = vunpack.c.l.b16 %v295
      %v864 = vunpack.c.l.b16 %v296
      %v865 = vunpack.c.l.b16 %v297
      %v866 = vunpack.c.l.b16 %v298
      %v867 = vunpack.c.l.b16 %v299
      %v868 = vunpack.c.l.b16 %v300
      %v869 = vunpack.c.l.b16 %v301
      %v870 = vunpack.c.l.b16 %v302
      %v871 = vunpack.c.l.b16 %v303
      %v872 = vunpack.c.l.b16 %v304
      %v873 = vunpack.c.l.b16 %v305
      %v874 = vunpack.c.l.b16 %v306
      %v875 = vunpack.c.l.b16 %v307
      %v876 = vunpack.c.l.b16 %v308
      %v877 = vunpack.c.l.b16 %v309
      %v878 = vunpack.c.l.b16 %v310
      %v879 = vunpack.c.l.b16 %v311
      %v880 = vunpack.c.l.b16 %v312
      %v881 = vunpack.c.l.b16 %v313
      %v882 = vunpack.c.l.b16 %v314
      %v883 = vunpack.c.l.b16 %v315
      %v884 = vunpack.c.l.b16 %v316
      %v885 = vunpack.c.l.b16 %v317
      %v886 = vunpack.c.l.b16 %v318
      %v887 = vunpack.c.l.b16 %v319
      %v888 = vunpack.c.l.b16 %v320
      %v889 = vunpack.c.l.b16 %v321
      %v890 = vunpack.c.l.b16 %v322
      %v891 = vunpack.c.l.b16 %v323
      %v892 = vunpack.c.l.b16 %v324
      %v893 = vunpack.c.l.b16 %v325
      %v894 = vpack.c.b16 %v847, %v846
      %v895 = vpack.c.b16 %v849, %v848
      %v896 = vpack.c.b16 %v851, %v850
      %v897 = vpack.c.b16 %v853, %v852
      %v898 = vpack.c.b16 %v855, %v854
      %v899 = vpack.c.b16 %v857, %v856
      %v900 = vpack.c.b16 %v859, %v858
      %v901 = vpack.c.b16 %v861, %v860
      %v902 = vpack.c.b16 %v863, %v862
      %v903 = vpack.c.b16 %v865, %v864
      %v904 = vpack.c.b16 %v867, %v866
      %v905 = vpack.c.b16 %v869, %v868
      %v906 = vpack.c.b16 %v871, %v870
      %v907 = vpack.c.b16 %v873, %v872
      %v908 = vpack.c.b16 %v875, %v874
      %v909 = vpack.c.b16 %v877, %v876
      %v910 = vpack.c.b16 %v879, %v878
      %v911 = vpack.c.b16 %v881, %v880
      %v912 = vpack.c.b16 %v883, %v882
      %v913 = vpack.c.b16 %v885, %v884
      %v914 = vpack.c.b16 %v887, %v886
      %v915 = vpack.c.b16 %v889, %v888
      %v916 = vpack.c.b16 %v891, %v890
      %v917 = vpack.c.b16 %v893, %v892
      %v919 = vsel %vm496, %v894, 0
      %v922 = vsel %vm496, %v895, 0
      %v925 = vsel %vm496, %v896, 0
      %v928 = vsel %vm496, %v897, 0
      %v931 = vsel %vm496, %v898, 0
      %v934 = vsel %vm496, %v899, 0
      %v937 = vsel %vm496, %v900, 0
      %v940 = vsel %vm496, %v901, 0
      %v943 = vsel %vm496, %v902, 0
      %v946 = vsel %vm496, %v903, 0
      %v949 = vsel %vm496, %v904, 0
      %v952 = vsel %vm496, %v905, 0
      %v955 = vsel %vm496, %v906, 0
      %v958 = vsel %vm496, %v907, 0
      %v961 = vsel %vm496, %v908, 0
      %v964 = vsel %vm496, %v909, 0
      %v967 = vsel %vm496, %v910, 0
      %v970 = vsel %vm496, %v911, 0
      %v973 = vsel %vm496, %v912, 0
      %v976 = vsel %vm496, %v913, 0
      %v979 = vsel %vm496, %v914, 0
      %v982 = vsel %vm496, %v915, 0
      %v985 = vsel %vm496, %v916, 0
      %v988 = vsel %vm496, %v917, 0
      %v991 = vsel %vm569, %v326, 0
      %993 = vmatprep.subr.bf16.mxu0 0
      %994 = vmatpush1.bf16.msra.mxu0 %v991
      %995 = vmatprep.subr.bf16.mxu0 0
      %996 = vmatpush1.bf16.msra.mxu0 0
      %997 = vmatprep.subr.bf16.mxu0 0
      %998 = vmatpush1.bf16.msra.mxu0 0
      %999 = vmatprep.subr.bf16.mxu0 0
      %1000 = vmatpush1.bf16.msra.mxu0 0
      %1001 = vmatprep.subr.bf16.mxu0 0
      %1002 = vmatpush1.bf16.msra.mxu0 0
      %1003 = vmatprep.subr.bf16.mxu0 0
      %1004 = vmatpush1.bf16.msra.mxu0 0
      %1005 = vmatprep.subr.bf16.mxu0 0
      %1006 = vmatpush1.bf16.msra.mxu0 0
      %1007 = vmatprep.subr.bf16.mxu0 0
      %1008 = vmatpush1.bf16.msra.mxu0 0
      %1009 = vmatprep.subr.bf16.mxu0 0
      %1010 = vmatpush1.bf16.msra.mxu0 0
      %1011 = vmatprep.subr.bf16.mxu0 0
      %1012 = vmatpush1.bf16.msra.mxu0 0
      %1013 = vmatprep.subr.bf16.mxu0 0
      %1014 = vmatpush1.bf16.msra.mxu0 0
      %1015 = vmatprep.subr.bf16.mxu0 0
      %1016 = vmatpush1.bf16.msra.mxu0 0
      %1017 = vmatprep.subr.bf16.mxu0 0
      %1018 = vmatpush1.bf16.msra.mxu0 0
      %1019 = vmatprep.subr.bf16.mxu0 0
      %1020 = vmatpush1.bf16.msra.mxu0 0
      %1021 = vmatprep.subr.bf16.mxu0 0
      %1022 = vmatpush1.bf16.msra.mxu0 0
      %1023 = vmatprep.subr.bf16.mxu0 0
      %1024 = vmatpush1.bf16.msra.mxu0 0
      %1025 = vmatprep.mubr.bf16.mxu0 0
      %1026 = vmatmul.mubr.bf16.gmra.mrb[0].mxu0 %v919
      %v1027 = vpop.f32.mrb[0].mxu0
      %v1028 = vadd.f32 %v608, %v1027
      %v1029 = vpop.f32.mrb[0].mxu0
      %v1030 = vpop.f32.mrb[0].mxu0
      %v1031 = vadd.f32 %v611, %v1030
      %v1032 = vpop.f32.mrb[0].mxu0
      %1033 = vmatprep.mubr.bf16.mxu0 0
      %1034 = vmatmul.mubr.bf16.gmra.mrb[0].mxu0 %v922
      %v1035 = vpop.f32.mrb[0].mxu0
      %v1036 = vadd.f32 %v616, %v1035
      %v1037 = vpop.f32.mrb[0].mxu0
      %v1038 = vpop.f32.mrb[0].mxu0
      %v1039 = vadd.f32 %v619, %v1038
      %v1040 = vpop.f32.mrb[0].mxu0
      %1041 = vmatprep.mubr.bf16.mxu0 0
      %1042 = vmatmul.mubr.bf16.gmra.mrb[0].mxu0 %v925
      %v1043 = vpop.f32.mrb[0].mxu0
      %v1044 = vadd.f32 %v624, %v1043
      %v1045 = vpop.f32.mrb[0].mxu0
      %v1046 = vpop.f32.mrb[0].mxu0
      %v1047 = vadd.f32 %v627, %v1046
      %v1048 = vpop.f32.mrb[0].mxu0
      %1049 = vmatprep.mubr.bf16.mxu0 0
      %1050 = vmatmul.mubr.bf16.gmra.mrb[0].mxu0 %v928
      %v1051 = vpop.f32.mrb[0].mxu0
      %v1052 = vadd.f32 %v632, %v1051
      %v1053 = vpop.f32.mrb[0].mxu0
      %v1054 = vpop.f32.mrb[0].mxu0
      %v1055 = vadd.f32 %v635, %v1054
      %v1056 = vpop.f32.mrb[0].mxu0
      %1057 = vmatprep.mubr.bf16.mxu0 0
      %1058 = vmatmul.mubr.bf16.gmra.mrb[0].mxu0 %v931
      %v1059 = vpop.f32.mrb[0].mxu0
      %v1060 = vadd.f32 %v640, %v1059
      %v1061 = vpop.f32.mrb[0].mxu0
      %v1062 = vpop.f32.mrb[0].mxu0
      %v1063 = vadd.f32 %v643, %v1062
      %v1064 = vpop.f32.mrb[0].mxu0
      %1065 = vmatprep.mubr.bf16.mxu0 0
      %1066 = vmatmul.mubr.bf16.gmra.mrb[0].mxu0 %v934
      %v1067 = vpop.f32.mrb[0].mxu0
      %v1068 = vadd.f32 %v648, %v1067
      %v1069 = vpop.f32.mrb[0].mxu0
      %v1070 = vpop.f32.mrb[0].mxu0
      %v1071 = vadd.f32 %v651, %v1070
      %v1072 = vpop.f32.mrb[0].mxu0
      %1073 = vmatprep.mubr.bf16.mxu0 0
      %1074 = vmatmul.mubr.bf16.gmra.mrb[0].mxu0 %v937
      %v1075 = vpop.f32.mrb[0].mxu0
      %v1076 = vadd.f32 %v656, %v1075
      %v1077 = vpop.f32.mrb[0].mxu0
      %v1078 = vpop.f32.mrb[0].mxu0
      %v1079 = vadd.f32 %v659, %v1078
      %v1080 = vpop.f32.mrb[0].mxu0
      %1081 = vmatprep.mubr.bf16.mxu0 0
      %1082 = vmatmul.mubr.bf16.gmra.mrb[0].mxu0 %v940
      %v1083 = vpop.f32.mrb[0].mxu0
      %v1084 = vadd.f32 %v664, %v1083
      %v1085 = vpop.f32.mrb[0].mxu0
      %v1086 = vpop.f32.mrb[0].mxu0
      %v1087 = vadd.f32 %v667, %v1086
      %v1088 = vpop.f32.mrb[0].mxu0
      %1089 = vmatprep.mubr.bf16.mxu0 0
      %1090 = vmatmul.mubr.bf16.gmra.mrb[0].mxu0 %v943
      %v1091 = vpop.f32.mrb[0].mxu0
      %v1092 = vadd.f32 %v672, %v1091
      %v1093 = vpop.f32.mrb[0].mxu0
      %v1094 = vpop.f32.mrb[0].mxu0
      %v1095 = vadd.f32 %v675, %v1094
      %v1096 = vpop.f32.mrb[0].mxu0
      %1097 = vmatprep.mubr.bf16.mxu0 0
      %1098 = vmatmul.mubr.bf16.gmra.mrb[0].mxu0 %v946
      %v1099 = vpop.f32.mrb[0].mxu0
      %v1100 = vadd.f32 %v680, %v1099
      %v1101 = vpop.f32.mrb[0].mxu0
      %v1102 = vpop.f32.mrb[0].mxu0
      %v1103 = vadd.f32 %v683, %v1102
      %v1104 = vpop.f32.mrb[0].mxu0
      %1105 = vmatprep.mubr.bf16.mxu0 0
      %1106 = vmatmul.mubr.bf16.gmra.mrb[0].mxu0 %v949
      %v1107 = vpop.f32.mrb[0].mxu0
      %v1108 = vadd.f32 %v688, %v1107
      %v1109 = vpop.f32.mrb[0].mxu0
      %v1110 = vpop.f32.mrb[0].mxu0
      %v1111 = vadd.f32 %v691, %v1110
      %v1112 = vpop.f32.mrb[0].mxu0
      %1113 = vmatprep.mubr.bf16.mxu0 0
      %1114 = vmatmul.mubr.bf16.gmra.mrb[0].mxu0 %v952
      %v1115 = vpop.f32.mrb[0].mxu0
      %v1116 = vadd.f32 %v696, %v1115
      %v1117 = vpop.f32.mrb[0].mxu0
      %v1118 = vpop.f32.mrb[0].mxu0
      %v1119 = vadd.f32 %v699, %v1118
      %v1120 = vpop.f32.mrb[0].mxu0
      %1121 = vmatprep.mubr.bf16.mxu0 0
      %1122 = vmatmul.mubr.bf16.gmra.mrb[0].mxu0 %v955
      %v1123 = vpop.f32.mrb[0].mxu0
      %v1124 = vadd.f32 %v704, %v1123
      %v1125 = vpop.f32.mrb[0].mxu0
      %v1126 = vpop.f32.mrb[0].mxu0
      %v1127 = vadd.f32 %v707, %v1126
      %v1128 = vpop.f32.mrb[0].mxu0
      %1129 = vmatprep.mubr.bf16.mxu0 0
      %1130 = vmatmul.mubr.bf16.gmra.mrb[0].mxu0 %v958
      %v1131 = vpop.f32.mrb[0].mxu0
      %v1132 = vadd.f32 %v712, %v1131
      %v1133 = vpop.f32.mrb[0].mxu0
      %v1134 = vpop.f32.mrb[0].mxu0
      %v1135 = vadd.f32 %v715, %v1134
      %v1136 = vpop.f32.mrb[0].mxu0
      %1137 = vmatprep.mubr.bf16.mxu0 0
      %1138 = vmatmul.mubr.bf16.gmra.mrb[0].mxu0 %v961
      %v1139 = vpop.f32.mrb[0].mxu0
      %v1140 = vadd.f32 %v720, %v1139
      %v1141 = vpop.f32.mrb[0].mxu0
      %v1142 = vpop.f32.mrb[0].mxu0
      %v1143 = vadd.f32 %v723, %v1142
      %v1144 = vpop.f32.mrb[0].mxu0
      %1145 = vmatprep.mubr.bf16.mxu0 0
      %1146 = vmatmul.mubr.bf16.gmra.mrb[0].mxu0 %v964
      %v1147 = vpop.f32.mrb[0].mxu0
      %v1148 = vadd.f32 %v728, %v1147
      %v1149 = vpop.f32.mrb[0].mxu0
      %v1150 = vpop.f32.mrb[0].mxu0
      %v1151 = vadd.f32 %v731, %v1150
      %v1152 = vpop.f32.mrb[0].mxu0
      %1153 = vmatprep.mubr.bf16.mxu0 0
      %1154 = vmatmul.mubr.bf16.gmra.mrb[0].mxu0 %v967
      %v1155 = vpop.f32.mrb[0].mxu0
      %v1156 = vadd.f32 %v736, %v1155
      %v1157 = vpop.f32.mrb[0].mxu0
      %v1158 = vpop.f32.mrb[0].mxu0
      %v1159 = vadd.f32 %v739, %v1158
      %v1160 = vpop.f32.mrb[0].mxu0
      %1161 = vmatprep.mubr.bf16.mxu0 0
      %1162 = vmatmul.mubr.bf16.gmra.mrb[0].mxu0 %v970
      %v1163 = vpop.f32.mrb[0].mxu0
      %v1164 = vadd.f32 %v744, %v1163
      %v1165 = vpop.f32.mrb[0].mxu0
      %v1166 = vpop.f32.mrb[0].mxu0
      %v1167 = vadd.f32 %v747, %v1166
      %v1168 = vpop.f32.mrb[0].mxu0
      %1169 = vmatprep.mubr.bf16.mxu0 0
      %1170 = vmatmul.mubr.bf16.gmra.mrb[0].mxu0 %v973
      %v1171 = vpop.f32.mrb[0].mxu0
      %v1172 = vadd.f32 %v752, %v1171
      %v1173 = vpop.f32.mrb[0].mxu0
      %v1174 = vpop.f32.mrb[0].mxu0
      %v1175 = vadd.f32 %v755, %v1174
      %v1176 = vpop.f32.mrb[0].mxu0
      %1177 = vmatprep.mubr.bf16.mxu0 0
      %1178 = vmatmul.mubr.bf16.gmra.mrb[0].mxu0 %v976
      %v1179 = vpop.f32.mrb[0].mxu0
      %v1180 = vadd.f32 %v760, %v1179
      %v1181 = vpop.f32.mrb[0].mxu0
      %v1182 = vpop.f32.mrb[0].mxu0
      %v1183 = vadd.f32 %v763, %v1182
      %v1184 = vpop.f32.mrb[0].mxu0
      %1185 = vmatprep.mubr.bf16.mxu0 0
      %1186 = vmatmul.mubr.bf16.gmra.mrb[0].mxu0 %v979
      %v1187 = vpop.f32.mrb[0].mxu0
      %v1188 = vadd.f32 %v768, %v1187
      %v1189 = vpop.f32.mrb[0].mxu0
      %v1190 = vpop.f32.mrb[0].mxu0
      %v1191 = vadd.f32 %v771, %v1190
      %v1192 = vpop.f32.mrb[0].mxu0
      %1193 = vmatprep.mubr.bf16.mxu0 0
      %1194 = vmatmul.mubr.bf16.gmra.mrb[0].mxu0 %v982
      %v1195 = vpop.f32.mrb[0].mxu0
      %v1196 = vadd.f32 %v776, %v1195
      %v1197 = vpop.f32.mrb[0].mxu0
      %v1198 = vpop.f32.mrb[0].mxu0
      %v1199 = vadd.f32 %v779, %v1198
      %v1200 = vpop.f32.mrb[0].mxu0
      %1201 = vmatprep.mubr.bf16.mxu0 0
      %1202 = vmatmul.mubr.bf16.gmra.mrb[0].mxu0 %v985
      %v1203 = vpop.f32.mrb[0].mxu0
      %v1204 = vadd.f32 %v784, %v1203
      %v1205 = vpop.f32.mrb[0].mxu0
      %v1206 = vpop.f32.mrb[0].mxu0
      %v1207 = vadd.f32 %v787, %v1206
      %v1208 = vpop.f32.mrb[0].mxu0
      %1209 = vmatprep.mubr.bf16.mxu0 0
      %1210 = vmatmul.mubr.bf16.gmra.mrb[0].mxu0 %v988
      %v1211 = vpop.f32.mrb[0].mxu0
      %v1212 = vadd.f32 %v792, %v1211
      %v1213 = vpop.f32.mrb[0].mxu0
      %v1214 = vpop.f32.mrb[0].mxu0
      %v1215 = vadd.f32 %v795, %v1214
      %v1216 = vpop.f32.mrb[0].mxu0
      %1217 = vdwg.mxu0
      %v1218 = vmax.f32 %v1028, 0.0
      %v1219 = vmax.f32 %v1031, 0.0
      %v1220 = vmax.f32 %v1036, 0.0
      %v1221 = vmax.f32 %v1039, 0.0
      %v1222 = vmax.f32 %v1044, 0.0
      %v1223 = vmax.f32 %v1047, 0.0
      %v1224 = vmax.f32 %v1052, 0.0
      %v1225 = vmax.f32 %v1055, 0.0
      %v1226 = vmax.f32 %v1060, 0.0
      %v1227 = vmax.f32 %v1063, 0.0
      %v1228 = vmax.f32 %v1068, 0.0
      %v1229 = vmax.f32 %v1071, 0.0
      %v1230 = vmax.f32 %v1076, 0.0
      %v1231 = vmax.f32 %v1079, 0.0
      %v1232 = vmax.f32 %v1084, 0.0
      %v1233 = vmax.f32 %v1087, 0.0
      %v1234 = vmax.f32 %v1092, 0.0
      %v1235 = vmax.f32 %v1095, 0.0
      %v1236 = vmax.f32 %v1100, 0.0
      %v1237 = vmax.f32 %v1103, 0.0
      %v1238 = vmax.f32 %v1108, 0.0
      %v1239 = vmax.f32 %v1111, 0.0
      %v1240 = vmax.f32 %v1116, 0.0
      %v1241 = vmax.f32 %v1119, 0.0
      %v1242 = vmax.f32 %v1124, 0.0
      %v1243 = vmax.f32 %v1127, 0.0
      %v1244 = vmax.f32 %v1132, 0.0
      %v1245 = vmax.f32 %v1135, 0.0
      %v1246 = vmax.f32 %v1140, 0.0
      %v1247 = vmax.f32 %v1143, 0.0
      %v1248 = vmax.f32 %v1148, 0.0
      %v1249 = vmax.f32 %v1151, 0.0
      %v1250 = vmax.f32 %v1156, 0.0
      %v1251 = vmax.f32 %v1159, 0.0
      %v1252 = vmax.f32 %v1164, 0.0
      %v1253 = vmax.f32 %v1167, 0.0
      %v1254 = vmax.f32 %v1172, 0.0
      %v1255 = vmax.f32 %v1175, 0.0
      %v1256 = vmax.f32 %v1180, 0.0
      %v1257 = vmax.f32 %v1183, 0.0
      %v1258 = vmax.f32 %v1188, 0.0
      %v1259 = vmax.f32 %v1191, 0.0
      %v1260 = vmax.f32 %v1196, 0.0
      %v1261 = vmax.f32 %v1199, 0.0
      %v1262 = vmax.f32 %v1204, 0.0
      %v1263 = vmax.f32 %v1207, 0.0
      %v1264 = vmax.f32 %v1212, 0.0
      %v1265 = vmax.f32 %v1215, 0.0
      %vm1266 = vcmask 130048
      %1267 = vst.msk [vmem:[%s275] sm:$0xff] %vm1266, %v1218
      %1268 = vst.msk [vmem:[%s275 + $0x8] sm:$0xff] %vm1266, %v1219
      %1269 = vst.msk [vmem:[%s275 + $0x10] sm:$0xff] %vm1266, %v1220
      %1270 = vst.msk [vmem:[%s275 + $0x18] sm:$0xff] %vm1266, %v1221
      %1271 = vst.msk [vmem:[%s275 + $0x20] sm:$0xff] %vm1266, %v1222
      %1272 = vst.msk [vmem:[%s275 + $0x28] sm:$0xff] %vm1266, %v1223
      %1273 = vst.msk [vmem:[%s275 + $0x30] sm:$0xff] %vm1266, %v1224
      %1274 = vst.msk [vmem:[%s275 + $0x38] sm:$0xff] %vm1266, %v1225
      %1275 = vst.msk [vmem:[%s275 + $0x40] sm:$0xff] %vm1266, %v1226
      %1276 = vst.msk [vmem:[%s275 + $0x48] sm:$0xff] %vm1266, %v1227
      %1277 = vst.msk [vmem:[%s275 + $0x50] sm:$0xff] %vm1266, %v1228
      %1278 = vst.msk [vmem:[%s275 + $0x58] sm:$0xff] %vm1266, %v1229
      %1279 = vst.msk [vmem:[%s275 + $0x60] sm:$0xff] %vm1266, %v1230
      %1280 = vst.msk [vmem:[%s275 + $0x68] sm:$0xff] %vm1266, %v1231
      %1281 = vst.msk [vmem:[%s275 + $0x70] sm:$0xff] %vm1266, %v1232
      %1282 = vst.msk [vmem:[%s275 + $0x78] sm:$0xff] %vm1266, %v1233
      %1283 = vst.msk [vmem:[%s275 + $0x80] sm:$0xff] %vm1266, %v1234
      %1284 = vst.msk [vmem:[%s275 + $0x88] sm:$0xff] %vm1266, %v1235
      %1285 = vst.msk [vmem:[%s275 + $0x90] sm:$0xff] %vm1266, %v1236
      %1286 = vst.msk [vmem:[%s275 + $0x98] sm:$0xff] %vm1266, %v1237
      %1287 = vst.msk [vmem:[%s275 + $0xa0] sm:$0xff] %vm1266, %v1238
      %1288 = vst.msk [vmem:[%s275 + $0xa8] sm:$0xff] %vm1266, %v1239
      %1289 = vst.msk [vmem:[%s275 + $0xb0] sm:$0xff] %vm1266, %v1240
      %1290 = vst.msk [vmem:[%s275 + $0xb8] sm:$0xff] %vm1266, %v1241
      %1291 = vst.msk [vmem:[%s275 + $0xc0] sm:$0xff] %vm1266, %v1242
      %1292 = vst.msk [vmem:[%s275 + $0xc8] sm:$0xff] %vm1266, %v1243
      %1293 = vst.msk [vmem:[%s275 + $0xd0] sm:$0xff] %vm1266, %v1244
      %1294 = vst.msk [vmem:[%s275 + $0xd8] sm:$0xff] %vm1266, %v1245
      %1295 = vst.msk [vmem:[%s275 + $0xe0] sm:$0xff] %vm1266, %v1246
      %1296 = vst.msk [vmem:[%s275 + $0xe8] sm:$0xff] %vm1266, %v1247
      %1297 = vst.msk [vmem:[%s275 + $0xf0] sm:$0xff] %vm1266, %v1248
      %1298 = vst.msk [vmem:[%s275 + $0xf8] sm:$0xff] %vm1266, %v1249
      %1299 = vst.msk [vmem:[%s275 + $0x100] sm:$0xff] %vm1266, %v1250
      %1300 = vst.msk [vmem:[%s275 + $0x108] sm:$0xff] %vm1266, %v1251
      %1301 = vst.msk [vmem:[%s275 + $0x110] sm:$0xff] %vm1266, %v1252
      %1302 = vst.msk [vmem:[%s275 + $0x118] sm:$0xff] %vm1266, %v1253
      %1303 = vst.msk [vmem:[%s275 + $0x120] sm:$0xff] %vm1266, %v1254
      %1304 = vst.msk [vmem:[%s275 + $0x128] sm:$0xff] %vm1266, %v1255
      %1305 = vst.msk [vmem:[%s275 + $0x130] sm:$0xff] %vm1266, %v1256
      %1306 = vst.msk [vmem:[%s275 + $0x138] sm:$0xff] %vm1266, %v1257
      %1307 = vst.msk [vmem:[%s275 + $0x140] sm:$0xff] %vm1266, %v1258
      %1308 = vst.msk [vmem:[%s275 + $0x148] sm:$0xff] %vm1266, %v1259
      %1309 = vst.msk [vmem:[%s275 + $0x150] sm:$0xff] %vm1266, %v1260
      %1310 = vst.msk [vmem:[%s275 + $0x158] sm:$0xff] %vm1266, %v1261
      %1311 = vst.msk [vmem:[%s275 + $0x160] sm:$0xff] %vm1266, %v1262
      %1312 = vst.msk [vmem:[%s275 + $0x168] sm:$0xff] %vm1266, %v1263
      %1313 = vst.msk [vmem:[%s275 + $0x170] sm:$0xff] %vm1266, %v1264
      %1314 = vst.msk [vmem:[%s275 + $0x178] sm:$0xff] %vm1266, %v1265
      %s1315 = smul.u32 48, %s19
      %p1316 = scmp.lt.s32.totalorder %s1315, 95
      %s1317 = scalar_select %p1316, %s1315, 95
      %p1318 = scmp.lt.s32.totalorder %s20, 0
      %s1319 = scalar_select %p1318, %s20, 0
      %s1320 = sadd.s32 %s1319, %s1317
      %s1321 = smul.addr %s1320, 8
      %s1322 = scalar_lea.vmem %s4, %s1321
      // Predicated region
      $region37: #{_lambda_.5} parent=35 // pred_check
        %p1323 = pneg %p151
      $region38: #{_lambda_.5} parent=35 // pred_check_branch
        %1325 = sbr.rel (%p1323) target = $region40
      $region39: #{_lambda_.5} parent=35 // pred_region
        %s1326 = smul.u32 48, %s19
      $region40: #{_lambda_.5} parent=35 // pred_fallthru
        _
    $region36: #{_lambda_.5} parent=5 // pred_fallthru
      _
    %p1327 = scmp.le.s32.totalorder 2, %s10
    // Predicated region
    $region41: #{_lambda_.5} parent=5 // pred_check
      %p1328 = pneg %p1327
    $region42: #{_lambda_.5} parent=5 // pred_check_branch
      %1330 = sbr.rel (%p1328) target = $region44
    $region43: #{_lambda_.5} parent=5 // pred_region
      %s1331 = ssub.s32 %s10, 2
      // Predicated region
      $region45: #{_lambda_.5} parent=43 // pred_check
        %p1332 = pneg %p157
      $region46: #{_lambda_.5} parent=43 // pred_check_branch
        %1334 = sbr.rel (%p1332) target = $region48
      $region47: #{_lambda_.5} parent=43 // pred_region
        %s1335 = smul.u32 48, %s21
        %p1336 = scmp.lt.s32.totalorder %s1335, 95
        %s1337 = scalar_select %p1336, %s1335, 95
        %p1338 = scmp.lt.s32.totalorder %s22, 0
        %s1339 = scalar_select %p1338, %s22, 0
        %s1340 = sadd.s32 %s1339, %s1337
        %s1341 = smul.addr %s1340, 8
        %s1342 = scalar_lea.vmem %s4, %s1341
      $region48: #{_lambda_.5} parent=43 // pred_fallthru
        _
    $region44: #{_lambda_.5} parent=5 // pred_fallthru
      _
  $region6: #{_lambda_.5} parent=0 // loop_footer
    %s14 = sadd.s32 1, %s10
  $region7: #{_lambda_.5} parent=0 // loop_footer_branch
    %9 = sbr.rel target = $region3
  $region8: #{_lambda_.5} parent=0 // loop_exit
    _

// kernel: _lambda_.4
$region0: #{_lambda_.4}
  #allocation0 [shape = 'u32[]', space=smem, size = 0x4, offset = 0x4, fixed_abs, tag = 'smem constant byte address 0x4 - core index']
  #allocation1 [shape = 'u32[144,128]{1,0:T(1,128)}', space=vmem, size = 0x12000, scoped, tag = 'internal scratch']
  %s0 = inlined_call_operand.vmem [shape: bf16[2,456,4], index: 0, kind: input, shape index: {}]
  %s1 = inlined_call_operand.vmem [shape: bf16[9,4,4], index: 1, kind: input, shape index: {}]
  %s2 = inlined_call_operand.vmem [shape: bf16[2,384,4], index: 2, kind: output, shape index: {}]
  %s3 = sld [smem:[#allocation0]]
  $region41: #{_lambda_.4} parent=0
    _
  %s5 = ssub.s32 1, %s3
  %s6 = scalar_select 0, %s5, %s3
  loop: start=0, step=1, limit=4
  $region2: #{_lambda_.4} parent=0 // loop_pre_header
    _
  $region3: #{_lambda_.4} parent=0 // loop_header
    %s8 = sphi 0, %s12
    %p9 = scmp.ge.s32.totalorder %s8, 4
    %s15 = sphi 0, %s27
    %s16 = sphi 0, %s23
    %s17 = sphi 0, %s15
    %s18 = sphi 0, %s16
    %s19 = sphi 0, %s17
    %s20 = sphi 0, %s18
    %s30 = sphi 0, %s32
    %s33 = sphi 0, %s30
    %s34 = sphi 0, %s33
    %s50 = sphi 0, %s34
    %s56 = sphi 0, %s58
    %s59 = sphi 0, %s56
    %s60 = sphi 0, %s59
    %s76 = sphi 0, %s60
    %s84 = sphi 0, %s86
    %s87 = sphi 0, %s84
    %s88 = sphi 0, %s87
    %s104 = sphi 0, %s88
  $region4: #{_lambda_.4} parent=0 // loop_header_branch
    %11 = sbr.rel (%p9) target = $region8
  $region5: #{_lambda_.4} parent=0 // loop_body
    %s13 = ssub.s32 %s8, 1
    %s14 = ssub.s32 %s8, 2
    %s21 = sadd.s32 1, %s16
    %p22 = scmp.ge.s32.totalorder %s21, 1
    %s23 = scalar_select %p22, 0, %s21
    %s24 = sadd.s32 1, %s15
    %s25 = scalar_select %p22, %s24, %s15
    %p26 = scmp.ge.s32.totalorder %s25, 2
    %s27 = scalar_select %p26, 0, %s25
    %s28 = ssub.s32 %s15, %s27
    %p29 = scmp.eq.s32.totalorder %s28, 0
    %s31 = sadd.s32 %s30, 1
    %s32 = scalar_select %p29, %s30, %s31
    %p35 = pneg %p29
    %p36 = scmp.eq.s32.totalorder %s8, 1
    %p37 = por %p35, %p36
    %p38 = scmp.ne.s32.totalorder %s30, %s33
    %p39 = scmp.eq.s32.totalorder %s8, 0
    %p40 = por %p38, %p39
    %p41 = scmp.ne.s32.totalorder %s30, %s33
    %p42 = scmp.eq.s32.totalorder %s13, 1
    %p43 = por %p41, %p42
    %p44 = scmp.ne.s32.totalorder %s33, %s34
    %p45 = scmp.eq.s32.totalorder %s13, 0
    %p46 = por %p44, %p45
    %p47 = scmp.ne.s32.totalorder %s33, %s34
    %p48 = scmp.eq.s32.totalorder %s14, 1
    %p49 = por %p47, %p48
    %p51 = scmp.ne.s32.totalorder %s34, %s50
    %p52 = scmp.eq.s32.totalorder %s14, 0
    %p53 = por %p51, %p52
    %s54 = ssub.s32 %s16, %s23
    %p55 = scmp.eq.s32.totalorder %s54, 0
    %s57 = sadd.s32 %s56, 1
    %s58 = scalar_select %p55, %s56, %s57
    %p61 = pneg %p55
    %p62 = scmp.eq.s32.totalorder %s8, 1
    %p63 = por %p61, %p62
    %p64 = scmp.ne.s32.totalorder %s56, %s59
    %p65 = scmp.eq.s32.totalorder %s8, 0
    %p66 = por %p64, %p65
    %p67 = scmp.ne.s32.totalorder %s56, %s59
    %p68 = scmp.eq.s32.totalorder %s13, 1
    %p69 = por %p67, %p68
    %p70 = scmp.ne.s32.totalorder %s59, %s60
    %p71 = scmp.eq.s32.totalorder %s13, 0
    %p72 = por %p70, %p71
    %p73 = scmp.ne.s32.totalorder %s59, %s60
    %p74 = scmp.eq.s32.totalorder %s14, 1
    %p75 = por %p73, %p74
    %p77 = scmp.ne.s32.totalorder %s60, %s76
    %p78 = scmp.eq.s32.totalorder %s14, 0
    %p79 = por %p77, %p78
    %s80 = ssub.s32 %s15, %s27
    %s81 = ssub.s32 %s16, %s23
    %s82 = sor.u32 %s80, %s81
    %p83 = scmp.eq.s32.totalorder %s82, 0
    %s85 = sadd.s32 %s84, 1
    %s86 = scalar_select %p83, %s84, %s85
    %p89 = pneg %p83
    %p90 = scmp.eq.s32.totalorder %s8, 1
    %p91 = por %p89, %p90
    %p92 = scmp.ne.s32.totalorder %s84, %s87
    %p93 = scmp.eq.s32.totalorder %s8, 0
    %p94 = por %p92, %p93
    %p95 = scmp.ne.s32.totalorder %s84, %s87
    %p96 = scmp.eq.s32.totalorder %s13, 1
    %p97 = por %p95, %p96
    %p98 = scmp.ne.s32.totalorder %s87, %s88
    %p99 = scmp.eq.s32.totalorder %s13, 0
    %p100 = por %p98, %p99
    %p101 = scmp.ne.s32.totalorder %s87, %s88
    %p102 = scmp.eq.s32.totalorder %s14, 1
    %p103 = por %p101, %p102
    %p105 = scmp.ne.s32.totalorder %s88, %s104
    %p106 = scmp.eq.s32.totalorder %s14, 0
    %p107 = por %p105, %p106
    %p108 = scmp.le.s32.totalorder 1, %s8
    %p109 = scmp.lt.s32.totalorder %s8, 3
    %p110 = pnand %p108, %p109
    %p111 = pneg %p110
    // Predicated region
    $region9: #{_lambda_.4} parent=5 // pred_check
      _
    $region10: #{_lambda_.4} parent=5 // pred_check_branch
      %113 = sbr.rel (%p110) target = $region12
    $region11: #{_lambda_.4} parent=5 // pred_region
      %s114 = ssub.s32 %s8, 1
      // Predicated region
      $region13: #{_lambda_.4} parent=11 // pred_check
        %p115 = pneg %p72
      $region14: #{_lambda_.4} parent=11 // pred_check_branch
        %117 = sbr.rel (%p115) target = $region16
      $region15: #{_lambda_.4} parent=11 // pred_region
        %p118 = scmp.lt.s32.totalorder %s18, 0
        %s119 = scalar_select %p118, %s18, 0
        %s120 = smul.addr %s119, 2
        %s121 = scalar_lea.vmem %s1, %s120
      $region16: #{_lambda_.4} parent=11 // pred_fallthru
        _
    $region12: #{_lambda_.4} parent=5 // pred_fallthru
      _
    %p122 = scmp.lt.s32.totalorder %s8, 2
    // Predicated region
    $region17: #{_lambda_.4} parent=5 // pred_check
      %p123 = pneg %p122
    $region18: #{_lambda_.4} parent=5 // pred_check_branch
      %125 = sbr.rel (%p123) target = $region20
    $region19: #{_lambda_.4} parent=5 // pred_region
      // Predicated region
      $region21: #{_lambda_.4} parent=19 // pred_check
        %p126 = pneg %p40
      $region22: #{_lambda_.4} parent=19 // pred_check_branch
        %128 = sbr.rel (%p126) target = $region24
      $region23: #{_lambda_.4} parent=19 // pred_region
        %p129 = scmp.lt.s32.totalorder %s15, 1
        %s130 = scalar_select %p129, %s15, 1
        %s131 = smul.addr %s130, 57
        %s132 = smul.addr %s131, 4
        %s133 = scalar_lea.vmem %s0, %s132
      $region24: #{_lambda_.4} parent=19 // pred_fallthru
        _
    $region20: #{_lambda_.4} parent=5 // pred_fallthru
      _
    %p134 = scmp.le.s32.totalorder 1, %s8
    %p135 = scmp.lt.s32.totalorder %s8, 3
    %p136 = pnand %p134, %p135
    %p137 = pneg %p136
    // Predicated region
    $region25: #{_lambda_.4} parent=5 // pred_check
      _
    $region26: #{_lambda_.4} parent=5 // pred_check_branch
      %139 = sbr.rel (%p136) target = $region28
    $region27: #{_lambda_.4} parent=5 // pred_region
      %s140 = ssub.s32 %s8, 1
      %p141 = scmp.lt.s32.totalorder %s17, 1
      %s142 = scalar_select %p141, %s17, 1
      %s143 = smul.addr %s142, 57
      %s144 = smul.addr %s143, 4
      %s145 = scalar_lea.vmem %s0, %s144
      %p146 = pneg %p46
      %p147 = pneg %p43
      %p148 = scmp.lt.s32.totalorder %s18, 0
      %s149 = scalar_select %p148, %s18, 0
      %s150 = smul.addr %s149, 2
      %s151 = scalar_lea.vmem %s1, %s150
      %p152 = pneg %p72
      %p153 = pneg %p69
      %p154 = pneg %p100
      %p155 = pneg %p97
      %p156 = scmp.lt.s32.totalorder %s17, 1
      %s157 = scalar_select %p156, %s17, 1
      %p158 = scmp.lt.s32.totalorder %s18, 0
      %s159 = scalar_select %p158, %s18, 0
      %s160 = smul.addr %s157, 48
      %s161 = sadd.s32 %s159, %s160
      %s162 = smul.addr %s161, 4
      %s163 = scalar_lea.vmem %s2, %s162
      %p164 = scmp.lt.s32.totalorder %s17, 1
      %s165 = scalar_select %p164, %s17, 1
      %s166 = smul.addr %s165, 57
      %s167 = smul.addr %s166, 4
      %s168 = scalar_lea.vmem %s0, %s167
      %p169 = scmp.lt.s32.totalorder %s18, 0
      %s170 = scalar_select %p169, %s18, 0
      %s171 = smul.addr %s170, 2
      %s172 = scalar_lea.vmem %s1, %s171
      %p173 = scmp.lt.s32.totalorder %s17, 1
      %s174 = scalar_select %p173, %s17, 1
      %p175 = scmp.lt.s32.totalorder %s18, 0
      %s176 = scalar_select %p175, %s18, 0
      %s177 = smul.addr %s174, 48
      %s178 = sadd.s32 %s176, %s177
      %s179 = smul.addr %s178, 4
      %s180 = scalar_lea.vmem %s2, %s179
      %v182 = vld [vmem:[%s168] sm:$0xf]
      %v183 = vld [vmem:[%s168 + $0x4] sm:$0xf]
      %v184 = vld [vmem:[%s168 + $0x8] sm:$0xf]
      %v185 = vld [vmem:[%s168 + $0xc] sm:$0xf]
      %v186 = vld [vmem:[%s168 + $0x10] sm:$0xf]
      %v187 = vld [vmem:[%s168 + $0x14] sm:$0xf]
      %v188 = vld [vmem:[%s168 + $0x18] sm:$0xf]
      %v189 = vld [vmem:[%s168 + $0x1c] sm:$0xf]
      %v190 = vld [vmem:[%s168 + $0x20] sm:$0xf]
      %v191 = vld [vmem:[%s168 + $0x24] sm:$0xf]
      %v192 = vld [vmem:[%s168 + $0x28] sm:$0xf]
      %v193 = vld [vmem:[%s168 + $0x2c] sm:$0xf]
      %v194 = vld [vmem:[%s168 + $0x30] sm:$0xf]
      %v195 = vld [vmem:[%s168 + $0x34] sm:$0xf]
      %v196 = vld [vmem:[%s168 + $0x38] sm:$0xf]
      %v197 = vld [vmem:[%s168 + $0x3c] sm:$0xf]
      %v198 = vld [vmem:[%s168 + $0x40] sm:$0xf]
      %v199 = vld [vmem:[%s168 + $0x44] sm:$0xf]
      %v200 = vld [vmem:[%s168 + $0x48] sm:$0xf]
      %v201 = vld [vmem:[%s168 + $0x4c] sm:$0xf]
      %v202 = vld [vmem:[%s168 + $0x50] sm:$0xf]
      %v203 = vld [vmem:[%s168 + $0x54] sm:$0xf]
      %v204 = vld [vmem:[%s168 + $0x58] sm:$0xf]
      %v205 = vld [vmem:[%s168 + $0x5c] sm:$0xf]
      %v206 = vld [vmem:[%s168 + $0x60] sm:$0xf]
      %v207 = vld [vmem:[%s168 + $0x64] sm:$0xf]
      %v208 = vld [vmem:[%s168 + $0x68] sm:$0xf]
      %v209 = vld [vmem:[%s168 + $0x6c] sm:$0xf]
      %v210 = vld [vmem:[%s168 + $0x70] sm:$0xf]
      %v211 = vld [vmem:[%s168 + $0x74] sm:$0xf]
      %v212 = vld [vmem:[%s168 + $0x78] sm:$0xf]
      %v213 = vld [vmem:[%s168 + $0x7c] sm:$0xf]
      %v214 = vld [vmem:[%s168 + $0x80] sm:$0xf]
      %v215 = vld [vmem:[%s168 + $0x84] sm:$0xf]
      %v216 = vld [vmem:[%s168 + $0x88] sm:$0xf]
      %v217 = vld [vmem:[%s168 + $0x8c] sm:$0xf]
      %v218 = vld [vmem:[%s168 + $0x90] sm:$0xf]
      %v219 = vld [vmem:[%s168 + $0x94] sm:$0xf]
      %v220 = vld [vmem:[%s168 + $0x98] sm:$0xf]
      %v221 = vld [vmem:[%s168 + $0x9c] sm:$0xf]
      %v222 = vld [vmem:[%s168 + $0xa0] sm:$0xf]
      %v223 = vld [vmem:[%s168 + $0xa4] sm:$0xf]
      %v224 = vld [vmem:[%s168 + $0xa8] sm:$0xf]
      %v225 = vld [vmem:[%s168 + $0xac] sm:$0xf]
      %v226 = vld [vmem:[%s168 + $0xb0] sm:$0xf]
      %v227 = vld [vmem:[%s168 + $0xb4] sm:$0xf]
      %v228 = vld [vmem:[%s168 + $0xb8] sm:$0xf]
      %v229 = vld [vmem:[%s168 + $0xbc] sm:$0xf]
      %v230 = vld [vmem:[%s172] sm:$0x3]
      %v231 = vld [vmem:[%s168 + $0xc0] sm:$0x1]
      %s232 = scalar_lea.vmem %s172, 2
      %v233 = vld [vmem:[%s232] sm:$0x3]
      %v283 = vunpack.c.l.b16 %v182
      %v284 = vunpack.c.l.b16 %v183
      %v285 = vunpack.c.l.b16 %v184
      %v286 = vunpack.c.l.b16 %v185
      %v287 = vunpack.c.l.b16 %v186
      %v288 = vunpack.c.l.b16 %v187
      %v289 = vunpack.c.l.b16 %v188
      %v290 = vunpack.c.l.b16 %v189
      %v291 = vunpack.c.l.b16 %v190
      %v292 = vunpack.c.l.b16 %v191
      %v293 = vunpack.c.l.b16 %v192
      %v294 = vunpack.c.l.b16 %v193
      %v295 = vunpack.c.l.b16 %v194
      %v296 = vunpack.c.l.b16 %v195
      %v297 = vunpack.c.l.b16 %v196
      %v298 = vunpack.c.l.b16 %v197
      %v299 = vunpack.c.l.b16 %v198
      %v300 = vunpack.c.l.b16 %v199
      %v301 = vunpack.c.l.b16 %v200
      %v302 = vunpack.c.l.b16 %v201
      %v303 = vunpack.c.l.b16 %v202
      %v304 = vunpack.c.l.b16 %v203
      %v305 = vunpack.c.l.b16 %v204
      %v306 = vunpack.c.l.b16 %v205
      %v307 = vunpack.c.l.b16 %v206
      %v308 = vunpack.c.l.b16 %v207
      %v309 = vunpack.c.l.b16 %v208
      %v310 = vunpack.c.l.b16 %v209
      %v311 = vunpack.c.l.b16 %v210
      %v312 = vunpack.c.l.b16 %v211
      %v313 = vunpack.c.l.b16 %v212
      %v314 = vunpack.c.l.b16 %v213
      %v315 = vunpack.c.l.b16 %v214
      %v316 = vunpack.c.l.b16 %v215
      %v317 = vunpack.c.l.b16 %v216
      %v318 = vunpack.c.l.b16 %v217
      %v319 = vunpack.c.l.b16 %v218
      %v320 = vunpack.c.l.b16 %v219
      %v321 = vunpack.c.l.b16 %v220
      %v322 = vunpack.c.l.b16 %v221
      %v323 = vunpack.c.l.b16 %v222
      %v324 = vunpack.c.l.b16 %v223
      %v325 = vunpack.c.l.b16 %v224
      %v326 = vunpack.c.l.b16 %v225
      %v327 = vunpack.c.l.b16 %v226
      %v328 = vunpack.c.l.b16 %v227
      %v329 = vunpack.c.l.b16 %v228
      %v330 = vunpack.c.l.b16 %v229
      %v331 = vunpack.c.l.b16 %v231
      %v332 = vpack.c.b16 %v284, %v283
      %v333 = vpack.c.b16 %v286, %v285
      %v334 = vpack.c.b16 %v288, %v287
      %v335 = vpack.c.b16 %v290, %v289
      %v336 = vpack.c.b16 %v292, %v291
      %v337 = vpack.c.b16 %v294, %v293
      %v338 = vpack.c.b16 %v296, %v295
      %v339 = vpack.c.b16 %v298, %v297
      %v340 = vpack.c.b16 %v300, %v299
      %v341 = vpack.c.b16 %v302, %v301
      %v342 = vpack.c.b16 %v304, %v303
      %v343 = vpack.c.b16 %v306, %v305
      %v344 = vpack.c.b16 %v308, %v307
      %v345 = vpack.c.b16 %v310, %v309
      %v346 = vpack.c.b16 %v312, %v311
      %v347 = vpack.c.b16 %v314, %v313
      %v348 = vpack.c.b16 %v316, %v315
      %v349 = vpack.c.b16 %v318, %v317
      %v350 = vpack.c.b16 %v320, %v319
      %v351 = vpack.c.b16 %v322, %v321
      %v352 = vpack.c.b16 %v324, %v323
      %v353 = vpack.c.b16 %v326, %v325
      %v354 = vpack.c.b16 %v328, %v327
      %v355 = vpack.c.b16 %v330, %v329
      %v356 = vpack.c.b16 %v331, %v331
      %vm357 = vsmask.f32 7424
      %v359 = vshrl.u32 %v332, 16
      %v361 = vshll.u32 %v332, 16
      %v363 = vrot.slane %v361, 1
      %v364 = vor.u32 %v359, %v363
      %v366 = vshll.u32 %v333, 16
      %v368 = vrot.slane %v366, 1
      %v369 = vsel %vm357, %v364, %v368
      %v370 = vshrl.u32 %v333, 16
      %v372 = vor.u32 %v370, %v368
      %v374 = vshll.u32 %v334, 16
      %v376 = vrot.slane %v374, 1
      %v377 = vsel %vm357, %v372, %v376
      %v378 = vshrl.u32 %v334, 16
      %v380 = vor.u32 %v378, %v376
      %v382 = vshll.u32 %v335, 16
      %v384 = vrot.slane %v382, 1
      %v385 = vsel %vm357, %v380, %v384
      %v386 = vshrl.u32 %v335, 16
      %v388 = vor.u32 %v386, %v384
      %v390 = vshll.u32 %v336, 16
      %v392 = vrot.slane %v390, 1
      %v393 = vsel %vm357, %v388, %v392
      %v394 = vshrl.u32 %v336, 16
      %v396 = vor.u32 %v394, %v392
      %v398 = vshll.u32 %v337, 16
      %v400 = vrot.slane %v398, 1
      %v401 = vsel %vm357, %v396, %v400
      %v402 = vshrl.u32 %v337, 16
      %v404 = vor.u32 %v402, %v400
      %v406 = vshll.u32 %v338, 16
      %v408 = vrot.slane %v406, 1
      %v409 = vsel %vm357, %v404, %v408
      %v410 = vshrl.u32 %v338, 16
      %v412 = vor.u32 %v410, %v408
      %v414 = vshll.u32 %v339, 16
      %v416 = vrot.slane %v414, 1
      %v417 = vsel %vm357, %v412, %v416
      %v418 = vshrl.u32 %v339, 16
      %v420 = vor.u32 %v418, %v416
      %v422 = vshll.u32 %v340, 16
      %v424 = vrot.slane %v422, 1
      %v425 = vsel %vm357, %v420, %v424
      %v426 = vshrl.u32 %v340, 16
      %v428 = vor.u32 %v426, %v424
      %v430 = vshll.u32 %v341, 16
      %v432 = vrot.slane %v430, 1
      %v433 = vsel %vm357, %v428, %v432
      %v434 = vshrl.u32 %v341, 16
      %v436 = vor.u32 %v434, %v432
      %v438 = vshll.u32 %v342, 16
      %v440 = vrot.slane %v438, 1
      %v441 = vsel %vm357, %v436, %v440
      %v442 = vshrl.u32 %v342, 16
      %v444 = vor.u32 %v442, %v440
      %v446 = vshll.u32 %v343, 16
      %v448 = vrot.slane %v446, 1
      %v449 = vsel %vm357, %v444, %v448
      %v450 = vshrl.u32 %v343, 16
      %v452 = vor.u32 %v450, %v448
      %v454 = vshll.u32 %v344, 16
      %v456 = vrot.slane %v454, 1
      %v457 = vsel %vm357, %v452, %v456
      %v458 = vshrl.u32 %v344, 16
      %v460 = vor.u32 %v458, %v456
      %v462 = vshll.u32 %v345, 16
      %v464 = vrot.slane %v462, 1
      %v465 = vsel %vm357, %v460, %v464
      %v466 = vshrl.u32 %v345, 16
      %v468 = vor.u32 %v466, %v464
      %v470 = vshll.u32 %v346, 16
      %v472 = vrot.slane %v470, 1
      %v473 = vsel %vm357, %v468, %v472
      %v474 = vshrl.u32 %v346, 16
      %v476 = vor.u32 %v474, %v472
      %v478 = vshll.u32 %v347, 16
      %v480 = vrot.slane %v478, 1
      %v481 = vsel %vm357, %v476, %v480
      %v482 = vshrl.u32 %v347, 16
      %v484 = vor.u32 %v482, %v480
      %v486 = vshll.u32 %v348, 16
      %v488 = vrot.slane %v486, 1
      %v489 = vsel %vm357, %v484, %v488
      %v490 = vshrl.u32 %v348, 16
      %v492 = vor.u32 %v490, %v488
      %v494 = vshll.u32 %v349, 16
      %v496 = vrot.slane %v494, 1
      %v497 = vsel %vm357, %v492, %v496
      %v498 = vshrl.u32 %v349, 16
      %v500 = vor.u32 %v498, %v496
      %v502 = vshll.u32 %v350, 16
      %v504 = vrot.slane %v502, 1
      %v505 = vsel %vm357, %v500, %v504
      %v506 = vshrl.u32 %v350, 16
      %v508 = vor.u32 %v506, %v504
      %v510 = vshll.u32 %v351, 16
      %v512 = vrot.slane %v510, 1
      %v513 = vsel %vm357, %v508, %v512
      %v514 = vshrl.u32 %v351, 16
      %v516 = vor.u32 %v514, %v512
      %v518 = vshll.u32 %v352, 16
      %v520 = vrot.slane %v518, 1
      %v521 = vsel %vm357, %v516, %v520
      %v522 = vshrl.u32 %v352, 16
      %v524 = vor.u32 %v522, %v520
      %v526 = vshll.u32 %v353, 16
      %v528 = vrot.slane %v526, 1
      %v529 = vsel %vm357, %v524, %v528
      %v530 = vshrl.u32 %v353, 16
      %v532 = vor.u32 %v530, %v528
      %v534 = vshll.u32 %v354, 16
      %v536 = vrot.slane %v534, 1
      %v537 = vsel %vm357, %v532, %v536
      %v538 = vshrl.u32 %v354, 16
      %v540 = vor.u32 %v538, %v536
      %v542 = vshll.u32 %v355, 16
      %v544 = vrot.slane %v542, 1
      %v545 = vsel %vm357, %v540, %v544
      %v546 = vshrl.u32 %v355, 16
      %v548 = vor.u32 %v546, %v544
      %v550 = vshll.u32 %v356, 16
      %v552 = vrot.slane %v550, 1
      %v553 = vsel %vm357, %v548, %v552
      %vm554 = vcmask 31744
      %v556 = vsel %vm554, %v369, 0
      %v559 = vsel %vm554, %v377, 0
      %v562 = vsel %vm554, %v385, 0
      %v565 = vsel %vm554, %v393, 0
      %v568 = vsel %vm554, %v401, 0
      %v571 = vsel %vm554, %v409, 0
      %v574 = vsel %vm554, %v417, 0
      %v577 = vsel %vm554, %v425, 0
      %v580 = vsel %vm554, %v433, 0
      %v583 = vsel %vm554, %v441, 0
      %v586 = vsel %vm554, %v449, 0
      %v589 = vsel %vm554, %v457, 0
      %v592 = vsel %vm554, %v465, 0
      %v595 = vsel %vm554, %v473, 0
      %v598 = vsel %vm554, %v481, 0
      %v601 = vsel %vm554, %v489, 0
      %v604 = vsel %vm554, %v497, 0
      %v607 = vsel %vm554, %v505, 0
      %v610 = vsel %vm554, %v513, 0
      %v613 = vsel %vm554, %v521, 0
      %v616 = vsel %vm554, %v529, 0
      %v619 = vsel %vm554, %v537, 0
      %v622 = vsel %vm554, %v545, 0
      %v625 = vsel %vm554, %v553, 0
      %vm627 = vcmask 1041408
      %v629 = vsel %vm627, %v233, 0
      %631 = vmatprep.subr.bf16.mxu0 0
      %632 = vmatpush1.bf16.msra.mxu0 %v629
      %633 = vmatprep.subr.bf16.mxu0 0
      %634 = vmatpush1.bf16.msra.mxu0 0
      %635 = vmatprep.subr.bf16.mxu0 0
      %636 = vmatpush1.bf16.msra.mxu0 0
      %637 = vmatprep.subr.bf16.mxu0 0
      %638 = vmatpush1.bf16.msra.mxu0 0
      %639 = vmatprep.subr.bf16.mxu0 0
      %640 = vmatpush1.bf16.msra.mxu0 0
      %641 = vmatprep.subr.bf16.mxu0 0
      %642 = vmatpush1.bf16.msra.mxu0 0
      %643 = vmatprep.subr.bf16.mxu0 0
      %644 = vmatpush1.bf16.msra.mxu0 0
      %645 = vmatprep.subr.bf16.mxu0 0
      %646 = vmatpush1.bf16.msra.mxu0 0
      %647 = vmatprep.subr.bf16.mxu0 0
      %648 = vmatpush1.bf16.msra.mxu0 0
      %649 = vmatprep.subr.bf16.mxu0 0
      %650 = vmatpush1.bf16.msra.mxu0 0
      %651 = vmatprep.subr.bf16.mxu0 0
      %652 = vmatpush1.bf16.msra.mxu0 0
      %653 = vmatprep.subr.bf16.mxu0 0
      %654 = vmatpush1.bf16.msra.mxu0 0
      %655 = vmatprep.subr.bf16.mxu0 0
      %656 = vmatpush1.bf16.msra.mxu0 0
      %657 = vmatprep.subr.bf16.mxu0 0
      %658 = vmatpush1.bf16.msra.mxu0 0
      %659 = vmatprep.subr.bf16.mxu0 0
      %660 = vmatpush1.bf16.msra.mxu0 0
      %661 = vmatprep.subr.bf16.mxu0 0
      %662 = vmatpush1.bf16.msra.mxu0 0
      %663 = vmatprep.mubr.bf16.mxu0 0
      %664 = vmatmul.mubr.bf16.gmra.mrb[0].mxu0 %v556
      %v665 = vpop.f32.mrb[0].mxu0
      %v666 = vadd.f32 0.0, %v665
      %v667 = vpop.f32.mrb[0].mxu0
      %v668 = vpop.f32.mrb[0].mxu0
      %v669 = vadd.f32 0.0, %v668
      %v670 = vpop.f32.mrb[0].mxu0
      %671 = vmatprep.mubr.bf16.mxu0 0
      %672 = vmatmul.mubr.bf16.gmra.mrb[0].mxu0 %v559
      %v673 = vpop.f32.mrb[0].mxu0
      %v674 = vadd.f32 0.0, %v673
      %v675 = vpop.f32.mrb[0].mxu0
      %v676 = vpop.f32.mrb[0].mxu0
      %v677 = vadd.f32 0.0, %v676
      %v678 = vpop.f32.mrb[0].mxu0
      %679 = vmatprep.mubr.bf16.mxu0 0
      %680 = vmatmul.mubr.bf16.gmra.mrb[0].mxu0 %v562
      %v681 = vpop.f32.mrb[0].mxu0
      %v682 = vadd.f32 0.0, %v681
      %v683 = vpop.f32.mrb[0].mxu0
      %v684 = vpop.f32.mrb[0].mxu0
      %v685 = vadd.f32 0.0, %v684
      %v686 = vpop.f32.mrb[0].mxu0
      %687 = vmatprep.mubr.bf16.mxu0 0
      %688 = vmatmul.mubr.bf16.gmra.mrb[0].mxu0 %v565
      %v689 = vpop.f32.mrb[0].mxu0
      %v690 = vadd.f32 0.0, %v689
      %v691 = vpop.f32.mrb[0].mxu0
      %v692 = vpop.f32.mrb[0].mxu0
      %v693 = vadd.f32 0.0, %v692
      %v694 = vpop.f32.mrb[0].mxu0
      %695 = vmatprep.mubr.bf16.mxu0 0
      %696 = vmatmul.mubr.bf16.gmra.mrb[0].mxu0 %v568
      %v697 = vpop.f32.mrb[0].mxu0
      %v698 = vadd.f32 0.0, %v697
      %v699 = vpop.f32.mrb[0].mxu0
      %v700 = vpop.f32.mrb[0].mxu0
      %v701 = vadd.f32 0.0, %v700
      %v702 = vpop.f32.mrb[0].mxu0
      %703 = vmatprep.mubr.bf16.mxu0 0
      %704 = vmatmul.mubr.bf16.gmra.mrb[0].mxu0 %v571
      %v705 = vpop.f32.mrb[0].mxu0
      %v706 = vadd.f32 0.0, %v705
      %v707 = vpop.f32.mrb[0].mxu0
      %v708 = vpop.f32.mrb[0].mxu0
      %v709 = vadd.f32 0.0, %v708
      %v710 = vpop.f32.mrb[0].mxu0
      %711 = vmatprep.mubr.bf16.mxu0 0
      %712 = vmatmul.mubr.bf16.gmra.mrb[0].mxu0 %v574
      %v713 = vpop.f32.mrb[0].mxu0
      %v714 = vadd.f32 0.0, %v713
      %v715 = vpop.f32.mrb[0].mxu0
      %v716 = vpop.f32.mrb[0].mxu0
      %v717 = vadd.f32 0.0, %v716
      %v718 = vpop.f32.mrb[0].mxu0
      %719 = vmatprep.mubr.bf16.mxu0 0
      %720 = vmatmul.mubr.bf16.gmra.mrb[0].mxu0 %v577
      %v721 = vpop.f32.mrb[0].mxu0
      %v722 = vadd.f32 0.0, %v721
      %v723 = vpop.f32.mrb[0].mxu0
      %v724 = vpop.f32.mrb[0].mxu0
      %v725 = vadd.f32 0.0, %v724
      %v726 = vpop.f32.mrb[0].mxu0
      %727 = vmatprep.mubr.bf16.mxu0 0
      %728 = vmatmul.mubr.bf16.gmra.mrb[0].mxu0 %v580
      %v729 = vpop.f32.mrb[0].mxu0
      %v730 = vadd.f32 0.0, %v729
      %v731 = vpop.f32.mrb[0].mxu0
      %v732 = vpop.f32.mrb[0].mxu0
      %v733 = vadd.f32 0.0, %v732
      %v734 = vpop.f32.mrb[0].mxu0
      %735 = vmatprep.mubr.bf16.mxu0 0
      %736 = vmatmul.mubr.bf16.gmra.mrb[0].mxu0 %v583
      %v737 = vpop.f32.mrb[0].mxu0
      %v738 = vadd.f32 0.0, %v737
      %v739 = vpop.f32.mrb[0].mxu0
      %v740 = vpop.f32.mrb[0].mxu0
      %v741 = vadd.f32 0.0, %v740
      %v742 = vpop.f32.mrb[0].mxu0
      %743 = vmatprep.mubr.bf16.mxu0 0
      %744 = vmatmul.mubr.bf16.gmra.mrb[0].mxu0 %v586
      %v745 = vpop.f32.mrb[0].mxu0
      %v746 = vadd.f32 0.0, %v745
      %v747 = vpop.f32.mrb[0].mxu0
      %v748 = vpop.f32.mrb[0].mxu0
      %v749 = vadd.f32 0.0, %v748
      %v750 = vpop.f32.mrb[0].mxu0
      %751 = vmatprep.mubr.bf16.mxu0 0
      %752 = vmatmul.mubr.bf16.gmra.mrb[0].mxu0 %v589
      %v753 = vpop.f32.mrb[0].mxu0
      %v754 = vadd.f32 0.0, %v753
      %v755 = vpop.f32.mrb[0].mxu0
      %v756 = vpop.f32.mrb[0].mxu0
      %v757 = vadd.f32 0.0, %v756
      %v758 = vpop.f32.mrb[0].mxu0
      %759 = vmatprep.mubr.bf16.mxu0 0
      %760 = vmatmul.mubr.bf16.gmra.mrb[0].mxu0 %v592
      %v761 = vpop.f32.mrb[0].mxu0
      %v762 = vadd.f32 0.0, %v761
      %v763 = vpop.f32.mrb[0].mxu0
      %v764 = vpop.f32.mrb[0].mxu0
      %v765 = vadd.f32 0.0, %v764
      %v766 = vpop.f32.mrb[0].mxu0
      %767 = vmatprep.mubr.bf16.mxu0 0
      %768 = vmatmul.mubr.bf16.gmra.mrb[0].mxu0 %v595
      %v769 = vpop.f32.mrb[0].mxu0
      %v770 = vadd.f32 0.0, %v769
      %v771 = vpop.f32.mrb[0].mxu0
      %v772 = vpop.f32.mrb[0].mxu0
      %v773 = vadd.f32 0.0, %v772
      %v774 = vpop.f32.mrb[0].mxu0
      %775 = vmatprep.mubr.bf16.mxu0 0
      %776 = vmatmul.mubr.bf16.gmra.mrb[0].mxu0 %v598
      %v777 = vpop.f32.mrb[0].mxu0
      %v778 = vadd.f32 0.0, %v777
      %v779 = vpop.f32.mrb[0].mxu0
      %v780 = vpop.f32.mrb[0].mxu0
      %v781 = vadd.f32 0.0, %v780
      %v782 = vpop.f32.mrb[0].mxu0
      %783 = vmatprep.mubr.bf16.mxu0 0
      %784 = vmatmul.mubr.bf16.gmra.mrb[0].mxu0 %v601
      %v785 = vpop.f32.mrb[0].mxu0
      %v786 = vadd.f32 0.0, %v785
      %v787 = vpop.f32.mrb[0].mxu0
      %v788 = vpop.f32.mrb[0].mxu0
      %v789 = vadd.f32 0.0, %v788
      %v790 = vpop.f32.mrb[0].mxu0
      %791 = vmatprep.mubr.bf16.mxu0 0
      %792 = vmatmul.mubr.bf16.gmra.mrb[0].mxu0 %v604
      %v793 = vpop.f32.mrb[0].mxu0
      %v794 = vadd.f32 0.0, %v793
      %v795 = vpop.f32.mrb[0].mxu0
      %v796 = vpop.f32.mrb[0].mxu0
      %v797 = vadd.f32 0.0, %v796
      %v798 = vpop.f32.mrb[0].mxu0
      %799 = vmatprep.mubr.bf16.mxu0 0
      %800 = vmatmul.mubr.bf16.gmra.mrb[0].mxu0 %v607
      %v801 = vpop.f32.mrb[0].mxu0
      %v802 = vadd.f32 0.0, %v801
      %v803 = vpop.f32.mrb[0].mxu0
      %v804 = vpop.f32.mrb[0].mxu0
      %v805 = vadd.f32 0.0, %v804
      %v806 = vpop.f32.mrb[0].mxu0
      %807 = vmatprep.mubr.bf16.mxu0 0
      %808 = vmatmul.mubr.bf16.gmra.mrb[0].mxu0 %v610
      %v809 = vpop.f32.mrb[0].mxu0
      %v810 = vadd.f32 0.0, %v809
      %v811 = vpop.f32.mrb[0].mxu0
      %v812 = vpop.f32.mrb[0].mxu0
      %v813 = vadd.f32 0.0, %v812
      %v814 = vpop.f32.mrb[0].mxu0
      %815 = vmatprep.mubr.bf16.mxu0 0
      %816 = vmatmul.mubr.bf16.gmra.mrb[0].mxu0 %v613
      %v817 = vpop.f32.mrb[0].mxu0
      %v818 = vadd.f32 0.0, %v817
      %v819 = vpop.f32.mrb[0].mxu0
      %v820 = vpop.f32.mrb[0].mxu0
      %v821 = vadd.f32 0.0, %v820
      %v822 = vpop.f32.mrb[0].mxu0
      %823 = vmatprep.mubr.bf16.mxu0 0
      %824 = vmatmul.mubr.bf16.gmra.mrb[0].mxu0 %v616
      %v825 = vpop.f32.mrb[0].mxu0
      %v826 = vadd.f32 0.0, %v825
      %v827 = vpop.f32.mrb[0].mxu0
      %v828 = vpop.f32.mrb[0].mxu0
      %v829 = vadd.f32 0.0, %v828
      %v830 = vpop.f32.mrb[0].mxu0
      %831 = vmatprep.mubr.bf16.mxu0 0
      %832 = vmatmul.mubr.bf16.gmra.mrb[0].mxu0 %v619
      %v833 = vpop.f32.mrb[0].mxu0
      %v834 = vadd.f32 0.0, %v833
      %v835 = vpop.f32.mrb[0].mxu0
      %v836 = vpop.f32.mrb[0].mxu0
      %v837 = vadd.f32 0.0, %v836
      %v838 = vpop.f32.mrb[0].mxu0
      %839 = vmatprep.mubr.bf16.mxu0 0
      %840 = vmatmul.mubr.bf16.gmra.mrb[0].mxu0 %v622
      %v841 = vpop.f32.mrb[0].mxu0
      %v842 = vadd.f32 0.0, %v841
      %v843 = vpop.f32.mrb[0].mxu0
      %v844 = vpop.f32.mrb[0].mxu0
      %v845 = vadd.f32 0.0, %v844
      %v846 = vpop.f32.mrb[0].mxu0
      %847 = vmatprep.mubr.bf16.mxu0 0
      %848 = vmatmul.mubr.bf16.gmra.mrb[0].mxu0 %v625
      %v849 = vpop.f32.mrb[0].mxu0
      %v850 = vadd.f32 0.0, %v849
      %v851 = vpop.f32.mrb[0].mxu0
      %v852 = vpop.f32.mrb[0].mxu0
      %v853 = vadd.f32 0.0, %v852
      %v854 = vpop.f32.mrb[0].mxu0
      %855 = vdwg.mxu0
      %v856 = vsel %vm554, %v332, 0
      %v858 = vsel %vm554, %v333, 0
      %v860 = vsel %vm554, %v334, 0
      %v862 = vsel %vm554, %v335, 0
      %v864 = vsel %vm554, %v336, 0
      %v866 = vsel %vm554, %v337, 0
      %v868 = vsel %vm554, %v338, 0
      %v870 = vsel %vm554, %v339, 0
      %v872 = vsel %vm554, %v340, 0
      %v874 = vsel %vm554, %v341, 0
      %v876 = vsel %vm554, %v342, 0
      %v878 = vsel %vm554, %v343, 0
      %v880 = vsel %vm554, %v344, 0
      %v882 = vsel %vm554, %v345, 0
      %v884 = vsel %vm554, %v346, 0
      %v886 = vsel %vm554, %v347, 0
      %v888 = vsel %vm554, %v348, 0
      %v890 = vsel %vm554, %v349, 0
      %v892 = vsel %vm554, %v350, 0
      %v894 = vsel %vm554, %v351, 0
      %v896 = vsel %vm554, %v352, 0
      %v898 = vsel %vm554, %v353, 0
      %v900 = vsel %vm554, %v354, 0
      %v902 = vsel %vm554, %v355, 0
      %v905 = vsel %vm627, %v230, 0
      %907 = vmatprep.subr.bf16.mxu0 0
      %908 = vmatpush1.bf16.msra.mxu0 %v905
      %909 = vmatprep.subr.bf16.mxu0 0
      %910 = vmatpush1.bf16.msra.mxu0 0
      %911 = vmatprep.subr.bf16.mxu0 0
      %912 = vmatpush1.bf16.msra.mxu0 0
      %913 = vmatprep.subr.bf16.mxu0 0
      %914 = vmatpush1.bf16.msra.mxu0 0
      %915 = vmatprep.subr.bf16.mxu0 0
      %916 = vmatpush1.bf16.msra.mxu0 0
      %917 = vmatprep.subr.bf16.mxu0 0
      %918 = vmatpush1.bf16.msra.mxu0 0
      %919 = vmatprep.subr.bf16.mxu0 0
      %920 = vmatpush1.bf16.msra.mxu0 0
      %921 = vmatprep.subr.bf16.mxu0 0
      %922 = vmatpush1.bf16.msra.mxu0 0
      %923 = vmatprep.subr.bf16.mxu0 0
      %924 = vmatpush1.bf16.msra.mxu0 0
      %925 = vmatprep.subr.bf16.mxu0 0
      %926 = vmatpush1.bf16.msra.mxu0 0
      %927 = vmatprep.subr.bf16.mxu0 0
      %928 = vmatpush1.bf16.msra.mxu0 0
      %929 = vmatprep.subr.bf16.mxu0 0
      %930 = vmatpush1.bf16.msra.mxu0 0
      %931 = vmatprep.subr.bf16.mxu0 0
      %932 = vmatpush1.bf16.msra.mxu0 0
      %933 = vmatprep.subr.bf16.mxu0 0
      %934 = vmatpush1.bf16.msra.mxu0 0
      %935 = vmatprep.subr.bf16.mxu0 0
      %936 = vmatpush1.bf16.msra.mxu0 0
      %937 = vmatprep.subr.bf16.mxu0 0
      %938 = vmatpush1.bf16.msra.mxu0 0
      %939 = vmatprep.mubr.bf16.mxu0 0
      %940 = vmatmul.mubr.bf16.gmra.mrb[0].mxu0 %v856
      %v941 = vpop.f32.mrb[0].mxu0
      %v942 = vadd.f32 %v666, %v941
      %v943 = vpop.f32.mrb[0].mxu0
      %v944 = vpop.f32.mrb[0].mxu0
      %v945 = vadd.f32 %v669, %v944
      %v946 = vpop.f32.mrb[0].mxu0
      %947 = vmatprep.mubr.bf16.mxu0 0
      %948 = vmatmul.mubr.bf16.gmra.mrb[0].mxu0 %v858
      %v949 = vpop.f32.mrb[0].mxu0
      %v950 = vadd.f32 %v674, %v949
      %v951 = vpop.f32.mrb[0].mxu0
      %v952 = vpop.f32.mrb[0].mxu0
      %v953 = vadd.f32 %v677, %v952
      %v954 = vpop.f32.mrb[0].mxu0
      %955 = vmatprep.mubr.bf16.mxu0 0
      %956 = vmatmul.mubr.bf16.gmra.mrb[0].mxu0 %v860
      %v957 = vpop.f32.mrb[0].mxu0
      %v958 = vadd.f32 %v682, %v957
      %v959 = vpop.f32.mrb[0].mxu0
      %v960 = vpop.f32.mrb[0].mxu0
      %v961 = vadd.f32 %v685, %v960
      %v962 = vpop.f32.mrb[0].mxu0
      %963 = vmatprep.mubr.bf16.mxu0 0
      %964 = vmatmul.mubr.bf16.gmra.mrb[0].mxu0 %v862
      %v965 = vpop.f32.mrb[0].mxu0
      %v966 = vadd.f32 %v690, %v965
      %v967 = vpop.f32.mrb[0].mxu0
      %v968 = vpop.f32.mrb[0].mxu0
      %v969 = vadd.f32 %v693, %v968
      %v970 = vpop.f32.mrb[0].mxu0
      %971 = vmatprep.mubr.bf16.mxu0 0
      %972 = vmatmul.mubr.bf16.gmra.mrb[0].mxu0 %v864
      %v973 = vpop.f32.mrb[0].mxu0
      %v974 = vadd.f32 %v698, %v973
      %v975 = vpop.f32.mrb[0].mxu0
      %v976 = vpop.f32.mrb[0].mxu0
      %v977 = vadd.f32 %v701, %v976
      %v978 = vpop.f32.mrb[0].mxu0
      %979 = vmatprep.mubr.bf16.mxu0 0
      %980 = vmatmul.mubr.bf16.gmra.mrb[0].mxu0 %v866
      %v981 = vpop.f32.mrb[0].mxu0
      %v982 = vadd.f32 %v706, %v981
      %v983 = vpop.f32.mrb[0].mxu0
      %v984 = vpop.f32.mrb[0].mxu0
      %v985 = vadd.f32 %v709, %v984
      %v986 = vpop.f32.mrb[0].mxu0
      %987 = vmatprep.mubr.bf16.mxu0 0
      %988 = vmatmul.mubr.bf16.gmra.mrb[0].mxu0 %v868
      %v989 = vpop.f32.mrb[0].mxu0
      %v990 = vadd.f32 %v714, %v989
      %v991 = vpop.f32.mrb[0].mxu0
      %v992 = vpop.f32.mrb[0].mxu0
      %v993 = vadd.f32 %v717, %v992
      %v994 = vpop.f32.mrb[0].mxu0
      %995 = vmatprep.mubr.bf16.mxu0 0
      %996 = vmatmul.mubr.bf16.gmra.mrb[0].mxu0 %v870
      %v997 = vpop.f32.mrb[0].mxu0
      %v998 = vadd.f32 %v722, %v997
      %v999 = vpop.f32.mrb[0].mxu0
      %v1000 = vpop.f32.mrb[0].mxu0
      %v1001 = vadd.f32 %v725, %v1000
      %v1002 = vpop.f32.mrb[0].mxu0
      %1003 = vmatprep.mubr.bf16.mxu0 0
      %1004 = vmatmul.mubr.bf16.gmra.mrb[0].mxu0 %v872
      %v1005 = vpop.f32.mrb[0].mxu0
      %v1006 = vadd.f32 %v730, %v1005
      %v1007 = vpop.f32.mrb[0].mxu0
      %v1008 = vpop.f32.mrb[0].mxu0
      %v1009 = vadd.f32 %v733, %v1008
      %v1010 = vpop.f32.mrb[0].mxu0
      %1011 = vmatprep.mubr.bf16.mxu0 0
      %1012 = vmatmul.mubr.bf16.gmra.mrb[0].mxu0 %v874
      %v1013 = vpop.f32.mrb[0].mxu0
      %v1014 = vadd.f32 %v738, %v1013
      %v1015 = vpop.f32.mrb[0].mxu0
      %v1016 = vpop.f32.mrb[0].mxu0
      %v1017 = vadd.f32 %v741, %v1016
      %v1018 = vpop.f32.mrb[0].mxu0
      %1019 = vmatprep.mubr.bf16.mxu0 0
      %1020 = vmatmul.mubr.bf16.gmra.mrb[0].mxu0 %v876
      %v1021 = vpop.f32.mrb[0].mxu0
      %v1022 = vadd.f32 %v746, %v1021
      %v1023 = vpop.f32.mrb[0].mxu0
      %v1024 = vpop.f32.mrb[0].mxu0
      %v1025 = vadd.f32 %v749, %v1024
      %v1026 = vpop.f32.mrb[0].mxu0
      %1027 = vmatprep.mubr.bf16.mxu0 0
      %1028 = vmatmul.mubr.bf16.gmra.mrb[0].mxu0 %v878
      %v1029 = vpop.f32.mrb[0].mxu0
      %v1030 = vadd.f32 %v754, %v1029
      %v1031 = vpop.f32.mrb[0].mxu0
      %v1032 = vpop.f32.mrb[0].mxu0
      %v1033 = vadd.f32 %v757, %v1032
      %v1034 = vpop.f32.mrb[0].mxu0
      %1035 = vmatprep.mubr.bf16.mxu0 0
      %1036 = vmatmul.mubr.bf16.gmra.mrb[0].mxu0 %v880
      %v1037 = vpop.f32.mrb[0].mxu0
      %v1038 = vadd.f32 %v762, %v1037
      %v1039 = vpop.f32.mrb[0].mxu0
      %v1040 = vpop.f32.mrb[0].mxu0
      %v1041 = vadd.f32 %v765, %v1040
      %v1042 = vpop.f32.mrb[0].mxu0
      %1043 = vmatprep.mubr.bf16.mxu0 0
      %1044 = vmatmul.mubr.bf16.gmra.mrb[0].mxu0 %v882
      %v1045 = vpop.f32.mrb[0].mxu0
      %v1046 = vadd.f32 %v770, %v1045
      %v1047 = vpop.f32.mrb[0].mxu0
      %v1048 = vpop.f32.mrb[0].mxu0
      %v1049 = vadd.f32 %v773, %v1048
      %v1050 = vpop.f32.mrb[0].mxu0
      %1051 = vmatprep.mubr.bf16.mxu0 0
      %1052 = vmatmul.mubr.bf16.gmra.mrb[0].mxu0 %v884
      %v1053 = vpop.f32.mrb[0].mxu0
      %v1054 = vadd.f32 %v778, %v1053
      %v1055 = vpop.f32.mrb[0].mxu0
      %v1056 = vpop.f32.mrb[0].mxu0
      %v1057 = vadd.f32 %v781, %v1056
      %v1058 = vpop.f32.mrb[0].mxu0
      %1059 = vmatprep.mubr.bf16.mxu0 0
      %1060 = vmatmul.mubr.bf16.gmra.mrb[0].mxu0 %v886
      %v1061 = vpop.f32.mrb[0].mxu0
      %v1062 = vadd.f32 %v786, %v1061
      %v1063 = vpop.f32.mrb[0].mxu0
      %v1064 = vpop.f32.mrb[0].mxu0
      %v1065 = vadd.f32 %v789, %v1064
      %v1066 = vpop.f32.mrb[0].mxu0
      %1067 = vmatprep.mubr.bf16.mxu0 0
      %1068 = vmatmul.mubr.bf16.gmra.mrb[0].mxu0 %v888
      %v1069 = vpop.f32.mrb[0].mxu0
      %v1070 = vadd.f32 %v794, %v1069
      %v1071 = vpop.f32.mrb[0].mxu0
      %v1072 = vpop.f32.mrb[0].mxu0
      %v1073 = vadd.f32 %v797, %v1072
      %v1074 = vpop.f32.mrb[0].mxu0
      %1075 = vmatprep.mubr.bf16.mxu0 0
      %1076 = vmatmul.mubr.bf16.gmra.mrb[0].mxu0 %v890
      %v1077 = vpop.f32.mrb[0].mxu0
      %v1078 = vadd.f32 %v802, %v1077
      %v1079 = vpop.f32.mrb[0].mxu0
      %v1080 = vpop.f32.mrb[0].mxu0
      %v1081 = vadd.f32 %v805, %v1080
      %v1082 = vpop.f32.mrb[0].mxu0
      %1083 = vmatprep.mubr.bf16.mxu0 0
      %1084 = vmatmul.mubr.bf16.gmra.mrb[0].mxu0 %v892
      %v1085 = vpop.f32.mrb[0].mxu0
      %v1086 = vadd.f32 %v810, %v1085
      %v1087 = vpop.f32.mrb[0].mxu0
      %v1088 = vpop.f32.mrb[0].mxu0
      %v1089 = vadd.f32 %v813, %v1088
      %v1090 = vpop.f32.mrb[0].mxu0
      %1091 = vmatprep.mubr.bf16.mxu0 0
      %1092 = vmatmul.mubr.bf16.gmra.mrb[0].mxu0 %v894
      %v1093 = vpop.f32.mrb[0].mxu0
      %v1094 = vadd.f32 %v818, %v1093
      %v1095 = vpop.f32.mrb[0].mxu0
      %v1096 = vpop.f32.mrb[0].mxu0
      %v1097 = vadd.f32 %v821, %v1096
      %v1098 = vpop.f32.mrb[0].mxu0
      %1099 = vmatprep.mubr.bf16.mxu0 0
      %1100 = vmatmul.mubr.bf16.gmra.mrb[0].mxu0 %v896
      %v1101 = vpop.f32.mrb[0].mxu0
      %v1102 = vadd.f32 %v826, %v1101
      %v1103 = vpop.f32.mrb[0].mxu0
      %v1104 = vpop.f32.mrb[0].mxu0
      %v1105 = vadd.f32 %v829, %v1104
      %v1106 = vpop.f32.mrb[0].mxu0
      %1107 = vmatprep.mubr.bf16.mxu0 0
      %1108 = vmatmul.mubr.bf16.gmra.mrb[0].mxu0 %v898
      %v1109 = vpop.f32.mrb[0].mxu0
      %v1110 = vadd.f32 %v834, %v1109
      %v1111 = vpop.f32.mrb[0].mxu0
      %v1112 = vpop.f32.mrb[0].mxu0
      %v1113 = vadd.f32 %v837, %v1112
      %v1114 = vpop.f32.mrb[0].mxu0
      %1115 = vmatprep.mubr.bf16.mxu0 0
      %1116 = vmatmul.mubr.bf16.gmra.mrb[0].mxu0 %v900
      %v1117 = vpop.f32.mrb[0].mxu0
      %v1118 = vadd.f32 %v842, %v1117
      %v1119 = vpop.f32.mrb[0].mxu0
      %v1120 = vpop.f32.mrb[0].mxu0
      %v1121 = vadd.f32 %v845, %v1120
      %v1122 = vpop.f32.mrb[0].mxu0
      %1123 = vmatprep.mubr.bf16.mxu0 0
      %1124 = vmatmul.mubr.bf16.gmra.mrb[0].mxu0 %v902
      %v1125 = vpop.f32.mrb[0].mxu0
      %v1126 = vadd.f32 %v850, %v1125
      %v1127 = vpop.f32.mrb[0].mxu0
      %v1128 = vpop.f32.mrb[0].mxu0
      %v1129 = vadd.f32 %v853, %v1128
      %v1130 = vpop.f32.mrb[0].mxu0
      %1131 = vdwg.mxu0
      %v1132 = vld [vmem:[%s168] sm:$0xe]
      %s1133 = scalar_lea.vmem %s172, 4
      %v1134 = vld [vmem:[%s1133] sm:$0x3]
      %v1136 = vunpack.c.l.b16 %v1132
      %v1137 = vpack.c.b16 %v284, %v1136
      %vm1138 = vcmask 1046528
      %v1139 = vrot.slane %v1137, 1
      %v1140 = vrot.slane %v333, 1
      %v1141 = vsel %vm1138, %v1139, %v1140
      %v1142 = vrot.slane %v334, 1
      %v1143 = vsel %vm1138, %v1140, %v1142
      %v1144 = vrot.slane %v335, 1
      %v1145 = vsel %vm1138, %v1142, %v1144
      %v1146 = vrot.slane %v336, 1
      %v1147 = vsel %vm1138, %v1144, %v1146
      %v1148 = vrot.slane %v337, 1
      %v1149 = vsel %vm1138, %v1146, %v1148
      %v1150 = vrot.slane %v338, 1
      %v1151 = vsel %vm1138, %v1148, %v1150
      %v1152 = vrot.slane %v339, 1
      %v1153 = vsel %vm1138, %v1150, %v1152
      %v1154 = vrot.slane %v340, 1
      %v1155 = vsel %vm1138, %v1152, %v1154
      %v1156 = vrot.slane %v341, 1
      %v1157 = vsel %vm1138, %v1154, %v1156
      %v1158 = vrot.slane %v342, 1
      %v1159 = vsel %vm1138, %v1156, %v1158
      %v1160 = vrot.slane %v343, 1
      %v1161 = vsel %vm1138, %v1158, %v1160
      %v1162 = vrot.slane %v344, 1
      %v1163 = vsel %vm1138, %v1160, %v1162
      %v1164 = vrot.slane %v345, 1
      %v1165 = vsel %vm1138, %v1162, %v1164
      %v1166 = vrot.slane %v346, 1
      %v1167 = vsel %vm1138, %v1164, %v1166
      %v1168 = vrot.slane %v347, 1
      %v1169 = vsel %vm1138, %v1166, %v1168
      %v1170 = vrot.slane %v348, 1
      %v1171 = vsel %vm1138, %v1168, %v1170
      %v1172 = vrot.slane %v349, 1
      %v1173 = vsel %vm1138, %v1170, %v1172
      %v1174 = vrot.slane %v350, 1
      %v1175 = vsel %vm1138, %v1172, %v1174
      %v1176 = vrot.slane %v351, 1
      %v1177 = vsel %vm1138, %v1174, %v1176
      %v1178 = vrot.slane %v352, 1
      %v1179 = vsel %vm1138, %v1176, %v1178
      %v1180 = vrot.slane %v353, 1
      %v1181 = vsel %vm1138, %v1178, %v1180
      %v1182 = vrot.slane %v354, 1
      %v1183 = vsel %vm1138, %v1180, %v1182
      %v1184 = vrot.slane %v355, 1
      %v1185 = vsel %vm1138, %v1182, %v1184
      %v1186 = vrot.slane %v356, 1
      %v1187 = vsel %vm1138, %v1184, %v1186
      %v1189 = vsel %vm554, %v1141, 0
      %v1192 = vsel %vm554, %v1143, 0
      %v1195 = vsel %vm554, %v1145, 0
      %v1198 = vsel %vm554, %v1147, 0
      %v1201 = vsel %vm554, %v1149, 0
      %v1204 = vsel %vm554, %v1151, 0
      %v1207 = vsel %vm554, %v1153, 0
      %v1210 = vsel %vm554, %v1155, 0
      %v1213 = vsel %vm554, %v1157, 0
      %v1216 = vsel %vm554, %v1159, 0
      %v1219 = vsel %vm554, %v1161, 0
      %v1222 = vsel %vm554, %v1163, 0
      %v1225 = vsel %vm554, %v1165, 0
      %v1228 = vsel %vm554, %v1167, 0
      %v1231 = vsel %vm554, %v1169, 0
      %v1234 = vsel %vm554, %v1171, 0
      %v1237 = vsel %vm554, %v1173, 0
      %v1240 = vsel %vm554, %v1175, 0
      %v1243 = vsel %vm554, %v1177, 0
      %v1246 = vsel %vm554, %v1179, 0
      %v1249 = vsel %vm554, %v1181, 0
      %v1252 = vsel %vm554, %v1183, 0
      %v1255 = vsel %vm554, %v1185, 0
      %v1258 = vsel %vm554, %v1187, 0
      %v1261 = vsel %vm627, %v1134, 0
      %1263 = vmatprep.subr.bf16.mxu0 0
      %1264 = vmatpush1.bf16.msra.mxu0 %v1261
      %1265 = vmatprep.subr.bf16.mxu0 0
      %1266 = vmatpush1.bf16.msra.mxu0 0
      %1267 = vmatprep.subr.bf16.mxu0 0
      %1268 = vmatpush1.bf16.msra.mxu0 0
      %1269 = vmatprep.subr.bf16.mxu0 0
      %1270 = vmatpush1.bf16.msra.mxu0 0
      %1271 = vmatprep.subr.bf16.mxu0 0
      %1272 = vmatpush1.bf16.msra.mxu0 0
      %1273 = vmatprep.subr.bf16.mxu0 0
      %1274 = vmatpush1.bf16.msra.mxu0 0
      %1275 = vmatprep.subr.bf16.mxu0 0
      %1276 = vmatpush1.bf16.msra.mxu0 0
      %1277 = vmatprep.subr.bf16.mxu0 0
      %1278 = vmatpush1.bf16.msra.mxu0 0
      %1279 = vmatprep.subr.bf16.mxu0 0
      %1280 = vmatpush1.bf16.msra.mxu0 0
      %1281 = vmatprep.subr.bf16.mxu0 0
      %1282 = vmatpush1.bf16.msra.mxu0 0
      %1283 = vmatprep.subr.bf16.mxu0 0
      %1284 = vmatpush1.bf16.msra.mxu0 0
      %1285 = vmatprep.subr.bf16.mxu0 0
      %1286 = vmatpush1.bf16.msra.mxu0 0
      %1287 = vmatprep.subr.bf16.mxu0 0
      %1288 = vmatpush1.bf16.msra.mxu0 0
      %1289 = vmatprep.subr.bf16.mxu0 0
      %1290 = vmatpush1.bf16.msra.mxu0 0
      %1291 = vmatprep.subr.bf16.mxu0 0
      %1292 = vmatpush1.bf16.msra.mxu0 0
      %1293 = vmatprep.subr.bf16.mxu0 0
      %1294 = vmatpush1.bf16.msra.mxu0 0
      %1295 = vmatprep.mubr.bf16.mxu0 0
      %1296 = vmatmul.mubr.bf16.gmra.mrb[0].mxu0 %v1189
      %v1297 = vpop.f32.mrb[0].mxu0
      %v1298 = vadd.f32 0.0, %v1297
      %v1299 = vpop.f32.mrb[0].mxu0
      %v1300 = vpop.f32.mrb[0].mxu0
      %v1301 = vadd.f32 0.0, %v1300
      %v1302 = vpop.f32.mrb[0].mxu0
      %1303 = vmatprep.mubr.bf16.mxu0 0
      %1304 = vmatmul.mubr.bf16.gmra.mrb[0].mxu0 %v1192
      %v1305 = vpop.f32.mrb[0].mxu0
      %v1306 = vadd.f32 0.0, %v1305
      %v1307 = vpop.f32.mrb[0].mxu0
      %v1308 = vpop.f32.mrb[0].mxu0
      %v1309 = vadd.f32 0.0, %v1308
      %v1310 = vpop.f32.mrb[0].mxu0
      %1311 = vmatprep.mubr.bf16.mxu0 0
      %1312 = vmatmul.mubr.bf16.gmra.mrb[0].mxu0 %v1195
      %v1313 = vpop.f32.mrb[0].mxu0
      %v1314 = vadd.f32 0.0, %v1313
      %v1315 = vpop.f32.mrb[0].mxu0
      %v1316 = vpop.f32.mrb[0].mxu0
      %v1317 = vadd.f32 0.0, %v1316
      %v1318 = vpop.f32.mrb[0].mxu0
      %1319 = vmatprep.mubr.bf16.mxu0 0
      %1320 = vmatmul.mubr.bf16.gmra.mrb[0].mxu0 %v1198
      %v1321 = vpop.f32.mrb[0].mxu0
      %v1322 = vadd.f32 0.0, %v1321
      %v1323 = vpop.f32.mrb[0].mxu0
      %v1324 = vpop.f32.mrb[0].mxu0
      %v1325 = vadd.f32 0.0, %v1324
      %v1326 = vpop.f32.mrb[0].mxu0
      %1327 = vmatprep.mubr.bf16.mxu0 0
      %1328 = vmatmul.mubr.bf16.gmra.mrb[0].mxu0 %v1201
      %v1329 = vpop.f32.mrb[0].mxu0
      %v1330 = vadd.f32 0.0, %v1329
      %v1331 = vpop.f32.mrb[0].mxu0
      %v1332 = vpop.f32.mrb[0].mxu0
      %v1333 = vadd.f32 0.0, %v1332
      %v1334 = vpop.f32.mrb[0].mxu0
      %1335 = vmatprep.mubr.bf16.mxu0 0
      %1336 = vmatmul.mubr.bf16.gmra.mrb[0].mxu0 %v1204
      %v1337 = vpop.f32.mrb[0].mxu0
      %v1338 = vadd.f32 0.0, %v1337
      %v1339 = vpop.f32.mrb[0].mxu0
      %v1340 = vpop.f32.mrb[0].mxu0
      %v1341 = vadd.f32 0.0, %v1340
      %v1342 = vpop.f32.mrb[0].mxu0
      %1343 = vmatprep.mubr.bf16.mxu0 0
      %1344 = vmatmul.mubr.bf16.gmra.mrb[0].mxu0 %v1207
      %v1345 = vpop.f32.mrb[0].mxu0
      %v1346 = vadd.f32 0.0, %v1345
      %v1347 = vpop.f32.mrb[0].mxu0
      %v1348 = vpop.f32.mrb[0].mxu0
      %v1349 = vadd.f32 0.0, %v1348
      %v1350 = vpop.f32.mrb[0].mxu0
      %1351 = vmatprep.mubr.bf16.mxu0 0
      %1352 = vmatmul.mubr.bf16.gmra.mrb[0].mxu0 %v1210
      %v1353 = vpop.f32.mrb[0].mxu0
      %v1354 = vadd.f32 0.0, %v1353
      %v1355 = vpop.f32.mrb[0].mxu0
      %v1356 = vpop.f32.mrb[0].mxu0
      %v1357 = vadd.f32 0.0, %v1356
      %v1358 = vpop.f32.mrb[0].mxu0
      %1359 = vmatprep.mubr.bf16.mxu0 0
      %1360 = vmatmul.mubr.bf16.gmra.mrb[0].mxu0 %v1213
      %v1361 = vpop.f32.mrb[0].mxu0
      %v1362 = vadd.f32 0.0, %v1361
      %v1363 = vpop.f32.mrb[0].mxu0
      %v1364 = vpop.f32.mrb[0].mxu0
      %v1365 = vadd.f32 0.0, %v1364
      %v1366 = vpop.f32.mrb[0].mxu0
      %1367 = vmatprep.mubr.bf16.mxu0 0
      %1368 = vmatmul.mubr.bf16.gmra.mrb[0].mxu0 %v1216
      %v1369 = vpop.f32.mrb[0].mxu0
      %v1370 = vadd.f32 0.0, %v1369
      %v1371 = vpop.f32.mrb[0].mxu0
      %v1372 = vpop.f32.mrb[0].mxu0
      %v1373 = vadd.f32 0.0, %v1372
      %v1374 = vpop.f32.mrb[0].mxu0
      %1375 = vmatprep.mubr.bf16.mxu0 0
      %1376 = vmatmul.mubr.bf16.gmra.mrb[0].mxu0 %v1219
      %v1377 = vpop.f32.mrb[0].mxu0
      %v1378 = vadd.f32 0.0, %v1377
      %v1379 = vpop.f32.mrb[0].mxu0
      %v1380 = vpop.f32.mrb[0].mxu0
      %v1381 = vadd.f32 0.0, %v1380
      %v1382 = vpop.f32.mrb[0].mxu0
      %1383 = vmatprep.mubr.bf16.mxu0 0
      %1384 = vmatmul.mubr.bf16.gmra.mrb[0].mxu0 %v1222
      %v1385 = vpop.f32.mrb[0].mxu0
      %v1386 = vadd.f32 0.0, %v1385
      %v1387 = vpop.f32.mrb[0].mxu0
      %v1388 = vpop.f32.mrb[0].mxu0
      %v1389 = vadd.f32 0.0, %v1388
      %v1390 = vpop.f32.mrb[0].mxu0
      %1391 = vmatprep.mubr.bf16.mxu0 0
      %1392 = vmatmul.mubr.bf16.gmra.mrb[0].mxu0 %v1225
      %v1393 = vpop.f32.mrb[0].mxu0
      %v1394 = vadd.f32 0.0, %v1393
      %v1395 = vpop.f32.mrb[0].mxu0
      %v1396 = vpop.f32.mrb[0].mxu0
      %v1397 = vadd.f32 0.0, %v1396
      %v1398 = vpop.f32.mrb[0].mxu0
      %1399 = vmatprep.mubr.bf16.mxu0 0
      %1400 = vmatmul.mubr.bf16.gmra.mrb[0].mxu0 %v1228
      %v1401 = vpop.f32.mrb[0].mxu0
      %v1402 = vadd.f32 0.0, %v1401
      %v1403 = vpop.f32.mrb[0].mxu0
      %v1404 = vpop.f32.mrb[0].mxu0
      %v1405 = vadd.f32 0.0, %v1404
      %v1406 = vpop.f32.mrb[0].mxu0
      %1407 = vmatprep.mubr.bf16.mxu0 0
      %1408 = vmatmul.mubr.bf16.gmra.mrb[0].mxu0 %v1231
      %v1409 = vpop.f32.mrb[0].mxu0
      %v1410 = vadd.f32 0.0, %v1409
      %v1411 = vpop.f32.mrb[0].mxu0
      %v1412 = vpop.f32.mrb[0].mxu0
      %v1413 = vadd.f32 0.0, %v1412
      %v1414 = vpop.f32.mrb[0].mxu0
      %1415 = vmatprep.mubr.bf16.mxu0 0
      %1416 = vmatmul.mubr.bf16.gmra.mrb[0].mxu0 %v1234
      %v1417 = vpop.f32.mrb[0].mxu0
      %v1418 = vadd.f32 0.0, %v1417
      %v1419 = vpop.f32.mrb[0].mxu0
      %v1420 = vpop.f32.mrb[0].mxu0
      %v1421 = vadd.f32 0.0, %v1420
      %v1422 = vpop.f32.mrb[0].mxu0
      %1423 = vmatprep.mubr.bf16.mxu0 0
      %1424 = vmatmul.mubr.bf16.gmra.mrb[0].mxu0 %v1237
      %v1425 = vpop.f32.mrb[0].mxu0
      %v1426 = vadd.f32 0.0, %v1425
      %v1427 = vpop.f32.mrb[0].mxu0
      %v1428 = vpop.f32.mrb[0].mxu0
      %v1429 = vadd.f32 0.0, %v1428
      %v1430 = vpop.f32.mrb[0].mxu0
      %1431 = vmatprep.mubr.bf16.mxu0 0
      %1432 = vmatmul.mubr.bf16.gmra.mrb[0].mxu0 %v1240
      %v1433 = vpop.f32.mrb[0].mxu0
      %v1434 = vadd.f32 0.0, %v1433
      %v1435 = vpop.f32.mrb[0].mxu0
      %v1436 = vpop.f32.mrb[0].mxu0
      %v1437 = vadd.f32 0.0, %v1436
      %v1438 = vpop.f32.mrb[0].mxu0
      %1439 = vmatprep.mubr.bf16.mxu0 0
      %1440 = vmatmul.mubr.bf16.gmra.mrb[0].mxu0 %v1243
      %v1441 = vpop.f32.mrb[0].mxu0
      %v1442 = vadd.f32 0.0, %v1441
      %v1443 = vpop.f32.mrb[0].mxu0
      %v1444 = vpop.f32.mrb[0].mxu0
      %v1445 = vadd.f32 0.0, %v1444
      %v1446 = vpop.f32.mrb[0].mxu0
      %1447 = vmatprep.mubr.bf16.mxu0 0
      %1448 = vmatmul.mubr.bf16.gmra.mrb[0].mxu0 %v1246
      %v1449 = vpop.f32.mrb[0].mxu0
      %v1450 = vadd.f32 0.0, %v1449
      %v1451 = vpop.f32.mrb[0].mxu0
      %v1452 = vpop.f32.mrb[0].mxu0
      %v1453 = vadd.f32 0.0, %v1452
      %v1454 = vpop.f32.mrb[0].mxu0
      %1455 = vmatprep.mubr.bf16.mxu0 0
      %1456 = vmatmul.mubr.bf16.gmra.mrb[0].mxu0 %v1249
      %v1457 = vpop.f32.mrb[0].mxu0
      %v1458 = vadd.f32 0.0, %v1457
      %v1459 = vpop.f32.mrb[0].mxu0
      %v1460 = vpop.f32.mrb[0].mxu0
      %v1461 = vadd.f32 0.0, %v1460
      %v1462 = vpop.f32.mrb[0].mxu0
      %1463 = vmatprep.mubr.bf16.mxu0 0
      %1464 = vmatmul.mubr.bf16.gmra.mrb[0].mxu0 %v1252
      %v1465 = vpop.f32.mrb[0].mxu0
      %v1466 = vadd.f32 0.0, %v1465
      %v1467 = vpop.f32.mrb[0].mxu0
      %v1468 = vpop.f32.mrb[0].mxu0
      %v1469 = vadd.f32 0.0, %v1468
      %v1470 = vpop.f32.mrb[0].mxu0
      %1471 = vmatprep.mubr.bf16.mxu0 0
      %1472 = vmatmul.mubr.bf16.gmra.mrb[0].mxu0 %v1255
      %v1473 = vpop.f32.mrb[0].mxu0
      %v1474 = vadd.f32 0.0, %v1473
      %v1475 = vpop.f32.mrb[0].mxu0
      %v1476 = vpop.f32.mrb[0].mxu0
      %v1477 = vadd.f32 0.0, %v1476
      %v1478 = vpop.f32.mrb[0].mxu0
      %1479 = vmatprep.mubr.bf16.mxu0 0
      %1480 = vmatmul.mubr.bf16.gmra.mrb[0].mxu0 %v1258
      %v1481 = vpop.f32.mrb[0].mxu0
      %v1482 = vadd.f32 0.0, %v1481
      %v1483 = vpop.f32.mrb[0].mxu0
      %v1484 = vpop.f32.mrb[0].mxu0
      %v1485 = vadd.f32 0.0, %v1484
      %v1486 = vpop.f32.mrb[0].mxu0
      %1487 = vdwg.mxu0
      %v1488 = vadd.f32 %v942, %v1298
      %v1489 = vadd.f32 %v945, %v1301
      %v1490 = vadd.f32 %v950, %v1306
      %v1491 = vadd.f32 %v953, %v1309
      %v1492 = vadd.f32 %v958, %v1314
      %v1493 = vadd.f32 %v961, %v1317
      %v1494 = vadd.f32 %v966, %v1322
      %v1495 = vadd.f32 %v969, %v1325
      %v1496 = vadd.f32 %v974, %v1330
      %v1497 = vadd.f32 %v977, %v1333
      %v1498 = vadd.f32 %v982, %v1338
      %v1499 = vadd.f32 %v985, %v1341
      %v1500 = vadd.f32 %v990, %v1346
      %v1501 = vadd.f32 %v993, %v1349
      %v1502 = vadd.f32 %v998, %v1354
      %v1503 = vadd.f32 %v1001, %v1357
      %v1504 = vadd.f32 %v1006, %v1362
      %v1505 = vadd.f32 %v1009, %v1365
      %v1506 = vadd.f32 %v1014, %v1370
      %v1507 = vadd.f32 %v1017, %v1373
      %v1508 = vadd.f32 %v1022, %v1378
      %v1509 = vadd.f32 %v1025, %v1381
      %v1510 = vadd.f32 %v1030, %v1386
      %v1511 = vadd.f32 %v1033, %v1389
      %v1512 = vadd.f32 %v1038, %v1394
      %v1513 = vadd.f32 %v1041, %v1397
      %v1514 = vadd.f32 %v1046, %v1402
      %v1515 = vadd.f32 %v1049, %v1405
      %v1516 = vadd.f32 %v1054, %v1410
      %v1517 = vadd.f32 %v1057, %v1413
      %v1518 = vadd.f32 %v1062, %v1418
      %v1519 = vadd.f32 %v1065, %v1421
      %v1520 = vadd.f32 %v1070, %v1426
      %v1521 = vadd.f32 %v1073, %v1429
      %v1522 = vadd.f32 %v1078, %v1434
      %v1523 = vadd.f32 %v1081, %v1437
      %v1524 = vadd.f32 %v1086, %v1442
      %v1525 = vadd.f32 %v1089, %v1445
      %v1526 = vadd.f32 %v1094, %v1450
      %v1527 = vadd.f32 %v1097, %v1453
      %v1528 = vadd.f32 %v1102, %v1458
      %v1529 = vadd.f32 %v1105, %v1461
      %v1530 = vadd.f32 %v1110, %v1466
      %v1531 = vadd.f32 %v1113, %v1469
      %v1532 = vadd.f32 %v1118, %v1474
      %v1533 = vadd.f32 %v1121, %v1477
      %v1534 = vadd.f32 %v1126, %v1482
      %v1535 = vadd.f32 %v1129, %v1485
      %v1536 = vld [vmem:[%s168 + $0xc] sm:$0xf]
      %v1537 = vld [vmem:[%s168 + $0x10] sm:$0xf]
      %v1538 = vld [vmem:[%s168 + $0x14] sm:$0xf]
      %v1539 = vld [vmem:[%s168 + $0x18] sm:$0xf]
      %v1540 = vld [vmem:[%s168 + $0x1c] sm:$0xf]
      %v1541 = vld [vmem:[%s168 + $0x20] sm:$0xf]
      %v1542 = vld [vmem:[%s168 + $0x24] sm:$0xf]
      %v1543 = vld [vmem:[%s168 + $0x28] sm:$0xf]
      %v1544 = vld [vmem:[%s168 + $0x2c] sm:$0xf]
      %v1545 = vld [vmem:[%s168 + $0x30] sm:$0xf]
      %v1546 = vld [vmem:[%s168 + $0x34] sm:$0xf]
      %v1547 = vld [vmem:[%s168 + $0x38] sm:$0xf]
      %v1548 = vld [vmem:[%s168 + $0x3c] sm:$0xf]
      %v1549 = vld [vmem:[%s168 + $0x40] sm:$0xf]
      %v1550 = vld [vmem:[%s168 + $0x44] sm:$0xf]
      %v1551 = vld [vmem:[%s168 + $0x48] sm:$0xf]
      %v1552 = vld [vmem:[%s168 + $0x4c] sm:$0xf]
      %v1553 = vld [vmem:[%s168 + $0x50] sm:$0xf]
      %v1554 = vld [vmem:[%s168 + $0x54] sm:$0xf]
      %v1555 = vld [vmem:[%s168 + $0x58] sm:$0xf]
      %v1556 = vld [vmem:[%s168 + $0x5c] sm:$0xf]
      %v1557 = vld [vmem:[%s168 + $0x60] sm:$0xf]
      %v1558 = vld [vmem:[%s168 + $0x64] sm:$0xf]
      %v1559 = vld [vmem:[%s168 + $0x68] sm:$0xf]
      %v1560 = vld [vmem:[%s168 + $0x6c] sm:$0xf]
      %v1561 = vld [vmem:[%s168 + $0x70] sm:$0xf]
      %v1562 = vld [vmem:[%s168 + $0x74] sm:$0xf]
      %v1563 = vld [vmem:[%s168 + $0x78] sm:$0xf]
      %v1564 = vld [vmem:[%s168 + $0x7c] sm:$0xf]
      %v1565 = vld [vmem:[%s168 + $0x80] sm:$0xf]
      %v1566 = vld [vmem:[%s168 + $0x84] sm:$0xf]
      %v1567 = vld [vmem:[%s168 + $0x88] sm:$0xf]
      %v1568 = vld [vmem:[%s168 + $0x8c] sm:$0xf]
      %v1569 = vld [vmem:[%s168 + $0x90] sm:$0xf]
      %v1570 = vld [vmem:[%s168 + $0x94] sm:$0xf]
      %v1571 = vld [vmem:[%s168 + $0x98] sm:$0xf]
      %v1572 = vld [vmem:[%s168 + $0x9c] sm:$0xf]
      %v1573 = vld [vmem:[%s168 + $0xa0] sm:$0xf]
      %v1574 = vld [vmem:[%s168 + $0xa4] sm:$0xf]
      %v1575 = vld [vmem:[%s168 + $0xa8] sm:$0xf]
      %v1576 = vld [vmem:[%s168 + $0xac] sm:$0xf]
      %v1577 = vld [vmem:[%s168 + $0xb0] sm:$0xf]
      %v1578 = vld [vmem:[%s168 + $0xb4] sm:$0xf]
      %v1579 = vld [vmem:[%s168 + $0xb8] sm:$0xf]
      %v1580 = vld [vmem:[%s168 + $0xbc] sm:$0xf]
      %v1581 = vld [vmem:[%s168 + $0xc0] sm:$0xf]
      %v1582 = vld [vmem:[%s168 + $0xc4] sm:$0xf]
      %v1583 = vld [vmem:[%s168 + $0xc8] sm:$0xf]
      %s1584 = scalar_lea.vmem %s172, 6
      %v1585 = vld [vmem:[%s1584] sm:$0x3]
      %v1586 = vld [vmem:[%s168 + $0xcc] sm:$0x1]
      %s1587 = scalar_lea.vmem %s172, 8
      %v1588 = vld [vmem:[%s1587] sm:$0x3]
      %v1638 = vunpack.c.l.b16 %v1536
      %v1639 = vunpack.c.l.b16 %v1537
      %v1640 = vunpack.c.l.b16 %v1538
      %v1641 = vunpack.c.l.b16 %v1539
      %v1642 = vunpack.c.l.b16 %v1540
      %v1643 = vunpack.c.l.b16 %v1541
      %v1644 = vunpack.c.l.b16 %v1542
      %v1645 = vunpack.c.l.b16 %v1543
      %v1646 = vunpack.c.l.b16 %v1544
      %v1647 = vunpack.c.l.b16 %v1545
      %v1648 = vunpack.c.l.b16 %v1546
      %v1649 = vunpack.c.l.b16 %v1547
      %v1650 = vunpack.c.l.b16 %v1548
      %v1651 = vunpack.c.l.b16 %v1549
      %v1652 = vunpack.c.l.b16 %v1550
      %v1653 = vunpack.c.l.b16 %v1551
      %v1654 = vunpack.c.l.b16 %v1552
      %v1655 = vunpack.c.l.b16 %v1553
      %v1656 = vunpack.c.l.b16 %v1554
      %v1657 = vunpack.c.l.b16 %v1555
      %v1658 = vunpack.c.l.b16 %v1556
      %v1659 = vunpack.c.l.b16 %v1557
      %v1660 = vunpack.c.l.b16 %v1558
      %v1661 = vunpack.c.l.b16 %v1559
      %v1662 = vunpack.c.l.b16 %v1560
      %v1663 = vunpack.c.l.b16 %v1561
      %v1664 = vunpack.c.l.b16 %v1562
      %v1665 = vunpack.c.l.b16 %v1563
      %v1666 = vunpack.c.l.b16 %v1564
      %v1667 = vunpack.c.l.b16 %v1565
      %v1668 = vunpack.c.l.b16 %v1566
      %v1669 = vunpack.c.l.b16 %v1567
      %v1670 = vunpack.c.l.b16 %v1568
      %v1671 = vunpack.c.l.b16 %v1569
      %v1672 = vunpack.c.l.b16 %v1570
      %v1673 = vunpack.c.l.b16 %v1571
      %v1674 = vunpack.c.l.b16 %v1572
      %v1675 = vunpack.c.l.b16 %v1573
      %v1676 = vunpack.c.l.b16 %v1574
      %v1677 = vunpack.c.l.b16 %v1575
      %v1678 = vunpack.c.l.b16 %v1576
      %v1679 = vunpack.c.l.b16 %v1577
      %v1680 = vunpack.c.l.b16 %v1578
      %v1681 = vunpack.c.l.b16 %v1579
      %v1682 = vunpack.c.l.b16 %v1580
      %v1683 = vunpack.c.l.b16 %v1581
      %v1684 = vunpack.c.l.b16 %v1582
      %v1685 = vunpack.c.l.b16 %v1583
      %v1686 = vunpack.c.l.b16 %v1586
      %v1687 = vpack.c.b16 %v1639, %v1638
      %v1688 = vpack.c.b16 %v1641, %v1640
      %v1689 = vpack.c.b16 %v1643, %v1642
      %v1690 = vpack.c.b16 %v1645, %v1644
      %v1691 = vpack.c.b16 %v1647, %v1646
      %v1692 = vpack.c.b16 %v1649, %v1648
      %v1693 = vpack.c.b16 %v1651, %v1650
      %v1694 = vpack.c.b16 %v1653, %v1652
      %v1695 = vpack.c.b16 %v1655, %v1654
      %v1696 = vpack.c.b16 %v1657, %v1656
      %v1697 = vpack.c.b16 %v1659, %v1658
      %v1698 = vpack.c.b16 %v1661, %v1660
      %v1699 = vpack.c.b16 %v1663, %v1662
      %v1700 = vpack.c.b16 %v1665, %v1664
      %v1701 = vpack.c.b16 %v1667, %v1666
      %v1702 = vpack.c.b16 %v1669, %v1668
      %v1703 = vpack.c.b16 %v1671, %v1670
      %v1704 = vpack.c.b16 %v1673, %v1672
      %v1705 = vpack.c.b16 %v1675, %v1674
      %v1706 = vpack.c.b16 %v1677, %v1676
      %v1707 = vpack.c.b16 %v1679, %v1678
      %v1708 = vpack.c.b16 %v1681, %v1680
      %v1709 = vpack.c.b16 %v1683, %v1682
      %v1710 = vpack.c.b16 %v1685, %v1684
      %v1711 = vpack.c.b16 %v1686, %v1686
      %v1713 = vshrl.u32 %v1687, 16
      %v1715 = vshll.u32 %v1687, 16
      %v1717 = vrot.slane %v1715, 1
      %v1718 = vor.u32 %v1713, %v1717
      %v1720 = vshll.u32 %v1688, 16
      %v1722 = vrot.slane %v1720, 1
      %v1723 = vsel %vm357, %v1718, %v1722
      %v1724 = vshrl.u32 %v1688, 16
      %v1726 = vor.u32 %v1724, %v1722
      %v1728 = vshll.u32 %v1689, 16
      %v1730 = vrot.slane %v1728, 1
      %v1731 = vsel %vm357, %v1726, %v1730
      %v1732 = vshrl.u32 %v1689, 16
      %v1734 = vor.u32 %v1732, %v1730
      %v1736 = vshll.u32 %v1690, 16
      %v1738 = vrot.slane %v1736, 1
      %v1739 = vsel %vm357, %v1734, %v1738
      %v1740 = vshrl.u32 %v1690, 16
      %v1742 = vor.u32 %v1740, %v1738
      %v1744 = vshll.u32 %v1691, 16
      %v1746 = vrot.slane %v1744, 1
      %v1747 = vsel %vm357, %v1742, %v1746
      %v1748 = vshrl.u32 %v1691, 16
      %v1750 = vor.u32 %v1748, %v1746
      %v1752 = vshll.u32 %v1692, 16
      %v1754 = vrot.slane %v1752, 1
      %v1755 = vsel %vm357, %v1750, %v1754
      %v1756 = vshrl.u32 %v1692, 16
      %v1758 = vor.u32 %v1756, %v1754
      %v1760 = vshll.u32 %v1693, 16
      %v1762 = vrot.slane %v1760, 1
      %v1763 = vsel %vm357, %v1758, %v1762
      %v1764 = vshrl.u32 %v1693, 16
      %v1766 = vor.u32 %v1764, %v1762
      %v1768 = vshll.u32 %v1694, 16
      %v1770 = vrot.slane %v1768, 1
      %v1771 = vsel %vm357, %v1766, %v1770
      %v1772 = vshrl.u32 %v1694, 16
      %v1774 = vor.u32 %v1772, %v1770
      %v1776 = vshll.u32 %v1695, 16
      %v1778 = vrot.slane %v1776, 1
      %v1779 = vsel %vm357, %v1774, %v1778
      %v1780 = vshrl.u32 %v1695, 16
      %v1782 = vor.u32 %v1780, %v1778
      %v1784 = vshll.u32 %v1696, 16
      %v1786 = vrot.slane %v1784, 1
      %v1787 = vsel %vm357, %v1782, %v1786
      %v1788 = vshrl.u32 %v1696, 16
      %v1790 = vor.u32 %v1788, %v1786
      %v1792 = vshll.u32 %v1697, 16
      %v1794 = vrot.slane %v1792, 1
      %v1795 = vsel %vm357, %v1790, %v1794
      %v1796 = vshrl.u32 %v1697, 16
      %v1798 = vor.u32 %v1796, %v1794
      %v1800 = vshll.u32 %v1698, 16
      %v1802 = vrot.slane %v1800, 1
      %v1803 = vsel %vm357, %v1798, %v1802
      %v1804 = vshrl.u32 %v1698, 16
      %v1806 = vor.u32 %v1804, %v1802
      %v1808 = vshll.u32 %v1699, 16
      %v1810 = vrot.slane %v1808, 1
      %v1811 = vsel %vm357, %v1806, %v1810
      %v1812 = vshrl.u32 %v1699, 16
      %v1814 = vor.u32 %v1812, %v1810
      %v1816 = vshll.u32 %v1700, 16
      %v1818 = vrot.slane %v1816, 1
      %v1819 = vsel %vm357, %v1814, %v1818
      %v1820 = vshrl.u32 %v1700, 16
      %v1822 = vor.u32 %v1820, %v1818
      %v1824 = vshll.u32 %v1701, 16
      %v1826 = vrot.slane %v1824, 1
      %v1827 = vsel %vm357, %v1822, %v1826
      %v1828 = vshrl.u32 %v1701, 16
      %v1830 = vor.u32 %v1828, %v1826
      %v1832 = vshll.u32 %v1702, 16
      %v1834 = vrot.slane %v1832, 1
      %v1835 = vsel %vm357, %v1830, %v1834
      %v1836 = vshrl.u32 %v1702, 16
      %v1838 = vor.u32 %v1836, %v1834
      %v1840 = vshll.u32 %v1703, 16
      %v1842 = vrot.slane %v1840, 1
      %v1843 = vsel %vm357, %v1838, %v1842
      %v1844 = vshrl.u32 %v1703, 16
      %v1846 = vor.u32 %v1844, %v1842
      %v1848 = vshll.u32 %v1704, 16
      %v1850 = vrot.slane %v1848, 1
      %v1851 = vsel %vm357, %v1846, %v1850
      %v1852 = vshrl.u32 %v1704, 16
      %v1854 = vor.u32 %v1852, %v1850
      %v1856 = vshll.u32 %v1705, 16
      %v1858 = vrot.slane %v1856, 1
      %v1859 = vsel %vm357, %v1854, %v1858
      %v1860 = vshrl.u32 %v1705, 16
      %v1862 = vor.u32 %v1860, %v1858
      %v1864 = vshll.u32 %v1706, 16
      %v1866 = vrot.slane %v1864, 1
      %v1867 = vsel %vm357, %v1862, %v1866
      %v1868 = vshrl.u32 %v1706, 16
      %v1870 = vor.u32 %v1868, %v1866
      %v1872 = vshll.u32 %v1707, 16
      %v1874 = vrot.slane %v1872, 1
      %v1875 = vsel %vm357, %v1870, %v1874
      %v1876 = vshrl.u32 %v1707, 16
      %v1878 = vor.u32 %v1876, %v1874
      %v1880 = vshll.u32 %v1708, 16
      %v1882 = vrot.slane %v1880, 1
      %v1883 = vsel %vm357, %v1878, %v1882
      %v1884 = vshrl.u32 %v1708, 16
      %v1886 = vor.u32 %v1884, %v1882
      %v1888 = vshll.u32 %v1709, 16
      %v1890 = vrot.slane %v1888, 1
      %v1891 = vsel %vm357, %v1886, %v1890
      %v1892 = vshrl.u32 %v1709, 16
      %v1894 = vor.u32 %v1892, %v1890
      %v1896 = vshll.u32 %v1710, 16
      %v1898 = vrot.slane %v1896, 1
      %v1899 = vsel %vm357, %v1894, %v1898
      %v1900 = vshrl.u32 %v1710, 16
      %v1902 = vor.u32 %v1900, %v1898
      %v1904 = vshll.u32 %v1711, 16
      %v1906 = vrot.slane %v1904, 1
      %v1907 = vsel %vm357, %v1902, %v1906
      %v1909 = vsel %vm554, %v1723, 0
      %v1912 = vsel %vm554, %v1731, 0
      %v1915 = vsel %vm554, %v1739, 0
      %v1918 = vsel %vm554, %v1747, 0
      %v1921 = vsel %vm554, %v1755, 0
      %v1924 = vsel %vm554, %v1763, 0
      %v1927 = vsel %vm554, %v1771, 0
      %v1930 = vsel %vm554, %v1779, 0
      %v1933 = vsel %vm554, %v1787, 0
      %v1936 = vsel %vm554, %v1795, 0
      %v1939 = vsel %vm554, %v1803, 0
      %v1942 = vsel %vm554, %v1811, 0
      %v1945 = vsel %vm554, %v1819, 0
      %v1948 = vsel %vm554, %v1827, 0
      %v1951 = vsel %vm554, %v1835, 0
      %v1954 = vsel %vm554, %v1843, 0
      %v1957 = vsel %vm554, %v1851, 0
      %v1960 = vsel %vm554, %v1859, 0
      %v1963 = vsel %vm554, %v1867, 0
      %v1966 = vsel %vm554, %v1875, 0
      %v1969 = vsel %vm554, %v1883, 0
      %v1972 = vsel %vm554, %v1891, 0
      %v1975 = vsel %vm554, %v1899, 0
      %v1978 = vsel %vm554, %v1907, 0
      %v1981 = vsel %vm627, %v1588, 0
      %1983 = vmatprep.subr.bf16.mxu0 0
      %1984 = vmatpush1.bf16.msra.mxu0 %v1981
      %1985 = vmatprep.subr.bf16.mxu0 0
      %1986 = vmatpush1.bf16.msra.mxu0 0
      %1987 = vmatprep.subr.bf16.mxu0 0
      %1988 = vmatpush1.bf16.msra.mxu0 0
      %1989 = vmatprep.subr.bf16.mxu0 0
      %1990 = vmatpush1.bf16.msra.mxu0 0
      %1991 = vmatprep.subr.bf16.mxu0 0
      %1992 = vmatpush1.bf16.msra.mxu0 0
      %1993 = vmatprep.subr.bf16.mxu0 0
      %1994 = vmatpush1.bf16.msra.mxu0 0
      %1995 = vmatprep.subr.bf16.mxu0 0
      %1996 = vmatpush1.bf16.msra.mxu0 0
      %1997 = vmatprep.subr.bf16.mxu0 0
      %1998 = vmatpush1.bf16.msra.mxu0 0
      %1999 = vmatprep.subr.bf16.mxu0 0
      %2000 = vmatpush1.bf16.msra.mxu0 0
      %2001 = vmatprep.subr.bf16.mxu0 0
      %2002 = vmatpush1.bf16.msra.mxu0 0
      %2003 = vmatprep.subr.bf16.mxu0 0
      %2004 = vmatpush1.bf16.msra.mxu0 0
      %2005 = vmatprep.subr.bf16.mxu0 0
      %2006 = vmatpush1.bf16.msra.mxu0 0
      %2007 = vmatprep.subr.bf16.mxu0 0
      %2008 = vmatpush1.bf16.msra.mxu0 0
      %2009 = vmatprep.subr.bf16.mxu0 0
      %2010 = vmatpush1.bf16.msra.mxu0 0
      %2011 = vmatprep.subr.bf16.mxu0 0
      %2012 = vmatpush1.bf16.msra.mxu0 0
      %2013 = vmatprep.subr.bf16.mxu0 0
      %2014 = vmatpush1.bf16.msra.mxu0 0
      %2015 = vmatprep.mubr.bf16.mxu0 0
      %2016 = vmatmul.mubr.bf16.gmra.mrb[0].mxu0 %v1909
      %v2017 = vpop.f32.mrb[0].mxu0
      %v2018 = vadd.f32 0.0, %v2017
      %v2019 = vpop.f32.mrb[0].mxu0
      %v2020 = vpop.f32.mrb[0].mxu0
      %v2021 = vadd.f32 0.0, %v2020
      %v2022 = vpop.f32.mrb[0].mxu0
      %2023 = vmatprep.mubr.bf16.mxu0 0
      %2024 = vmatmul.mubr.bf16.gmra.mrb[0].mxu0 %v1912
      %v2025 = vpop.f32.mrb[0].mxu0
      %v2026 = vadd.f32 0.0, %v2025
      %v2027 = vpop.f32.mrb[0].mxu0
      %v2028 = vpop.f32.mrb[0].mxu0
      %v2029 = vadd.f32 0.0, %v2028
      %v2030 = vpop.f32.mrb[0].mxu0
      %2031 = vmatprep.mubr.bf16.mxu0 0
      %2032 = vmatmul.mubr.bf16.gmra.mrb[0].mxu0 %v1915
      %v2033 = vpop.f32.mrb[0].mxu0
      %v2034 = vadd.f32 0.0, %v2033
      %v2035 = vpop.f32.mrb[0].mxu0
      %v2036 = vpop.f32.mrb[0].mxu0
      %v2037 = vadd.f32 0.0, %v2036
      %v2038 = vpop.f32.mrb[0].mxu0
      %2039 = vmatprep.mubr.bf16.mxu0 0
      %2040 = vmatmul.mubr.bf16.gmra.mrb[0].mxu0 %v1918
      %v2041 = vpop.f32.mrb[0].mxu0
      %v2042 = vadd.f32 0.0, %v2041
      %v2043 = vpop.f32.mrb[0].mxu0
      %v2044 = vpop.f32.mrb[0].mxu0
      %v2045 = vadd.f32 0.0, %v2044
      %v2046 = vpop.f32.mrb[0].mxu0
      %2047 = vmatprep.mubr.bf16.mxu0 0
      %2048 = vmatmul.mubr.bf16.gmra.mrb[0].mxu0 %v1921
      %v2049 = vpop.f32.mrb[0].mxu0
      %v2050 = vadd.f32 0.0, %v2049
      %v2051 = vpop.f32.mrb[0].mxu0
      %v2052 = vpop.f32.mrb[0].mxu0
      %v2053 = vadd.f32 0.0, %v2052
      %v2054 = vpop.f32.mrb[0].mxu0
      %2055 = vmatprep.mubr.bf16.mxu0 0
      %2056 = vmatmul.mubr.bf16.gmra.mrb[0].mxu0 %v1924
      %v2057 = vpop.f32.mrb[0].mxu0
      %v2058 = vadd.f32 0.0, %v2057
      %v2059 = vpop.f32.mrb[0].mxu0
      %v2060 = vpop.f32.mrb[0].mxu0
      %v2061 = vadd.f32 0.0, %v2060
      %v2062 = vpop.f32.mrb[0].mxu0
      %2063 = vmatprep.mubr.bf16.mxu0 0
      %2064 = vmatmul.mubr.bf16.gmra.mrb[0].mxu0 %v1927
      %v2065 = vpop.f32.mrb[0].mxu0
      %v2066 = vadd.f32 0.0, %v2065
      %v2067 = vpop.f32.mrb[0].mxu0
      %v2068 = vpop.f32.mrb[0].mxu0
      %v2069 = vadd.f32 0.0, %v2068
      %v2070 = vpop.f32.mrb[0].mxu0
      %2071 = vmatprep.mubr.bf16.mxu0 0
      %2072 = vmatmul.mubr.bf16.gmra.mrb[0].mxu0 %v1930
      %v2073 = vpop.f32.mrb[0].mxu0
      %v2074 = vadd.f32 0.0, %v2073
      %v2075 = vpop.f32.mrb[0].mxu0
      %v2076 = vpop.f32.mrb[0].mxu0
      %v2077 = vadd.f32 0.0, %v2076
      %v2078 = vpop.f32.mrb[0].mxu0
      %2079 = vmatprep.mubr.bf16.mxu0 0
      %2080 = vmatmul.mubr.bf16.gmra.mrb[0].mxu0 %v1933
      %v2081 = vpop.f32.mrb[0].mxu0
      %v2082 = vadd.f32 0.0, %v2081
      %v2083 = vpop.f32.mrb[0].mxu0
      %v2084 = vpop.f32.mrb[0].mxu0
      %v2085 = vadd.f32 0.0, %v2084
      %v2086 = vpop.f32.mrb[0].mxu0
      %2087 = vmatprep.mubr.bf16.mxu0 0
      %2088 = vmatmul.mubr.bf16.gmra.mrb[0].mxu0 %v1936
      %v2089 = vpop.f32.mrb[0].mxu0
      %v2090 = vadd.f32 0.0, %v2089
      %v2091 = vpop.f32.mrb[0].mxu0
      %v2092 = vpop.f32.mrb[0].mxu0
      %v2093 = vadd.f32 0.0, %v2092
      %v2094 = vpop.f32.mrb[0].mxu0
      %2095 = vmatprep.mubr.bf16.mxu0 0
      %2096 = vmatmul.mubr.bf16.gmra.mrb[0].mxu0 %v1939
      %v2097 = vpop.f32.mrb[0].mxu0
      %v2098 = vadd.f32 0.0, %v2097
      %v2099 = vpop.f32.mrb[0].mxu0
      %v2100 = vpop.f32.mrb[0].mxu0
      %v2101 = vadd.f32 0.0, %v2100
      %v2102 = vpop.f32.mrb[0].mxu0
      %2103 = vmatprep.mubr.bf16.mxu0 0
      %2104 = vmatmul.mubr.bf16.gmra.mrb[0].mxu0 %v1942
      %v2105 = vpop.f32.mrb[0].mxu0
      %v2106 = vadd.f32 0.0, %v2105
      %v2107 = vpop.f32.mrb[0].mxu0
      %v2108 = vpop.f32.mrb[0].mxu0
      %v2109 = vadd.f32 0.0, %v2108
      %v2110 = vpop.f32.mrb[0].mxu0
      %2111 = vmatprep.mubr.bf16.mxu0 0
      %2112 = vmatmul.mubr.bf16.gmra.mrb[0].mxu0 %v1945
      %v2113 = vpop.f32.mrb[0].mxu0
      %v2114 = vadd.f32 0.0, %v2113
      %v2115 = vpop.f32.mrb[0].mxu0
      %v2116 = vpop.f32.mrb[0].mxu0
      %v2117 = vadd.f32 0.0, %v2116
      %v2118 = vpop.f32.mrb[0].mxu0
      %2119 = vmatprep.mubr.bf16.mxu0 0
      %2120 = vmatmul.mubr.bf16.gmra.mrb[0].mxu0 %v1948
      %v2121 = vpop.f32.mrb[0].mxu0
      %v2122 = vadd.f32 0.0, %v2121
      %v2123 = vpop.f32.mrb[0].mxu0
      %v2124 = vpop.f32.mrb[0].mxu0
      %v2125 = vadd.f32 0.0, %v2124
      %v2126 = vpop.f32.mrb[0].mxu0
      %2127 = vmatprep.mubr.bf16.mxu0 0
      %2128 = vmatmul.mubr.bf16.gmra.mrb[0].mxu0 %v1951
      %v2129 = vpop.f32.mrb[0].mxu0
      %v2130 = vadd.f32 0.0, %v2129
      %v2131 = vpop.f32.mrb[0].mxu0
      %v2132 = vpop.f32.mrb[0].mxu0
      %v2133 = vadd.f32 0.0, %v2132
      %v2134 = vpop.f32.mrb[0].mxu0
      %2135 = vmatprep.mubr.bf16.mxu0 0
      %2136 = vmatmul.mubr.bf16.gmra.mrb[0].mxu0 %v1954
      %v2137 = vpop.f32.mrb[0].mxu0
      %v2138 = vadd.f32 0.0, %v2137
      %v2139 = vpop.f32.mrb[0].mxu0
      %v2140 = vpop.f32.mrb[0].mxu0
      %v2141 = vadd.f32 0.0, %v2140
      %v2142 = vpop.f32.mrb[0].mxu0
      %2143 = vmatprep.mubr.bf16.mxu0 0
      %2144 = vmatmul.mubr.bf16.gmra.mrb[0].mxu0 %v1957
      %v2145 = vpop.f32.mrb[0].mxu0
      %v2146 = vadd.f32 0.0, %v2145
      %v2147 = vpop.f32.mrb[0].mxu0
      %v2148 = vpop.f32.mrb[0].mxu0
      %v2149 = vadd.f32 0.0, %v2148
      %v2150 = vpop.f32.mrb[0].mxu0
      %2151 = vmatprep.mubr.bf16.mxu0 0
      %2152 = vmatmul.mubr.bf16.gmra.mrb[0].mxu0 %v1960
      %v2153 = vpop.f32.mrb[0].mxu0
      %v2154 = vadd.f32 0.0, %v2153
      %v2155 = vpop.f32.mrb[0].mxu0
      %v2156 = vpop.f32.mrb[0].mxu0
      %v2157 = vadd.f32 0.0, %v2156
      %v2158 = vpop.f32.mrb[0].mxu0
      %2159 = vmatprep.mubr.bf16.mxu0 0
      %2160 = vmatmul.mubr.bf16.gmra.mrb[0].mxu0 %v1963
      %v2161 = vpop.f32.mrb[0].mxu0
      %v2162 = vadd.f32 0.0, %v2161
      %v2163 = vpop.f32.mrb[0].mxu0
      %v2164 = vpop.f32.mrb[0].mxu0
      %v2165 = vadd.f32 0.0, %v2164
      %v2166 = vpop.f32.mrb[0].mxu0
      %2167 = vmatprep.mubr.bf16.mxu0 0
      %2168 = vmatmul.mubr.bf16.gmra.mrb[0].mxu0 %v1966
      %v2169 = vpop.f32.mrb[0].mxu0
      %v2170 = vadd.f32 0.0, %v2169
      %v2171 = vpop.f32.mrb[0].mxu0
      %v2172 = vpop.f32.mrb[0].mxu0
      %v2173 = vadd.f32 0.0, %v2172
      %v2174 = vpop.f32.mrb[0].mxu0
      %2175 = vmatprep.mubr.bf16.mxu0 0
      %2176 = vmatmul.mubr.bf16.gmra.mrb[0].mxu0 %v1969
      %v2177 = vpop.f32.mrb[0].mxu0
      %v2178 = vadd.f32 0.0, %v2177
      %v2179 = vpop.f32.mrb[0].mxu0
      %v2180 = vpop.f32.mrb[0].mxu0
      %v2181 = vadd.f32 0.0, %v2180
      %v2182 = vpop.f32.mrb[0].mxu0
      %2183 = vmatprep.mubr.bf16.mxu0 0
      %2184 = vmatmul.mubr.bf16.gmra.mrb[0].mxu0 %v1972
      %v2185 = vpop.f32.mrb[0].mxu0
      %v2186 = vadd.f32 0.0, %v2185
      %v2187 = vpop.f32.mrb[0].mxu0
      %v2188 = vpop.f32.mrb[0].mxu0
      %v2189 = vadd.f32 0.0, %v2188
      %v2190 = vpop.f32.mrb[0].mxu0
      %2191 = vmatprep.mubr.bf16.mxu0 0
      %2192 = vmatmul.mubr.bf16.gmra.mrb[0].mxu0 %v1975
      %v2193 = vpop.f32.mrb[0].mxu0
      %v2194 = vadd.f32 0.0, %v2193
      %v2195 = vpop.f32.mrb[0].mxu0
      %v2196 = vpop.f32.mrb[0].mxu0
      %v2197 = vadd.f32 0.0, %v2196
      %v2198 = vpop.f32.mrb[0].mxu0
      %2199 = vmatprep.mubr.bf16.mxu0 0
      %2200 = vmatmul.mubr.bf16.gmra.mrb[0].mxu0 %v1978
      %v2201 = vpop.f32.mrb[0].mxu0
      %v2202 = vadd.f32 0.0, %v2201
      %v2203 = vpop.f32.mrb[0].mxu0
      %v2204 = vpop.f32.mrb[0].mxu0
      %v2205 = vadd.f32 0.0, %v2204
      %v2206 = vpop.f32.mrb[0].mxu0
      %2207 = vdwg.mxu0
      %v2208 = vsel %vm554, %v1687, 0
      %v2210 = vsel %vm554, %v1688, 0
      %v2212 = vsel %vm554, %v1689, 0
      %v2214 = vsel %vm554, %v1690, 0
      %v2216 = vsel %vm554, %v1691, 0
      %v2218 = vsel %vm554, %v1692, 0
      %v2220 = vsel %vm554, %v1693, 0
      %v2222 = vsel %vm554, %v1694, 0
      %v2224 = vsel %vm554, %v1695, 0
      %v2226 = vsel %vm554, %v1696, 0
      %v2228 = vsel %vm554, %v1697, 0
      %v2230 = vsel %vm554, %v1698, 0
      %v2232 = vsel %vm554, %v1699, 0
      %v2234 = vsel %vm554, %v1700, 0
      %v2236 = vsel %vm554, %v1701, 0
      %v2238 = vsel %vm554, %v1702, 0
      %v2240 = vsel %vm554, %v1703, 0
      %v2242 = vsel %vm554, %v1704, 0
      %v2244 = vsel %vm554, %v1705, 0
      %v2246 = vsel %vm554, %v1706, 0
      %v2248 = vsel %vm554, %v1707, 0
      %v2250 = vsel %vm554, %v1708, 0
      %v2252 = vsel %vm554, %v1709, 0
      %v2254 = vsel %vm554, %v1710, 0
      %v2257 = vsel %vm627, %v1585, 0
      %2259 = vmatprep.subr.bf16.mxu0 0
      %2260 = vmatpush1.bf16.msra.mxu0 %v2257
      %2261 = vmatprep.subr.bf16.mxu0 0
      %2262 = vmatpush1.bf16.msra.mxu0 0
      %2263 = vmatprep.subr.bf16.mxu0 0
      %2264 = vmatpush1.bf16.msra.mxu0 0
      %2265 = vmatprep.subr.bf16.mxu0 0
      %2266 = vmatpush1.bf16.msra.mxu0 0
      %2267 = vmatprep.subr.bf16.mxu0 0
      %2268 = vmatpush1.bf16.msra.mxu0 0
      %2269 = vmatprep.subr.bf16.mxu0 0
      %2270 = vmatpush1.bf16.msra.mxu0 0
      %2271 = vmatprep.subr.bf16.mxu0 0
      %2272 = vmatpush1.bf16.msra.mxu0 0
      %2273 = vmatprep.subr.bf16.mxu0 0
      %2274 = vmatpush1.bf16.msra.mxu0 0
      %2275 = vmatprep.subr.bf16.mxu0 0
      %2276 = vmatpush1.bf16.msra.mxu0 0
      %2277 = vmatprep.subr.bf16.mxu0 0
      %2278 = vmatpush1.bf16.msra.mxu0 0
      %2279 = vmatprep.subr.bf16.mxu0 0
      %2280 = vmatpush1.bf16.msra.mxu0 0
      %2281 = vmatprep.subr.bf16.mxu0 0
      %2282 = vmatpush1.bf16.msra.mxu0 0
      %2283 = vmatprep.subr.bf16.mxu0 0
      %2284 = vmatpush1.bf16.msra.mxu0 0
      %2285 = vmatprep.subr.bf16.mxu0 0
      %2286 = vmatpush1.bf16.msra.mxu0 0
      %2287 = vmatprep.subr.bf16.mxu0 0
      %2288 = vmatpush1.bf16.msra.mxu0 0
      %2289 = vmatprep.subr.bf16.mxu0 0
      %2290 = vmatpush1.bf16.msra.mxu0 0
      %2291 = vmatprep.mubr.bf16.mxu0 0
      %2292 = vmatmul.mubr.bf16.gmra.mrb[0].mxu0 %v2208
      %v2293 = vpop.f32.mrb[0].mxu0
      %v2294 = vadd.f32 %v2018, %v2293
      %v2295 = vpop.f32.mrb[0].mxu0
      %v2296 = vpop.f32.mrb[0].mxu0
      %v2297 = vadd.f32 %v2021, %v2296
      %v2298 = vpop.f32.mrb[0].mxu0
      %2299 = vmatprep.mubr.bf16.mxu0 0
      %2300 = vmatmul.mubr.bf16.gmra.mrb[0].mxu0 %v2210
      %v2301 = vpop.f32.mrb[0].mxu0
      %v2302 = vadd.f32 %v2026, %v2301
      %v2303 = vpop.f32.mrb[0].mxu0
      %v2304 = vpop.f32.mrb[0].mxu0
      %v2305 = vadd.f32 %v2029, %v2304
      %v2306 = vpop.f32.mrb[0].mxu0
      %2307 = vmatprep.mubr.bf16.mxu0 0
      %2308 = vmatmul.mubr.bf16.gmra.mrb[0].mxu0 %v2212
      %v2309 = vpop.f32.mrb[0].mxu0
      %v2310 = vadd.f32 %v2034, %v2309
      %v2311 = vpop.f32.mrb[0].mxu0
      %v2312 = vpop.f32.mrb[0].mxu0
      %v2313 = vadd.f32 %v2037, %v2312
      %v2314 = vpop.f32.mrb[0].mxu0
      %2315 = vmatprep.mubr.bf16.mxu0 0
      %2316 = vmatmul.mubr.bf16.gmra.mrb[0].mxu0 %v2214
      %v2317 = vpop.f32.mrb[0].mxu0
      %v2318 = vadd.f32 %v2042, %v2317
      %v2319 = vpop.f32.mrb[0].mxu0
      %v2320 = vpop.f32.mrb[0].mxu0
      %v2321 = vadd.f32 %v2045, %v2320
      %v2322 = vpop.f32.mrb[0].mxu0
      %2323 = vmatprep.mubr.bf16.mxu0 0
      %2324 = vmatmul.mubr.bf16.gmra.mrb[0].mxu0 %v2216
      %v2325 = vpop.f32.mrb[0].mxu0
      %v2326 = vadd.f32 %v2050, %v2325
      %v2327 = vpop.f32.mrb[0].mxu0
      %v2328 = vpop.f32.mrb[0].mxu0
      %v2329 = vadd.f32 %v2053, %v2328
      %v2330 = vpop.f32.mrb[0].mxu0
      %2331 = vmatprep.mubr.bf16.mxu0 0
      %2332 = vmatmul.mubr.bf16.gmra.mrb[0].mxu0 %v2218
      %v2333 = vpop.f32.mrb[0].mxu0
      %v2334 = vadd.f32 %v2058, %v2333
      %v2335 = vpop.f32.mrb[0].mxu0
      %v2336 = vpop.f32.mrb[0].mxu0
      %v2337 = vadd.f32 %v2061, %v2336
      %v2338 = vpop.f32.mrb[0].mxu0
      %2339 = vmatprep.mubr.bf16.mxu0 0
      %2340 = vmatmul.mubr.bf16.gmra.mrb[0].mxu0 %v2220
      %v2341 = vpop.f32.mrb[0].mxu0
      %v2342 = vadd.f32 %v2066, %v2341
      %v2343 = vpop.f32.mrb[0].mxu0
      %v2344 = vpop.f32.mrb[0].mxu0
      %v2345 = vadd.f32 %v2069, %v2344
      %v2346 = vpop.f32.mrb[0].mxu0
      %2347 = vmatprep.mubr.bf16.mxu0 0
      %2348 = vmatmul.mubr.bf16.gmra.mrb[0].mxu0 %v2222
      %v2349 = vpop.f32.mrb[0].mxu0
      %v2350 = vadd.f32 %v2074, %v2349
      %v2351 = vpop.f32.mrb[0].mxu0
      %v2352 = vpop.f32.mrb[0].mxu0
      %v2353 = vadd.f32 %v2077, %v2352
      %v2354 = vpop.f32.mrb[0].mxu0
      %2355 = vmatprep.mubr.bf16.mxu0 0
      %2356 = vmatmul.mubr.bf16.gmra.mrb[0].mxu0 %v2224
      %v2357 = vpop.f32.mrb[0].mxu0
      %v2358 = vadd.f32 %v2082, %v2357
      %v2359 = vpop.f32.mrb[0].mxu0
      %v2360 = vpop.f32.mrb[0].mxu0
      %v2361 = vadd.f32 %v2085, %v2360
      %v2362 = vpop.f32.mrb[0].mxu0
      %2363 = vmatprep.mubr.bf16.mxu0 0
      %2364 = vmatmul.mubr.bf16.gmra.mrb[0].mxu0 %v2226
      %v2365 = vpop.f32.mrb[0].mxu0
      %v2366 = vadd.f32 %v2090, %v2365
      %v2367 = vpop.f32.mrb[0].mxu0
      %v2368 = vpop.f32.mrb[0].mxu0
      %v2369 = vadd.f32 %v2093, %v2368
      %v2370 = vpop.f32.mrb[0].mxu0
      %2371 = vmatprep.mubr.bf16.mxu0 0
      %2372 = vmatmul.mubr.bf16.gmra.mrb[0].mxu0 %v2228
      %v2373 = vpop.f32.mrb[0].mxu0
      %v2374 = vadd.f32 %v2098, %v2373
      %v2375 = vpop.f32.mrb[0].mxu0
      %v2376 = vpop.f32.mrb[0].mxu0
      %v2377 = vadd.f32 %v2101, %v2376
      %v2378 = vpop.f32.mrb[0].mxu0
      %2379 = vmatprep.mubr.bf16.mxu0 0
      %2380 = vmatmul.mubr.bf16.gmra.mrb[0].mxu0 %v2230
      %v2381 = vpop.f32.mrb[0].mxu0
      %v2382 = vadd.f32 %v2106, %v2381
      %v2383 = vpop.f32.mrb[0].mxu0
      %v2384 = vpop.f32.mrb[0].mxu0
      %v2385 = vadd.f32 %v2109, %v2384
      %v2386 = vpop.f32.mrb[0].mxu0
      %2387 = vmatprep.mubr.bf16.mxu0 0
      %2388 = vmatmul.mubr.bf16.gmra.mrb[0].mxu0 %v2232
      %v2389 = vpop.f32.mrb[0].mxu0
      %v2390 = vadd.f32 %v2114, %v2389
      %v2391 = vpop.f32.mrb[0].mxu0
      %v2392 = vpop.f32.mrb[0].mxu0
      %v2393 = vadd.f32 %v2117, %v2392
      %v2394 = vpop.f32.mrb[0].mxu0
      %2395 = vmatprep.mubr.bf16.mxu0 0
      %2396 = vmatmul.mubr.bf16.gmra.mrb[0].mxu0 %v2234
      %v2397 = vpop.f32.mrb[0].mxu0
      %v2398 = vadd.f32 %v2122, %v2397
      %v2399 = vpop.f32.mrb[0].mxu0
      %v2400 = vpop.f32.mrb[0].mxu0
      %v2401 = vadd.f32 %v2125, %v2400
      %v2402 = vpop.f32.mrb[0].mxu0
      %2403 = vmatprep.mubr.bf16.mxu0 0
      %2404 = vmatmul.mubr.bf16.gmra.mrb[0].mxu0 %v2236
      %v2405 = vpop.f32.mrb[0].mxu0
      %v2406 = vadd.f32 %v2130, %v2405
      %v2407 = vpop.f32.mrb[0].mxu0
      %v2408 = vpop.f32.mrb[0].mxu0
      %v2409 = vadd.f32 %v2133, %v2408
      %v2410 = vpop.f32.mrb[0].mxu0
      %2411 = vmatprep.mubr.bf16.mxu0 0
      %2412 = vmatmul.mubr.bf16.gmra.mrb[0].mxu0 %v2238
      %v2413 = vpop.f32.mrb[0].mxu0
      %v2414 = vadd.f32 %v2138, %v2413
      %v2415 = vpop.f32.mrb[0].mxu0
      %v2416 = vpop.f32.mrb[0].mxu0
      %v2417 = vadd.f32 %v2141, %v2416
      %v2418 = vpop.f32.mrb[0].mxu0
      %2419 = vmatprep.mubr.bf16.mxu0 0
      %2420 = vmatmul.mubr.bf16.gmra.mrb[0].mxu0 %v2240
      %v2421 = vpop.f32.mrb[0].mxu0
      %v2422 = vadd.f32 %v2146, %v2421
      %v2423 = vpop.f32.mrb[0].mxu0
      %v2424 = vpop.f32.mrb[0].mxu0
      %v2425 = vadd.f32 %v2149, %v2424
      %v2426 = vpop.f32.mrb[0].mxu0
      %2427 = vmatprep.mubr.bf16.mxu0 0
      %2428 = vmatmul.mubr.bf16.gmra.mrb[0].mxu0 %v2242
      %v2429 = vpop.f32.mrb[0].mxu0
      %v2430 = vadd.f32 %v2154, %v2429
      %v2431 = vpop.f32.mrb[0].mxu0
      %v2432 = vpop.f32.mrb[0].mxu0
      %v2433 = vadd.f32 %v2157, %v2432
      %v2434 = vpop.f32.mrb[0].mxu0
      %2435 = vmatprep.mubr.bf16.mxu0 0
      %2436 = vmatmul.mubr.bf16.gmra.mrb[0].mxu0 %v2244
      %v2437 = vpop.f32.mrb[0].mxu0
      %v2438 = vadd.f32 %v2162, %v2437
      %v2439 = vpop.f32.mrb[0].mxu0
      %v2440 = vpop.f32.mrb[0].mxu0
      %v2441 = vadd.f32 %v2165, %v2440
      %v2442 = vpop.f32.mrb[0].mxu0
      %2443 = vmatprep.mubr.bf16.mxu0 0
      %2444 = vmatmul.mubr.bf16.gmra.mrb[0].mxu0 %v2246
      %v2445 = vpop.f32.mrb[0].mxu0
      %v2446 = vadd.f32 %v2170, %v2445
      %v2447 = vpop.f32.mrb[0].mxu0
      %v2448 = vpop.f32.mrb[0].mxu0
      %v2449 = vadd.f32 %v2173, %v2448
      %v2450 = vpop.f32.mrb[0].mxu0
      %2451 = vmatprep.mubr.bf16.mxu0 0
      %2452 = vmatmul.mubr.bf16.gmra.mrb[0].mxu0 %v2248
      %v2453 = vpop.f32.mrb[0].mxu0
      %v2454 = vadd.f32 %v2178, %v2453
      %v2455 = vpop.f32.mrb[0].mxu0
      %v2456 = vpop.f32.mrb[0].mxu0
      %v2457 = vadd.f32 %v2181, %v2456
      %v2458 = vpop.f32.mrb[0].mxu0
      %2459 = vmatprep.mubr.bf16.mxu0 0
      %2460 = vmatmul.mubr.bf16.gmra.mrb[0].mxu0 %v2250
      %v2461 = vpop.f32.mrb[0].mxu0
      %v2462 = vadd.f32 %v2186, %v2461
      %v2463 = vpop.f32.mrb[0].mxu0
      %v2464 = vpop.f32.mrb[0].mxu0
      %v2465 = vadd.f32 %v2189, %v2464
      %v2466 = vpop.f32.mrb[0].mxu0
      %2467 = vmatprep.mubr.bf16.mxu0 0
      %2468 = vmatmul.mubr.bf16.gmra.mrb[0].mxu0 %v2252
      %v2469 = vpop.f32.mrb[0].mxu0
      %v2470 = vadd.f32 %v2194, %v2469
      %v2471 = vpop.f32.mrb[0].mxu0
      %v2472 = vpop.f32.mrb[0].mxu0
      %v2473 = vadd.f32 %v2197, %v2472
      %v2474 = vpop.f32.mrb[0].mxu0
      %2475 = vmatprep.mubr.bf16.mxu0 0
      %2476 = vmatmul.mubr.bf16.gmra.mrb[0].mxu0 %v2254
      %v2477 = vpop.f32.mrb[0].mxu0
      %v2478 = vadd.f32 %v2202, %v2477
      %v2479 = vpop.f32.mrb[0].mxu0
      %v2480 = vpop.f32.mrb[0].mxu0
      %v2481 = vadd.f32 %v2205, %v2480
      %v2482 = vpop.f32.mrb[0].mxu0
      %2483 = vdwg.mxu0
      %v2484 = vld [vmem:[%s168 + $0xc] sm:$0xe]
      %s2485 = scalar_lea.vmem %s172, 10
      %v2486 = vld [vmem:[%s2485] sm:$0x3]
      %v2488 = vunpack.c.l.b16 %v2484
      %v2489 = vpack.c.b16 %v1639, %v2488
      %v2490 = vrot.slane %v2489, 1
      %v2491 = vrot.slane %v1688, 1
      %v2492 = vsel %vm1138, %v2490, %v2491
      %v2493 = vrot.slane %v1689, 1
      %v2494 = vsel %vm1138, %v2491, %v2493
      %v2495 = vrot.slane %v1690, 1
      %v2496 = vsel %vm1138, %v2493, %v2495
      %v2497 = vrot.slane %v1691, 1
      %v2498 = vsel %vm1138, %v2495, %v2497
      %v2499 = vrot.slane %v1692, 1
      %v2500 = vsel %vm1138, %v2497, %v2499
      %v2501 = vrot.slane %v1693, 1
      %v2502 = vsel %vm1138, %v2499, %v2501
      %v2503 = vrot.slane %v1694, 1
      %v2504 = vsel %vm1138, %v2501, %v2503
      %v2505 = vrot.slane %v1695, 1
      %v2506 = vsel %vm1138, %v2503, %v2505
      %v2507 = vrot.slane %v1696, 1
      %v2508 = vsel %vm1138, %v2505, %v2507
      %v2509 = vrot.slane %v1697, 1
      %v2510 = vsel %vm1138, %v2507, %v2509
      %v2511 = vrot.slane %v1698, 1
      %v2512 = vsel %vm1138, %v2509, %v2511
      %v2513 = vrot.slane %v1699, 1
      %v2514 = vsel %vm1138, %v2511, %v2513
      %v2515 = vrot.slane %v1700, 1
      %v2516 = vsel %vm1138, %v2513, %v2515
      %v2517 = vrot.slane %v1701, 1
      %v2518 = vsel %vm1138, %v2515, %v2517
      %v2519 = vrot.slane %v1702, 1
      %v2520 = vsel %vm1138, %v2517, %v2519
      %v2521 = vrot.slane %v1703, 1
      %v2522 = vsel %vm1138, %v2519, %v2521
      %v2523 = vrot.slane %v1704, 1
      %v2524 = vsel %vm1138, %v2521, %v2523
      %v2525 = vrot.slane %v1705, 1
      %v2526 = vsel %vm1138, %v2523, %v2525
      %v2527 = vrot.slane %v1706, 1
      %v2528 = vsel %vm1138, %v2525, %v2527
      %v2529 = vrot.slane %v1707, 1
      %v2530 = vsel %vm1138, %v2527, %v2529
      %v2531 = vrot.slane %v1708, 1
      %v2532 = vsel %vm1138, %v2529, %v2531
      %v2533 = vrot.slane %v1709, 1
      %v2534 = vsel %vm1138, %v2531, %v2533
      %v2535 = vrot.slane %v1710, 1
      %v2536 = vsel %vm1138, %v2533, %v2535
      %v2537 = vrot.slane %v1711, 1
      %v2538 = vsel %vm1138, %v2535, %v2537
      %v2540 = vsel %vm554, %v2492, 0
      %v2543 = vsel %vm554, %v2494, 0
      %v2546 = vsel %vm554, %v2496, 0
      %v2549 = vsel %vm554, %v2498, 0
      %v2552 = vsel %vm554, %v2500, 0
      %v2555 = vsel %vm554, %v2502, 0
      %v2558 = vsel %vm554, %v2504, 0
      %v2561 = vsel %vm554, %v2506, 0
      %v2564 = vsel %vm554, %v2508, 0
      %v2567 = vsel %vm554, %v2510, 0
      %v2570 = vsel %vm554, %v2512, 0
      %v2573 = vsel %vm554, %v2514, 0
      %v2576 = vsel %vm554, %v2516, 0
      %v2579 = vsel %vm554, %v2518, 0
      %v2582 = vsel %vm554, %v2520, 0
      %v2585 = vsel %vm554, %v2522, 0
      %v2588 = vsel %vm554, %v2524, 0
      %v2591 = vsel %vm554, %v2526, 0
      %v2594 = vsel %vm554, %v2528, 0
      %v2597 = vsel %vm554, %v2530, 0
      %v2600 = vsel %vm554, %v2532, 0
      %v2603 = vsel %vm554, %v2534, 0
      %v2606 = vsel %vm554, %v2536, 0
      %v2609 = vsel %vm554, %v2538, 0
      %v2612 = vsel %vm627, %v2486, 0
      %2614 = vmatprep.subr.bf16.mxu0 0
      %2615 = vmatpush1.bf16.msra.mxu0 %v2612
      %2616 = vmatprep.subr.bf16.mxu0 0
      %2617 = vmatpush1.bf16.msra.mxu0 0
      %2618 = vmatprep.subr.bf16.mxu0 0
      %2619 = vmatpush1.bf16.msra.mxu0 0
      %2620 = vmatprep.subr.bf16.mxu0 0
      %2621 = vmatpush1.bf16.msra.mxu0 0
      %2622 = vmatprep.subr.bf16.mxu0 0
      %2623 = vmatpush1.bf16.msra.mxu0 0
      %2624 = vmatprep.subr.bf16.mxu0 0
      %2625 = vmatpush1.bf16.msra.mxu0 0
      %2626 = vmatprep.subr.bf16.mxu0 0
      %2627 = vmatpush1.bf16.msra.mxu0 0
      %2628 = vmatprep.subr.bf16.mxu0 0
      %2629 = vmatpush1.bf16.msra.mxu0 0
      %2630 = vmatprep.subr.bf16.mxu0 0
      %2631 = vmatpush1.bf16.msra.mxu0 0
      %2632 = vmatprep.subr.bf16.mxu0 0
      %2633 = vmatpush1.bf16.msra.mxu0 0
      %2634 = vmatprep.subr.bf16.mxu0 0
      %2635 = vmatpush1.bf16.msra.mxu0 0
      %2636 = vmatprep.subr.bf16.mxu0 0
      %2637 = vmatpush1.bf16.msra.mxu0 0
      %2638 = vmatprep.subr.bf16.mxu0 0
      %2639 = vmatpush1.bf16.msra.mxu0 0
      %2640 = vmatprep.subr.bf16.mxu0 0
      %2641 = vmatpush1.bf16.msra.mxu0 0
      %2642 = vmatprep.subr.bf16.mxu0 0
      %2643 = vmatpush1.bf16.msra.mxu0 0
      %2644 = vmatprep.subr.bf16.mxu0 0
      %2645 = vmatpush1.bf16.msra.mxu0 0
      %2646 = vmatprep.mubr.bf16.mxu0 0
      %2647 = vmatmul.mubr.bf16.gmra.mrb[0].mxu0 %v2540
      %v2648 = vpop.f32.mrb[0].mxu0
      %v2649 = vadd.f32 0.0, %v2648
      %v2650 = vpop.f32.mrb[0].mxu0
      %v2651 = vpop.f32.mrb[0].mxu0
      %v2652 = vadd.f32 0.0, %v2651
      %v2653 = vpop.f32.mrb[0].mxu0
      %2654 = vmatprep.mubr.bf16.mxu0 0
      %2655 = vmatmul.mubr.bf16.gmra.mrb[0].mxu0 %v2543
      %v2656 = vpop.f32.mrb[0].mxu0
      %v2657 = vadd.f32 0.0, %v2656
      %v2658 = vpop.f32.mrb[0].mxu0
      %v2659 = vpop.f32.mrb[0].mxu0
      %v2660 = vadd.f32 0.0, %v2659
      %v2661 = vpop.f32.mrb[0].mxu0
      %2662 = vmatprep.mubr.bf16.mxu0 0
      %2663 = vmatmul.mubr.bf16.gmra.mrb[0].mxu0 %v2546
      %v2664 = vpop.f32.mrb[0].mxu0
      %v2665 = vadd.f32 0.0, %v2664
      %v2666 = vpop.f32.mrb[0].mxu0
      %v2667 = vpop.f32.mrb[0].mxu0
      %v2668 = vadd.f32 0.0, %v2667
      %v2669 = vpop.f32.mrb[0].mxu0
      %2670 = vmatprep.mubr.bf16.mxu0 0
      %2671 = vmatmul.mubr.bf16.gmra.mrb[0].mxu0 %v2549
      %v2672 = vpop.f32.mrb[0].mxu0
      %v2673 = vadd.f32 0.0, %v2672
      %v2674 = vpop.f32.mrb[0].mxu0
      %v2675 = vpop.f32.mrb[0].mxu0
      %v2676 = vadd.f32 0.0, %v2675
      %v2677 = vpop.f32.mrb[0].mxu0
      %2678 = vmatprep.mubr.bf16.mxu0 0
      %2679 = vmatmul.mubr.bf16.gmra.mrb[0].mxu0 %v2552
      %v2680 = vpop.f32.mrb[0].mxu0
      %v2681 = vadd.f32 0.0, %v2680
      %v2682 = vpop.f32.mrb[0].mxu0
      %v2683 = vpop.f32.mrb[0].mxu0
      %v2684 = vadd.f32 0.0, %v2683
      %v2685 = vpop.f32.mrb[0].mxu0
      %2686 = vmatprep.mubr.bf16.mxu0 0
      %2687 = vmatmul.mubr.bf16.gmra.mrb[0].mxu0 %v2555
      %v2688 = vpop.f32.mrb[0].mxu0
      %v2689 = vadd.f32 0.0, %v2688
      %v2690 = vpop.f32.mrb[0].mxu0
      %v2691 = vpop.f32.mrb[0].mxu0
      %v2692 = vadd.f32 0.0, %v2691
      %v2693 = vpop.f32.mrb[0].mxu0
      %2694 = vmatprep.mubr.bf16.mxu0 0
      %2695 = vmatmul.mubr.bf16.gmra.mrb[0].mxu0 %v2558
      %v2696 = vpop.f32.mrb[0].mxu0
      %v2697 = vadd.f32 0.0, %v2696
      %v2698 = vpop.f32.mrb[0].mxu0
      %v2699 = vpop.f32.mrb[0].mxu0
      %v2700 = vadd.f32 0.0, %v2699
      %v2701 = vpop.f32.mrb[0].mxu0
      %2702 = vmatprep.mubr.bf16.mxu0 0
      %2703 = vmatmul.mubr.bf16.gmra.mrb[0].mxu0 %v2561
      %v2704 = vpop.f32.mrb[0].mxu0
      %v2705 = vadd.f32 0.0, %v2704
      %v2706 = vpop.f32.mrb[0].mxu0
      %v2707 = vpop.f32.mrb[0].mxu0
      %v2708 = vadd.f32 0.0, %v2707
      %v2709 = vpop.f32.mrb[0].mxu0
      %2710 = vmatprep.mubr.bf16.mxu0 0
      %2711 = vmatmul.mubr.bf16.gmra.mrb[0].mxu0 %v2564
      %v2712 = vpop.f32.mrb[0].mxu0
      %v2713 = vadd.f32 0.0, %v2712
      %v2714 = vpop.f32.mrb[0].mxu0
      %v2715 = vpop.f32.mrb[0].mxu0
      %v2716 = vadd.f32 0.0, %v2715
      %v2717 = vpop.f32.mrb[0].mxu0
      %2718 = vmatprep.mubr.bf16.mxu0 0
      %2719 = vmatmul.mubr.bf16.gmra.mrb[0].mxu0 %v2567
      %v2720 = vpop.f32.mrb[0].mxu0
      %v2721 = vadd.f32 0.0, %v2720
      %v2722 = vpop.f32.mrb[0].mxu0
      %v2723 = vpop.f32.mrb[0].mxu0
      %v2724 = vadd.f32 0.0, %v2723
      %v2725 = vpop.f32.mrb[0].mxu0
      %2726 = vmatprep.mubr.bf16.mxu0 0
      %2727 = vmatmul.mubr.bf16.gmra.mrb[0].mxu0 %v2570
      %v2728 = vpop.f32.mrb[0].mxu0
      %v2729 = vadd.f32 0.0, %v2728
      %v2730 = vpop.f32.mrb[0].mxu0
      %v2731 = vpop.f32.mrb[0].mxu0
      %v2732 = vadd.f32 0.0, %v2731
      %v2733 = vpop.f32.mrb[0].mxu0
      %2734 = vmatprep.mubr.bf16.mxu0 0
      %2735 = vmatmul.mubr.bf16.gmra.mrb[0].mxu0 %v2573
      %v2736 = vpop.f32.mrb[0].mxu0
      %v2737 = vadd.f32 0.0, %v2736
      %v2738 = vpop.f32.mrb[0].mxu0
      %v2739 = vpop.f32.mrb[0].mxu0
      %v2740 = vadd.f32 0.0, %v2739
      %v2741 = vpop.f32.mrb[0].mxu0
      %2742 = vmatprep.mubr.bf16.mxu0 0
      %2743 = vmatmul.mubr.bf16.gmra.mrb[0].mxu0 %v2576
      %v2744 = vpop.f32.mrb[0].mxu0
      %v2745 = vadd.f32 0.0, %v2744
      %v2746 = vpop.f32.mrb[0].mxu0
      %v2747 = vpop.f32.mrb[0].mxu0
      %v2748 = vadd.f32 0.0, %v2747
      %v2749 = vpop.f32.mrb[0].mxu0
      %2750 = vmatprep.mubr.bf16.mxu0 0
      %2751 = vmatmul.mubr.bf16.gmra.mrb[0].mxu0 %v2579
      %v2752 = vpop.f32.mrb[0].mxu0
      %v2753 = vadd.f32 0.0, %v2752
      %v2754 = vpop.f32.mrb[0].mxu0
      %v2755 = vpop.f32.mrb[0].mxu0
      %v2756 = vadd.f32 0.0, %v2755
      %v2757 = vpop.f32.mrb[0].mxu0
      %2758 = vmatprep.mubr.bf16.mxu0 0
      %2759 = vmatmul.mubr.bf16.gmra.mrb[0].mxu0 %v2582
      %v2760 = vpop.f32.mrb[0].mxu0
      %v2761 = vadd.f32 0.0, %v2760
      %v2762 = vpop.f32.mrb[0].mxu0
      %v2763 = vpop.f32.mrb[0].mxu0
      %v2764 = vadd.f32 0.0, %v2763
      %v2765 = vpop.f32.mrb[0].mxu0
      %2766 = vmatprep.mubr.bf16.mxu0 0
      %2767 = vmatmul.mubr.bf16.gmra.mrb[0].mxu0 %v2585
      %v2768 = vpop.f32.mrb[0].mxu0
      %v2769 = vadd.f32 0.0, %v2768
      %v2770 = vpop.f32.mrb[0].mxu0
      %v2771 = vpop.f32.mrb[0].mxu0
      %v2772 = vadd.f32 0.0, %v2771
      %v2773 = vpop.f32.mrb[0].mxu0
      %2774 = vmatprep.mubr.bf16.mxu0 0
      %2775 = vmatmul.mubr.bf16.gmra.mrb[0].mxu0 %v2588
      %v2776 = vpop.f32.mrb[0].mxu0
      %v2777 = vadd.f32 0.0, %v2776
      %v2778 = vpop.f32.mrb[0].mxu0
      %v2779 = vpop.f32.mrb[0].mxu0
      %v2780 = vadd.f32 0.0, %v2779
      %v2781 = vpop.f32.mrb[0].mxu0
      %2782 = vmatprep.mubr.bf16.mxu0 0
      %2783 = vmatmul.mubr.bf16.gmra.mrb[0].mxu0 %v2591
      %v2784 = vpop.f32.mrb[0].mxu0
      %v2785 = vadd.f32 0.0, %v2784
      %v2786 = vpop.f32.mrb[0].mxu0
      %v2787 = vpop.f32.mrb[0].mxu0
      %v2788 = vadd.f32 0.0, %v2787
      %v2789 = vpop.f32.mrb[0].mxu0
      %2790 = vmatprep.mubr.bf16.mxu0 0
      %2791 = vmatmul.mubr.bf16.gmra.mrb[0].mxu0 %v2594
      %v2792 = vpop.f32.mrb[0].mxu0
      %v2793 = vadd.f32 0.0, %v2792
      %v2794 = vpop.f32.mrb[0].mxu0
      %v2795 = vpop.f32.mrb[0].mxu0
      %v2796 = vadd.f32 0.0, %v2795
      %v2797 = vpop.f32.mrb[0].mxu0
      %2798 = vmatprep.mubr.bf16.mxu0 0
      %2799 = vmatmul.mubr.bf16.gmra.mrb[0].mxu0 %v2597
      %v2800 = vpop.f32.mrb[0].mxu0
      %v2801 = vadd.f32 0.0, %v2800
      %v2802 = vpop.f32.mrb[0].mxu0
      %v2803 = vpop.f32.mrb[0].mxu0
      %v2804 = vadd.f32 0.0, %v2803
      %v2805 = vpop.f32.mrb[0].mxu0
      %2806 = vmatprep.mubr.bf16.mxu0 0
      %2807 = vmatmul.mubr.bf16.gmra.mrb[0].mxu0 %v2600
      %v2808 = vpop.f32.mrb[0].mxu0
      %v2809 = vadd.f32 0.0, %v2808
      %v2810 = vpop.f32.mrb[0].mxu0
      %v2811 = vpop.f32.mrb[0].mxu0
      %v2812 = vadd.f32 0.0, %v2811
      %v2813 = vpop.f32.mrb[0].mxu0
      %2814 = vmatprep.mubr.bf16.mxu0 0
      %2815 = vmatmul.mubr.bf16.gmra.mrb[0].mxu0 %v2603
      %v2816 = vpop.f32.mrb[0].mxu0
      %v2817 = vadd.f32 0.0, %v2816
      %v2818 = vpop.f32.mrb[0].mxu0
      %v2819 = vpop.f32.mrb[0].mxu0
      %v2820 = vadd.f32 0.0, %v2819
      %v2821 = vpop.f32.mrb[0].mxu0
      %2822 = vmatprep.mubr.bf16.mxu0 0
      %2823 = vmatmul.mubr.bf16.gmra.mrb[0].mxu0 %v2606
      %v2824 = vpop.f32.mrb[0].mxu0
      %v2825 = vadd.f32 0.0, %v2824
      %v2826 = vpop.f32.mrb[0].mxu0
      %v2827 = vpop.f32.mrb[0].mxu0
      %v2828 = vadd.f32 0.0, %v2827
      %v2829 = vpop.f32.mrb[0].mxu0
      %2830 = vmatprep.mubr.bf16.mxu0 0
      %2831 = vmatmul.mubr.bf16.gmra.mrb[0].mxu0 %v2609
      %v2832 = vpop.f32.mrb[0].mxu0
      %v2833 = vadd.f32 0.0, %v2832
      %v2834 = vpop.f32.mrb[0].mxu0
      %v2835 = vpop.f32.mrb[0].mxu0
      %v2836 = vadd.f32 0.0, %v2835
      %v2837 = vpop.f32.mrb[0].mxu0
      %2838 = vdwg.mxu0
      %v2839 = vadd.f32 %v2294, %v2649
      %v2840 = vadd.f32 %v2297, %v2652
      %v2841 = vadd.f32 %v2302, %v2657
      %v2842 = vadd.f32 %v2305, %v2660
      %v2843 = vadd.f32 %v2310, %v2665
      %v2844 = vadd.f32 %v2313, %v2668
      %v2845 = vadd.f32 %v2318, %v2673
      %v2846 = vadd.f32 %v2321, %v2676
      %v2847 = vadd.f32 %v2326, %v2681
      %v2848 = vadd.f32 %v2329, %v2684
      %v2849 = vadd.f32 %v2334, %v2689
      %v2850 = vadd.f32 %v2337, %v2692
      %v2851 = vadd.f32 %v2342, %v2697
      %v2852 = vadd.f32 %v2345, %v2700
      %v2853 = vadd.f32 %v2350, %v2705
      %v2854 = vadd.f32 %v2353, %v2708
      %v2855 = vadd.f32 %v2358, %v2713
      %v2856 = vadd.f32 %v2361, %v2716
      %v2857 = vadd.f32 %v2366, %v2721
      %v2858 = vadd.f32 %v2369, %v2724
      %v2859 = vadd.f32 %v2374, %v2729
      %v2860 = vadd.f32 %v2377, %v2732
      %v2861 = vadd.f32 %v2382, %v2737
      %v2862 = vadd.f32 %v2385, %v2740
      %v2863 = vadd.f32 %v2390, %v2745
      %v2864 = vadd.f32 %v2393, %v2748
      %v2865 = vadd.f32 %v2398, %v2753
      %v2866 = vadd.f32 %v2401, %v2756
      %v2867 = vadd.f32 %v2406, %v2761
      %v2868 = vadd.f32 %v2409, %v2764
      %v2869 = vadd.f32 %v2414, %v2769
      %v2870 = vadd.f32 %v2417, %v2772
      %v2871 = vadd.f32 %v2422, %v2777
      %v2872 = vadd.f32 %v2425, %v2780
      %v2873 = vadd.f32 %v2430, %v2785
      %v2874 = vadd.f32 %v2433, %v2788
      %v2875 = vadd.f32 %v2438, %v2793
      %v2876 = vadd.f32 %v2441, %v2796
      %v2877 = vadd.f32 %v2446, %v2801
      %v2878 = vadd.f32 %v2449, %v2804
      %v2879 = vadd.f32 %v2454, %v2809
      %v2880 = vadd.f32 %v2457, %v2812
      %v2881 = vadd.f32 %v2462, %v2817
      %v2882 = vadd.f32 %v2465, %v2820
      %v2883 = vadd.f32 %v2470, %v2825
      %v2884 = vadd.f32 %v2473, %v2828
      %v2885 = vadd.f32 %v2478, %v2833
      %v2886 = vadd.f32 %v2481, %v2836
      %v2887 = vadd.f32 %v1488, %v2839
      %v2888 = vadd.f32 %v1489, %v2840
      %v2889 = vadd.f32 %v1490, %v2841
      %v2890 = vadd.f32 %v1491, %v2842
      %v2891 = vadd.f32 %v1492, %v2843
      %v2892 = vadd.f32 %v1493, %v2844
      %v2893 = vadd.f32 %v1494, %v2845
      %v2894 = vadd.f32 %v1495, %v2846
      %v2895 = vadd.f32 %v1496, %v2847
      %v2896 = vadd.f32 %v1497, %v2848
      %v2897 = vadd.f32 %v1498, %v2849
      %v2898 = vadd.f32 %v1499, %v2850
      %v2899 = vadd.f32 %v1500, %v2851
      %v2900 = vadd.f32 %v1501, %v2852
      %v2901 = vadd.f32 %v1502, %v2853
      %v2902 = vadd.f32 %v1503, %v2854
      %v2903 = vadd.f32 %v1504, %v2855
      %v2904 = vadd.f32 %v1505, %v2856
      %v2905 = vadd.f32 %v1506, %v2857
      %v2906 = vadd.f32 %v1507, %v2858
      %v2907 = vadd.f32 %v1508, %v2859
      %v2908 = vadd.f32 %v1509, %v2860
      %v2909 = vadd.f32 %v1510, %v2861
      %v2910 = vadd.f32 %v1511, %v2862
      %v2911 = vadd.f32 %v1512, %v2863
      %v2912 = vadd.f32 %v1513, %v2864
      %v2913 = vadd.f32 %v1514, %v2865
      %v2914 = vadd.f32 %v1515, %v2866
      %v2915 = vadd.f32 %v1516, %v2867
      %v2916 = vadd.f32 %v1517, %v2868
      %v2917 = vadd.f32 %v1518, %v2869
      %v2918 = vadd.f32 %v1519, %v2870
      %v2919 = vadd.f32 %v1520, %v2871
      %v2920 = vadd.f32 %v1521, %v2872
      %v2921 = vadd.f32 %v1522, %v2873
      %v2922 = vadd.f32 %v1523, %v2874
      %v2923 = vadd.f32 %v1524, %v2875
      %v2924 = vadd.f32 %v1525, %v2876
      %v2925 = vadd.f32 %v1526, %v2877
      %v2926 = vadd.f32 %v1527, %v2878
      %v2927 = vadd.f32 %v1528, %v2879
      %v2928 = vadd.f32 %v1529, %v2880
      %v2929 = vadd.f32 %v1530, %v2881
      %v2930 = vadd.f32 %v1531, %v2882
      %v2931 = vadd.f32 %v1532, %v2883
      %v2932 = vadd.f32 %v1533, %v2884
      %v2933 = vadd.f32 %v1534, %v2885
      %v2934 = vadd.f32 %v1535, %v2886
      %v2935 = vld [vmem:[%s168 + $0x18] sm:$0xf]
      %v2936 = vld [vmem:[%s168 + $0x1c] sm:$0xf]
      %v2937 = vld [vmem:[%s168 + $0x20] sm:$0xf]
      %v2938 = vld [vmem:[%s168 + $0x24] sm:$0xf]
      %v2939 = vld [vmem:[%s168 + $0x28] sm:$0xf]
      %v2940 = vld [vmem:[%s168 + $0x2c] sm:$0xf]
      %v2941 = vld [vmem:[%s168 + $0x30] sm:$0xf]
      %v2942 = vld [vmem:[%s168 + $0x34] sm:$0xf]
      %v2943 = vld [vmem:[%s168 + $0x38] sm:$0xf]
      %v2944 = vld [vmem:[%s168 + $0x3c] sm:$0xf]
      %v2945 = vld [vmem:[%s168 + $0x40] sm:$0xf]
      %v2946 = vld [vmem:[%s168 + $0x44] sm:$0xf]
      %v2947 = vld [vmem:[%s168 + $0x48] sm:$0xf]
      %v2948 = vld [vmem:[%s168 + $0x4c] sm:$0xf]
      %v2949 = vld [vmem:[%s168 + $0x50] sm:$0xf]
      %v2950 = vld [vmem:[%s168 + $0x54] sm:$0xf]
      %v2951 = vld [vmem:[%s168 + $0x58] sm:$0xf]
      %v2952 = vld [vmem:[%s168 + $0x5c] sm:$0xf]
      %v2953 = vld [vmem:[%s168 + $0x60] sm:$0xf]
      %v2954 = vld [vmem:[%s168 + $0x64] sm:$0xf]
      %v2955 = vld [vmem:[%s168 + $0x68] sm:$0xf]
      %v2956 = vld [vmem:[%s168 + $0x6c] sm:$0xf]
      %v2957 = vld [vmem:[%s168 + $0x70] sm:$0xf]
      %v2958 = vld [vmem:[%s168 + $0x74] sm:$0xf]
      %v2959 = vld [vmem:[%s168 + $0x78] sm:$0xf]
      %v2960 = vld [vmem:[%s168 + $0x7c] sm:$0xf]
      %v2961 = vld [vmem:[%s168 + $0x80] sm:$0xf]
      %v2962 = vld [vmem:[%s168 + $0x84] sm:$0xf]
      %v2963 = vld [vmem:[%s168 + $0x88] sm:$0xf]
      %v2964 = vld [vmem:[%s168 + $0x8c] sm:$0xf]
      %v2965 = vld [vmem:[%s168 + $0x90] sm:$0xf]
      %v2966 = vld [vmem:[%s168 + $0x94] sm:$0xf]
      %v2967 = vld [vmem:[%s168 + $0x98] sm:$0xf]
      %v2968 = vld [vmem:[%s168 + $0x9c] sm:$0xf]
      %v2969 = vld [vmem:[%s168 + $0xa0] sm:$0xf]
      %v2970 = vld [vmem:[%s168 + $0xa4] sm:$0xf]
      %v2971 = vld [vmem:[%s168 + $0xa8] sm:$0xf]
      %v2972 = vld [vmem:[%s168 + $0xac] sm:$0xf]
      %v2973 = vld [vmem:[%s168 + $0xb0] sm:$0xf]
      %v2974 = vld [vmem:[%s168 + $0xb4] sm:$0xf]
      %v2975 = vld [vmem:[%s168 + $0xb8] sm:$0xf]
      %v2976 = vld [vmem:[%s168 + $0xbc] sm:$0xf]
      %v2977 = vld [vmem:[%s168 + $0xc0] sm:$0xf]
      %v2978 = vld [vmem:[%s168 + $0xc4] sm:$0xf]
      %v2979 = vld [vmem:[%s168 + $0xc8] sm:$0xf]
      %v2980 = vld [vmem:[%s168 + $0xcc] sm:$0xf]
      %v2981 = vld [vmem:[%s168 + $0xd0] sm:$0xf]
      %v2982 = vld [vmem:[%s168 + $0xd4] sm:$0xf]
      %s2983 = scalar_lea.vmem %s172, 12
      %v2984 = vld [vmem:[%s2983] sm:$0x3]
      %v2985 = vld [vmem:[%s168 + $0xd8] sm:$0x1]
      %s2986 = scalar_lea.vmem %s172, 14
      %v2987 = vld [vmem:[%s2986] sm:$0x3]
      %v3037 = vunpack.c.l.b16 %v2935
      %v3038 = vunpack.c.l.b16 %v2936
      %v3039 = vunpack.c.l.b16 %v2937
      %v3040 = vunpack.c.l.b16 %v2938
      %v3041 = vunpack.c.l.b16 %v2939
      %v3042 = vunpack.c.l.b16 %v2940
      %v3043 = vunpack.c.l.b16 %v2941
      %v3044 = vunpack.c.l.b16 %v2942
      %v3045 = vunpack.c.l.b16 %v2943
      %v3046 = vunpack.c.l.b16 %v2944
      %v3047 = vunpack.c.l.b16 %v2945
      %v3048 = vunpack.c.l.b16 %v2946
      %v3049 = vunpack.c.l.b16 %v2947
      %v3050 = vunpack.c.l.b16 %v2948
      %v3051 = vunpack.c.l.b16 %v2949
      %v3052 = vunpack.c.l.b16 %v2950
      %v3053 = vunpack.c.l.b16 %v2951
      %v3054 = vunpack.c.l.b16 %v2952
      %v3055 = vunpack.c.l.b16 %v2953
      %v3056 = vunpack.c.l.b16 %v2954
      %v3057 = vunpack.c.l.b16 %v2955
      %v3058 = vunpack.c.l.b16 %v2956
      %v3059 = vunpack.c.l.b16 %v2957
      %v3060 = vunpack.c.l.b16 %v2958
      %v3061 = vunpack.c.l.b16 %v2959
      %v3062 = vunpack.c.l.b16 %v2960
      %v3063 = vunpack.c.l.b16 %v2961
      %v3064 = vunpack.c.l.b16 %v2962
      %v3065 = vunpack.c.l.b16 %v2963
      %v3066 = vunpack.c.l.b16 %v2964
      %v3067 = vunpack.c.l.b16 %v2965
      %v3068 = vunpack.c.l.b16 %v2966
      %v3069 = vunpack.c.l.b16 %v2967
      %v3070 = vunpack.c.l.b16 %v2968
      %v3071 = vunpack.c.l.b16 %v2969
      %v3072 = vunpack.c.l.b16 %v2970
      %v3073 = vunpack.c.l.b16 %v2971
      %v3074 = vunpack.c.l.b16 %v2972
      %v3075 = vunpack.c.l.b16 %v2973
      %v3076 = vunpack.c.l.b16 %v2974
      %v3077 = vunpack.c.l.b16 %v2975
      %v3078 = vunpack.c.l.b16 %v2976
      %v3079 = vunpack.c.l.b16 %v2977
      %v3080 = vunpack.c.l.b16 %v2978
      %v3081 = vunpack.c.l.b16 %v2979
      %v3082 = vunpack.c.l.b16 %v2980
      %v3083 = vunpack.c.l.b16 %v2981
      %v3084 = vunpack.c.l.b16 %v2982
      %v3085 = vunpack.c.l.b16 %v2985
      %v3086 = vpack.c.b16 %v3038, %v3037
      %v3087 = vpack.c.b16 %v3040, %v3039
      %v3088 = vpack.c.b16 %v3042, %v3041
      %v3089 = vpack.c.b16 %v3044, %v3043
      %v3090 = vpack.c.b16 %v3046, %v3045
      %v3091 = vpack.c.b16 %v3048, %v3047
      %v3092 = vpack.c.b16 %v3050, %v3049
      %v3093 = vpack.c.b16 %v3052, %v3051
      %v3094 = vpack.c.b16 %v3054, %v3053
      %v3095 = vpack.c.b16 %v3056, %v3055
      %v3096 = vpack.c.b16 %v3058, %v3057
      %v3097 = vpack.c.b16 %v3060, %v3059
      %v3098 = vpack.c.b16 %v3062, %v3061
      %v3099 = vpack.c.b16 %v3064, %v3063
      %v3100 = vpack.c.b16 %v3066, %v3065
      %v3101 = vpack.c.b16 %v3068, %v3067
      %v3102 = vpack.c.b16 %v3070, %v3069
      %v3103 = vpack.c.b16 %v3072, %v3071
      %v3104 = vpack.c.b16 %v3074, %v3073
      %v3105 = vpack.c.b16 %v3076, %v3075
      %v3106 = vpack.c.b16 %v3078, %v3077
      %v3107 = vpack.c.b16 %v3080, %v3079
      %v3108 = vpack.c.b16 %v3082, %v3081
      %v3109 = vpack.c.b16 %v3084, %v3083
      %v3110 = vpack.c.b16 %v3085, %v3085
      %v3112 = vshrl.u32 %v3086, 16
      %v3114 = vshll.u32 %v3086, 16
      %v3116 = vrot.slane %v3114, 1
      %v3117 = vor.u32 %v3112, %v3116
      %v3119 = vshll.u32 %v3087, 16
      %v3121 = vrot.slane %v3119, 1
      %v3122 = vsel %vm357, %v3117, %v3121
      %v3123 = vshrl.u32 %v3087, 16
      %v3125 = vor.u32 %v3123, %v3121
      %v3127 = vshll.u32 %v3088, 16
      %v3129 = vrot.slane %v3127, 1
      %v3130 = vsel %vm357, %v3125, %v3129
      %v3131 = vshrl.u32 %v3088, 16
      %v3133 = vor.u32 %v3131, %v3129
      %v3135 = vshll.u32 %v3089, 16
      %v3137 = vrot.slane %v3135, 1
      %v3138 = vsel %vm357, %v3133, %v3137
      %v3139 = vshrl.u32 %v3089, 16
      %v3141 = vor.u32 %v3139, %v3137
      %v3143 = vshll.u32 %v3090, 16
      %v3145 = vrot.slane %v3143, 1
      %v3146 = vsel %vm357, %v3141, %v3145
      %v3147 = vshrl.u32 %v3090, 16
      %v3149 = vor.u32 %v3147, %v3145
      %v3151 = vshll.u32 %v3091, 16
      %v3153 = vrot.slane %v3151, 1
      %v3154 = vsel %vm357, %v3149, %v3153
      %v3155 = vshrl.u32 %v3091, 16
      %v3157 = vor.u32 %v3155, %v3153
      %v3159 = vshll.u32 %v3092, 16
      %v3161 = vrot.slane %v3159, 1
      %v3162 = vsel %vm357, %v3157, %v3161
      %v3163 = vshrl.u32 %v3092, 16
      %v3165 = vor.u32 %v3163, %v3161
      %v3167 = vshll.u32 %v3093, 16
      %v3169 = vrot.slane %v3167, 1
      %v3170 = vsel %vm357, %v3165, %v3169
      %v3171 = vshrl.u32 %v3093, 16
      %v3173 = vor.u32 %v3171, %v3169
      %v3175 = vshll.u32 %v3094, 16
      %v3177 = vrot.slane %v3175, 1
      %v3178 = vsel %vm357, %v3173, %v3177
      %v3179 = vshrl.u32 %v3094, 16
      %v3181 = vor.u32 %v3179, %v3177
      %v3183 = vshll.u32 %v3095, 16
      %v3185 = vrot.slane %v3183, 1
      %v3186 = vsel %vm357, %v3181, %v3185
      %v3187 = vshrl.u32 %v3095, 16
      %v3189 = vor.u32 %v3187, %v3185
      %v3191 = vshll.u32 %v3096, 16
      %v3193 = vrot.slane %v3191, 1
      %v3194 = vsel %vm357, %v3189, %v3193
      %v3195 = vshrl.u32 %v3096, 16
      %v3197 = vor.u32 %v3195, %v3193
      %v3199 = vshll.u32 %v3097, 16
      %v3201 = vrot.slane %v3199, 1
      %v3202 = vsel %vm357, %v3197, %v3201
      %v3203 = vshrl.u32 %v3097, 16
      %v3205 = vor.u32 %v3203, %v3201
      %v3207 = vshll.u32 %v3098, 16
      %v3209 = vrot.slane %v3207, 1
      %v3210 = vsel %vm357, %v3205, %v3209
      %v3211 = vshrl.u32 %v3098, 16
      %v3213 = vor.u32 %v3211, %v3209
      %v3215 = vshll.u32 %v3099, 16
      %v3217 = vrot.slane %v3215, 1
      %v3218 = vsel %vm357, %v3213, %v3217
      %v3219 = vshrl.u32 %v3099, 16
      %v3221 = vor.u32 %v3219, %v3217
      %v3223 = vshll.u32 %v3100, 16
      %v3225 = vrot.slane %v3223, 1
      %v3226 = vsel %vm357, %v3221, %v3225
      %v3227 = vshrl.u32 %v3100, 16
      %v3229 = vor.u32 %v3227, %v3225
      %v3231 = vshll.u32 %v3101, 16
      %v3233 = vrot.slane %v3231, 1
      %v3234 = vsel %vm357, %v3229, %v3233
      %v3235 = vshrl.u32 %v3101, 16
      %v3237 = vor.u32 %v3235, %v3233
      %v3239 = vshll.u32 %v3102, 16
      %v3241 = vrot.slane %v3239, 1
      %v3242 = vsel %vm357, %v3237, %v3241
      %v3243 = vshrl.u32 %v3102, 16
      %v3245 = vor.u32 %v3243, %v3241
      %v3247 = vshll.u32 %v3103, 16
      %v3249 = vrot.slane %v3247, 1
      %v3250 = vsel %vm357, %v3245, %v3249
      %v3251 = vshrl.u32 %v3103, 16
      %v3253 = vor.u32 %v3251, %v3249
      %v3255 = vshll.u32 %v3104, 16
      %v3257 = vrot.slane %v3255, 1
      %v3258 = vsel %vm357, %v3253, %v3257
      %v3259 = vshrl.u32 %v3104, 16
      %v3261 = vor.u32 %v3259, %v3257
      %v3263 = vshll.u32 %v3105, 16
      %v3265 = vrot.slane %v3263, 1
      %v3266 = vsel %vm357, %v3261, %v3265
      %v3267 = vshrl.u32 %v3105, 16
      %v3269 = vor.u32 %v3267, %v3265
      %v3271 = vshll.u32 %v3106, 16
      %v3273 = vrot.slane %v3271, 1
      %v3274 = vsel %vm357, %v3269, %v3273
      %v3275 = vshrl.u32 %v3106, 16
      %v3277 = vor.u32 %v3275, %v3273
      %v3279 = vshll.u32 %v3107, 16
      %v3281 = vrot.slane %v3279, 1
      %v3282 = vsel %vm357, %v3277, %v3281
      %v3283 = vshrl.u32 %v3107, 16
      %v3285 = vor.u32 %v3283, %v3281
      %v3287 = vshll.u32 %v3108, 16
      %v3289 = vrot.slane %v3287, 1
      %v3290 = vsel %vm357, %v3285, %v3289
      %v3291 = vshrl.u32 %v3108, 16
      %v3293 = vor.u32 %v3291, %v3289
      %v3295 = vshll.u32 %v3109, 16
      %v3297 = vrot.slane %v3295, 1
      %v3298 = vsel %vm357, %v3293, %v3297
      %v3299 = vshrl.u32 %v3109, 16
      %v3301 = vor.u32 %v3299, %v3297
      %v3303 = vshll.u32 %v3110, 16
      %v3305 = vrot.slane %v3303, 1
      %v3306 = vsel %vm357, %v3301, %v3305
      %v3308 = vsel %vm554, %v3122, 0
      %v3311 = vsel %vm554, %v3130, 0
      %v3314 = vsel %vm554, %v3138, 0
      %v3317 = vsel %vm554, %v3146, 0
      %v3320 = vsel %vm554, %v3154, 0
      %v3323 = vsel %vm554, %v3162, 0
      %v3326 = vsel %vm554, %v3170, 0
      %v3329 = vsel %vm554, %v3178, 0
      %v3332 = vsel %vm554, %v3186, 0
      %v3335 = vsel %vm554, %v3194, 0
      %v3338 = vsel %vm554, %v3202, 0
      %v3341 = vsel %vm554, %v3210, 0
      %v3344 = vsel %vm554, %v3218, 0
      %v3347 = vsel %vm554, %v3226, 0
      %v3350 = vsel %vm554, %v3234, 0
      %v3353 = vsel %vm554, %v3242, 0
      %v3356 = vsel %vm554, %v3250, 0
      %v3359 = vsel %vm554, %v3258, 0
      %v3362 = vsel %vm554, %v3266, 0
      %v3365 = vsel %vm554, %v3274, 0
      %v3368 = vsel %vm554, %v3282, 0
      %v3371 = vsel %vm554, %v3290, 0
      %v3374 = vsel %vm554, %v3298, 0
      %v3377 = vsel %vm554, %v3306, 0
      %v3380 = vsel %vm627, %v2987, 0
      %3382 = vmatprep.subr.bf16.mxu0 0
      %3383 = vmatpush1.bf16.msra.mxu0 %v3380
      %3384 = vmatprep.subr.bf16.mxu0 0
      %3385 = vmatpush1.bf16.msra.mxu0 0
      %3386 = vmatprep.subr.bf16.mxu0 0
      %3387 = vmatpush1.bf16.msra.mxu0 0
      %3388 = vmatprep.subr.bf16.mxu0 0
      %3389 = vmatpush1.bf16.msra.mxu0 0
      %3390 = vmatprep.subr.bf16.mxu0 0
      %3391 = vmatpush1.bf16.msra.mxu0 0
      %3392 = vmatprep.subr.bf16.mxu0 0
      %3393 = vmatpush1.bf16.msra.mxu0 0
      %3394 = vmatprep.subr.bf16.mxu0 0
      %3395 = vmatpush1.bf16.msra.mxu0 0
      %3396 = vmatprep.subr.bf16.mxu0 0
      %3397 = vmatpush1.bf16.msra.mxu0 0
      %3398 = vmatprep.subr.bf16.mxu0 0
      %3399 = vmatpush1.bf16.msra.mxu0 0
      %3400 = vmatprep.subr.bf16.mxu0 0
      %3401 = vmatpush1.bf16.msra.mxu0 0
      %3402 = vmatprep.subr.bf16.mxu0 0
      %3403 = vmatpush1.bf16.msra.mxu0 0
      %3404 = vmatprep.subr.bf16.mxu0 0
      %3405 = vmatpush1.bf16.msra.mxu0 0
      %3406 = vmatprep.subr.bf16.mxu0 0
      %3407 = vmatpush1.bf16.msra.mxu0 0
      %3408 = vmatprep.subr.bf16.mxu0 0
      %3409 = vmatpush1.bf16.msra.mxu0 0
      %3410 = vmatprep.subr.bf16.mxu0 0
      %3411 = vmatpush1.bf16.msra.mxu0 0
      %3412 = vmatprep.subr.bf16.mxu0 0
      %3413 = vmatpush1.bf16.msra.mxu0 0
      %3414 = vmatprep.mubr.bf16.mxu0 0
      %3415 = vmatmul.mubr.bf16.gmra.mrb[0].mxu0 %v3308
      %v3416 = vpop.f32.mrb[0].mxu0
      %v3417 = vadd.f32 0.0, %v3416
      %v3418 = vpop.f32.mrb[0].mxu0
      %v3419 = vpop.f32.mrb[0].mxu0
      %v3420 = vadd.f32 0.0, %v3419
      %v3421 = vpop.f32.mrb[0].mxu0
      %3422 = vmatprep.mubr.bf16.mxu0 0
      %3423 = vmatmul.mubr.bf16.gmra.mrb[0].mxu0 %v3311
      %v3424 = vpop.f32.mrb[0].mxu0
      %v3425 = vadd.f32 0.0, %v3424
      %v3426 = vpop.f32.mrb[0].mxu0
      %v3427 = vpop.f32.mrb[0].mxu0
      %v3428 = vadd.f32 0.0, %v3427
      %v3429 = vpop.f32.mrb[0].mxu0
      %3430 = vmatprep.mubr.bf16.mxu0 0
      %3431 = vmatmul.mubr.bf16.gmra.mrb[0].mxu0 %v3314
      %v3432 = vpop.f32.mrb[0].mxu0
      %v3433 = vadd.f32 0.0, %v3432
      %v3434 = vpop.f32.mrb[0].mxu0
      %v3435 = vpop.f32.mrb[0].mxu0
      %v3436 = vadd.f32 0.0, %v3435
      %v3437 = vpop.f32.mrb[0].mxu0
      %3438 = vmatprep.mubr.bf16.mxu0 0
      %3439 = vmatmul.mubr.bf16.gmra.mrb[0].mxu0 %v3317
      %v3440 = vpop.f32.mrb[0].mxu0
      %v3441 = vadd.f32 0.0, %v3440
      %v3442 = vpop.f32.mrb[0].mxu0
      %v3443 = vpop.f32.mrb[0].mxu0
      %v3444 = vadd.f32 0.0, %v3443
      %v3445 = vpop.f32.mrb[0].mxu0
      %3446 = vmatprep.mubr.bf16.mxu0 0
      %3447 = vmatmul.mubr.bf16.gmra.mrb[0].mxu0 %v3320
      %v3448 = vpop.f32.mrb[0].mxu0
      %v3449 = vadd.f32 0.0, %v3448
      %v3450 = vpop.f32.mrb[0].mxu0
      %v3451 = vpop.f32.mrb[0].mxu0
      %v3452 = vadd.f32 0.0, %v3451
      %v3453 = vpop.f32.mrb[0].mxu0
      %3454 = vmatprep.mubr.bf16.mxu0 0
      %3455 = vmatmul.mubr.bf16.gmra.mrb[0].mxu0 %v3323
      %v3456 = vpop.f32.mrb[0].mxu0
      %v3457 = vadd.f32 0.0, %v3456
      %v3458 = vpop.f32.mrb[0].mxu0
      %v3459 = vpop.f32.mrb[0].mxu0
      %v3460 = vadd.f32 0.0, %v3459
      %v3461 = vpop.f32.mrb[0].mxu0
      %3462 = vmatprep.mubr.bf16.mxu0 0
      %3463 = vmatmul.mubr.bf16.gmra.mrb[0].mxu0 %v3326
      %v3464 = vpop.f32.mrb[0].mxu0
      %v3465 = vadd.f32 0.0, %v3464
      %v3466 = vpop.f32.mrb[0].mxu0
      %v3467 = vpop.f32.mrb[0].mxu0
      %v3468 = vadd.f32 0.0, %v3467
      %v3469 = vpop.f32.mrb[0].mxu0
      %3470 = vmatprep.mubr.bf16.mxu0 0
      %3471 = vmatmul.mubr.bf16.gmra.mrb[0].mxu0 %v3329
      %v3472 = vpop.f32.mrb[0].mxu0
      %v3473 = vadd.f32 0.0, %v3472
      %v3474 = vpop.f32.mrb[0].mxu0
      %v3475 = vpop.f32.mrb[0].mxu0
      %v3476 = vadd.f32 0.0, %v3475
      %v3477 = vpop.f32.mrb[0].mxu0
      %3478 = vmatprep.mubr.bf16.mxu0 0
      %3479 = vmatmul.mubr.bf16.gmra.mrb[0].mxu0 %v3332
      %v3480 = vpop.f32.mrb[0].mxu0
      %v3481 = vadd.f32 0.0, %v3480
      %v3482 = vpop.f32.mrb[0].mxu0
      %v3483 = vpop.f32.mrb[0].mxu0
      %v3484 = vadd.f32 0.0, %v3483
      %v3485 = vpop.f32.mrb[0].mxu0
      %3486 = vmatprep.mubr.bf16.mxu0 0
      %3487 = vmatmul.mubr.bf16.gmra.mrb[0].mxu0 %v3335
      %v3488 = vpop.f32.mrb[0].mxu0
      %v3489 = vadd.f32 0.0, %v3488
      %v3490 = vpop.f32.mrb[0].mxu0
      %v3491 = vpop.f32.mrb[0].mxu0
      %v3492 = vadd.f32 0.0, %v3491
      %v3493 = vpop.f32.mrb[0].mxu0
      %3494 = vmatprep.mubr.bf16.mxu0 0
      %3495 = vmatmul.mubr.bf16.gmra.mrb[0].mxu0 %v3338
      %v3496 = vpop.f32.mrb[0].mxu0
      %v3497 = vadd.f32 0.0, %v3496
      %v3498 = vpop.f32.mrb[0].mxu0
      %v3499 = vpop.f32.mrb[0].mxu0
      %v3500 = vadd.f32 0.0, %v3499
      %v3501 = vpop.f32.mrb[0].mxu0
      %3502 = vmatprep.mubr.bf16.mxu0 0
      %3503 = vmatmul.mubr.bf16.gmra.mrb[0].mxu0 %v3341
      %v3504 = vpop.f32.mrb[0].mxu0
      %v3505 = vadd.f32 0.0, %v3504
      %v3506 = vpop.f32.mrb[0].mxu0
      %v3507 = vpop.f32.mrb[0].mxu0
      %v3508 = vadd.f32 0.0, %v3507
      %v3509 = vpop.f32.mrb[0].mxu0
      %3510 = vmatprep.mubr.bf16.mxu0 0
      %3511 = vmatmul.mubr.bf16.gmra.mrb[0].mxu0 %v3344
      %v3512 = vpop.f32.mrb[0].mxu0
      %v3513 = vadd.f32 0.0, %v3512
      %v3514 = vpop.f32.mrb[0].mxu0
      %v3515 = vpop.f32.mrb[0].mxu0
      %v3516 = vadd.f32 0.0, %v3515
      %v3517 = vpop.f32.mrb[0].mxu0
      %3518 = vmatprep.mubr.bf16.mxu0 0
      %3519 = vmatmul.mubr.bf16.gmra.mrb[0].mxu0 %v3347
      %v3520 = vpop.f32.mrb[0].mxu0
      %v3521 = vadd.f32 0.0, %v3520
      %v3522 = vpop.f32.mrb[0].mxu0
      %v3523 = vpop.f32.mrb[0].mxu0
      %v3524 = vadd.f32 0.0, %v3523
      %v3525 = vpop.f32.mrb[0].mxu0
      %3526 = vmatprep.mubr.bf16.mxu0 0
      %3527 = vmatmul.mubr.bf16.gmra.mrb[0].mxu0 %v3350
      %v3528 = vpop.f32.mrb[0].mxu0
      %v3529 = vadd.f32 0.0, %v3528
      %v3530 = vpop.f32.mrb[0].mxu0
      %v3531 = vpop.f32.mrb[0].mxu0
      %v3532 = vadd.f32 0.0, %v3531
      %v3533 = vpop.f32.mrb[0].mxu0
      %3534 = vmatprep.mubr.bf16.mxu0 0
      %3535 = vmatmul.mubr.bf16.gmra.mrb[0].mxu0 %v3353
      %v3536 = vpop.f32.mrb[0].mxu0
      %v3537 = vadd.f32 0.0, %v3536
      %v3538 = vpop.f32.mrb[0].mxu0
      %v3539 = vpop.f32.mrb[0].mxu0
      %v3540 = vadd.f32 0.0, %v3539
      %v3541 = vpop.f32.mrb[0].mxu0
      %3542 = vmatprep.mubr.bf16.mxu0 0
      %3543 = vmatmul.mubr.bf16.gmra.mrb[0].mxu0 %v3356
      %v3544 = vpop.f32.mrb[0].mxu0
      %v3545 = vadd.f32 0.0, %v3544
      %v3546 = vpop.f32.mrb[0].mxu0
      %v3547 = vpop.f32.mrb[0].mxu0
      %v3548 = vadd.f32 0.0, %v3547
      %v3549 = vpop.f32.mrb[0].mxu0
      %3550 = vmatprep.mubr.bf16.mxu0 0
      %3551 = vmatmul.mubr.bf16.gmra.mrb[0].mxu0 %v3359
      %v3552 = vpop.f32.mrb[0].mxu0
      %v3553 = vadd.f32 0.0, %v3552
      %v3554 = vpop.f32.mrb[0].mxu0
      %v3555 = vpop.f32.mrb[0].mxu0
      %v3556 = vadd.f32 0.0, %v3555
      %v3557 = vpop.f32.mrb[0].mxu0
      %3558 = vmatprep.mubr.bf16.mxu0 0
      %3559 = vmatmul.mubr.bf16.gmra.mrb[0].mxu0 %v3362
      %v3560 = vpop.f32.mrb[0].mxu0
      %v3561 = vadd.f32 0.0, %v3560
      %v3562 = vpop.f32.mrb[0].mxu0
      %v3563 = vpop.f32.mrb[0].mxu0
      %v3564 = vadd.f32 0.0, %v3563
      %v3565 = vpop.f32.mrb[0].mxu0
      %3566 = vmatprep.mubr.bf16.mxu0 0
      %3567 = vmatmul.mubr.bf16.gmra.mrb[0].mxu0 %v3365
      %v3568 = vpop.f32.mrb[0].mxu0
      %v3569 = vadd.f32 0.0, %v3568
      %v3570 = vpop.f32.mrb[0].mxu0
      %v3571 = vpop.f32.mrb[0].mxu0
      %v3572 = vadd.f32 0.0, %v3571
      %v3573 = vpop.f32.mrb[0].mxu0
      %3574 = vmatprep.mubr.bf16.mxu0 0
      %3575 = vmatmul.mubr.bf16.gmra.mrb[0].mxu0 %v3368
      %v3576 = vpop.f32.mrb[0].mxu0
      %v3577 = vadd.f32 0.0, %v3576
      %v3578 = vpop.f32.mrb[0].mxu0
      %v3579 = vpop.f32.mrb[0].mxu0
      %v3580 = vadd.f32 0.0, %v3579
      %v3581 = vpop.f32.mrb[0].mxu0
      %3582 = vmatprep.mubr.bf16.mxu0 0
      %3583 = vmatmul.mubr.bf16.gmra.mrb[0].mxu0 %v3371
      %v3584 = vpop.f32.mrb[0].mxu0
      %v3585 = vadd.f32 0.0, %v3584
      %v3586 = vpop.f32.mrb[0].mxu0
      %v3587 = vpop.f32.mrb[0].mxu0
      %v3588 = vadd.f32 0.0, %v3587
      %v3589 = vpop.f32.mrb[0].mxu0
      %3590 = vmatprep.mubr.bf16.mxu0 0
      %3591 = vmatmul.mubr.bf16.gmra.mrb[0].mxu0 %v3374
      %v3592 = vpop.f32.mrb[0].mxu0
      %v3593 = vadd.f32 0.0, %v3592
      %v3594 = vpop.f32.mrb[0].mxu0
      %v3595 = vpop.f32.mrb[0].mxu0
      %v3596 = vadd.f32 0.0, %v3595
      %v3597 = vpop.f32.mrb[0].mxu0
      %3598 = vmatprep.mubr.bf16.mxu0 0
      %3599 = vmatmul.mubr.bf16.gmra.mrb[0].mxu0 %v3377
      %v3600 = vpop.f32.mrb[0].mxu0
      %v3601 = vadd.f32 0.0, %v3600
      %v3602 = vpop.f32.mrb[0].mxu0
      %v3603 = vpop.f32.mrb[0].mxu0
      %v3604 = vadd.f32 0.0, %v3603
      %v3605 = vpop.f32.mrb[0].mxu0
      %3606 = vdwg.mxu0
      %v3607 = vsel %vm554, %v3086, 0
      %v3609 = vsel %vm554, %v3087, 0
      %v3611 = vsel %vm554, %v3088, 0
      %v3613 = vsel %vm554, %v3089, 0
      %v3615 = vsel %vm554, %v3090, 0
      %v3617 = vsel %vm554, %v3091, 0
      %v3619 = vsel %vm554, %v3092, 0
      %v3621 = vsel %vm554, %v3093, 0
      %v3623 = vsel %vm554, %v3094, 0
      %v3625 = vsel %vm554, %v3095, 0
      %v3627 = vsel %vm554, %v3096, 0
      %v3629 = vsel %vm554, %v3097, 0
      %v3631 = vsel %vm554, %v3098, 0
      %v3633 = vsel %vm554, %v3099, 0
      %v3635 = vsel %vm554, %v3100, 0
      %v3637 = vsel %vm554, %v3101, 0
      %v3639 = vsel %vm554, %v3102, 0
      %v3641 = vsel %vm554, %v3103, 0
      %v3643 = vsel %vm554, %v3104, 0
      %v3645 = vsel %vm554, %v3105, 0
      %v3647 = vsel %vm554, %v3106, 0
      %v3649 = vsel %vm554, %v3107, 0
      %v3651 = vsel %vm554, %v3108, 0
      %v3653 = vsel %vm554, %v3109, 0
      %v3656 = vsel %vm627, %v2984, 0
      %3658 = vmatprep.subr.bf16.mxu0 0
      %3659 = vmatpush1.bf16.msra.mxu0 %v3656
      %3660 = vmatprep.subr.bf16.mxu0 0
      %3661 = vmatpush1.bf16.msra.mxu0 0
      %3662 = vmatprep.subr.bf16.mxu0 0
      %3663 = vmatpush1.bf16.msra.mxu0 0
      %3664 = vmatprep.subr.bf16.mxu0 0
      %3665 = vmatpush1.bf16.msra.mxu0 0
      %3666 = vmatprep.subr.bf16.mxu0 0
      %3667 = vmatpush1.bf16.msra.mxu0 0
      %3668 = vmatprep.subr.bf16.mxu0 0
      %3669 = vmatpush1.bf16.msra.mxu0 0
      %3670 = vmatprep.subr.bf16.mxu0 0
      %3671 = vmatpush1.bf16.msra.mxu0 0
      %3672 = vmatprep.subr.bf16.mxu0 0
      %3673 = vmatpush1.bf16.msra.mxu0 0
      %3674 = vmatprep.subr.bf16.mxu0 0
      %3675 = vmatpush1.bf16.msra.mxu0 0
      %3676 = vmatprep.subr.bf16.mxu0 0
      %3677 = vmatpush1.bf16.msra.mxu0 0
      %3678 = vmatprep.subr.bf16.mxu0 0
      %3679 = vmatpush1.bf16.msra.mxu0 0
      %3680 = vmatprep.subr.bf16.mxu0 0
      %3681 = vmatpush1.bf16.msra.mxu0 0
      %3682 = vmatprep.subr.bf16.mxu0 0
      %3683 = vmatpush1.bf16.msra.mxu0 0
      %3684 = vmatprep.subr.bf16.mxu0 0
      %3685 = vmatpush1.bf16.msra.mxu0 0
      %3686 = vmatprep.subr.bf16.mxu0 0
      %3687 = vmatpush1.bf16.msra.mxu0 0
      %3688 = vmatprep.subr.bf16.mxu0 0
      %3689 = vmatpush1.bf16.msra.mxu0 0
      %3690 = vmatprep.mubr.bf16.mxu0 0
      %3691 = vmatmul.mubr.bf16.gmra.mrb[0].mxu0 %v3607
      %v3692 = vpop.f32.mrb[0].mxu0
      %v3693 = vadd.f32 %v3417, %v3692
      %v3694 = vpop.f32.mrb[0].mxu0
      %v3695 = vpop.f32.mrb[0].mxu0
      %v3696 = vadd.f32 %v3420, %v3695
      %v3697 = vpop.f32.mrb[0].mxu0
      %3698 = vmatprep.mubr.bf16.mxu0 0
      %3699 = vmatmul.mubr.bf16.gmra.mrb[0].mxu0 %v3609
      %v3700 = vpop.f32.mrb[0].mxu0
      %v3701 = vadd.f32 %v3425, %v3700
      %v3702 = vpop.f32.mrb[0].mxu0
      %v3703 = vpop.f32.mrb[0].mxu0
      %v3704 = vadd.f32 %v3428, %v3703
      %v3705 = vpop.f32.mrb[0].mxu0
      %3706 = vmatprep.mubr.bf16.mxu0 0
      %3707 = vmatmul.mubr.bf16.gmra.mrb[0].mxu0 %v3611
      %v3708 = vpop.f32.mrb[0].mxu0
      %v3709 = vadd.f32 %v3433, %v3708
      %v3710 = vpop.f32.mrb[0].mxu0
      %v3711 = vpop.f32.mrb[0].mxu0
      %v3712 = vadd.f32 %v3436, %v3711
      %v3713 = vpop.f32.mrb[0].mxu0
      %3714 = vmatprep.mubr.bf16.mxu0 0
      %3715 = vmatmul.mubr.bf16.gmra.mrb[0].mxu0 %v3613
      %v3716 = vpop.f32.mrb[0].mxu0
      %v3717 = vadd.f32 %v3441, %v3716
      %v3718 = vpop.f32.mrb[0].mxu0
      %v3719 = vpop.f32.mrb[0].mxu0
      %v3720 = vadd.f32 %v3444, %v3719
      %v3721 = vpop.f32.mrb[0].mxu0
      %3722 = vmatprep.mubr.bf16.mxu0 0
      %3723 = vmatmul.mubr.bf16.gmra.mrb[0].mxu0 %v3615
      %v3724 = vpop.f32.mrb[0].mxu0
      %v3725 = vadd.f32 %v3449, %v3724
      %v3726 = vpop.f32.mrb[0].mxu0
      %v3727 = vpop.f32.mrb[0].mxu0
      %v3728 = vadd.f32 %v3452, %v3727
      %v3729 = vpop.f32.mrb[0].mxu0
      %3730 = vmatprep.mubr.bf16.mxu0 0
      %3731 = vmatmul.mubr.bf16.gmra.mrb[0].mxu0 %v3617
      %v3732 = vpop.f32.mrb[0].mxu0
      %v3733 = vadd.f32 %v3457, %v3732
      %v3734 = vpop.f32.mrb[0].mxu0
      %v3735 = vpop.f32.mrb[0].mxu0
      %v3736 = vadd.f32 %v3460, %v3735
      %v3737 = vpop.f32.mrb[0].mxu0
      %3738 = vmatprep.mubr.bf16.mxu0 0
      %3739 = vmatmul.mubr.bf16.gmra.mrb[0].mxu0 %v3619
      %v3740 = vpop.f32.mrb[0].mxu0
      %v3741 = vadd.f32 %v3465, %v3740
      %v3742 = vpop.f32.mrb[0].mxu0
      %v3743 = vpop.f32.mrb[0].mxu0
      %v3744 = vadd.f32 %v3468, %v3743
      %v3745 = vpop.f32.mrb[0].mxu0
      %3746 = vmatprep.mubr.bf16.mxu0 0
      %3747 = vmatmul.mubr.bf16.gmra.mrb[0].mxu0 %v3621
      %v3748 = vpop.f32.mrb[0].mxu0
      %v3749 = vadd.f32 %v3473, %v3748
      %v3750 = vpop.f32.mrb[0].mxu0
      %v3751 = vpop.f32.mrb[0].mxu0
      %v3752 = vadd.f32 %v3476, %v3751
      %v3753 = vpop.f32.mrb[0].mxu0
      %3754 = vmatprep.mubr.bf16.mxu0 0
      %3755 = vmatmul.mubr.bf16.gmra.mrb[0].mxu0 %v3623
      %v3756 = vpop.f32.mrb[0].mxu0
      %v3757 = vadd.f32 %v3481, %v3756
      %v3758 = vpop.f32.mrb[0].mxu0
      %v3759 = vpop.f32.mrb[0].mxu0
      %v3760 = vadd.f32 %v3484, %v3759
      %v3761 = vpop.f32.mrb[0].mxu0
      %3762 = vmatprep.mubr.bf16.mxu0 0
      %3763 = vmatmul.mubr.bf16.gmra.mrb[0].mxu0 %v3625
      %v3764 = vpop.f32.mrb[0].mxu0
      %v3765 = vadd.f32 %v3489, %v3764
      %v3766 = vpop.f32.mrb[0].mxu0
      %v3767 = vpop.f32.mrb[0].mxu0
      %v3768 = vadd.f32 %v3492, %v3767
      %v3769 = vpop.f32.mrb[0].mxu0
      %3770 = vmatprep.mubr.bf16.mxu0 0
      %3771 = vmatmul.mubr.bf16.gmra.mrb[0].mxu0 %v3627
      %v3772 = vpop.f32.mrb[0].mxu0
      %v3773 = vadd.f32 %v3497, %v3772
      %v3774 = vpop.f32.mrb[0].mxu0
      %v3775 = vpop.f32.mrb[0].mxu0
      %v3776 = vadd.f32 %v3500, %v3775
      %v3777 = vpop.f32.mrb[0].mxu0
      %3778 = vmatprep.mubr.bf16.mxu0 0
      %3779 = vmatmul.mubr.bf16.gmra.mrb[0].mxu0 %v3629
      %v3780 = vpop.f32.mrb[0].mxu0
      %v3781 = vadd.f32 %v3505, %v3780
      %v3782 = vpop.f32.mrb[0].mxu0
      %v3783 = vpop.f32.mrb[0].mxu0
      %v3784 = vadd.f32 %v3508, %v3783
      %v3785 = vpop.f32.mrb[0].mxu0
      %3786 = vmatprep.mubr.bf16.mxu0 0
      %3787 = vmatmul.mubr.bf16.gmra.mrb[0].mxu0 %v3631
      %v3788 = vpop.f32.mrb[0].mxu0
      %v3789 = vadd.f32 %v3513, %v3788
      %v3790 = vpop.f32.mrb[0].mxu0
      %v3791 = vpop.f32.mrb[0].mxu0
      %v3792 = vadd.f32 %v3516, %v3791
      %v3793 = vpop.f32.mrb[0].mxu0
      %3794 = vmatprep.mubr.bf16.mxu0 0
      %3795 = vmatmul.mubr.bf16.gmra.mrb[0].mxu0 %v3633
      %v3796 = vpop.f32.mrb[0].mxu0
      %v3797 = vadd.f32 %v3521, %v3796
      %v3798 = vpop.f32.mrb[0].mxu0
      %v3799 = vpop.f32.mrb[0].mxu0
      %v3800 = vadd.f32 %v3524, %v3799
      %v3801 = vpop.f32.mrb[0].mxu0
      %3802 = vmatprep.mubr.bf16.mxu0 0
      %3803 = vmatmul.mubr.bf16.gmra.mrb[0].mxu0 %v3635
      %v3804 = vpop.f32.mrb[0].mxu0
      %v3805 = vadd.f32 %v3529, %v3804
      %v3806 = vpop.f32.mrb[0].mxu0
      %v3807 = vpop.f32.mrb[0].mxu0
      %v3808 = vadd.f32 %v3532, %v3807
      %v3809 = vpop.f32.mrb[0].mxu0
      %3810 = vmatprep.mubr.bf16.mxu0 0
      %3811 = vmatmul.mubr.bf16.gmra.mrb[0].mxu0 %v3637
      %v3812 = vpop.f32.mrb[0].mxu0
      %v3813 = vadd.f32 %v3537, %v3812
      %v3814 = vpop.f32.mrb[0].mxu0
      %v3815 = vpop.f32.mrb[0].mxu0
      %v3816 = vadd.f32 %v3540, %v3815
      %v3817 = vpop.f32.mrb[0].mxu0
      %3818 = vmatprep.mubr.bf16.mxu0 0
      %3819 = vmatmul.mubr.bf16.gmra.mrb[0].mxu0 %v3639
      %v3820 = vpop.f32.mrb[0].mxu0
      %v3821 = vadd.f32 %v3545, %v3820
      %v3822 = vpop.f32.mrb[0].mxu0
      %v3823 = vpop.f32.mrb[0].mxu0
      %v3824 = vadd.f32 %v3548, %v3823
      %v3825 = vpop.f32.mrb[0].mxu0
      %3826 = vmatprep.mubr.bf16.mxu0 0
      %3827 = vmatmul.mubr.bf16.gmra.mrb[0].mxu0 %v3641
      %v3828 = vpop.f32.mrb[0].mxu0
      %v3829 = vadd.f32 %v3553, %v3828
      %v3830 = vpop.f32.mrb[0].mxu0
      %v3831 = vpop.f32.mrb[0].mxu0
      %v3832 = vadd.f32 %v3556, %v3831
      %v3833 = vpop.f32.mrb[0].mxu0
      %3834 = vmatprep.mubr.bf16.mxu0 0
      %3835 = vmatmul.mubr.bf16.gmra.mrb[0].mxu0 %v3643
      %v3836 = vpop.f32.mrb[0].mxu0
      %v3837 = vadd.f32 %v3561, %v3836
      %v3838 = vpop.f32.mrb[0].mxu0
      %v3839 = vpop.f32.mrb[0].mxu0
      %v3840 = vadd.f32 %v3564, %v3839
      %v3841 = vpop.f32.mrb[0].mxu0
      %3842 = vmatprep.mubr.bf16.mxu0 0
      %3843 = vmatmul.mubr.bf16.gmra.mrb[0].mxu0 %v3645
      %v3844 = vpop.f32.mrb[0].mxu0
      %v3845 = vadd.f32 %v3569, %v3844
      %v3846 = vpop.f32.mrb[0].mxu0
      %v3847 = vpop.f32.mrb[0].mxu0
      %v3848 = vadd.f32 %v3572, %v3847
      %v3849 = vpop.f32.mrb[0].mxu0
      %3850 = vmatprep.mubr.bf16.mxu0 0
      %3851 = vmatmul.mubr.bf16.gmra.mrb[0].mxu0 %v3647
      %v3852 = vpop.f32.mrb[0].mxu0
      %v3853 = vadd.f32 %v3577, %v3852
      %v3854 = vpop.f32.mrb[0].mxu0
      %v3855 = vpop.f32.mrb[0].mxu0
      %v3856 = vadd.f32 %v3580, %v3855
      %v3857 = vpop.f32.mrb[0].mxu0
      %3858 = vmatprep.mubr.bf16.mxu0 0
      %3859 = vmatmul.mubr.bf16.gmra.mrb[0].mxu0 %v3649
      %v3860 = vpop.f32.mrb[0].mxu0
      %v3861 = vadd.f32 %v3585, %v3860
      %v3862 = vpop.f32.mrb[0].mxu0
      %v3863 = vpop.f32.mrb[0].mxu0
      %v3864 = vadd.f32 %v3588, %v3863
      %v3865 = vpop.f32.mrb[0].mxu0
      %3866 = vmatprep.mubr.bf16.mxu0 0
      %3867 = vmatmul.mubr.bf16.gmra.mrb[0].mxu0 %v3651
      %v3868 = vpop.f32.mrb[0].mxu0
      %v3869 = vadd.f32 %v3593, %v3868
      %v3870 = vpop.f32.mrb[0].mxu0
      %v3871 = vpop.f32.mrb[0].mxu0
      %v3872 = vadd.f32 %v3596, %v3871
      %v3873 = vpop.f32.mrb[0].mxu0
      %3874 = vmatprep.mubr.bf16.mxu0 0
      %3875 = vmatmul.mubr.bf16.gmra.mrb[0].mxu0 %v3653
      %v3876 = vpop.f32.mrb[0].mxu0
      %v3877 = vadd.f32 %v3601, %v3876
      %v3878 = vpop.f32.mrb[0].mxu0
      %v3879 = vpop.f32.mrb[0].mxu0
      %v3880 = vadd.f32 %v3604, %v3879
      %v3881 = vpop.f32.mrb[0].mxu0
      %3882 = vdwg.mxu0
      %v3883 = vld [vmem:[%s168 + $0x18] sm:$0xe]
      %s3884 = scalar_lea.vmem %s172, 16
      %v3885 = vld [vmem:[%s3884] sm:$0x3]
      %v3887 = vunpack.c.l.b16 %v3883
      %v3888 = vpack.c.b16 %v3038, %v3887
      %v3889 = vrot.slane %v3888, 1
      %v3890 = vrot.slane %v3087, 1
      %v3891 = vsel %vm1138, %v3889, %v3890
      %v3892 = vrot.slane %v3088, 1
      %v3893 = vsel %vm1138, %v3890, %v3892
      %v3894 = vrot.slane %v3089, 1
      %v3895 = vsel %vm1138, %v3892, %v3894
      %v3896 = vrot.slane %v3090, 1
      %v3897 = vsel %vm1138, %v3894, %v3896
      %v3898 = vrot.slane %v3091, 1
      %v3899 = vsel %vm1138, %v3896, %v3898
      %v3900 = vrot.slane %v3092, 1
      %v3901 = vsel %vm1138, %v3898, %v3900
      %v3902 = vrot.slane %v3093, 1
      %v3903 = vsel %vm1138, %v3900, %v3902
      %v3904 = vrot.slane %v3094, 1
      %v3905 = vsel %vm1138, %v3902, %v3904
      %v3906 = vrot.slane %v3095, 1
      %v3907 = vsel %vm1138, %v3904, %v3906
      %v3908 = vrot.slane %v3096, 1
      %v3909 = vsel %vm1138, %v3906, %v3908
      %v3910 = vrot.slane %v3097, 1
      %v3911 = vsel %vm1138, %v3908, %v3910
      %v3912 = vrot.slane %v3098, 1
      %v3913 = vsel %vm1138, %v3910, %v3912
      %v3914 = vrot.slane %v3099, 1
      %v3915 = vsel %vm1138, %v3912, %v3914
      %v3916 = vrot.slane %v3100, 1
      %v3917 = vsel %vm1138, %v3914, %v3916
      %v3918 = vrot.slane %v3101, 1
      %v3919 = vsel %vm1138, %v3916, %v3918
      %v3920 = vrot.slane %v3102, 1
      %v3921 = vsel %vm1138, %v3918, %v3920
      %v3922 = vrot.slane %v3103, 1
      %v3923 = vsel %vm1138, %v3920, %v3922
      %v3924 = vrot.slane %v3104, 1
      %v3925 = vsel %vm1138, %v3922, %v3924
      %v3926 = vrot.slane %v3105, 1
      %v3927 = vsel %vm1138, %v3924, %v3926
      %v3928 = vrot.slane %v3106, 1
      %v3929 = vsel %vm1138, %v3926, %v3928
      %v3930 = vrot.slane %v3107, 1
      %v3931 = vsel %vm1138, %v3928, %v3930
      %v3932 = vrot.slane %v3108, 1
      %v3933 = vsel %vm1138, %v3930, %v3932
      %v3934 = vrot.slane %v3109, 1
      %v3935 = vsel %vm1138, %v3932, %v3934
      %v3936 = vrot.slane %v3110, 1
      %v3937 = vsel %vm1138, %v3934, %v3936
      %v3939 = vsel %vm554, %v3891, 0
      %v3942 = vsel %vm554, %v3893, 0
      %v3945 = vsel %vm554, %v3895, 0
      %v3948 = vsel %vm554, %v3897, 0
      %v3951 = vsel %vm554, %v3899, 0
      %v3954 = vsel %vm554, %v3901, 0
      %v3957 = vsel %vm554, %v3903, 0
      %v3960 = vsel %vm554, %v3905, 0
      %v3963 = vsel %vm554, %v3907, 0
      %v3966 = vsel %vm554, %v3909, 0
      %v3969 = vsel %vm554, %v3911, 0
      %v3972 = vsel %vm554, %v3913, 0
      %v3975 = vsel %vm554, %v3915, 0
      %v3978 = vsel %vm554, %v3917, 0
      %v3981 = vsel %vm554, %v3919, 0
      %v3984 = vsel %vm554, %v3921, 0
      %v3987 = vsel %vm554, %v3923, 0
      %v3990 = vsel %vm554, %v3925, 0
      %v3993 = vsel %vm554, %v3927, 0
      %v3996 = vsel %vm554, %v3929, 0
      %v3999 = vsel %vm554, %v3931, 0
      %v4002 = vsel %vm554, %v3933, 0
      %v4005 = vsel %vm554, %v3935, 0
      %v4008 = vsel %vm554, %v3937, 0
      %v4011 = vsel %vm627, %v3885, 0
      %4013 = vmatprep.subr.bf16.mxu0 0
      %4014 = vmatpush1.bf16.msra.mxu0 %v4011
      %4015 = vmatprep.subr.bf16.mxu0 0
      %4016 = vmatpush1.bf16.msra.mxu0 0
      %4017 = vmatprep.subr.bf16.mxu0 0
      %4018 = vmatpush1.bf16.msra.mxu0 0
      %4019 = vmatprep.subr.bf16.mxu0 0
      %4020 = vmatpush1.bf16.msra.mxu0 0
      %4021 = vmatprep.subr.bf16.mxu0 0
      %4022 = vmatpush1.bf16.msra.mxu0 0
      %4023 = vmatprep.subr.bf16.mxu0 0
      %4024 = vmatpush1.bf16.msra.mxu0 0
      %4025 = vmatprep.subr.bf16.mxu0 0
      %4026 = vmatpush1.bf16.msra.mxu0 0
      %4027 = vmatprep.subr.bf16.mxu0 0
      %4028 = vmatpush1.bf16.msra.mxu0 0
      %4029 = vmatprep.subr.bf16.mxu0 0
      %4030 = vmatpush1.bf16.msra.mxu0 0
      %4031 = vmatprep.subr.bf16.mxu0 0
      %4032 = vmatpush1.bf16.msra.mxu0 0
      %4033 = vmatprep.subr.bf16.mxu0 0
      %4034 = vmatpush1.bf16.msra.mxu0 0
      %4035 = vmatprep.subr.bf16.mxu0 0
      %4036 = vmatpush1.bf16.msra.mxu0 0
      %4037 = vmatprep.subr.bf16.mxu0 0
      %4038 = vmatpush1.bf16.msra.mxu0 0
      %4039 = vmatprep.subr.bf16.mxu0 0
      %4040 = vmatpush1.bf16.msra.mxu0 0
      %4041 = vmatprep.subr.bf16.mxu0 0
      %4042 = vmatpush1.bf16.msra.mxu0 0
      %4043 = vmatprep.subr.bf16.mxu0 0
      %4044 = vmatpush1.bf16.msra.mxu0 0
      %4045 = vmatprep.mubr.bf16.mxu0 0
      %4046 = vmatmul.mubr.bf16.gmra.mrb[0].mxu0 %v3939
      %v4047 = vpop.f32.mrb[0].mxu0
      %v4048 = vadd.f32 0.0, %v4047
      %v4049 = vpop.f32.mrb[0].mxu0
      %v4050 = vpop.f32.mrb[0].mxu0
      %v4051 = vadd.f32 0.0, %v4050
      %v4052 = vpop.f32.mrb[0].mxu0
      %4053 = vmatprep.mubr.bf16.mxu0 0
      %4054 = vmatmul.mubr.bf16.gmra.mrb[0].mxu0 %v3942
      %v4055 = vpop.f32.mrb[0].mxu0
      %v4056 = vadd.f32 0.0, %v4055
      %v4057 = vpop.f32.mrb[0].mxu0
      %v4058 = vpop.f32.mrb[0].mxu0
      %v4059 = vadd.f32 0.0, %v4058
      %v4060 = vpop.f32.mrb[0].mxu0
      %4061 = vmatprep.mubr.bf16.mxu0 0
      %4062 = vmatmul.mubr.bf16.gmra.mrb[0].mxu0 %v3945
      %v4063 = vpop.f32.mrb[0].mxu0
      %v4064 = vadd.f32 0.0, %v4063
      %v4065 = vpop.f32.mrb[0].mxu0
      %v4066 = vpop.f32.mrb[0].mxu0
      %v4067 = vadd.f32 0.0, %v4066
      %v4068 = vpop.f32.mrb[0].mxu0
      %4069 = vmatprep.mubr.bf16.mxu0 0
      %4070 = vmatmul.mubr.bf16.gmra.mrb[0].mxu0 %v3948
      %v4071 = vpop.f32.mrb[0].mxu0
      %v4072 = vadd.f32 0.0, %v4071
      %v4073 = vpop.f32.mrb[0].mxu0
      %v4074 = vpop.f32.mrb[0].mxu0
      %v4075 = vadd.f32 0.0, %v4074
      %v4076 = vpop.f32.mrb[0].mxu0
      %4077 = vmatprep.mubr.bf16.mxu0 0
      %4078 = vmatmul.mubr.bf16.gmra.mrb[0].mxu0 %v3951
      %v4079 = vpop.f32.mrb[0].mxu0
      %v4080 = vadd.f32 0.0, %v4079
      %v4081 = vpop.f32.mrb[0].mxu0
      %v4082 = vpop.f32.mrb[0].mxu0
      %v4083 = vadd.f32 0.0, %v4082
      %v4084 = vpop.f32.mrb[0].mxu0
      %4085 = vmatprep.mubr.bf16.mxu0 0
      %4086 = vmatmul.mubr.bf16.gmra.mrb[0].mxu0 %v3954
      %v4087 = vpop.f32.mrb[0].mxu0
      %v4088 = vadd.f32 0.0, %v4087
      %v4089 = vpop.f32.mrb[0].mxu0
      %v4090 = vpop.f32.mrb[0].mxu0
      %v4091 = vadd.f32 0.0, %v4090
      %v4092 = vpop.f32.mrb[0].mxu0
      %4093 = vmatprep.mubr.bf16.mxu0 0
      %4094 = vmatmul.mubr.bf16.gmra.mrb[0].mxu0 %v3957
      %v4095 = vpop.f32.mrb[0].mxu0
      %v4096 = vadd.f32 0.0, %v4095
      %v4097 = vpop.f32.mrb[0].mxu0
      %v4098 = vpop.f32.mrb[0].mxu0
      %v4099 = vadd.f32 0.0, %v4098
      %v4100 = vpop.f32.mrb[0].mxu0
      %4101 = vmatprep.mubr.bf16.mxu0 0
      %4102 = vmatmul.mubr.bf16.gmra.mrb[0].mxu0 %v3960
      %v4103 = vpop.f32.mrb[0].mxu0
      %v4104 = vadd.f32 0.0, %v4103
      %v4105 = vpop.f32.mrb[0].mxu0
      %v4106 = vpop.f32.mrb[0].mxu0
      %v4107 = vadd.f32 0.0, %v4106
      %v4108 = vpop.f32.mrb[0].mxu0
      %4109 = vmatprep.mubr.bf16.mxu0 0
      %4110 = vmatmul.mubr.bf16.gmra.mrb[0].mxu0 %v3963
      %v4111 = vpop.f32.mrb[0].mxu0
      %v4112 = vadd.f32 0.0, %v4111
      %v4113 = vpop.f32.mrb[0].mxu0
      %v4114 = vpop.f32.mrb[0].mxu0
      %v4115 = vadd.f32 0.0, %v4114
      %v4116 = vpop.f32.mrb[0].mxu0
      %4117 = vmatprep.mubr.bf16.mxu0 0
      %4118 = vmatmul.mubr.bf16.gmra.mrb[0].mxu0 %v3966
      %v4119 = vpop.f32.mrb[0].mxu0
      %v4120 = vadd.f32 0.0, %v4119
      %v4121 = vpop.f32.mrb[0].mxu0
      %v4122 = vpop.f32.mrb[0].mxu0
      %v4123 = vadd.f32 0.0, %v4122
      %v4124 = vpop.f32.mrb[0].mxu0
      %4125 = vmatprep.mubr.bf16.mxu0 0
      %4126 = vmatmul.mubr.bf16.gmra.mrb[0].mxu0 %v3969
      %v4127 = vpop.f32.mrb[0].mxu0
      %v4128 = vadd.f32 0.0, %v4127
      %v4129 = vpop.f32.mrb[0].mxu0
      %v4130 = vpop.f32.mrb[0].mxu0
      %v4131 = vadd.f32 0.0, %v4130
      %v4132 = vpop.f32.mrb[0].mxu0
      %4133 = vmatprep.mubr.bf16.mxu0 0
      %4134 = vmatmul.mubr.bf16.gmra.mrb[0].mxu0 %v3972
      %v4135 = vpop.f32.mrb[0].mxu0
      %v4136 = vadd.f32 0.0, %v4135
      %v4137 = vpop.f32.mrb[0].mxu0
      %v4138 = vpop.f32.mrb[0].mxu0
      %v4139 = vadd.f32 0.0, %v4138
      %v4140 = vpop.f32.mrb[0].mxu0
      %4141 = vmatprep.mubr.bf16.mxu0 0
      %4142 = vmatmul.mubr.bf16.gmra.mrb[0].mxu0 %v3975
      %v4143 = vpop.f32.mrb[0].mxu0
      %v4144 = vadd.f32 0.0, %v4143
      %v4145 = vpop.f32.mrb[0].mxu0
      %v4146 = vpop.f32.mrb[0].mxu0
      %v4147 = vadd.f32 0.0, %v4146
      %v4148 = vpop.f32.mrb[0].mxu0
      %4149 = vmatprep.mubr.bf16.mxu0 0
      %4150 = vmatmul.mubr.bf16.gmra.mrb[0].mxu0 %v3978
      %v4151 = vpop.f32.mrb[0].mxu0
      %v4152 = vadd.f32 0.0, %v4151
      %v4153 = vpop.f32.mrb[0].mxu0
      %v4154 = vpop.f32.mrb[0].mxu0
      %v4155 = vadd.f32 0.0, %v4154
      %v4156 = vpop.f32.mrb[0].mxu0
      %4157 = vmatprep.mubr.bf16.mxu0 0
      %4158 = vmatmul.mubr.bf16.gmra.mrb[0].mxu0 %v3981
      %v4159 = vpop.f32.mrb[0].mxu0
      %v4160 = vadd.f32 0.0, %v4159
      %v4161 = vpop.f32.mrb[0].mxu0
      %v4162 = vpop.f32.mrb[0].mxu0
      %v4163 = vadd.f32 0.0, %v4162
      %v4164 = vpop.f32.mrb[0].mxu0
      %4165 = vmatprep.mubr.bf16.mxu0 0
      %4166 = vmatmul.mubr.bf16.gmra.mrb[0].mxu0 %v3984
      %v4167 = vpop.f32.mrb[0].mxu0
      %v4168 = vadd.f32 0.0, %v4167
      %v4169 = vpop.f32.mrb[0].mxu0
      %v4170 = vpop.f32.mrb[0].mxu0
      %v4171 = vadd.f32 0.0, %v4170
      %v4172 = vpop.f32.mrb[0].mxu0
      %4173 = vmatprep.mubr.bf16.mxu0 0
      %4174 = vmatmul.mubr.bf16.gmra.mrb[0].mxu0 %v3987
      %v4175 = vpop.f32.mrb[0].mxu0
      %v4176 = vadd.f32 0.0, %v4175
      %v4177 = vpop.f32.mrb[0].mxu0
      %v4178 = vpop.f32.mrb[0].mxu0
      %v4179 = vadd.f32 0.0, %v4178
      %v4180 = vpop.f32.mrb[0].mxu0
      %4181 = vmatprep.mubr.bf16.mxu0 0
      %4182 = vmatmul.mubr.bf16.gmra.mrb[0].mxu0 %v3990
      %v4183 = vpop.f32.mrb[0].mxu0
      %v4184 = vadd.f32 0.0, %v4183
      %v4185 = vpop.f32.mrb[0].mxu0
      %v4186 = vpop.f32.mrb[0].mxu0
      %v4187 = vadd.f32 0.0, %v4186
      %v4188 = vpop.f32.mrb[0].mxu0
      %4189 = vmatprep.mubr.bf16.mxu0 0
      %4190 = vmatmul.mubr.bf16.gmra.mrb[0].mxu0 %v3993
      %v4191 = vpop.f32.mrb[0].mxu0
      %v4192 = vadd.f32 0.0, %v4191
      %v4193 = vpop.f32.mrb[0].mxu0
      %v4194 = vpop.f32.mrb[0].mxu0
      %v4195 = vadd.f32 0.0, %v4194
      %v4196 = vpop.f32.mrb[0].mxu0
      %4197 = vmatprep.mubr.bf16.mxu0 0
      %4198 = vmatmul.mubr.bf16.gmra.mrb[0].mxu0 %v3996
      %v4199 = vpop.f32.mrb[0].mxu0
      %v4200 = vadd.f32 0.0, %v4199
      %v4201 = vpop.f32.mrb[0].mxu0
      %v4202 = vpop.f32.mrb[0].mxu0
      %v4203 = vadd.f32 0.0, %v4202
      %v4204 = vpop.f32.mrb[0].mxu0
      %4205 = vmatprep.mubr.bf16.mxu0 0
      %4206 = vmatmul.mubr.bf16.gmra.mrb[0].mxu0 %v3999
      %v4207 = vpop.f32.mrb[0].mxu0
      %v4208 = vadd.f32 0.0, %v4207
      %v4209 = vpop.f32.mrb[0].mxu0
      %v4210 = vpop.f32.mrb[0].mxu0
      %v4211 = vadd.f32 0.0, %v4210
      %v4212 = vpop.f32.mrb[0].mxu0
      %4213 = vmatprep.mubr.bf16.mxu0 0
      %4214 = vmatmul.mubr.bf16.gmra.mrb[0].mxu0 %v4002
      %v4215 = vpop.f32.mrb[0].mxu0
      %v4216 = vadd.f32 0.0, %v4215
      %v4217 = vpop.f32.mrb[0].mxu0
      %v4218 = vpop.f32.mrb[0].mxu0
      %v4219 = vadd.f32 0.0, %v4218
      %v4220 = vpop.f32.mrb[0].mxu0
      %4221 = vmatprep.mubr.bf16.mxu0 0
      %4222 = vmatmul.mubr.bf16.gmra.mrb[0].mxu0 %v4005
      %v4223 = vpop.f32.mrb[0].mxu0
      %v4224 = vadd.f32 0.0, %v4223
      %v4225 = vpop.f32.mrb[0].mxu0
      %v4226 = vpop.f32.mrb[0].mxu0
      %v4227 = vadd.f32 0.0, %v4226
      %v4228 = vpop.f32.mrb[0].mxu0
      %4229 = vmatprep.mubr.bf16.mxu0 0
      %4230 = vmatmul.mubr.bf16.gmra.mrb[0].mxu0 %v4008
      %v4231 = vpop.f32.mrb[0].mxu0
      %v4232 = vadd.f32 0.0, %v4231
      %v4233 = vpop.f32.mrb[0].mxu0
      %v4234 = vpop.f32.mrb[0].mxu0
      %v4235 = vadd.f32 0.0, %v4234
      %v4236 = vpop.f32.mrb[0].mxu0
      %4237 = vdwg.mxu0
      %v4238 = vadd.f32 %v3693, %v4048
      %v4239 = vadd.f32 %v3696, %v4051
      %v4240 = vadd.f32 %v3701, %v4056
      %v4241 = vadd.f32 %v3704, %v4059
      %v4242 = vadd.f32 %v3709, %v4064
      %v4243 = vadd.f32 %v3712, %v4067
      %v4244 = vadd.f32 %v3717, %v4072
      %v4245 = vadd.f32 %v3720, %v4075
      %v4246 = vadd.f32 %v3725, %v4080
      %v4247 = vadd.f32 %v3728, %v4083
      %v4248 = vadd.f32 %v3733, %v4088
      %v4249 = vadd.f32 %v3736, %v4091
      %v4250 = vadd.f32 %v3741, %v4096
      %v4251 = vadd.f32 %v3744, %v4099
      %v4252 = vadd.f32 %v3749, %v4104
      %v4253 = vadd.f32 %v3752, %v4107
      %v4254 = vadd.f32 %v3757, %v4112
      %v4255 = vadd.f32 %v3760, %v4115
      %v4256 = vadd.f32 %v3765, %v4120
      %v4257 = vadd.f32 %v3768, %v4123
      %v4258 = vadd.f32 %v3773, %v4128
      %v4259 = vadd.f32 %v3776, %v4131
      %v4260 = vadd.f32 %v3781, %v4136
      %v4261 = vadd.f32 %v3784, %v4139
      %v4262 = vadd.f32 %v3789, %v4144
      %v4263 = vadd.f32 %v3792, %v4147
      %v4264 = vadd.f32 %v3797, %v4152
      %v4265 = vadd.f32 %v3800, %v4155
      %v4266 = vadd.f32 %v3805, %v4160
      %v4267 = vadd.f32 %v3808, %v4163
      %v4268 = vadd.f32 %v3813, %v4168
      %v4269 = vadd.f32 %v3816, %v4171
      %v4270 = vadd.f32 %v3821, %v4176
      %v4271 = vadd.f32 %v3824, %v4179
      %v4272 = vadd.f32 %v3829, %v4184
      %v4273 = vadd.f32 %v3832, %v4187
      %v4274 = vadd.f32 %v3837, %v4192
      %v4275 = vadd.f32 %v3840, %v4195
      %v4276 = vadd.f32 %v3845, %v4200
      %v4277 = vadd.f32 %v3848, %v4203
      %v4278 = vadd.f32 %v3853, %v4208
      %v4279 = vadd.f32 %v3856, %v4211
      %v4280 = vadd.f32 %v3861, %v4216
      %v4281 = vadd.f32 %v3864, %v4219
      %v4282 = vadd.f32 %v3869, %v4224
      %v4283 = vadd.f32 %v3872, %v4227
      %v4284 = vadd.f32 %v3877, %v4232
      %v4285 = vadd.f32 %v3880, %v4235
      %v4286 = vadd.f32 %v2887, %v4238
      %v4287 = vadd.f32 %v2888, %v4239
      %v4288 = vadd.f32 %v2889, %v4240
      %v4289 = vadd.f32 %v2890, %v4241
      %v4290 = vadd.f32 %v2891, %v4242
      %v4291 = vadd.f32 %v2892, %v4243
      %v4292 = vadd.f32 %v2893, %v4244
      %v4293 = vadd.f32 %v2894, %v4245
      %v4294 = vadd.f32 %v2895, %v4246
      %v4295 = vadd.f32 %v2896, %v4247
      %v4296 = vadd.f32 %v2897, %v4248
      %v4297 = vadd.f32 %v2898, %v4249
      %v4298 = vadd.f32 %v2899, %v4250
      %v4299 = vadd.f32 %v2900, %v4251
      %v4300 = vadd.f32 %v2901, %v4252
      %v4301 = vadd.f32 %v2902, %v4253
      %v4302 = vadd.f32 %v2903, %v4254
      %v4303 = vadd.f32 %v2904, %v4255
      %v4304 = vadd.f32 %v2905, %v4256
      %v4305 = vadd.f32 %v2906, %v4257
      %v4306 = vadd.f32 %v2907, %v4258
      %v4307 = vadd.f32 %v2908, %v4259
      %v4308 = vadd.f32 %v2909, %v4260
      %v4309 = vadd.f32 %v2910, %v4261
      %v4310 = vadd.f32 %v2911, %v4262
      %v4311 = vadd.f32 %v2912, %v4263
      %v4312 = vadd.f32 %v2913, %v4264
      %v4313 = vadd.f32 %v2914, %v4265
      %v4314 = vadd.f32 %v2915, %v4266
      %v4315 = vadd.f32 %v2916, %v4267
      %v4316 = vadd.f32 %v2917, %v4268
      %v4317 = vadd.f32 %v2918, %v4269
      %v4318 = vadd.f32 %v2919, %v4270
      %v4319 = vadd.f32 %v2920, %v4271
      %v4320 = vadd.f32 %v2921, %v4272
      %v4321 = vadd.f32 %v2922, %v4273
      %v4322 = vadd.f32 %v2923, %v4274
      %v4323 = vadd.f32 %v2924, %v4275
      %v4324 = vadd.f32 %v2925, %v4276
      %v4325 = vadd.f32 %v2926, %v4277
      %v4326 = vadd.f32 %v2927, %v4278
      %v4327 = vadd.f32 %v2928, %v4279
      %v4328 = vadd.f32 %v2929, %v4280
      %v4329 = vadd.f32 %v2930, %v4281
      %v4330 = vadd.f32 %v2931, %v4282
      %v4331 = vadd.f32 %v2932, %v4283
      %v4332 = vadd.f32 %v2933, %v4284
      %v4333 = vadd.f32 %v2934, %v4285
      %v4334 = vmax.f32 %v4286, 0.0
      %v4335 = vmax.f32 %v4287, 0.0
      %v4336 = vmax.f32 %v4288, 0.0
      %v4337 = vmax.f32 %v4289, 0.0
      %v4338 = vmax.f32 %v4290, 0.0
      %v4339 = vmax.f32 %v4291, 0.0
      %v4340 = vmax.f32 %v4292, 0.0
      %v4341 = vmax.f32 %v4293, 0.0
      %v4342 = vmax.f32 %v4294, 0.0
      %v4343 = vmax.f32 %v4295, 0.0
      %v4344 = vmax.f32 %v4296, 0.0
      %v4345 = vmax.f32 %v4297, 0.0
      %v4346 = vmax.f32 %v4298, 0.0
      %v4347 = vmax.f32 %v4299, 0.0
      %v4348 = vmax.f32 %v4300, 0.0
      %v4349 = vmax.f32 %v4301, 0.0
      %v4350 = vmax.f32 %v4302, 0.0
      %v4351 = vmax.f32 %v4303, 0.0
      %v4352 = vmax.f32 %v4304, 0.0
      %v4353 = vmax.f32 %v4305, 0.0
      %v4354 = vmax.f32 %v4306, 0.0
      %v4355 = vmax.f32 %v4307, 0.0
      %v4356 = vmax.f32 %v4308, 0.0
      %v4357 = vmax.f32 %v4309, 0.0
      %v4358 = vmax.f32 %v4310, 0.0
      %v4359 = vmax.f32 %v4311, 0.0
      %v4360 = vmax.f32 %v4312, 0.0
      %v4361 = vmax.f32 %v4313, 0.0
      %v4362 = vmax.f32 %v4314, 0.0
      %v4363 = vmax.f32 %v4315, 0.0
      %v4364 = vmax.f32 %v4316, 0.0
      %v4365 = vmax.f32 %v4317, 0.0
      %v4366 = vmax.f32 %v4318, 0.0
      %v4367 = vmax.f32 %v4319, 0.0
      %v4368 = vmax.f32 %v4320, 0.0
      %v4369 = vmax.f32 %v4321, 0.0
      %v4370 = vmax.f32 %v4322, 0.0
      %v4371 = vmax.f32 %v4323, 0.0
      %v4372 = vmax.f32 %v4324, 0.0
      %v4373 = vmax.f32 %v4325, 0.0
      %v4374 = vmax.f32 %v4326, 0.0
      %v4375 = vmax.f32 %v4327, 0.0
      %v4376 = vmax.f32 %v4328, 0.0
      %v4377 = vmax.f32 %v4329, 0.0
      %v4378 = vmax.f32 %v4330, 0.0
      %v4379 = vmax.f32 %v4331, 0.0
      %v4380 = vmax.f32 %v4332, 0.0
      %v4381 = vmax.f32 %v4333, 0.0
      %v4382 = vpack.c.bf16 %v4335, %v4334
      %v4383 = vpack.c.bf16 %v4337, %v4336
      %v4384 = vpack.c.bf16 %v4339, %v4338
      %v4385 = vpack.c.bf16 %v4341, %v4340
      %v4386 = vpack.c.bf16 %v4343, %v4342
      %v4387 = vpack.c.bf16 %v4345, %v4344
      %v4388 = vpack.c.bf16 %v4347, %v4346
      %v4389 = vpack.c.bf16 %v4349, %v4348
      %v4390 = vpack.c.bf16 %v4351, %v4350
      %v4391 = vpack.c.bf16 %v4353, %v4352
      %v4392 = vpack.c.bf16 %v4355, %v4354
      %v4393 = vpack.c.bf16 %v4357, %v4356
      %v4394 = vpack.c.bf16 %v4359, %v4358
      %v4395 = vpack.c.bf16 %v4361, %v4360
      %v4396 = vpack.c.bf16 %v4363, %v4362
      %v4397 = vpack.c.bf16 %v4365, %v4364
      %v4398 = vpack.c.bf16 %v4367, %v4366
      %v4399 = vpack.c.bf16 %v4369, %v4368
      %v4400 = vpack.c.bf16 %v4371, %v4370
      %v4401 = vpack.c.bf16 %v4373, %v4372
      %v4402 = vpack.c.bf16 %v4375, %v4374
      %v4403 = vpack.c.bf16 %v4377, %v4376
      %v4404 = vpack.c.bf16 %v4379, %v4378
      %v4405 = vpack.c.bf16 %v4381, %v4380
      %v4430 = vunpack.c.l.b16 %v4382
      %v4431 = vunpack.c.h.b16 %v4382
      %v4432 = vunpack.c.l.b16 %v4383
      %v4433 = vunpack.c.h.b16 %v4383
      %v4434 = vunpack.c.l.b16 %v4384
      %v4435 = vunpack.c.h.b16 %v4384
      %v4436 = vunpack.c.l.b16 %v4385
      %v4437 = vunpack.c.h.b16 %v4385
      %v4438 = vunpack.c.l.b16 %v4386
      %v4439 = vunpack.c.h.b16 %v4386
      %v4440 = vunpack.c.l.b16 %v4387
      %v4441 = vunpack.c.h.b16 %v4387
      %v4442 = vunpack.c.l.b16 %v4388
      %v4443 = vunpack.c.h.b16 %v4388
      %v4444 = vunpack.c.l.b16 %v4389
      %v4445 = vunpack.c.h.b16 %v4389
      %v4446 = vunpack.c.l.b16 %v4390
      %v4447 = vunpack.c.h.b16 %v4390
      %v4448 = vunpack.c.l.b16 %v4391
      %v4449 = vunpack.c.h.b16 %v4391
      %v4450 = vunpack.c.l.b16 %v4392
      %v4451 = vunpack.c.h.b16 %v4392
      %v4452 = vunpack.c.l.b16 %v4393
      %v4453 = vunpack.c.h.b16 %v4393
      %v4454 = vunpack.c.l.b16 %v4394
      %v4455 = vunpack.c.h.b16 %v4394
      %v4456 = vunpack.c.l.b16 %v4395
      %v4457 = vunpack.c.h.b16 %v4395
      %v4458 = vunpack.c.l.b16 %v4396
      %v4459 = vunpack.c.h.b16 %v4396
      %v4460 = vunpack.c.l.b16 %v4397
      %v4461 = vunpack.c.h.b16 %v4397
      %v4462 = vunpack.c.l.b16 %v4398
      %v4463 = vunpack.c.h.b16 %v4398
      %v4464 = vunpack.c.l.b16 %v4399
      %v4465 = vunpack.c.h.b16 %v4399
      %v4466 = vunpack.c.l.b16 %v4400
      %v4467 = vunpack.c.h.b16 %v4400
      %v4468 = vunpack.c.l.b16 %v4401
      %v4469 = vunpack.c.h.b16 %v4401
      %v4470 = vunpack.c.l.b16 %v4402
      %v4471 = vunpack.c.h.b16 %v4402
      %v4472 = vunpack.c.l.b16 %v4403
      %v4473 = vunpack.c.h.b16 %v4403
      %v4474 = vunpack.c.l.b16 %v4404
      %v4475 = vunpack.c.h.b16 %v4404
      %v4476 = vunpack.c.l.b16 %v4405
      %v4477 = vunpack.c.h.b16 %v4405
      %v4478 = vpack.c.b16 %v4430, %v4430
      %v4479 = vpack.c.b16 %v4431, %v4431
      %v4480 = vpack.c.b16 %v4432, %v4432
      %v4481 = vpack.c.b16 %v4433, %v4433
      %v4482 = vpack.c.b16 %v4434, %v4434
      %v4483 = vpack.c.b16 %v4435, %v4435
      %v4484 = vpack.c.b16 %v4436, %v4436
      %v4485 = vpack.c.b16 %v4437, %v4437
      %v4486 = vpack.c.b16 %v4438, %v4438
      %v4487 = vpack.c.b16 %v4439, %v4439
      %v4488 = vpack.c.b16 %v4440, %v4440
      %v4489 = vpack.c.b16 %v4441, %v4441
      %v4490 = vpack.c.b16 %v4442, %v4442
      %v4491 = vpack.c.b16 %v4443, %v4443
      %v4492 = vpack.c.b16 %v4444, %v4444
      %v4493 = vpack.c.b16 %v4445, %v4445
      %v4494 = vpack.c.b16 %v4446, %v4446
      %v4495 = vpack.c.b16 %v4447, %v4447
      %v4496 = vpack.c.b16 %v4448, %v4448
      %v4497 = vpack.c.b16 %v4449, %v4449
      %v4498 = vpack.c.b16 %v4450, %v4450
      %v4499 = vpack.c.b16 %v4451, %v4451
      %v4500 = vpack.c.b16 %v4452, %v4452
      %v4501 = vpack.c.b16 %v4453, %v4453
      %v4502 = vpack.c.b16 %v4454, %v4454
      %v4503 = vpack.c.b16 %v4455, %v4455
      %v4504 = vpack.c.b16 %v4456, %v4456
      %v4505 = vpack.c.b16 %v4457, %v4457
      %v4506 = vpack.c.b16 %v4458, %v4458
      %v4507 = vpack.c.b16 %v4459, %v4459
      %v4508 = vpack.c.b16 %v4460, %v4460
      %v4509 = vpack.c.b16 %v4461, %v4461
      %v4510 = vpack.c.b16 %v4462, %v4462
      %v4511 = vpack.c.b16 %v4463, %v4463
      %v4512 = vpack.c.b16 %v4464, %v4464
      %v4513 = vpack.c.b16 %v4465, %v4465
      %v4514 = vpack.c.b16 %v4466, %v4466
      %v4515 = vpack.c.b16 %v4467, %v4467
      %v4516 = vpack.c.b16 %v4468, %v4468
      %v4517 = vpack.c.b16 %v4469, %v4469
      %v4518 = vpack.c.b16 %v4470, %v4470
      %v4519 = vpack.c.b16 %v4471, %v4471
      %v4520 = vpack.c.b16 %v4472, %v4472
      %v4521 = vpack.c.b16 %v4473, %v4473
      %v4522 = vpack.c.b16 %v4474, %v4474
      %v4523 = vpack.c.b16 %v4475, %v4475
      %v4524 = vpack.c.b16 %v4476, %v4476
      %v4525 = vpack.c.b16 %v4477, %v4477
      %vm4574 = vcmask 27648
      %4575 = vst.msk [vmem:[%s180] sm:$0xf] %vm4574, %v4478
      %4576 = vst.msk [vmem:[%s180 + $0x4] sm:$0xf] %vm4574, %v4479
      %4577 = vst.msk [vmem:[%s180 + $0x8] sm:$0xf] %vm4574, %v4480
      %4578 = vst.msk [vmem:[%s180 + $0xc] sm:$0xf] %vm4574, %v4481
      %4579 = vst.msk [vmem:[%s180 + $0x10] sm:$0xf] %vm4574, %v4482
      %4580 = vst.msk [vmem:[%s180 + $0x14] sm:$0xf] %vm4574, %v4483
      %4581 = vst.msk [vmem:[%s180 + $0x18] sm:$0xf] %vm4574, %v4484
      %4582 = vst.msk [vmem:[%s180 + $0x1c] sm:$0xf] %vm4574, %v4485
      %4583 = vst.msk [vmem:[%s180 + $0x20] sm:$0xf] %vm4574, %v4486
      %4584 = vst.msk [vmem:[%s180 + $0x24] sm:$0xf] %vm4574, %v4487
      %4585 = vst.msk [vmem:[%s180 + $0x28] sm:$0xf] %vm4574, %v4488
      %4586 = vst.msk [vmem:[%s180 + $0x2c] sm:$0xf] %vm4574, %v4489
      %4587 = vst.msk [vmem:[%s180 + $0x30] sm:$0xf] %vm4574, %v4490
      %4588 = vst.msk [vmem:[%s180 + $0x34] sm:$0xf] %vm4574, %v4491
      %4589 = vst.msk [vmem:[%s180 + $0x38] sm:$0xf] %vm4574, %v4492
      %4590 = vst.msk [vmem:[%s180 + $0x3c] sm:$0xf] %vm4574, %v4493
      %4591 = vst.msk [vmem:[%s180 + $0x40] sm:$0xf] %vm4574, %v4494
      %4592 = vst.msk [vmem:[%s180 + $0x44] sm:$0xf] %vm4574, %v4495
      %4593 = vst.msk [vmem:[%s180 + $0x48] sm:$0xf] %vm4574, %v4496
      %4594 = vst.msk [vmem:[%s180 + $0x4c] sm:$0xf] %vm4574, %v4497
      %4595 = vst.msk [vmem:[%s180 + $0x50] sm:$0xf] %vm4574, %v4498
      %4596 = vst.msk [vmem:[%s180 + $0x54] sm:$0xf] %vm4574, %v4499
      %4597 = vst.msk [vmem:[%s180 + $0x58] sm:$0xf] %vm4574, %v4500
      %4598 = vst.msk [vmem:[%s180 + $0x5c] sm:$0xf] %vm4574, %v4501
      %4599 = vst.msk [vmem:[%s180 + $0x60] sm:$0xf] %vm4574, %v4502
      %4600 = vst.msk [vmem:[%s180 + $0x64] sm:$0xf] %vm4574, %v4503
      %4601 = vst.msk [vmem:[%s180 + $0x68] sm:$0xf] %vm4574, %v4504
      %4602 = vst.msk [vmem:[%s180 + $0x6c] sm:$0xf] %vm4574, %v4505
      %4603 = vst.msk [vmem:[%s180 + $0x70] sm:$0xf] %vm4574, %v4506
      %4604 = vst.msk [vmem:[%s180 + $0x74] sm:$0xf] %vm4574, %v4507
      %4605 = vst.msk [vmem:[%s180 + $0x78] sm:$0xf] %vm4574, %v4508
      %4606 = vst.msk [vmem:[%s180 + $0x7c] sm:$0xf] %vm4574, %v4509
      %4607 = vst.msk [vmem:[%s180 + $0x80] sm:$0xf] %vm4574, %v4510
      %4608 = vst.msk [vmem:[%s180 + $0x84] sm:$0xf] %vm4574, %v4511
      %4609 = vst.msk [vmem:[%s180 + $0x88] sm:$0xf] %vm4574, %v4512
      %4610 = vst.msk [vmem:[%s180 + $0x8c] sm:$0xf] %vm4574, %v4513
      %4611 = vst.msk [vmem:[%s180 + $0x90] sm:$0xf] %vm4574, %v4514
      %4612 = vst.msk [vmem:[%s180 + $0x94] sm:$0xf] %vm4574, %v4515
      %4613 = vst.msk [vmem:[%s180 + $0x98] sm:$0xf] %vm4574, %v4516
      %4614 = vst.msk [vmem:[%s180 + $0x9c] sm:$0xf] %vm4574, %v4517
      %4615 = vst.msk [vmem:[%s180 + $0xa0] sm:$0xf] %vm4574, %v4518
      %4616 = vst.msk [vmem:[%s180 + $0xa4] sm:$0xf] %vm4574, %v4519
      %4617 = vst.msk [vmem:[%s180 + $0xa8] sm:$0xf] %vm4574, %v4520
      %4618 = vst.msk [vmem:[%s180 + $0xac] sm:$0xf] %vm4574, %v4521
      %4619 = vst.msk [vmem:[%s180 + $0xb0] sm:$0xf] %vm4574, %v4522
      %4620 = vst.msk [vmem:[%s180 + $0xb4] sm:$0xf] %vm4574, %v4523
      %4621 = vst.msk [vmem:[%s180 + $0xb8] sm:$0xf] %vm4574, %v4524
      %4622 = vst.msk [vmem:[%s180 + $0xbc] sm:$0xf] %vm4574, %v4525
      %p4623 = scmp.lt.s32.totalorder %s17, 1
      %s4624 = scalar_select %p4623, %s17, 1
      %p4625 = scmp.lt.s32.totalorder %s18, 0
      %s4626 = scalar_select %p4625, %s18, 0
      %s4627 = smul.addr %s4624, 48
      %s4628 = sadd.s32 %s4626, %s4627
      %s4629 = smul.addr %s4628, 4
      %s4630 = scalar_lea.vmem %s2, %s4629
      // Predicated region
      $region29: #{_lambda_.4} parent=27 // pred_check
        %p4631 = pneg %p97
      $region30: #{_lambda_.4} parent=27 // pred_check_branch
        %4633 = sbr.rel (%p4631) target = $region32
      $region31: #{_lambda_.4} parent=27 // pred_region
        _
      $region32: #{_lambda_.4} parent=27 // pred_fallthru
        _
    $region28: #{_lambda_.4} parent=5 // pred_fallthru
      _
    %p4634 = scmp.le.s32.totalorder 2, %s8
    // Predicated region
    $region33: #{_lambda_.4} parent=5 // pred_check
      %p4635 = pneg %p4634
    $region34: #{_lambda_.4} parent=5 // pred_check_branch
      %4637 = sbr.rel (%p4635) target = $region36
    $region35: #{_lambda_.4} parent=5 // pred_region
      %s4638 = ssub.s32 %s8, 2
      // Predicated region
      $region37: #{_lambda_.4} parent=35 // pred_check
        %p4639 = pneg %p103
      $region38: #{_lambda_.4} parent=35 // pred_check_branch
        %4641 = sbr.rel (%p4639) target = $region40
      $region39: #{_lambda_.4} parent=35 // pred_region
        %p4642 = scmp.lt.s32.totalorder %s19, 1
        %s4643 = scalar_select %p4642, %s19, 1
        %p4644 = scmp.lt.s32.totalorder %s20, 0
        %s4645 = scalar_select %p4644, %s20, 0
        %s4646 = smul.addr %s4643, 48
        %s4647 = sadd.s32 %s4645, %s4646
        %s4648 = smul.addr %s4647, 4
        %s4649 = scalar_lea.vmem %s2, %s4648
      $region40: #{_lambda_.4} parent=35 // pred_fallthru
        _
    $region36: #{_lambda_.4} parent=5 // pred_fallthru
      _
  $region6: #{_lambda_.4} parent=0 // loop_footer
    %s12 = sadd.s32 1, %s8
  $region7: #{_lambda_.4} parent=0 // loop_footer_branch
    %7 = sbr.rel target = $region3
  $region8: #{_lambda_.4} parent=0 // loop_exit
    _

</llo_original>
